<compile_context>
chip_gen: v6e
topology: v6e:2x2x1
jax: 0.10.0
libtpu: 0.0.40
codegen_flags: <defaults>
</compile_context>

<pallas_src>
import functools
import math

import jax
import jax.numpy as jnp
from jax.experimental import pallas as pl
from jax.experimental.pallas import tpu as pltpu


# --------------------------------------------------------------------------
# Generation-aware VMEM budgeting
# --------------------------------------------------------------------------
def _round_up(x, m):
    return ((x + m - 1) // m) * m


def _vmem_limit_bytes():
    """~75% of physical VMEM (v5e/v6e: 128 MiB -> 96 MiB, v7x: 64 MiB -> 48 MiB)."""
    try:
        cap = int(pltpu.get_tpu_info().vmem_capacity_bytes)
    except Exception:  # unknown backend / CPU: fall back to the scoped default
        return None
    return (cap * 3) // 4


def _compiler_params(dimension_semantics):
    limit = _vmem_limit_bytes()
    if limit is None:
        return pltpu.CompilerParams(dimension_semantics=dimension_semantics)
    return pltpu.CompilerParams(
        dimension_semantics=dimension_semantics, vmem_limit_bytes=limit
    )


# --------------------------------------------------------------------------
# Kernel 1: sample weights + scale-mixture KL partial sums (row-tiled)
# --------------------------------------------------------------------------
def _kl_sample_kernel(mu_ref, rho_ref, eps_ref, klp_ref, w_ref, *,
                      sigma1, sigma2, pi_mixture, vocab, row_tile, needs_mask):
    mu = mu_ref[...]
    rho = rho_ref[...]
    eps = eps_ref[...]

    sigma = jax.nn.softplus(rho) + 1e-5
    w = mu + eps * sigma
    w_ref[...] = w  # sampled table, reused by the lookup kernel (one table, not three)

    # log q(w | mu, sigma): (w - mu)/sigma == eps (no divide); the shared
    # -0.5*log(2*pi) constant cancels against the identical constant in log p(w).
    logq = -jnp.log(sigma) - 0.5 * (eps * eps)

    # log p(w): zero-mean two-component Gaussian scale mixture; logsumexp as
    # max + log1p(exp(min - max)) -> only 2 EUP ops per element.
    # TODO(synk): on v7x (EUP-bound once mem traffic drops) evaluate the
    # exp/log1p pair in bf16 after validating against the KL tolerance.
    w2 = w * w
    a = math.log(pi_mixture / sigma1) - (0.5 / (sigma1 * sigma1)) * w2
    b = math.log((1.0 - pi_mixture) / sigma2) - (0.5 / (sigma2 * sigma2)) * w2
    m = jnp.maximum(a, b)
    logp = m + jnp.log1p(jnp.exp(jnp.minimum(a, b) - m))

    contrib = logq - logp
    if needs_mask:
        # vocab is not a multiple of the row tile: zero rows past the table end.
        row = (pl.program_id(0) * row_tile
               + jax.lax.broadcasted_iota(jnp.int32, (row_tile, 1), 0))
        contrib = jnp.where(row < vocab, contrib, 0.0)

    # (8, D) partial sums per tile: unmasked sublane-aligned store; the tiny
    # (grid*8, D) array is reduced with one jnp.sum outside the kernel.
    klp_ref[...] = jnp.sum(
        contrib.reshape(row_tile // 8, 8, contrib.shape[-1]), axis=0
    )


def _pick_row_tile(vocab, dim):
    limit = _vmem_limit_bytes() or (16 * 1024 * 1024)
    # Double-buffered working set per grid step: 3 f32 inputs + 1 f32 w output;
    # keep it under ~1/3 of the limit to leave room for in-kernel temporaries.
    per_row_bytes = (3 + 1) * 2 * dim * 4
    max_rows = max(8, (limit // 3) // per_row_bytes)
    tr = 8
    for cand in (2048, 1024, 512, 256, 128, 64, 32, 16, 8):
        if cand <= max_rows:
            tr = cand
            break
    return min(tr, _round_up(vocab, 8))


def sample_weights_and_kl(mu, rho, eps, *, sigma1, sigma2, pi_mixture):
    """Returns (kl_scalar, sampled_weight_table)."""
    vocab, dim = mu.shape
    tr = _pick_row_tile(vocab, dim)
    grid = pl.cdiv(vocab, tr)
    needs_mask = (vocab % tr) != 0

    kernel = functools.partial(
        _kl_sample_kernel,
        sigma1=float(sigma1), sigma2=float(sigma2), pi_mixture=float(pi_mixture),
        vocab=vocab, row_tile=tr, needs_mask=needs_mask,
    )
    partials, w = pl.pallas_call(
        kernel,
        out_shape=(
            jax.ShapeDtypeStruct((grid * 8, dim), jnp.float32),
            jax.ShapeDtypeStruct((vocab, dim), jnp.float32),
        ),
        grid_spec=pltpu.PrefetchScalarGridSpec(
            num_scalar_prefetch=0,
            grid=(grid,),
            in_specs=[
                pl.BlockSpec((tr, dim), lambda i: (i, 0)),
                pl.BlockSpec((tr, dim), lambda i: (i, 0)),
                pl.BlockSpec((tr, dim), lambda i: (i, 0)),
            ],
            out_specs=(
                pl.BlockSpec((8, dim), lambda i: (i, 0)),
                pl.BlockSpec((tr, dim), lambda i: (i, 0)),
            ),
        ),
        compiler_params=_compiler_params(("parallel",)),
    )(mu, rho, eps)
    # Tiny (grid*8, D) final reduction outside the kernel (keeps the grid axis
    # carry-free so it can shard across v7x's two TensorCores).
    return jnp.sum(partials), w


# --------------------------------------------------------------------------
# Kernel 2: token-tiled lookup via one-hot MXU gather on the sampled table
# --------------------------------------------------------------------------
def _lookup_kernel(ids_ref, w_ref, out_ref):
    ids = ids_ref[...]                       # (tok_tile, 1) int32
    tok = ids.shape[0]
    vocab = w_ref.shape[0]
    # Vectorized row gather: one-hot (tok, V) x resident table (V, D) on the
    # MXU. Exact (0/1 one-hot, f32 table, HIGHEST precision); out-of-range or
    # padding ids match no column -> zero row, and can never read OOB.
    one_hot = (ids == jax.lax.broadcasted_iota(jnp.int32, (tok, vocab), 1)
               ).astype(jnp.float32)
    out_ref[...] = jnp.dot(one_hot, w_ref[...],
                           preferred_element_type=jnp.float32,
                           precision=jax.lax.Precision.HIGHEST)


def embedding_lookup(ids_flat, w):
    vocab, dim = w.shape
    num_tokens = int(ids_flat.shape[0])
    limit = _vmem_limit_bytes() or (16 * 1024 * 1024)

    tok_tile = 128 if num_tokens >= 128 else _round_up(max(num_tokens, 1), 8)
    resident_bytes = (
        2 * vocab * dim * 4        # w table (pipeline allocates 2 buffers;
                                   #  pipeline_mode=pl.Buffered(1) would halve this)
        + tok_tile * vocab * 4     # in-kernel one-hot block
        + 2 * tok_tile * dim * 4   # output tile (double-buffered)
    )
    if resident_bytes > (limit * 3) // 5:
        # TODO(synk): large-vocab path — keep w in HBM (memory_space=pl.ANY) and
        # do a manually double-buffered per-row make_async_copy gather; until
        # then fall back to a plain XLA gather so big vocabs remain usable.
        return jnp.take(w, ids_flat.astype(jnp.int32), axis=0)

    t_pad = _round_up(num_tokens, tok_tile)
    ids2d = jnp.pad(ids_flat.astype(jnp.int32), (0, t_pad - num_tokens)
                    ).reshape(t_pad, 1)
    grid = t_pad // tok_tile

    out = pl.pallas_call(
        _lookup_kernel,
        out_shape=jax.ShapeDtypeStruct((t_pad, dim), jnp.float32),
        grid_spec=pltpu.PrefetchScalarGridSpec(
            num_scalar_prefetch=0,
            grid=(grid,),
            in_specs=[
                # ids are a per-tile blocked input (bounded footprint), not a
                # whole-stream scalar-prefetch array.
                pl.BlockSpec((tok_tile, 1), lambda i: (i, 0)),
                # Constant block index -> sampled table stays VMEM-resident.
                pl.BlockSpec((vocab, dim), lambda i: (0, 0)),
            ],
            out_specs=pl.BlockSpec((tok_tile, dim), lambda i: (i, 0)),
        ),
        compiler_params=_compiler_params(("parallel",)),
    )(ids2d, w)
    return out[:num_tokens]


# --------------------------------------------------------------------------
# Module-equivalent wrapper
# --------------------------------------------------------------------------
class Prior:
    def __init__(self, sigma1=0.5, sigma2=0.05, pi_mixture=0.25):
        self.sigma1 = sigma1
        self.sigma2 = sigma2
        self.pi_mixture = pi_mixture
        self.sigma_mix = pi_mixture * sigma1 + (1.0 - pi_mixture) * sigma2

    def normal_init(self):
        rho_max = math.log(math.exp(self.sigma_mix / 2.0) - 1.0)
        rho_min = math.log(math.exp(self.sigma_mix / 4.0) - 1.0)
        return rho_min, rho_max


def init_bayes_embedding(key, num_embeddings, embedding_dim, prior, init_scale):
    rho_min, rho_max = prior.normal_init()
    k_mu, k_rho = jax.random.split(key)
    mu = jax.random.uniform(
        k_mu, (num_embeddings, embedding_dim), jnp.float32, -init_scale, init_scale
    )
    rho = jax.random.uniform(
        k_rho, (num_embeddings, embedding_dim), jnp.float32, rho_min, rho_max
    )
    return mu, rho


def bayes_embedding_forward(ids, mu, rho, eps, prior):
    """ids: int32 (B, S) -> (out: (B, S, D) f32, kl: scalar f32)."""
    # TODO(synk): generate eps with pltpu.prng_seed/stateful_normal inside
    # kernel 1 (drops the eps HBM stream); kept external here so the exact
    # analytic reference below stays checkable.
    kl, w = sample_weights_and_kl(
        mu, rho, eps,
        sigma1=prior.sigma1, sigma2=prior.sigma2, pi_mixture=prior.pi_mixture,
    )
    batch, seq = ids.shape
    out_flat = embedding_lookup(ids.reshape(-1), w)
    return out_flat.reshape(batch, seq, w.shape[1]), kl


# --------------------------------------------------------------------------
# Pure-JAX reference for correctness checking
# --------------------------------------------------------------------------
def reference_forward(ids, mu, rho, eps, prior):
    sigma = jax.nn.softplus(rho) + 1e-5
    w = mu + eps * sigma
    logq = jnp.sum(
        -0.5 * math.log(2 * math.pi) - jnp.log(sigma) - 0.5 * ((w - mu) / sigma) ** 2
    )

    def gauss_logpdf(x, s):
        return -0.5 * math.log(2 * math.pi) - math.log(s) - 0.5 * (x / s) ** 2

    logp = jnp.sum(
        jnp.logaddexp(
            gauss_logpdf(w, prior.sigma1) + math.log(prior.pi_mixture),
            gauss_logpdf(w, prior.sigma2) + math.log(1.0 - prior.pi_mixture),
        )
    )
    return w[ids], logq - logp


if __name__ == "__main__":
    num_embeddings = 4096     # -> KL grid of 2 tiles at TR=2048, D=128
    embedding_dim = 128
    batch, seq = 2, 8
    init_scale = 0.05

    prior = Prior(sigma1=0.5, sigma2=0.05, pi_mixture=0.25)

    key = jax.random.PRNGKey(0)
    k_param, k_eps, k_ids = jax.random.split(key, 3)

    mu, rho = init_bayes_embedding(k_param, num_embeddings, embedding_dim, prior, init_scale)
    # eps is the per-forward Gaussian sample (torch.randn in the original module),
    # drawn deterministically here so kernel and reference agree exactly.
    eps = jax.random.normal(k_eps, (num_embeddings, embedding_dim), jnp.float32)
    ids = jax.random.randint(k_ids, (batch, seq), 0, num_embeddings, dtype=jnp.int32)

    out, kl = bayes_embedding_forward(ids, mu, rho, eps, prior)
    out = jax.block_until_ready(out)
    kl = jax.block_until_ready(kl)

    out_ref, kl_ref = reference_forward(ids, mu, rho, eps, prior)

    assert out.shape == (batch, seq, embedding_dim)
    assert bool(jnp.allclose(out, out_ref, atol=1e-5, rtol=1e-5)), "embedding output mismatch"
    assert bool(jnp.allclose(kl, kl_ref, atol=1e-2, rtol=1e-3)), "KL mismatch"

    print("KERNEL_OK")
</pallas_src>

<mosaic_0001>
module attributes {stable_mosaic.version = 11 : i64} {
  func.func @_kl_sample_kernel(%arg0: i32, %arg1: memref<1024x128xf32, #tpu.memory_space<vmem>>, %arg2: memref<1024x128xf32, #tpu.memory_space<vmem>>, %arg3: memref<1024x128xf32, #tpu.memory_space<vmem>>, %arg4: memref<8x128xf32, #tpu.memory_space<vmem>>, %arg5: memref<1024x128xf32, #tpu.memory_space<vmem>>) attributes {dimension_semantics = [#tpu.dimension_semantics<parallel>], iteration_bounds = array<i64: 4>, scalar_prefetch = 0 : i64, scratch_operands = 0 : i64, tpu.core_type = #tpu.core_type<tc>, window_params = [{transform_indices = @transform_0, window_bounds = array<i64: 1024, 128>}, {transform_indices = @transform_1, window_bounds = array<i64: 1024, 128>}, {transform_indices = @transform_2, window_bounds = array<i64: 1024, 128>}, {transform_indices = @transform_3, window_bounds = array<i64: 8, 128>}, {transform_indices = @transform_4, window_bounds = array<i64: 1024, 128>}]} {
    %c0 = arith.constant 0 : index
    %c0_0 = arith.constant 0 : index
    %0 = vector.load %arg1[%c0, %c0_0] : memref<1024x128xf32, #tpu.memory_space<vmem>>, vector<1024x128xf32>
    %c0_1 = arith.constant 0 : index
    %c0_2 = arith.constant 0 : index
    %1 = vector.load %arg2[%c0_1, %c0_2] : memref<1024x128xf32, #tpu.memory_space<vmem>>, vector<1024x128xf32>
    %c0_3 = arith.constant 0 : index
    %c0_4 = arith.constant 0 : index
    %2 = vector.load %arg3[%c0_3, %c0_4] : memref<1024x128xf32, #tpu.memory_space<vmem>>, vector<1024x128xf32>
    %cst = arith.constant 0.000000e+00 : f32
    %3 = vector.broadcast %cst : f32 to vector<1024x128xf32>
    %4 = arith.maximumf %1, %3 : vector<1024x128xf32>
    %5 = vector.broadcast %cst : f32 to vector<1024x128xf32>
    %6 = arith.subf %1, %5 : vector<1024x128xf32>
    %7 = arith.cmpf one, %6, %6 : vector<1024x128xf32>
    %8 = vector.broadcast %cst : f32 to vector<1024x128xf32>
    %9 = arith.addf %1, %8 : vector<1024x128xf32>
    %10 = math.absf %6 : vector<1024x128xf32>
    %cst_5 = arith.constant 0.000000e+00 : f32
    %11 = vector.broadcast %cst_5 : f32 to vector<1024x128xf32>
    %12 = arith.subf %11, %10 : vector<1024x128xf32>
    %13 = math.exp %12 : vector<1024x128xf32>
    %14 = math.log1p %13 : vector<1024x128xf32>
    %15 = arith.addf %4, %14 : vector<1024x128xf32>
    %16 = arith.select %7, %9, %15 : vector<1024x128xi1>, vector<1024x128xf32>
    %cst_6 = arith.constant 9.99999974E-6 : f32
    %17 = vector.broadcast %cst_6 : f32 to vector<1024x128xf32>
    %18 = arith.addf %16, %17 : vector<1024x128xf32>
    %19 = arith.mulf %2, %18 : vector<1024x128xf32>
    %20 = arith.addf %0, %19 : vector<1024x128xf32>
    %c0_7 = arith.constant 0 : index
    %c0_8 = arith.constant 0 : index
    %21 = vector.load %arg5[%c0_7, %c0_8] : memref<1024x128xf32, #tpu.memory_space<vmem>>, vector<1024x128xf32>
    tpu.vector_store %arg5[%c0_7, %c0_8], %20 {strides = array<i32>} : memref<1024x128xf32, #tpu.memory_space<vmem>>, vector<1024x128xf32>,
    %22 = math.log %18 : vector<1024x128xf32>
    %cst_9 = arith.constant 0.000000e+00 : f32
    %23 = vector.broadcast %cst_9 : f32 to vector<1024x128xf32>
    %24 = arith.subf %23, %22 : vector<1024x128xf32>
    %25 = arith.mulf %2, %2 : vector<1024x128xf32>
    %cst_10 = arith.constant 5.000000e-01 : f32
    %26 = vector.broadcast %cst_10 : f32 to vector<1024x128xf32>
    %27 = arith.mulf %26, %25 : vector<1024x128xf32>
    %28 = arith.subf %24, %27 : vector<1024x128xf32>
    %29 = arith.mulf %20, %20 : vector<1024x128xf32>
    %cst_11 = arith.constant 2.000000e+00 : f32
    %30 = vector.broadcast %cst_11 : f32 to vector<1024x128xf32>
    %31 = arith.mulf %30, %29 : vector<1024x128xf32>
    %cst_12 = arith.constant -0.693147182 : f32
    %32 = vector.broadcast %cst_12 : f32 to vector<1024x128xf32>
    %33 = arith.subf %32, %31 : vector<1024x128xf32>
    %cst_13 = arith.constant 2.000000e+02 : f32
    %34 = vector.broadcast %cst_13 : f32 to vector<1024x128xf32>
    %35 = arith.mulf %34, %29 : vector<1024x128xf32>
    %cst_14 = arith.constant 2.70805025 : f32
    %36 = vector.broadcast %cst_14 : f32 to vector<1024x128xf32>
    %37 = arith.subf %36, %35 : vector<1024x128xf32>
    %38 = arith.maximumf %33, %37 : vector<1024x128xf32>
    %39 = arith.minimumf %33, %37 : vector<1024x128xf32>
    %40 = arith.subf %39, %38 : vector<1024x128xf32>
    %41 = math.exp %40 : vector<1024x128xf32>
    %42 = math.log1p %41 : vector<1024x128xf32>
    %43 = arith.addf %38, %42 : vector<1024x128xf32>
    %44 = arith.subf %28, %43 : vector<1024x128xf32>
    %45 = vector.shape_cast %44 : vector<1024x128xf32> to vector<128x8x128xf32>
    %cst_15 = arith.constant dense<0.000000e+00> : vector<8x128xf32>
    %46 = vector.multi_reduction <add>, %45, %cst_15 [0] : vector<128x8x128xf32> to vector<8x128xf32>
    %c0_16 = arith.constant 0 : index
    %c0_17 = arith.constant 0 : index
    %47 = vector.load %arg4[%c0_16, %c0_17] : memref<8x128xf32, #tpu.memory_space<vmem>>, vector<8x128xf32>
    tpu.vector_store %arg4[%c0_16, %c0_17], %46 {strides = array<i32>} : memref<8x128xf32, #tpu.memory_space<vmem>>, vector<8x128xf32>,
    return
  }
  func.func @transform_0(%arg0: i32) -> (i32, i32) {
    %c0_i32 = arith.constant 0 : i32
    %c0_i32_0 = arith.constant 0 : i32
    return %arg0, %c0_i32 : i32, i32
  }
  func.func @transform_1(%arg0: i32) -> (i32, i32) {
    %c0_i32 = arith.constant 0 : i32
    %c0_i32_0 = arith.constant 0 : i32
    return %arg0, %c0_i32 : i32, i32
  }
  func.func @transform_2(%arg0: i32) -> (i32, i32) {
    %c0_i32 = arith.constant 0 : i32
    %c0_i32_0 = arith.constant 0 : i32
    return %arg0, %c0_i32 : i32, i32
  }
  func.func @transform_3(%arg0: i32) -> (i32, i32) {
    %c0_i32 = arith.constant 0 : i32
    %c0_i32_0 = arith.constant 0 : i32
    return %arg0, %c0_i32 : i32, i32
  }
  func.func @transform_4(%arg0: i32) -> (i32, i32) {
    %c0_i32 = arith.constant 0 : i32
    %c0_i32_0 = arith.constant 0 : i32
    return %arg0, %c0_i32 : i32, i32
  }
}

</mosaic_0001>

<llo_original>
// kernel: tpu_custom_call.1
$region0: #{tpu_custom_call.1}
  #allocation0 [shape = 'u32[]', space=smem, size = 0x4, offset = 0x4, fixed_abs, tag = 'smem constant byte address 0x4 - core index']
  #allocation1 [shape = 'u32[144,128]{1,0:T(1,128)}', space=vmem, size = 0x12000, scoped, tag = 'internal scratch']
  %s0 = inlined_call_operand.hbm [shape: f32[4096,128], index: 0, kind: input, shape index: {}]
  %s1 = inlined_call_operand.hbm [shape: f32[4096,128], index: 1, kind: input, shape index: {}]
  %s2 = inlined_call_operand.hbm [shape: f32[4096,128], index: 2, kind: input, shape index: {}]
  %s3 = inlined_call_operand.hbm [shape: f32[32,128], index: 3, kind: output, shape index: {0}]
  %s4 = inlined_call_operand.hbm [shape: f32[4096,128], index: 4, kind: output, shape index: {1}]
  %5 = xla_tuple %s3, %s4
  %s6 = sld [smem:[#allocation0]]
  $region65: #{tpu_custom_call.1} parent=0
    _
  %s8 = ssub.s32 1, %s6
  %s9 = scalar_select 0, %s8, %s6
  $region1: #{tpu_custom_call.1} parent=0
    #allocation2 [shape = 'u8[1048576]{0}', space=vmem, size = 0x100000, scoped, tag = 'input window, operand 0']
    #allocation3 [shape = 's32[2]{0}', space=sflag, size = 0x8, scoped, tag = 'scoped memory for tpu_custom_call.1']
    #allocation4 [shape = 's32[2]{0}', space=sflag, size = 0x8, scoped, tag = 'scoped memory for tpu_custom_call.1']
    #allocation5 [shape = 'u8[1048576]{0}', space=vmem, size = 0x100000, scoped, tag = 'input window, operand 1']
    #allocation6 [shape = 's32[2]{0}', space=sflag, size = 0x8, scoped, tag = 'scoped memory for tpu_custom_call.1']
    #allocation7 [shape = 'u8[1048576]{0}', space=vmem, size = 0x100000, scoped, tag = 'input window, operand 2']
    #allocation8 [shape = 'u8[8192]{0}', space=vmem, size = 0x2000, scoped, tag = 'output window, operand 0']
    #allocation9 [shape = 'u8[1048576]{0}', space=vmem, size = 0x100000, scoped, tag = 'output window, operand 1']
    #allocation10 [shape = 's32[2]{0}', space=sflag, size = 0x8, scoped, tag = 'scoped memory for tpu_custom_call.1']
    %10 = vsyncpa [#allocation3], 0
    %s11 = scalar_lea.sflag [#allocation3], 1
    %12 = vsyncpa %s11, 0
    %13 = vsyncpa [#allocation6], 0
    %s14 = scalar_lea.sflag [#allocation6], 1
    %15 = vsyncpa %s14, 0
    %16 = vsyncpa [#allocation4], 0
    %s17 = scalar_lea.sflag [#allocation4], 1
    %18 = vsyncpa %s17, 0
    %19 = vsyncpa [#allocation10], 0
    %s20 = scalar_lea.sflag [#allocation10], 1
    %21 = vsyncpa %s20, 0
    loop: start=0, step=1, limit=6
    $region2: #{tpu_custom_call.1} parent=1 // loop_pre_header
      _
    $region3: #{tpu_custom_call.1} parent=1 // loop_header
      %s23 = sphi 0, %s27
      %p24 = scmp.ge.s32.totalorder %s23, 6
      %s33 = sphi 0, %s35
      %s36 = sphi 0, %s33
      %s37 = sphi 0, %s36
      %s53 = sphi 0, %s37
      %s59 = sphi 0, %s61
      %s62 = sphi 0, %s59
      %s63 = sphi 0, %s62
      %s79 = sphi 0, %s63
      %s85 = sphi 0, %s87
      %s88 = sphi 0, %s85
      %s89 = sphi 0, %s88
      %s105 = sphi 0, %s89
      %s111 = sphi 0, %s113
      %s114 = sphi 0, %s111
      %s115 = sphi 0, %s114
      %s131 = sphi 0, %s115
      %s137 = sphi 0, %s139
      %s140 = sphi 0, %s137
      %s141 = sphi 0, %s140
      %s157 = sphi 0, %s141
    $region4: #{tpu_custom_call.1} parent=1 // loop_header_branch
      %26 = sbr.rel (%p24) target = $region8
    $region5: #{tpu_custom_call.1} parent=1 // loop_body
      %s28 = ssub.s32 %s23, 1
      %s29 = ssub.s32 %s23, 2
      %s30 = sadd.s32 %s23, 1
      %s31 = ssub.s32 %s23, %s30
      %p32 = scmp.eq.s32.totalorder %s31, 0
      %s34 = sadd.s32 %s33, 1
      %s35 = scalar_select %p32, %s33, %s34
      %p38 = pneg %p32
      %p39 = scmp.eq.s32.totalorder %s23, 3
      %p40 = por %p38, %p39
      %p41 = scmp.ne.s32.totalorder %s33, %s36
      %p42 = scmp.eq.s32.totalorder %s23, 0
      %p43 = por %p41, %p42
      %p44 = scmp.ne.s32.totalorder %s33, %s36
      %p45 = scmp.eq.s32.totalorder %s28, 3
      %p46 = por %p44, %p45
      %p47 = scmp.ne.s32.totalorder %s36, %s37
      %p48 = scmp.eq.s32.totalorder %s28, 0
      %p49 = por %p47, %p48
      %p50 = scmp.ne.s32.totalorder %s36, %s37
      %p51 = scmp.eq.s32.totalorder %s29, 3
      %p52 = por %p50, %p51
      %p54 = scmp.ne.s32.totalorder %s37, %s53
      %p55 = scmp.eq.s32.totalorder %s29, 0
      %p56 = por %p54, %p55
      %s57 = ssub.s32 %s23, %s30
      %p58 = scmp.eq.s32.totalorder %s57, 0
      %s60 = sadd.s32 %s59, 1
      %s61 = scalar_select %p58, %s59, %s60
      %p64 = pneg %p58
      %p65 = scmp.eq.s32.totalorder %s23, 3
      %p66 = por %p64, %p65
      %p67 = scmp.ne.s32.totalorder %s59, %s62
      %p68 = scmp.eq.s32.totalorder %s23, 0
      %p69 = por %p67, %p68
      %p70 = scmp.ne.s32.totalorder %s59, %s62
      %p71 = scmp.eq.s32.totalorder %s28, 3
      %p72 = por %p70, %p71
      %p73 = scmp.ne.s32.totalorder %s62, %s63
      %p74 = scmp.eq.s32.totalorder %s28, 0
      %p75 = por %p73, %p74
      %p76 = scmp.ne.s32.totalorder %s62, %s63
      %p77 = scmp.eq.s32.totalorder %s29, 3
      %p78 = por %p76, %p77
      %p80 = scmp.ne.s32.totalorder %s63, %s79
      %p81 = scmp.eq.s32.totalorder %s29, 0
      %p82 = por %p80, %p81
      %s83 = ssub.s32 %s23, %s30
      %p84 = scmp.eq.s32.totalorder %s83, 0
      %s86 = sadd.s32 %s85, 1
      %s87 = scalar_select %p84, %s85, %s86
      %p90 = pneg %p84
      %p91 = scmp.eq.s32.totalorder %s23, 3
      %p92 = por %p90, %p91
      %p93 = scmp.ne.s32.totalorder %s85, %s88
      %p94 = scmp.eq.s32.totalorder %s23, 0
      %p95 = por %p93, %p94
      %p96 = scmp.ne.s32.totalorder %s85, %s88
      %p97 = scmp.eq.s32.totalorder %s28, 3
      %p98 = por %p96, %p97
      %p99 = scmp.ne.s32.totalorder %s88, %s89
      %p100 = scmp.eq.s32.totalorder %s28, 0
      %p101 = por %p99, %p100
      %p102 = scmp.ne.s32.totalorder %s88, %s89
      %p103 = scmp.eq.s32.totalorder %s29, 3
      %p104 = por %p102, %p103
      %p106 = scmp.ne.s32.totalorder %s89, %s105
      %p107 = scmp.eq.s32.totalorder %s29, 0
      %p108 = por %p106, %p107
      %s109 = ssub.s32 %s23, %s30
      %p110 = scmp.eq.s32.totalorder %s109, 0
      %s112 = sadd.s32 %s111, 1
      %s113 = scalar_select %p110, %s111, %s112
      %p116 = pneg %p110
      %p117 = scmp.eq.s32.totalorder %s23, 3
      %p118 = por %p116, %p117
      %p119 = scmp.ne.s32.totalorder %s111, %s114
      %p120 = scmp.eq.s32.totalorder %s23, 0
      %p121 = por %p119, %p120
      %p122 = scmp.ne.s32.totalorder %s111, %s114
      %p123 = scmp.eq.s32.totalorder %s28, 3
      %p124 = por %p122, %p123
      %p125 = scmp.ne.s32.totalorder %s114, %s115
      %p126 = scmp.eq.s32.totalorder %s28, 0
      %p127 = por %p125, %p126
      %p128 = scmp.ne.s32.totalorder %s114, %s115
      %p129 = scmp.eq.s32.totalorder %s29, 3
      %p130 = por %p128, %p129
      %p132 = scmp.ne.s32.totalorder %s115, %s131
      %p133 = scmp.eq.s32.totalorder %s29, 0
      %p134 = por %p132, %p133
      %s135 = ssub.s32 %s23, %s30
      %p136 = scmp.eq.s32.totalorder %s135, 0
      %s138 = sadd.s32 %s137, 1
      %s139 = scalar_select %p136, %s137, %s138
      %p142 = pneg %p136
      %p143 = scmp.eq.s32.totalorder %s23, 3
      %p144 = por %p142, %p143
      %p145 = scmp.ne.s32.totalorder %s137, %s140
      %p146 = scmp.eq.s32.totalorder %s23, 0
      %p147 = por %p145, %p146
      %p148 = scmp.ne.s32.totalorder %s137, %s140
      %p149 = scmp.eq.s32.totalorder %s28, 3
      %p150 = por %p148, %p149
      %p151 = scmp.ne.s32.totalorder %s140, %s141
      %p152 = scmp.eq.s32.totalorder %s28, 0
      %p153 = por %p151, %p152
      %p154 = scmp.ne.s32.totalorder %s140, %s141
      %p155 = scmp.eq.s32.totalorder %s29, 3
      %p156 = por %p154, %p155
      %p158 = scmp.ne.s32.totalorder %s141, %s157
      %p159 = scmp.eq.s32.totalorder %s29, 0
      %p160 = por %p158, %p159
      %p161 = scmp.le.s32.totalorder 1, %s23
      %p162 = scmp.lt.s32.totalorder %s23, 5
      %p163 = pnand %p161, %p162
      %p164 = pneg %p163
      // Predicated region
      $region9: #{tpu_custom_call.1} parent=5 // pred_check
        _
      $region10: #{tpu_custom_call.1} parent=5 // pred_check_branch
        %166 = sbr.rel (%p163) target = $region12
      $region11: #{tpu_custom_call.1} parent=5 // pred_region
        %s167 = ssub.s32 %s23, 1
      $region12: #{tpu_custom_call.1} parent=5 // pred_fallthru
        _
      %p168 = scmp.lt.s32.totalorder %s23, 4
      // Predicated region
      $region13: #{tpu_custom_call.1} parent=5 // pred_check
        %p169 = pneg %p168
      $region14: #{tpu_custom_call.1} parent=5 // pred_check_branch
        %171 = sbr.rel (%p169) target = $region16
      $region15: #{tpu_custom_call.1} parent=5 // pred_region
        // Predicated region
        $region17: #{tpu_custom_call.1} parent=15 // pred_check
          %p172 = pneg %p43
        $region18: #{tpu_custom_call.1} parent=15 // pred_check_branch
          %174 = sbr.rel (%p172) target = $region20
        $region19: #{tpu_custom_call.1} parent=15 // pred_region
          %s175 = sand.u32 %s33, 1
          %s176 = scalar_lea.sflag [#allocation3], %s175
          %s177 = sand.u32 %s33, 1
          %s178 = smul.addr %s177, 1024
          %s179 = scalar_lea.vmem [#allocation2], %s178
          %s180 = smul.u32 128, %s23
          %s182 = ssub.s32 16384, 16384
          %183 = vsyncadd %s176, %s182
          %s184 = smul.addr %s180, 128
          %s185 = scalar_lea.hbm %s0, %s184
          %s186 = sshll.u32 %s179, 4
          %s187 = int_to_ptr.vmem [resolvable:$true] %s186
          %192 = dma.hbm_to_vmem [thread:$0]  %s185, 16384, %s187, %s176, 128, 128, 8
        $region20: #{tpu_custom_call.1} parent=15 // pred_fallthru
          _
        // Predicated region
        $region21: #{tpu_custom_call.1} parent=15 // pred_check
          %p193 = pneg %p69
        $region22: #{tpu_custom_call.1} parent=15 // pred_check_branch
          %195 = sbr.rel (%p193) target = $region24
        $region23: #{tpu_custom_call.1} parent=15 // pred_region
          %s196 = sand.u32 %s23, 1
          %s197 = scalar_lea.sflag [#allocation6], %s196
          %s198 = sand.u32 %s59, 1
          %s199 = smul.addr %s198, 1024
          %s200 = scalar_lea.vmem [#allocation5], %s199
          %s201 = smul.u32 128, %s23
          %s203 = ssub.s32 16384, 16384
          %204 = vsyncadd %s197, %s203
          %s205 = smul.addr %s201, 128
          %s206 = scalar_lea.hbm %s1, %s205
          %s207 = sshll.u32 %s200, 4
          %s208 = int_to_ptr.vmem [resolvable:$true] %s207
          %213 = dma.hbm_to_vmem [thread:$0]  %s206, 16384, %s208, %s197, 128, 128, 8
        $region24: #{tpu_custom_call.1} parent=15 // pred_fallthru
          _
        // Predicated region
        $region25: #{tpu_custom_call.1} parent=15 // pred_check
          %p214 = pneg %p95
        $region26: #{tpu_custom_call.1} parent=15 // pred_check_branch
          %216 = sbr.rel (%p214) target = $region28
        $region27: #{tpu_custom_call.1} parent=15 // pred_region
          %s217 = sand.u32 %s23, 1
          %s218 = scalar_lea.sflag [#allocation6], %s217
          %s219 = sand.u32 %s85, 1
          %s220 = smul.addr %s219, 1024
          %s221 = scalar_lea.vmem [#allocation7], %s220
          %s222 = smul.u32 128, %s23
          %s224 = ssub.s32 16384, 16384
          %225 = vsyncadd %s218, %s224
          %s226 = smul.addr %s222, 128
          %s227 = scalar_lea.hbm %s2, %s226
          %s228 = sshll.u32 %s221, 4
          %s229 = int_to_ptr.vmem [resolvable:$true] %s228
          %234 = dma.hbm_to_vmem [thread:$0]  %s227, 16384, %s229, %s218, 128, 128, 8
        $region28: #{tpu_custom_call.1} parent=15 // pred_fallthru
          _
      $region16: #{tpu_custom_call.1} parent=5 // pred_fallthru
        _
      %p235 = scmp.le.s32.totalorder 1, %s23
      %p236 = scmp.lt.s32.totalorder %s23, 5
      %p237 = pnand %p235, %p236
      %p238 = pneg %p237
      // Predicated region
      $region29: #{tpu_custom_call.1} parent=5 // pred_check
        _
      $region30: #{tpu_custom_call.1} parent=5 // pred_check_branch
        %240 = sbr.rel (%p237) target = $region32
      $region31: #{tpu_custom_call.1} parent=5 // pred_region
        %s241 = ssub.s32 %s23, 1
        %s242 = sand.u32 %s36, 1
        %s243 = scalar_lea.sflag [#allocation3], %s242
        %s244 = sand.u32 %s36, 1
        %s245 = smul.addr %s244, 1024
        %s246 = scalar_lea.vmem [#allocation2], %s245
        // Predicated region
        $region33: #{tpu_custom_call.1} parent=31 // pred_check
          %p247 = pneg %p49
        $region34: #{tpu_custom_call.1} parent=31 // pred_check_branch
          %249 = sbr.rel (%p247) target = $region36
        $region35: #{tpu_custom_call.1} parent=31 // pred_region
          %250 = dma.done %s243, 16384
        $region36: #{tpu_custom_call.1} parent=31 // pred_fallthru
          _
        %s251 = sand.u32 %s28, 1
        %s252 = scalar_lea.sflag [#allocation6], %s251
        %s253 = sand.u32 %s62, 1
        %s254 = smul.addr %s253, 1024
        %s255 = scalar_lea.vmem [#allocation5], %s254
        // Predicated region
        $region37: #{tpu_custom_call.1} parent=31 // pred_check
          %p256 = pneg %p75
        $region38: #{tpu_custom_call.1} parent=31 // pred_check_branch
          %258 = sbr.rel (%p256) target = $region40
        $region39: #{tpu_custom_call.1} parent=31 // pred_region
          %259 = dma.done %s252, 16384
        $region40: #{tpu_custom_call.1} parent=31 // pred_fallthru
          _
        %s260 = sand.u32 %s28, 1
        %s261 = scalar_lea.sflag [#allocation6], %s260
        %s262 = sand.u32 %s88, 1
        %s263 = smul.addr %s262, 1024
        %s264 = scalar_lea.vmem [#allocation7], %s263
        // Predicated region
        $region41: #{tpu_custom_call.1} parent=31 // pred_check
          %p265 = pneg %p101
        $region42: #{tpu_custom_call.1} parent=31 // pred_check_branch
          %267 = sbr.rel (%p265) target = $region44
        $region43: #{tpu_custom_call.1} parent=31 // pred_region
          %268 = dma.done %s261, 16384
        $region44: #{tpu_custom_call.1} parent=31 // pred_fallthru
          _
        %s269 = sand.u32 %s36, 1
        %s270 = scalar_lea.sflag [#allocation3], %s269
        %s271 = sand.u32 %s36, 1
        %s272 = smul.addr %s271, 1024
        %s273 = scalar_lea.vmem [#allocation2], %s272
        %p274 = pneg %p49
        %p275 = pneg %p46
        %s276 = sand.u32 %s28, 1
        %s277 = scalar_lea.sflag [#allocation6], %s276
        %s278 = sand.u32 %s62, 1
        %s279 = smul.addr %s278, 1024
        %s280 = scalar_lea.vmem [#allocation5], %s279
        %p281 = pneg %p75
        %p282 = pneg %p72
        %s283 = sand.u32 %s28, 1
        %s284 = scalar_lea.sflag [#allocation6], %s283
        %s285 = sand.u32 %s88, 1
        %s286 = smul.addr %s285, 1024
        %s287 = scalar_lea.vmem [#allocation7], %s286
        %p288 = pneg %p101
        %p289 = pneg %p98
        %p290 = pneg %p127
        %p291 = pneg %p124
        %s292 = sand.u32 %s114, 1
        %s293 = scalar_lea.sflag [#allocation4], %s292
        %s294 = sand.u32 %s114, 1
        %s295 = smul.addr %s294, 8
        %s296 = scalar_lea.vmem [#allocation8], %s295
        %p297 = pneg %p153
        %p298 = pneg %p150
        %s299 = sand.u32 %s140, 1
        %s300 = scalar_lea.sflag [#allocation10], %s299
        %s301 = sand.u32 %s140, 1
        %s302 = smul.addr %s301, 1024
        %s303 = scalar_lea.vmem [#allocation9], %s302
        %s304 = smul.u32 128, %s28
        %s305 = smul.u32 128, %s28
        %s306 = smul.u32 128, %s28
        %s307 = smul.u32 128, %s28
        %v308 = vld [vmem:[%s246] sm:$0xff]
        %v309 = vld [vmem:[%s246 + $0x8] sm:$0xff]
        %v310 = vld [vmem:[%s246 + $0x10] sm:$0xff]
        %v311 = vld [vmem:[%s246 + $0x18] sm:$0xff]
        %v312 = vld [vmem:[%s246 + $0x20] sm:$0xff]
        %v313 = vld [vmem:[%s246 + $0x28] sm:$0xff]
        %v314 = vld [vmem:[%s246 + $0x30] sm:$0xff]
        %v315 = vld [vmem:[%s246 + $0x38] sm:$0xff]
        %v316 = vld [vmem:[%s246 + $0x40] sm:$0xff]
        %v317 = vld [vmem:[%s246 + $0x48] sm:$0xff]
        %v318 = vld [vmem:[%s246 + $0x50] sm:$0xff]
        %v319 = vld [vmem:[%s246 + $0x58] sm:$0xff]
        %v320 = vld [vmem:[%s246 + $0x60] sm:$0xff]
        %v321 = vld [vmem:[%s246 + $0x68] sm:$0xff]
        %v322 = vld [vmem:[%s246 + $0x70] sm:$0xff]
        %v323 = vld [vmem:[%s246 + $0x78] sm:$0xff]
        %v324 = vld [vmem:[%s246 + $0x80] sm:$0xff]
        %v325 = vld [vmem:[%s246 + $0x88] sm:$0xff]
        %v326 = vld [vmem:[%s246 + $0x90] sm:$0xff]
        %v327 = vld [vmem:[%s246 + $0x98] sm:$0xff]
        %v328 = vld [vmem:[%s246 + $0xa0] sm:$0xff]
        %v329 = vld [vmem:[%s246 + $0xa8] sm:$0xff]
        %v330 = vld [vmem:[%s246 + $0xb0] sm:$0xff]
        %v331 = vld [vmem:[%s246 + $0xb8] sm:$0xff]
        %v332 = vld [vmem:[%s246 + $0xc0] sm:$0xff]
        %v333 = vld [vmem:[%s246 + $0xc8] sm:$0xff]
        %v334 = vld [vmem:[%s246 + $0xd0] sm:$0xff]
        %v335 = vld [vmem:[%s246 + $0xd8] sm:$0xff]
        %v336 = vld [vmem:[%s246 + $0xe0] sm:$0xff]
        %v337 = vld [vmem:[%s246 + $0xe8] sm:$0xff]
        %v338 = vld [vmem:[%s246 + $0xf0] sm:$0xff]
        %v339 = vld [vmem:[%s246 + $0xf8] sm:$0xff]
        %v340 = vld [vmem:[%s246 + $0x100] sm:$0xff]
        %v341 = vld [vmem:[%s246 + $0x108] sm:$0xff]
        %v342 = vld [vmem:[%s246 + $0x110] sm:$0xff]
        %v343 = vld [vmem:[%s246 + $0x118] sm:$0xff]
        %v344 = vld [vmem:[%s246 + $0x120] sm:$0xff]
        %v345 = vld [vmem:[%s246 + $0x128] sm:$0xff]
        %v346 = vld [vmem:[%s246 + $0x130] sm:$0xff]
        %v347 = vld [vmem:[%s246 + $0x138] sm:$0xff]
        %v348 = vld [vmem:[%s246 + $0x140] sm:$0xff]
        %v349 = vld [vmem:[%s246 + $0x148] sm:$0xff]
        %v350 = vld [vmem:[%s246 + $0x150] sm:$0xff]
        %v351 = vld [vmem:[%s246 + $0x158] sm:$0xff]
        %v352 = vld [vmem:[%s246 + $0x160] sm:$0xff]
        %v353 = vld [vmem:[%s246 + $0x168] sm:$0xff]
        %v354 = vld [vmem:[%s246 + $0x170] sm:$0xff]
        %v355 = vld [vmem:[%s246 + $0x178] sm:$0xff]
        %v356 = vld [vmem:[%s246 + $0x180] sm:$0xff]
        %v357 = vld [vmem:[%s246 + $0x188] sm:$0xff]
        %v358 = vld [vmem:[%s246 + $0x190] sm:$0xff]
        %v359 = vld [vmem:[%s246 + $0x198] sm:$0xff]
        %v360 = vld [vmem:[%s246 + $0x1a0] sm:$0xff]
        %v361 = vld [vmem:[%s246 + $0x1a8] sm:$0xff]
        %v362 = vld [vmem:[%s246 + $0x1b0] sm:$0xff]
        %v363 = vld [vmem:[%s246 + $0x1b8] sm:$0xff]
        %v364 = vld [vmem:[%s246 + $0x1c0] sm:$0xff]
        %v365 = vld [vmem:[%s246 + $0x1c8] sm:$0xff]
        %v366 = vld [vmem:[%s246 + $0x1d0] sm:$0xff]
        %v367 = vld [vmem:[%s246 + $0x1d8] sm:$0xff]
        %v368 = vld [vmem:[%s246 + $0x1e0] sm:$0xff]
        %v369 = vld [vmem:[%s246 + $0x1e8] sm:$0xff]
        %v370 = vld [vmem:[%s246 + $0x1f0] sm:$0xff]
        %v371 = vld [vmem:[%s246 + $0x1f8] sm:$0xff]
        %v372 = vld [vmem:[%s246 + $0x200] sm:$0xff]
        %v373 = vld [vmem:[%s246 + $0x208] sm:$0xff]
        %v374 = vld [vmem:[%s246 + $0x210] sm:$0xff]
        %v375 = vld [vmem:[%s246 + $0x218] sm:$0xff]
        %v376 = vld [vmem:[%s246 + $0x220] sm:$0xff]
        %v377 = vld [vmem:[%s246 + $0x228] sm:$0xff]
        %v378 = vld [vmem:[%s246 + $0x230] sm:$0xff]
        %v379 = vld [vmem:[%s246 + $0x238] sm:$0xff]
        %v380 = vld [vmem:[%s246 + $0x240] sm:$0xff]
        %v381 = vld [vmem:[%s246 + $0x248] sm:$0xff]
        %v382 = vld [vmem:[%s246 + $0x250] sm:$0xff]
        %v383 = vld [vmem:[%s246 + $0x258] sm:$0xff]
        %v384 = vld [vmem:[%s246 + $0x260] sm:$0xff]
        %v385 = vld [vmem:[%s246 + $0x268] sm:$0xff]
        %v386 = vld [vmem:[%s246 + $0x270] sm:$0xff]
        %v387 = vld [vmem:[%s246 + $0x278] sm:$0xff]
        %v388 = vld [vmem:[%s246 + $0x280] sm:$0xff]
        %v389 = vld [vmem:[%s246 + $0x288] sm:$0xff]
        %v390 = vld [vmem:[%s246 + $0x290] sm:$0xff]
        %v391 = vld [vmem:[%s246 + $0x298] sm:$0xff]
        %v392 = vld [vmem:[%s246 + $0x2a0] sm:$0xff]
        %v393 = vld [vmem:[%s246 + $0x2a8] sm:$0xff]
        %v394 = vld [vmem:[%s246 + $0x2b0] sm:$0xff]
        %v395 = vld [vmem:[%s246 + $0x2b8] sm:$0xff]
        %v396 = vld [vmem:[%s246 + $0x2c0] sm:$0xff]
        %v397 = vld [vmem:[%s246 + $0x2c8] sm:$0xff]
        %v398 = vld [vmem:[%s246 + $0x2d0] sm:$0xff]
        %v399 = vld [vmem:[%s246 + $0x2d8] sm:$0xff]
        %v400 = vld [vmem:[%s246 + $0x2e0] sm:$0xff]
        %v401 = vld [vmem:[%s246 + $0x2e8] sm:$0xff]
        %v402 = vld [vmem:[%s246 + $0x2f0] sm:$0xff]
        %v403 = vld [vmem:[%s246 + $0x2f8] sm:$0xff]
        %v404 = vld [vmem:[%s246 + $0x300] sm:$0xff]
        %v405 = vld [vmem:[%s246 + $0x308] sm:$0xff]
        %v406 = vld [vmem:[%s246 + $0x310] sm:$0xff]
        %v407 = vld [vmem:[%s246 + $0x318] sm:$0xff]
        %v408 = vld [vmem:[%s246 + $0x320] sm:$0xff]
        %v409 = vld [vmem:[%s246 + $0x328] sm:$0xff]
        %v410 = vld [vmem:[%s246 + $0x330] sm:$0xff]
        %v411 = vld [vmem:[%s246 + $0x338] sm:$0xff]
        %v412 = vld [vmem:[%s246 + $0x340] sm:$0xff]
        %v413 = vld [vmem:[%s246 + $0x348] sm:$0xff]
        %v414 = vld [vmem:[%s246 + $0x350] sm:$0xff]
        %v415 = vld [vmem:[%s246 + $0x358] sm:$0xff]
        %v416 = vld [vmem:[%s246 + $0x360] sm:$0xff]
        %v417 = vld [vmem:[%s246 + $0x368] sm:$0xff]
        %v418 = vld [vmem:[%s246 + $0x370] sm:$0xff]
        %v419 = vld [vmem:[%s246 + $0x378] sm:$0xff]
        %v420 = vld [vmem:[%s246 + $0x380] sm:$0xff]
        %v421 = vld [vmem:[%s246 + $0x388] sm:$0xff]
        %v422 = vld [vmem:[%s246 + $0x390] sm:$0xff]
        %v423 = vld [vmem:[%s246 + $0x398] sm:$0xff]
        %v424 = vld [vmem:[%s246 + $0x3a0] sm:$0xff]
        %v425 = vld [vmem:[%s246 + $0x3a8] sm:$0xff]
        %v426 = vld [vmem:[%s246 + $0x3b0] sm:$0xff]
        %v427 = vld [vmem:[%s246 + $0x3b8] sm:$0xff]
        %v428 = vld [vmem:[%s246 + $0x3c0] sm:$0xff]
        %v429 = vld [vmem:[%s246 + $0x3c8] sm:$0xff]
        %v430 = vld [vmem:[%s246 + $0x3d0] sm:$0xff]
        %v431 = vld [vmem:[%s246 + $0x3d8] sm:$0xff]
        %v432 = vld [vmem:[%s246 + $0x3e0] sm:$0xff]
        %v433 = vld [vmem:[%s246 + $0x3e8] sm:$0xff]
        %v434 = vld [vmem:[%s246 + $0x3f0] sm:$0xff]
        %v435 = vld [vmem:[%s246 + $0x3f8] sm:$0xff]
        %v436 = vld [vmem:[%s255] sm:$0xff]
        %v437 = vld [vmem:[%s255 + $0x8] sm:$0xff]
        %v438 = vld [vmem:[%s255 + $0x10] sm:$0xff]
        %v439 = vld [vmem:[%s255 + $0x18] sm:$0xff]
        %v440 = vld [vmem:[%s255 + $0x20] sm:$0xff]
        %v441 = vld [vmem:[%s255 + $0x28] sm:$0xff]
        %v442 = vld [vmem:[%s255 + $0x30] sm:$0xff]
        %v443 = vld [vmem:[%s255 + $0x38] sm:$0xff]
        %v444 = vld [vmem:[%s255 + $0x40] sm:$0xff]
        %v445 = vld [vmem:[%s255 + $0x48] sm:$0xff]
        %v446 = vld [vmem:[%s255 + $0x50] sm:$0xff]
        %v447 = vld [vmem:[%s255 + $0x58] sm:$0xff]
        %v448 = vld [vmem:[%s255 + $0x60] sm:$0xff]
        %v449 = vld [vmem:[%s255 + $0x68] sm:$0xff]
        %v450 = vld [vmem:[%s255 + $0x70] sm:$0xff]
        %v451 = vld [vmem:[%s255 + $0x78] sm:$0xff]
        %v452 = vld [vmem:[%s255 + $0x80] sm:$0xff]
        %v453 = vld [vmem:[%s255 + $0x88] sm:$0xff]
        %v454 = vld [vmem:[%s255 + $0x90] sm:$0xff]
        %v455 = vld [vmem:[%s255 + $0x98] sm:$0xff]
        %v456 = vld [vmem:[%s255 + $0xa0] sm:$0xff]
        %v457 = vld [vmem:[%s255 + $0xa8] sm:$0xff]
        %v458 = vld [vmem:[%s255 + $0xb0] sm:$0xff]
        %v459 = vld [vmem:[%s255 + $0xb8] sm:$0xff]
        %v460 = vld [vmem:[%s255 + $0xc0] sm:$0xff]
        %v461 = vld [vmem:[%s255 + $0xc8] sm:$0xff]
        %v462 = vld [vmem:[%s255 + $0xd0] sm:$0xff]
        %v463 = vld [vmem:[%s255 + $0xd8] sm:$0xff]
        %v464 = vld [vmem:[%s255 + $0xe0] sm:$0xff]
        %v465 = vld [vmem:[%s255 + $0xe8] sm:$0xff]
        %v466 = vld [vmem:[%s255 + $0xf0] sm:$0xff]
        %v467 = vld [vmem:[%s255 + $0xf8] sm:$0xff]
        %v468 = vld [vmem:[%s255 + $0x100] sm:$0xff]
        %v469 = vld [vmem:[%s255 + $0x108] sm:$0xff]
        %v470 = vld [vmem:[%s255 + $0x110] sm:$0xff]
        %v471 = vld [vmem:[%s255 + $0x118] sm:$0xff]
        %v472 = vld [vmem:[%s255 + $0x120] sm:$0xff]
        %v473 = vld [vmem:[%s255 + $0x128] sm:$0xff]
        %v474 = vld [vmem:[%s255 + $0x130] sm:$0xff]
        %v475 = vld [vmem:[%s255 + $0x138] sm:$0xff]
        %v476 = vld [vmem:[%s255 + $0x140] sm:$0xff]
        %v477 = vld [vmem:[%s255 + $0x148] sm:$0xff]
        %v478 = vld [vmem:[%s255 + $0x150] sm:$0xff]
        %v479 = vld [vmem:[%s255 + $0x158] sm:$0xff]
        %v480 = vld [vmem:[%s255 + $0x160] sm:$0xff]
        %v481 = vld [vmem:[%s255 + $0x168] sm:$0xff]
        %v482 = vld [vmem:[%s255 + $0x170] sm:$0xff]
        %v483 = vld [vmem:[%s255 + $0x178] sm:$0xff]
        %v484 = vld [vmem:[%s255 + $0x180] sm:$0xff]
        %v485 = vld [vmem:[%s255 + $0x188] sm:$0xff]
        %v486 = vld [vmem:[%s255 + $0x190] sm:$0xff]
        %v487 = vld [vmem:[%s255 + $0x198] sm:$0xff]
        %v488 = vld [vmem:[%s255 + $0x1a0] sm:$0xff]
        %v489 = vld [vmem:[%s255 + $0x1a8] sm:$0xff]
        %v490 = vld [vmem:[%s255 + $0x1b0] sm:$0xff]
        %v491 = vld [vmem:[%s255 + $0x1b8] sm:$0xff]
        %v492 = vld [vmem:[%s255 + $0x1c0] sm:$0xff]
        %v493 = vld [vmem:[%s255 + $0x1c8] sm:$0xff]
        %v494 = vld [vmem:[%s255 + $0x1d0] sm:$0xff]
        %v495 = vld [vmem:[%s255 + $0x1d8] sm:$0xff]
        %v496 = vld [vmem:[%s255 + $0x1e0] sm:$0xff]
        %v497 = vld [vmem:[%s255 + $0x1e8] sm:$0xff]
        %v498 = vld [vmem:[%s255 + $0x1f0] sm:$0xff]
        %v499 = vld [vmem:[%s255 + $0x1f8] sm:$0xff]
        %v500 = vld [vmem:[%s255 + $0x200] sm:$0xff]
        %v501 = vld [vmem:[%s255 + $0x208] sm:$0xff]
        %v502 = vld [vmem:[%s255 + $0x210] sm:$0xff]
        %v503 = vld [vmem:[%s255 + $0x218] sm:$0xff]
        %v504 = vld [vmem:[%s255 + $0x220] sm:$0xff]
        %v505 = vld [vmem:[%s255 + $0x228] sm:$0xff]
        %v506 = vld [vmem:[%s255 + $0x230] sm:$0xff]
        %v507 = vld [vmem:[%s255 + $0x238] sm:$0xff]
        %v508 = vld [vmem:[%s255 + $0x240] sm:$0xff]
        %v509 = vld [vmem:[%s255 + $0x248] sm:$0xff]
        %v510 = vld [vmem:[%s255 + $0x250] sm:$0xff]
        %v511 = vld [vmem:[%s255 + $0x258] sm:$0xff]
        %v512 = vld [vmem:[%s255 + $0x260] sm:$0xff]
        %v513 = vld [vmem:[%s255 + $0x268] sm:$0xff]
        %v514 = vld [vmem:[%s255 + $0x270] sm:$0xff]
        %v515 = vld [vmem:[%s255 + $0x278] sm:$0xff]
        %v516 = vld [vmem:[%s255 + $0x280] sm:$0xff]
        %v517 = vld [vmem:[%s255 + $0x288] sm:$0xff]
        %v518 = vld [vmem:[%s255 + $0x290] sm:$0xff]
        %v519 = vld [vmem:[%s255 + $0x298] sm:$0xff]
        %v520 = vld [vmem:[%s255 + $0x2a0] sm:$0xff]
        %v521 = vld [vmem:[%s255 + $0x2a8] sm:$0xff]
        %v522 = vld [vmem:[%s255 + $0x2b0] sm:$0xff]
        %v523 = vld [vmem:[%s255 + $0x2b8] sm:$0xff]
        %v524 = vld [vmem:[%s255 + $0x2c0] sm:$0xff]
        %v525 = vld [vmem:[%s255 + $0x2c8] sm:$0xff]
        %v526 = vld [vmem:[%s255 + $0x2d0] sm:$0xff]
        %v527 = vld [vmem:[%s255 + $0x2d8] sm:$0xff]
        %v528 = vld [vmem:[%s255 + $0x2e0] sm:$0xff]
        %v529 = vld [vmem:[%s255 + $0x2e8] sm:$0xff]
        %v530 = vld [vmem:[%s255 + $0x2f0] sm:$0xff]
        %v531 = vld [vmem:[%s255 + $0x2f8] sm:$0xff]
        %v532 = vld [vmem:[%s255 + $0x300] sm:$0xff]
        %v533 = vld [vmem:[%s255 + $0x308] sm:$0xff]
        %v534 = vld [vmem:[%s255 + $0x310] sm:$0xff]
        %v535 = vld [vmem:[%s255 + $0x318] sm:$0xff]
        %v536 = vld [vmem:[%s255 + $0x320] sm:$0xff]
        %v537 = vld [vmem:[%s255 + $0x328] sm:$0xff]
        %v538 = vld [vmem:[%s255 + $0x330] sm:$0xff]
        %v539 = vld [vmem:[%s255 + $0x338] sm:$0xff]
        %v540 = vld [vmem:[%s255 + $0x340] sm:$0xff]
        %v541 = vld [vmem:[%s255 + $0x348] sm:$0xff]
        %v542 = vld [vmem:[%s255 + $0x350] sm:$0xff]
        %v543 = vld [vmem:[%s255 + $0x358] sm:$0xff]
        %v544 = vld [vmem:[%s255 + $0x360] sm:$0xff]
        %v545 = vld [vmem:[%s255 + $0x368] sm:$0xff]
        %v546 = vld [vmem:[%s255 + $0x370] sm:$0xff]
        %v547 = vld [vmem:[%s255 + $0x378] sm:$0xff]
        %v548 = vld [vmem:[%s255 + $0x380] sm:$0xff]
        %v549 = vld [vmem:[%s255 + $0x388] sm:$0xff]
        %v550 = vld [vmem:[%s255 + $0x390] sm:$0xff]
        %v551 = vld [vmem:[%s255 + $0x398] sm:$0xff]
        %v552 = vld [vmem:[%s255 + $0x3a0] sm:$0xff]
        %v553 = vld [vmem:[%s255 + $0x3a8] sm:$0xff]
        %v554 = vld [vmem:[%s255 + $0x3b0] sm:$0xff]
        %v555 = vld [vmem:[%s255 + $0x3b8] sm:$0xff]
        %v556 = vld [vmem:[%s255 + $0x3c0] sm:$0xff]
        %v557 = vld [vmem:[%s255 + $0x3c8] sm:$0xff]
        %v558 = vld [vmem:[%s255 + $0x3d0] sm:$0xff]
        %v559 = vld [vmem:[%s255 + $0x3d8] sm:$0xff]
        %v560 = vld [vmem:[%s255 + $0x3e0] sm:$0xff]
        %v561 = vld [vmem:[%s255 + $0x3e8] sm:$0xff]
        %v562 = vld [vmem:[%s255 + $0x3f0] sm:$0xff]
        %v563 = vld [vmem:[%s255 + $0x3f8] sm:$0xff]
        %v564 = vld [vmem:[%s264] sm:$0xff]
        %v565 = vld [vmem:[%s264 + $0x8] sm:$0xff]
        %v566 = vld [vmem:[%s264 + $0x10] sm:$0xff]
        %v567 = vld [vmem:[%s264 + $0x18] sm:$0xff]
        %v568 = vld [vmem:[%s264 + $0x20] sm:$0xff]
        %v569 = vld [vmem:[%s264 + $0x28] sm:$0xff]
        %v570 = vld [vmem:[%s264 + $0x30] sm:$0xff]
        %v571 = vld [vmem:[%s264 + $0x38] sm:$0xff]
        %v572 = vld [vmem:[%s264 + $0x40] sm:$0xff]
        %v573 = vld [vmem:[%s264 + $0x48] sm:$0xff]
        %v574 = vld [vmem:[%s264 + $0x50] sm:$0xff]
        %v575 = vld [vmem:[%s264 + $0x58] sm:$0xff]
        %v576 = vld [vmem:[%s264 + $0x60] sm:$0xff]
        %v577 = vld [vmem:[%s264 + $0x68] sm:$0xff]
        %v578 = vld [vmem:[%s264 + $0x70] sm:$0xff]
        %v579 = vld [vmem:[%s264 + $0x78] sm:$0xff]
        %v580 = vld [vmem:[%s264 + $0x80] sm:$0xff]
        %v581 = vld [vmem:[%s264 + $0x88] sm:$0xff]
        %v582 = vld [vmem:[%s264 + $0x90] sm:$0xff]
        %v583 = vld [vmem:[%s264 + $0x98] sm:$0xff]
        %v584 = vld [vmem:[%s264 + $0xa0] sm:$0xff]
        %v585 = vld [vmem:[%s264 + $0xa8] sm:$0xff]
        %v586 = vld [vmem:[%s264 + $0xb0] sm:$0xff]
        %v587 = vld [vmem:[%s264 + $0xb8] sm:$0xff]
        %v588 = vld [vmem:[%s264 + $0xc0] sm:$0xff]
        %v589 = vld [vmem:[%s264 + $0xc8] sm:$0xff]
        %v590 = vld [vmem:[%s264 + $0xd0] sm:$0xff]
        %v591 = vld [vmem:[%s264 + $0xd8] sm:$0xff]
        %v592 = vld [vmem:[%s264 + $0xe0] sm:$0xff]
        %v593 = vld [vmem:[%s264 + $0xe8] sm:$0xff]
        %v594 = vld [vmem:[%s264 + $0xf0] sm:$0xff]
        %v595 = vld [vmem:[%s264 + $0xf8] sm:$0xff]
        %v596 = vld [vmem:[%s264 + $0x100] sm:$0xff]
        %v597 = vld [vmem:[%s264 + $0x108] sm:$0xff]
        %v598 = vld [vmem:[%s264 + $0x110] sm:$0xff]
        %v599 = vld [vmem:[%s264 + $0x118] sm:$0xff]
        %v600 = vld [vmem:[%s264 + $0x120] sm:$0xff]
        %v601 = vld [vmem:[%s264 + $0x128] sm:$0xff]
        %v602 = vld [vmem:[%s264 + $0x130] sm:$0xff]
        %v603 = vld [vmem:[%s264 + $0x138] sm:$0xff]
        %v604 = vld [vmem:[%s264 + $0x140] sm:$0xff]
        %v605 = vld [vmem:[%s264 + $0x148] sm:$0xff]
        %v606 = vld [vmem:[%s264 + $0x150] sm:$0xff]
        %v607 = vld [vmem:[%s264 + $0x158] sm:$0xff]
        %v608 = vld [vmem:[%s264 + $0x160] sm:$0xff]
        %v609 = vld [vmem:[%s264 + $0x168] sm:$0xff]
        %v610 = vld [vmem:[%s264 + $0x170] sm:$0xff]
        %v611 = vld [vmem:[%s264 + $0x178] sm:$0xff]
        %v612 = vld [vmem:[%s264 + $0x180] sm:$0xff]
        %v613 = vld [vmem:[%s264 + $0x188] sm:$0xff]
        %v614 = vld [vmem:[%s264 + $0x190] sm:$0xff]
        %v615 = vld [vmem:[%s264 + $0x198] sm:$0xff]
        %v616 = vld [vmem:[%s264 + $0x1a0] sm:$0xff]
        %v617 = vld [vmem:[%s264 + $0x1a8] sm:$0xff]
        %v618 = vld [vmem:[%s264 + $0x1b0] sm:$0xff]
        %v619 = vld [vmem:[%s264 + $0x1b8] sm:$0xff]
        %v620 = vld [vmem:[%s264 + $0x1c0] sm:$0xff]
        %v621 = vld [vmem:[%s264 + $0x1c8] sm:$0xff]
        %v622 = vld [vmem:[%s264 + $0x1d0] sm:$0xff]
        %v623 = vld [vmem:[%s264 + $0x1d8] sm:$0xff]
        %v624 = vld [vmem:[%s264 + $0x1e0] sm:$0xff]
        %v625 = vld [vmem:[%s264 + $0x1e8] sm:$0xff]
        %v626 = vld [vmem:[%s264 + $0x1f0] sm:$0xff]
        %v627 = vld [vmem:[%s264 + $0x1f8] sm:$0xff]
        %v628 = vld [vmem:[%s264 + $0x200] sm:$0xff]
        %v629 = vld [vmem:[%s264 + $0x208] sm:$0xff]
        %v630 = vld [vmem:[%s264 + $0x210] sm:$0xff]
        %v631 = vld [vmem:[%s264 + $0x218] sm:$0xff]
        %v632 = vld [vmem:[%s264 + $0x220] sm:$0xff]
        %v633 = vld [vmem:[%s264 + $0x228] sm:$0xff]
        %v634 = vld [vmem:[%s264 + $0x230] sm:$0xff]
        %v635 = vld [vmem:[%s264 + $0x238] sm:$0xff]
        %v636 = vld [vmem:[%s264 + $0x240] sm:$0xff]
        %v637 = vld [vmem:[%s264 + $0x248] sm:$0xff]
        %v638 = vld [vmem:[%s264 + $0x250] sm:$0xff]
        %v639 = vld [vmem:[%s264 + $0x258] sm:$0xff]
        %v640 = vld [vmem:[%s264 + $0x260] sm:$0xff]
        %v641 = vld [vmem:[%s264 + $0x268] sm:$0xff]
        %v642 = vld [vmem:[%s264 + $0x270] sm:$0xff]
        %v643 = vld [vmem:[%s264 + $0x278] sm:$0xff]
        %v644 = vld [vmem:[%s264 + $0x280] sm:$0xff]
        %v645 = vld [vmem:[%s264 + $0x288] sm:$0xff]
        %v646 = vld [vmem:[%s264 + $0x290] sm:$0xff]
        %v647 = vld [vmem:[%s264 + $0x298] sm:$0xff]
        %v648 = vld [vmem:[%s264 + $0x2a0] sm:$0xff]
        %v649 = vld [vmem:[%s264 + $0x2a8] sm:$0xff]
        %v650 = vld [vmem:[%s264 + $0x2b0] sm:$0xff]
        %v651 = vld [vmem:[%s264 + $0x2b8] sm:$0xff]
        %v652 = vld [vmem:[%s264 + $0x2c0] sm:$0xff]
        %v653 = vld [vmem:[%s264 + $0x2c8] sm:$0xff]
        %v654 = vld [vmem:[%s264 + $0x2d0] sm:$0xff]
        %v655 = vld [vmem:[%s264 + $0x2d8] sm:$0xff]
        %v656 = vld [vmem:[%s264 + $0x2e0] sm:$0xff]
        %v657 = vld [vmem:[%s264 + $0x2e8] sm:$0xff]
        %v658 = vld [vmem:[%s264 + $0x2f0] sm:$0xff]
        %v659 = vld [vmem:[%s264 + $0x2f8] sm:$0xff]
        %v660 = vld [vmem:[%s264 + $0x300] sm:$0xff]
        %v661 = vld [vmem:[%s264 + $0x308] sm:$0xff]
        %v662 = vld [vmem:[%s264 + $0x310] sm:$0xff]
        %v663 = vld [vmem:[%s264 + $0x318] sm:$0xff]
        %v664 = vld [vmem:[%s264 + $0x320] sm:$0xff]
        %v665 = vld [vmem:[%s264 + $0x328] sm:$0xff]
        %v666 = vld [vmem:[%s264 + $0x330] sm:$0xff]
        %v667 = vld [vmem:[%s264 + $0x338] sm:$0xff]
        %v668 = vld [vmem:[%s264 + $0x340] sm:$0xff]
        %v669 = vld [vmem:[%s264 + $0x348] sm:$0xff]
        %v670 = vld [vmem:[%s264 + $0x350] sm:$0xff]
        %v671 = vld [vmem:[%s264 + $0x358] sm:$0xff]
        %v672 = vld [vmem:[%s264 + $0x360] sm:$0xff]
        %v673 = vld [vmem:[%s264 + $0x368] sm:$0xff]
        %v674 = vld [vmem:[%s264 + $0x370] sm:$0xff]
        %v675 = vld [vmem:[%s264 + $0x378] sm:$0xff]
        %v676 = vld [vmem:[%s264 + $0x380] sm:$0xff]
        %v677 = vld [vmem:[%s264 + $0x388] sm:$0xff]
        %v678 = vld [vmem:[%s264 + $0x390] sm:$0xff]
        %v679 = vld [vmem:[%s264 + $0x398] sm:$0xff]
        %v680 = vld [vmem:[%s264 + $0x3a0] sm:$0xff]
        %v681 = vld [vmem:[%s264 + $0x3a8] sm:$0xff]
        %v682 = vld [vmem:[%s264 + $0x3b0] sm:$0xff]
        %v683 = vld [vmem:[%s264 + $0x3b8] sm:$0xff]
        %v684 = vld [vmem:[%s264 + $0x3c0] sm:$0xff]
        %v685 = vld [vmem:[%s264 + $0x3c8] sm:$0xff]
        %v686 = vld [vmem:[%s264 + $0x3d0] sm:$0xff]
        %v687 = vld [vmem:[%s264 + $0x3d8] sm:$0xff]
        %v688 = vld [vmem:[%s264 + $0x3e0] sm:$0xff]
        %v689 = vld [vmem:[%s264 + $0x3e8] sm:$0xff]
        %v690 = vld [vmem:[%s264 + $0x3f0] sm:$0xff]
        %v691 = vld [vmem:[%s264 + $0x3f8] sm:$0xff]
        %v692 = vmax.f32 %v436, 0.0
        %v693 = vmax.f32 %v437, 0.0
        %v694 = vmax.f32 %v438, 0.0
        %v695 = vmax.f32 %v439, 0.0
        %v696 = vmax.f32 %v440, 0.0
        %v697 = vmax.f32 %v441, 0.0
        %v698 = vmax.f32 %v442, 0.0
        %v699 = vmax.f32 %v443, 0.0
        %v700 = vmax.f32 %v444, 0.0
        %v701 = vmax.f32 %v445, 0.0
        %v702 = vmax.f32 %v446, 0.0
        %v703 = vmax.f32 %v447, 0.0
        %v704 = vmax.f32 %v448, 0.0
        %v705 = vmax.f32 %v449, 0.0
        %v706 = vmax.f32 %v450, 0.0
        %v707 = vmax.f32 %v451, 0.0
        %v708 = vmax.f32 %v452, 0.0
        %v709 = vmax.f32 %v453, 0.0
        %v710 = vmax.f32 %v454, 0.0
        %v711 = vmax.f32 %v455, 0.0
        %v712 = vmax.f32 %v456, 0.0
        %v713 = vmax.f32 %v457, 0.0
        %v714 = vmax.f32 %v458, 0.0
        %v715 = vmax.f32 %v459, 0.0
        %v716 = vmax.f32 %v460, 0.0
        %v717 = vmax.f32 %v461, 0.0
        %v718 = vmax.f32 %v462, 0.0
        %v719 = vmax.f32 %v463, 0.0
        %v720 = vmax.f32 %v464, 0.0
        %v721 = vmax.f32 %v465, 0.0
        %v722 = vmax.f32 %v466, 0.0
        %v723 = vmax.f32 %v467, 0.0
        %v724 = vmax.f32 %v468, 0.0
        %v725 = vmax.f32 %v469, 0.0
        %v726 = vmax.f32 %v470, 0.0
        %v727 = vmax.f32 %v471, 0.0
        %v728 = vmax.f32 %v472, 0.0
        %v729 = vmax.f32 %v473, 0.0
        %v730 = vmax.f32 %v474, 0.0
        %v731 = vmax.f32 %v475, 0.0
        %v732 = vmax.f32 %v476, 0.0
        %v733 = vmax.f32 %v477, 0.0
        %v734 = vmax.f32 %v478, 0.0
        %v735 = vmax.f32 %v479, 0.0
        %v736 = vmax.f32 %v480, 0.0
        %v737 = vmax.f32 %v481, 0.0
        %v738 = vmax.f32 %v482, 0.0
        %v739 = vmax.f32 %v483, 0.0
        %v740 = vmax.f32 %v484, 0.0
        %v741 = vmax.f32 %v485, 0.0
        %v742 = vmax.f32 %v486, 0.0
        %v743 = vmax.f32 %v487, 0.0
        %v744 = vmax.f32 %v488, 0.0
        %v745 = vmax.f32 %v489, 0.0
        %v746 = vmax.f32 %v490, 0.0
        %v747 = vmax.f32 %v491, 0.0
        %v748 = vmax.f32 %v492, 0.0
        %v749 = vmax.f32 %v493, 0.0
        %v750 = vmax.f32 %v494, 0.0
        %v751 = vmax.f32 %v495, 0.0
        %v752 = vmax.f32 %v496, 0.0
        %v753 = vmax.f32 %v497, 0.0
        %v754 = vmax.f32 %v498, 0.0
        %v755 = vmax.f32 %v499, 0.0
        %v756 = vmax.f32 %v500, 0.0
        %v757 = vmax.f32 %v501, 0.0
        %v758 = vmax.f32 %v502, 0.0
        %v759 = vmax.f32 %v503, 0.0
        %v760 = vmax.f32 %v504, 0.0
        %v761 = vmax.f32 %v505, 0.0
        %v762 = vmax.f32 %v506, 0.0
        %v763 = vmax.f32 %v507, 0.0
        %v764 = vmax.f32 %v508, 0.0
        %v765 = vmax.f32 %v509, 0.0
        %v766 = vmax.f32 %v510, 0.0
        %v767 = vmax.f32 %v511, 0.0
        %v768 = vmax.f32 %v512, 0.0
        %v769 = vmax.f32 %v513, 0.0
        %v770 = vmax.f32 %v514, 0.0
        %v771 = vmax.f32 %v515, 0.0
        %v772 = vmax.f32 %v516, 0.0
        %v773 = vmax.f32 %v517, 0.0
        %v774 = vmax.f32 %v518, 0.0
        %v775 = vmax.f32 %v519, 0.0
        %v776 = vmax.f32 %v520, 0.0
        %v777 = vmax.f32 %v521, 0.0
        %v778 = vmax.f32 %v522, 0.0
        %v779 = vmax.f32 %v523, 0.0
        %v780 = vmax.f32 %v524, 0.0
        %v781 = vmax.f32 %v525, 0.0
        %v782 = vmax.f32 %v526, 0.0
        %v783 = vmax.f32 %v527, 0.0
        %v784 = vmax.f32 %v528, 0.0
        %v785 = vmax.f32 %v529, 0.0
        %v786 = vmax.f32 %v530, 0.0
        %v787 = vmax.f32 %v531, 0.0
        %v788 = vmax.f32 %v532, 0.0
        %v789 = vmax.f32 %v533, 0.0
        %v790 = vmax.f32 %v534, 0.0
        %v791 = vmax.f32 %v535, 0.0
        %v792 = vmax.f32 %v536, 0.0
        %v793 = vmax.f32 %v537, 0.0
        %v794 = vmax.f32 %v538, 0.0
        %v795 = vmax.f32 %v539, 0.0
        %v796 = vmax.f32 %v540, 0.0
        %v797 = vmax.f32 %v541, 0.0
        %v798 = vmax.f32 %v542, 0.0
        %v799 = vmax.f32 %v543, 0.0
        %v800 = vmax.f32 %v544, 0.0
        %v801 = vmax.f32 %v545, 0.0
        %v802 = vmax.f32 %v546, 0.0
        %v803 = vmax.f32 %v547, 0.0
        %v804 = vmax.f32 %v548, 0.0
        %v805 = vmax.f32 %v549, 0.0
        %v806 = vmax.f32 %v550, 0.0
        %v807 = vmax.f32 %v551, 0.0
        %v808 = vmax.f32 %v552, 0.0
        %v809 = vmax.f32 %v553, 0.0
        %v810 = vmax.f32 %v554, 0.0
        %v811 = vmax.f32 %v555, 0.0
        %v812 = vmax.f32 %v556, 0.0
        %v813 = vmax.f32 %v557, 0.0
        %v814 = vmax.f32 %v558, 0.0
        %v815 = vmax.f32 %v559, 0.0
        %v816 = vmax.f32 %v560, 0.0
        %v817 = vmax.f32 %v561, 0.0
        %v818 = vmax.f32 %v562, 0.0
        %v819 = vmax.f32 %v563, 0.0
        %vm820 = vcmp.ne.f32.partialorder %v436, %v436
        %vm821 = vcmp.ne.f32.partialorder %v437, %v437
        %vm822 = vcmp.ne.f32.partialorder %v438, %v438
        %vm823 = vcmp.ne.f32.partialorder %v439, %v439
        %vm824 = vcmp.ne.f32.partialorder %v440, %v440
        %vm825 = vcmp.ne.f32.partialorder %v441, %v441
        %vm826 = vcmp.ne.f32.partialorder %v442, %v442
        %vm827 = vcmp.ne.f32.partialorder %v443, %v443
        %vm828 = vcmp.ne.f32.partialorder %v444, %v444
        %vm829 = vcmp.ne.f32.partialorder %v445, %v445
        %vm830 = vcmp.ne.f32.partialorder %v446, %v446
        %vm831 = vcmp.ne.f32.partialorder %v447, %v447
        %vm832 = vcmp.ne.f32.partialorder %v448, %v448
        %vm833 = vcmp.ne.f32.partialorder %v449, %v449
        %vm834 = vcmp.ne.f32.partialorder %v450, %v450
        %vm835 = vcmp.ne.f32.partialorder %v451, %v451
        %vm836 = vcmp.ne.f32.partialorder %v452, %v452
        %vm837 = vcmp.ne.f32.partialorder %v453, %v453
        %vm838 = vcmp.ne.f32.partialorder %v454, %v454
        %vm839 = vcmp.ne.f32.partialorder %v455, %v455
        %vm840 = vcmp.ne.f32.partialorder %v456, %v456
        %vm841 = vcmp.ne.f32.partialorder %v457, %v457
        %vm842 = vcmp.ne.f32.partialorder %v458, %v458
        %vm843 = vcmp.ne.f32.partialorder %v459, %v459
        %vm844 = vcmp.ne.f32.partialorder %v460, %v460
        %vm845 = vcmp.ne.f32.partialorder %v461, %v461
        %vm846 = vcmp.ne.f32.partialorder %v462, %v462
        %vm847 = vcmp.ne.f32.partialorder %v463, %v463
        %vm848 = vcmp.ne.f32.partialorder %v464, %v464
        %vm849 = vcmp.ne.f32.partialorder %v465, %v465
        %vm850 = vcmp.ne.f32.partialorder %v466, %v466
        %vm851 = vcmp.ne.f32.partialorder %v467, %v467
        %vm852 = vcmp.ne.f32.partialorder %v468, %v468
        %vm853 = vcmp.ne.f32.partialorder %v469, %v469
        %vm854 = vcmp.ne.f32.partialorder %v470, %v470
        %vm855 = vcmp.ne.f32.partialorder %v471, %v471
        %vm856 = vcmp.ne.f32.partialorder %v472, %v472
        %vm857 = vcmp.ne.f32.partialorder %v473, %v473
        %vm858 = vcmp.ne.f32.partialorder %v474, %v474
        %vm859 = vcmp.ne.f32.partialorder %v475, %v475
        %vm860 = vcmp.ne.f32.partialorder %v476, %v476
        %vm861 = vcmp.ne.f32.partialorder %v477, %v477
        %vm862 = vcmp.ne.f32.partialorder %v478, %v478
        %vm863 = vcmp.ne.f32.partialorder %v479, %v479
        %vm864 = vcmp.ne.f32.partialorder %v480, %v480
        %vm865 = vcmp.ne.f32.partialorder %v481, %v481
        %vm866 = vcmp.ne.f32.partialorder %v482, %v482
        %vm867 = vcmp.ne.f32.partialorder %v483, %v483
        %vm868 = vcmp.ne.f32.partialorder %v484, %v484
        %vm869 = vcmp.ne.f32.partialorder %v485, %v485
        %vm870 = vcmp.ne.f32.partialorder %v486, %v486
        %vm871 = vcmp.ne.f32.partialorder %v487, %v487
        %vm872 = vcmp.ne.f32.partialorder %v488, %v488
        %vm873 = vcmp.ne.f32.partialorder %v489, %v489
        %vm874 = vcmp.ne.f32.partialorder %v490, %v490
        %vm875 = vcmp.ne.f32.partialorder %v491, %v491
        %vm876 = vcmp.ne.f32.partialorder %v492, %v492
        %vm877 = vcmp.ne.f32.partialorder %v493, %v493
        %vm878 = vcmp.ne.f32.partialorder %v494, %v494
        %vm879 = vcmp.ne.f32.partialorder %v495, %v495
        %vm880 = vcmp.ne.f32.partialorder %v496, %v496
        %vm881 = vcmp.ne.f32.partialorder %v497, %v497
        %vm882 = vcmp.ne.f32.partialorder %v498, %v498
        %vm883 = vcmp.ne.f32.partialorder %v499, %v499
        %vm884 = vcmp.ne.f32.partialorder %v500, %v500
        %vm885 = vcmp.ne.f32.partialorder %v501, %v501
        %vm886 = vcmp.ne.f32.partialorder %v502, %v502
        %vm887 = vcmp.ne.f32.partialorder %v503, %v503
        %vm888 = vcmp.ne.f32.partialorder %v504, %v504
        %vm889 = vcmp.ne.f32.partialorder %v505, %v505
        %vm890 = vcmp.ne.f32.partialorder %v506, %v506
        %vm891 = vcmp.ne.f32.partialorder %v507, %v507
        %vm892 = vcmp.ne.f32.partialorder %v508, %v508
        %vm893 = vcmp.ne.f32.partialorder %v509, %v509
        %vm894 = vcmp.ne.f32.partialorder %v510, %v510
        %vm895 = vcmp.ne.f32.partialorder %v511, %v511
        %vm896 = vcmp.ne.f32.partialorder %v512, %v512
        %vm897 = vcmp.ne.f32.partialorder %v513, %v513
        %vm898 = vcmp.ne.f32.partialorder %v514, %v514
        %vm899 = vcmp.ne.f32.partialorder %v515, %v515
        %vm900 = vcmp.ne.f32.partialorder %v516, %v516
        %vm901 = vcmp.ne.f32.partialorder %v517, %v517
        %vm902 = vcmp.ne.f32.partialorder %v518, %v518
        %vm903 = vcmp.ne.f32.partialorder %v519, %v519
        %vm904 = vcmp.ne.f32.partialorder %v520, %v520
        %vm905 = vcmp.ne.f32.partialorder %v521, %v521
        %vm906 = vcmp.ne.f32.partialorder %v522, %v522
        %vm907 = vcmp.ne.f32.partialorder %v523, %v523
        %vm908 = vcmp.ne.f32.partialorder %v524, %v524
        %vm909 = vcmp.ne.f32.partialorder %v525, %v525
        %vm910 = vcmp.ne.f32.partialorder %v526, %v526
        %vm911 = vcmp.ne.f32.partialorder %v527, %v527
        %vm912 = vcmp.ne.f32.partialorder %v528, %v528
        %vm913 = vcmp.ne.f32.partialorder %v529, %v529
        %vm914 = vcmp.ne.f32.partialorder %v530, %v530
        %vm915 = vcmp.ne.f32.partialorder %v531, %v531
        %vm916 = vcmp.ne.f32.partialorder %v532, %v532
        %vm917 = vcmp.ne.f32.partialorder %v533, %v533
        %vm918 = vcmp.ne.f32.partialorder %v534, %v534
        %vm919 = vcmp.ne.f32.partialorder %v535, %v535
        %vm920 = vcmp.ne.f32.partialorder %v536, %v536
        %vm921 = vcmp.ne.f32.partialorder %v537, %v537
        %vm922 = vcmp.ne.f32.partialorder %v538, %v538
        %vm923 = vcmp.ne.f32.partialorder %v539, %v539
        %vm924 = vcmp.ne.f32.partialorder %v540, %v540
        %vm925 = vcmp.ne.f32.partialorder %v541, %v541
        %vm926 = vcmp.ne.f32.partialorder %v542, %v542
        %vm927 = vcmp.ne.f32.partialorder %v543, %v543
        %vm928 = vcmp.ne.f32.partialorder %v544, %v544
        %vm929 = vcmp.ne.f32.partialorder %v545, %v545
        %vm930 = vcmp.ne.f32.partialorder %v546, %v546
        %vm931 = vcmp.ne.f32.partialorder %v547, %v547
        %vm932 = vcmp.ne.f32.partialorder %v548, %v548
        %vm933 = vcmp.ne.f32.partialorder %v549, %v549
        %vm934 = vcmp.ne.f32.partialorder %v550, %v550
        %vm935 = vcmp.ne.f32.partialorder %v551, %v551
        %vm936 = vcmp.ne.f32.partialorder %v552, %v552
        %vm937 = vcmp.ne.f32.partialorder %v553, %v553
        %vm938 = vcmp.ne.f32.partialorder %v554, %v554
        %vm939 = vcmp.ne.f32.partialorder %v555, %v555
        %vm940 = vcmp.ne.f32.partialorder %v556, %v556
        %vm941 = vcmp.ne.f32.partialorder %v557, %v557
        %vm942 = vcmp.ne.f32.partialorder %v558, %v558
        %vm943 = vcmp.ne.f32.partialorder %v559, %v559
        %vm944 = vcmp.ne.f32.partialorder %v560, %v560
        %vm945 = vcmp.ne.f32.partialorder %v561, %v561
        %vm946 = vcmp.ne.f32.partialorder %v562, %v562
        %vm947 = vcmp.ne.f32.partialorder %v563, %v563
        %v948 = vadd.f32 %v436, 0.0
        %v949 = vadd.f32 %v437, 0.0
        %v950 = vadd.f32 %v438, 0.0
        %v951 = vadd.f32 %v439, 0.0
        %v952 = vadd.f32 %v440, 0.0
        %v953 = vadd.f32 %v441, 0.0
        %v954 = vadd.f32 %v442, 0.0
        %v955 = vadd.f32 %v443, 0.0
        %v956 = vadd.f32 %v444, 0.0
        %v957 = vadd.f32 %v445, 0.0
        %v958 = vadd.f32 %v446, 0.0
        %v959 = vadd.f32 %v447, 0.0
        %v960 = vadd.f32 %v448, 0.0
        %v961 = vadd.f32 %v449, 0.0
        %v962 = vadd.f32 %v450, 0.0
        %v963 = vadd.f32 %v451, 0.0
        %v964 = vadd.f32 %v452, 0.0
        %v965 = vadd.f32 %v453, 0.0
        %v966 = vadd.f32 %v454, 0.0
        %v967 = vadd.f32 %v455, 0.0
        %v968 = vadd.f32 %v456, 0.0
        %v969 = vadd.f32 %v457, 0.0
        %v970 = vadd.f32 %v458, 0.0
        %v971 = vadd.f32 %v459, 0.0
        %v972 = vadd.f32 %v460, 0.0
        %v973 = vadd.f32 %v461, 0.0
        %v974 = vadd.f32 %v462, 0.0
        %v975 = vadd.f32 %v463, 0.0
        %v976 = vadd.f32 %v464, 0.0
        %v977 = vadd.f32 %v465, 0.0
        %v978 = vadd.f32 %v466, 0.0
        %v979 = vadd.f32 %v467, 0.0
        %v980 = vadd.f32 %v468, 0.0
        %v981 = vadd.f32 %v469, 0.0
        %v982 = vadd.f32 %v470, 0.0
        %v983 = vadd.f32 %v471, 0.0
        %v984 = vadd.f32 %v472, 0.0
        %v985 = vadd.f32 %v473, 0.0
        %v986 = vadd.f32 %v474, 0.0
        %v987 = vadd.f32 %v475, 0.0
        %v988 = vadd.f32 %v476, 0.0
        %v989 = vadd.f32 %v477, 0.0
        %v990 = vadd.f32 %v478, 0.0
        %v991 = vadd.f32 %v479, 0.0
        %v992 = vadd.f32 %v480, 0.0
        %v993 = vadd.f32 %v481, 0.0
        %v994 = vadd.f32 %v482, 0.0
        %v995 = vadd.f32 %v483, 0.0
        %v996 = vadd.f32 %v484, 0.0
        %v997 = vadd.f32 %v485, 0.0
        %v998 = vadd.f32 %v486, 0.0
        %v999 = vadd.f32 %v487, 0.0
        %v1000 = vadd.f32 %v488, 0.0
        %v1001 = vadd.f32 %v489, 0.0
        %v1002 = vadd.f32 %v490, 0.0
        %v1003 = vadd.f32 %v491, 0.0
        %v1004 = vadd.f32 %v492, 0.0
        %v1005 = vadd.f32 %v493, 0.0
        %v1006 = vadd.f32 %v494, 0.0
        %v1007 = vadd.f32 %v495, 0.0
        %v1008 = vadd.f32 %v496, 0.0
        %v1009 = vadd.f32 %v497, 0.0
        %v1010 = vadd.f32 %v498, 0.0
        %v1011 = vadd.f32 %v499, 0.0
        %v1012 = vadd.f32 %v500, 0.0
        %v1013 = vadd.f32 %v501, 0.0
        %v1014 = vadd.f32 %v502, 0.0
        %v1015 = vadd.f32 %v503, 0.0
        %v1016 = vadd.f32 %v504, 0.0
        %v1017 = vadd.f32 %v505, 0.0
        %v1018 = vadd.f32 %v506, 0.0
        %v1019 = vadd.f32 %v507, 0.0
        %v1020 = vadd.f32 %v508, 0.0
        %v1021 = vadd.f32 %v509, 0.0
        %v1022 = vadd.f32 %v510, 0.0
        %v1023 = vadd.f32 %v511, 0.0
        %v1024 = vadd.f32 %v512, 0.0
        %v1025 = vadd.f32 %v513, 0.0
        %v1026 = vadd.f32 %v514, 0.0
        %v1027 = vadd.f32 %v515, 0.0
        %v1028 = vadd.f32 %v516, 0.0
        %v1029 = vadd.f32 %v517, 0.0
        %v1030 = vadd.f32 %v518, 0.0
        %v1031 = vadd.f32 %v519, 0.0
        %v1032 = vadd.f32 %v520, 0.0
        %v1033 = vadd.f32 %v521, 0.0
        %v1034 = vadd.f32 %v522, 0.0
        %v1035 = vadd.f32 %v523, 0.0
        %v1036 = vadd.f32 %v524, 0.0
        %v1037 = vadd.f32 %v525, 0.0
        %v1038 = vadd.f32 %v526, 0.0
        %v1039 = vadd.f32 %v527, 0.0
        %v1040 = vadd.f32 %v528, 0.0
        %v1041 = vadd.f32 %v529, 0.0
        %v1042 = vadd.f32 %v530, 0.0
        %v1043 = vadd.f32 %v531, 0.0
        %v1044 = vadd.f32 %v532, 0.0
        %v1045 = vadd.f32 %v533, 0.0
        %v1046 = vadd.f32 %v534, 0.0
        %v1047 = vadd.f32 %v535, 0.0
        %v1048 = vadd.f32 %v536, 0.0
        %v1049 = vadd.f32 %v537, 0.0
        %v1050 = vadd.f32 %v538, 0.0
        %v1051 = vadd.f32 %v539, 0.0
        %v1052 = vadd.f32 %v540, 0.0
        %v1053 = vadd.f32 %v541, 0.0
        %v1054 = vadd.f32 %v542, 0.0
        %v1055 = vadd.f32 %v543, 0.0
        %v1056 = vadd.f32 %v544, 0.0
        %v1057 = vadd.f32 %v545, 0.0
        %v1058 = vadd.f32 %v546, 0.0
        %v1059 = vadd.f32 %v547, 0.0
        %v1060 = vadd.f32 %v548, 0.0
        %v1061 = vadd.f32 %v549, 0.0
        %v1062 = vadd.f32 %v550, 0.0
        %v1063 = vadd.f32 %v551, 0.0
        %v1064 = vadd.f32 %v552, 0.0
        %v1065 = vadd.f32 %v553, 0.0
        %v1066 = vadd.f32 %v554, 0.0
        %v1067 = vadd.f32 %v555, 0.0
        %v1068 = vadd.f32 %v556, 0.0
        %v1069 = vadd.f32 %v557, 0.0
        %v1070 = vadd.f32 %v558, 0.0
        %v1071 = vadd.f32 %v559, 0.0
        %v1072 = vadd.f32 %v560, 0.0
        %v1073 = vadd.f32 %v561, 0.0
        %v1074 = vadd.f32 %v562, 0.0
        %v1075 = vadd.f32 %v563, 0.0
        %v1076 = vand.u32 2147483647, %v436
        %v1077 = vand.u32 2147483647, %v437
        %v1078 = vand.u32 2147483647, %v438
        %v1079 = vand.u32 2147483647, %v439
        %v1080 = vand.u32 2147483647, %v440
        %v1081 = vand.u32 2147483647, %v441
        %v1082 = vand.u32 2147483647, %v442
        %v1083 = vand.u32 2147483647, %v443
        %v1084 = vand.u32 2147483647, %v444
        %v1085 = vand.u32 2147483647, %v445
        %v1086 = vand.u32 2147483647, %v446
        %v1087 = vand.u32 2147483647, %v447
        %v1088 = vand.u32 2147483647, %v448
        %v1089 = vand.u32 2147483647, %v449
        %v1090 = vand.u32 2147483647, %v450
        %v1091 = vand.u32 2147483647, %v451
        %v1092 = vand.u32 2147483647, %v452
        %v1093 = vand.u32 2147483647, %v453
        %v1094 = vand.u32 2147483647, %v454
        %v1095 = vand.u32 2147483647, %v455
        %v1096 = vand.u32 2147483647, %v456
        %v1097 = vand.u32 2147483647, %v457
        %v1098 = vand.u32 2147483647, %v458
        %v1099 = vand.u32 2147483647, %v459
        %v1100 = vand.u32 2147483647, %v460
        %v1101 = vand.u32 2147483647, %v461
        %v1102 = vand.u32 2147483647, %v462
        %v1103 = vand.u32 2147483647, %v463
        %v1104 = vand.u32 2147483647, %v464
        %v1105 = vand.u32 2147483647, %v465
        %v1106 = vand.u32 2147483647, %v466
        %v1107 = vand.u32 2147483647, %v467
        %v1108 = vand.u32 2147483647, %v468
        %v1109 = vand.u32 2147483647, %v469
        %v1110 = vand.u32 2147483647, %v470
        %v1111 = vand.u32 2147483647, %v471
        %v1112 = vand.u32 2147483647, %v472
        %v1113 = vand.u32 2147483647, %v473
        %v1114 = vand.u32 2147483647, %v474
        %v1115 = vand.u32 2147483647, %v475
        %v1116 = vand.u32 2147483647, %v476
        %v1117 = vand.u32 2147483647, %v477
        %v1118 = vand.u32 2147483647, %v478
        %v1119 = vand.u32 2147483647, %v479
        %v1120 = vand.u32 2147483647, %v480
        %v1121 = vand.u32 2147483647, %v481
        %v1122 = vand.u32 2147483647, %v482
        %v1123 = vand.u32 2147483647, %v483
        %v1124 = vand.u32 2147483647, %v484
        %v1125 = vand.u32 2147483647, %v485
        %v1126 = vand.u32 2147483647, %v486
        %v1127 = vand.u32 2147483647, %v487
        %v1128 = vand.u32 2147483647, %v488
        %v1129 = vand.u32 2147483647, %v489
        %v1130 = vand.u32 2147483647, %v490
        %v1131 = vand.u32 2147483647, %v491
        %v1132 = vand.u32 2147483647, %v492
        %v1133 = vand.u32 2147483647, %v493
        %v1134 = vand.u32 2147483647, %v494
        %v1135 = vand.u32 2147483647, %v495
        %v1136 = vand.u32 2147483647, %v496
        %v1137 = vand.u32 2147483647, %v497
        %v1138 = vand.u32 2147483647, %v498
        %v1139 = vand.u32 2147483647, %v499
        %v1140 = vand.u32 2147483647, %v500
        %v1141 = vand.u32 2147483647, %v501
        %v1142 = vand.u32 2147483647, %v502
        %v1143 = vand.u32 2147483647, %v503
        %v1144 = vand.u32 2147483647, %v504
        %v1145 = vand.u32 2147483647, %v505
        %v1146 = vand.u32 2147483647, %v506
        %v1147 = vand.u32 2147483647, %v507
        %v1148 = vand.u32 2147483647, %v508
        %v1149 = vand.u32 2147483647, %v509
        %v1150 = vand.u32 2147483647, %v510
        %v1151 = vand.u32 2147483647, %v511
        %v1152 = vand.u32 2147483647, %v512
        %v1153 = vand.u32 2147483647, %v513
        %v1154 = vand.u32 2147483647, %v514
        %v1155 = vand.u32 2147483647, %v515
        %v1156 = vand.u32 2147483647, %v516
        %v1157 = vand.u32 2147483647, %v517
        %v1158 = vand.u32 2147483647, %v518
        %v1159 = vand.u32 2147483647, %v519
        %v1160 = vand.u32 2147483647, %v520
        %v1161 = vand.u32 2147483647, %v521
        %v1162 = vand.u32 2147483647, %v522
        %v1163 = vand.u32 2147483647, %v523
        %v1164 = vand.u32 2147483647, %v524
        %v1165 = vand.u32 2147483647, %v525
        %v1166 = vand.u32 2147483647, %v526
        %v1167 = vand.u32 2147483647, %v527
        %v1168 = vand.u32 2147483647, %v528
        %v1169 = vand.u32 2147483647, %v529
        %v1170 = vand.u32 2147483647, %v530
        %v1171 = vand.u32 2147483647, %v531
        %v1172 = vand.u32 2147483647, %v532
        %v1173 = vand.u32 2147483647, %v533
        %v1174 = vand.u32 2147483647, %v534
        %v1175 = vand.u32 2147483647, %v535
        %v1176 = vand.u32 2147483647, %v536
        %v1177 = vand.u32 2147483647, %v537
        %v1178 = vand.u32 2147483647, %v538
        %v1179 = vand.u32 2147483647, %v539
        %v1180 = vand.u32 2147483647, %v540
        %v1181 = vand.u32 2147483647, %v541
        %v1182 = vand.u32 2147483647, %v542
        %v1183 = vand.u32 2147483647, %v543
        %v1184 = vand.u32 2147483647, %v544
        %v1185 = vand.u32 2147483647, %v545
        %v1186 = vand.u32 2147483647, %v546
        %v1187 = vand.u32 2147483647, %v547
        %v1188 = vand.u32 2147483647, %v548
        %v1189 = vand.u32 2147483647, %v549
        %v1190 = vand.u32 2147483647, %v550
        %v1191 = vand.u32 2147483647, %v551
        %v1192 = vand.u32 2147483647, %v552
        %v1193 = vand.u32 2147483647, %v553
        %v1194 = vand.u32 2147483647, %v554
        %v1195 = vand.u32 2147483647, %v555
        %v1196 = vand.u32 2147483647, %v556
        %v1197 = vand.u32 2147483647, %v557
        %v1198 = vand.u32 2147483647, %v558
        %v1199 = vand.u32 2147483647, %v559
        %v1200 = vand.u32 2147483647, %v560
        %v1201 = vand.u32 2147483647, %v561
        %v1202 = vand.u32 2147483647, %v562
        %v1203 = vand.u32 2147483647, %v563
        %v1204 = vsub.f32 0.0, %v1076
        %v1205 = vsub.f32 0.0, %v1077
        %v1206 = vsub.f32 0.0, %v1078
        %v1207 = vsub.f32 0.0, %v1079
        %v1208 = vsub.f32 0.0, %v1080
        %v1209 = vsub.f32 0.0, %v1081
        %v1210 = vsub.f32 0.0, %v1082
        %v1211 = vsub.f32 0.0, %v1083
        %v1212 = vsub.f32 0.0, %v1084
        %v1213 = vsub.f32 0.0, %v1085
        %v1214 = vsub.f32 0.0, %v1086
        %v1215 = vsub.f32 0.0, %v1087
        %v1216 = vsub.f32 0.0, %v1088
        %v1217 = vsub.f32 0.0, %v1089
        %v1218 = vsub.f32 0.0, %v1090
        %v1219 = vsub.f32 0.0, %v1091
        %v1220 = vsub.f32 0.0, %v1092
        %v1221 = vsub.f32 0.0, %v1093
        %v1222 = vsub.f32 0.0, %v1094
        %v1223 = vsub.f32 0.0, %v1095
        %v1224 = vsub.f32 0.0, %v1096
        %v1225 = vsub.f32 0.0, %v1097
        %v1226 = vsub.f32 0.0, %v1098
        %v1227 = vsub.f32 0.0, %v1099
        %v1228 = vsub.f32 0.0, %v1100
        %v1229 = vsub.f32 0.0, %v1101
        %v1230 = vsub.f32 0.0, %v1102
        %v1231 = vsub.f32 0.0, %v1103
        %v1232 = vsub.f32 0.0, %v1104
        %v1233 = vsub.f32 0.0, %v1105
        %v1234 = vsub.f32 0.0, %v1106
        %v1235 = vsub.f32 0.0, %v1107
        %v1236 = vsub.f32 0.0, %v1108
        %v1237 = vsub.f32 0.0, %v1109
        %v1238 = vsub.f32 0.0, %v1110
        %v1239 = vsub.f32 0.0, %v1111
        %v1240 = vsub.f32 0.0, %v1112
        %v1241 = vsub.f32 0.0, %v1113
        %v1242 = vsub.f32 0.0, %v1114
        %v1243 = vsub.f32 0.0, %v1115
        %v1244 = vsub.f32 0.0, %v1116
        %v1245 = vsub.f32 0.0, %v1117
        %v1246 = vsub.f32 0.0, %v1118
        %v1247 = vsub.f32 0.0, %v1119
        %v1248 = vsub.f32 0.0, %v1120
        %v1249 = vsub.f32 0.0, %v1121
        %v1250 = vsub.f32 0.0, %v1122
        %v1251 = vsub.f32 0.0, %v1123
        %v1252 = vsub.f32 0.0, %v1124
        %v1253 = vsub.f32 0.0, %v1125
        %v1254 = vsub.f32 0.0, %v1126
        %v1255 = vsub.f32 0.0, %v1127
        %v1256 = vsub.f32 0.0, %v1128
        %v1257 = vsub.f32 0.0, %v1129
        %v1258 = vsub.f32 0.0, %v1130
        %v1259 = vsub.f32 0.0, %v1131
        %v1260 = vsub.f32 0.0, %v1132
        %v1261 = vsub.f32 0.0, %v1133
        %v1262 = vsub.f32 0.0, %v1134
        %v1263 = vsub.f32 0.0, %v1135
        %v1264 = vsub.f32 0.0, %v1136
        %v1265 = vsub.f32 0.0, %v1137
        %v1266 = vsub.f32 0.0, %v1138
        %v1267 = vsub.f32 0.0, %v1139
        %v1268 = vsub.f32 0.0, %v1140
        %v1269 = vsub.f32 0.0, %v1141
        %v1270 = vsub.f32 0.0, %v1142
        %v1271 = vsub.f32 0.0, %v1143
        %v1272 = vsub.f32 0.0, %v1144
        %v1273 = vsub.f32 0.0, %v1145
        %v1274 = vsub.f32 0.0, %v1146
        %v1275 = vsub.f32 0.0, %v1147
        %v1276 = vsub.f32 0.0, %v1148
        %v1277 = vsub.f32 0.0, %v1149
        %v1278 = vsub.f32 0.0, %v1150
        %v1279 = vsub.f32 0.0, %v1151
        %v1280 = vsub.f32 0.0, %v1152
        %v1281 = vsub.f32 0.0, %v1153
        %v1282 = vsub.f32 0.0, %v1154
        %v1283 = vsub.f32 0.0, %v1155
        %v1284 = vsub.f32 0.0, %v1156
        %v1285 = vsub.f32 0.0, %v1157
        %v1286 = vsub.f32 0.0, %v1158
        %v1287 = vsub.f32 0.0, %v1159
        %v1288 = vsub.f32 0.0, %v1160
        %v1289 = vsub.f32 0.0, %v1161
        %v1290 = vsub.f32 0.0, %v1162
        %v1291 = vsub.f32 0.0, %v1163
        %v1292 = vsub.f32 0.0, %v1164
        %v1293 = vsub.f32 0.0, %v1165
        %v1294 = vsub.f32 0.0, %v1166
        %v1295 = vsub.f32 0.0, %v1167
        %v1296 = vsub.f32 0.0, %v1168
        %v1297 = vsub.f32 0.0, %v1169
        %v1298 = vsub.f32 0.0, %v1170
        %v1299 = vsub.f32 0.0, %v1171
        %v1300 = vsub.f32 0.0, %v1172
        %v1301 = vsub.f32 0.0, %v1173
        %v1302 = vsub.f32 0.0, %v1174
        %v1303 = vsub.f32 0.0, %v1175
        %v1304 = vsub.f32 0.0, %v1176
        %v1305 = vsub.f32 0.0, %v1177
        %v1306 = vsub.f32 0.0, %v1178
        %v1307 = vsub.f32 0.0, %v1179
        %v1308 = vsub.f32 0.0, %v1180
        %v1309 = vsub.f32 0.0, %v1181
        %v1310 = vsub.f32 0.0, %v1182
        %v1311 = vsub.f32 0.0, %v1183
        %v1312 = vsub.f32 0.0, %v1184
        %v1313 = vsub.f32 0.0, %v1185
        %v1314 = vsub.f32 0.0, %v1186
        %v1315 = vsub.f32 0.0, %v1187
        %v1316 = vsub.f32 0.0, %v1188
        %v1317 = vsub.f32 0.0, %v1189
        %v1318 = vsub.f32 0.0, %v1190
        %v1319 = vsub.f32 0.0, %v1191
        %v1320 = vsub.f32 0.0, %v1192
        %v1321 = vsub.f32 0.0, %v1193
        %v1322 = vsub.f32 0.0, %v1194
        %v1323 = vsub.f32 0.0, %v1195
        %v1324 = vsub.f32 0.0, %v1196
        %v1325 = vsub.f32 0.0, %v1197
        %v1326 = vsub.f32 0.0, %v1198
        %v1327 = vsub.f32 0.0, %v1199
        %v1328 = vsub.f32 0.0, %v1200
        %v1329 = vsub.f32 0.0, %v1201
        %v1330 = vsub.f32 0.0, %v1202
        %v1331 = vsub.f32 0.0, %v1203
        %v1332 = vmul.f32 %v1204, 1.442695
        %v1333 = vpow.pop %v1332
        %v1334 = vmul.f32 %v1205, 1.442695
        %v1335 = vpow.pop %v1334
        %v1336 = vmul.f32 %v1206, 1.442695
        %v1337 = vpow.pop %v1336
        %v1338 = vmul.f32 %v1207, 1.442695
        %v1339 = vpow.pop %v1338
        %v1340 = vmul.f32 %v1208, 1.442695
        %v1341 = vpow.pop %v1340
        %v1342 = vmul.f32 %v1209, 1.442695
        %v1343 = vpow.pop %v1342
        %v1344 = vmul.f32 %v1210, 1.442695
        %v1345 = vpow.pop %v1344
        %v1346 = vmul.f32 %v1211, 1.442695
        %v1347 = vpow.pop %v1346
        %v1348 = vmul.f32 %v1212, 1.442695
        %v1349 = vpow.pop %v1348
        %v1350 = vmul.f32 %v1213, 1.442695
        %v1351 = vpow.pop %v1350
        %v1352 = vmul.f32 %v1214, 1.442695
        %v1353 = vpow.pop %v1352
        %v1354 = vmul.f32 %v1215, 1.442695
        %v1355 = vpow.pop %v1354
        %v1356 = vmul.f32 %v1216, 1.442695
        %v1357 = vpow.pop %v1356
        %v1358 = vmul.f32 %v1217, 1.442695
        %v1359 = vpow.pop %v1358
        %v1360 = vmul.f32 %v1218, 1.442695
        %v1361 = vpow.pop %v1360
        %v1362 = vmul.f32 %v1219, 1.442695
        %v1363 = vpow.pop %v1362
        %v1364 = vmul.f32 %v1220, 1.442695
        %v1365 = vpow.pop %v1364
        %v1366 = vmul.f32 %v1221, 1.442695
        %v1367 = vpow.pop %v1366
        %v1368 = vmul.f32 %v1222, 1.442695
        %v1369 = vpow.pop %v1368
        %v1370 = vmul.f32 %v1223, 1.442695
        %v1371 = vpow.pop %v1370
        %v1372 = vmul.f32 %v1224, 1.442695
        %v1373 = vpow.pop %v1372
        %v1374 = vmul.f32 %v1225, 1.442695
        %v1375 = vpow.pop %v1374
        %v1376 = vmul.f32 %v1226, 1.442695
        %v1377 = vpow.pop %v1376
        %v1378 = vmul.f32 %v1227, 1.442695
        %v1379 = vpow.pop %v1378
        %v1380 = vmul.f32 %v1228, 1.442695
        %v1381 = vpow.pop %v1380
        %v1382 = vmul.f32 %v1229, 1.442695
        %v1383 = vpow.pop %v1382
        %v1384 = vmul.f32 %v1230, 1.442695
        %v1385 = vpow.pop %v1384
        %v1386 = vmul.f32 %v1231, 1.442695
        %v1387 = vpow.pop %v1386
        %v1388 = vmul.f32 %v1232, 1.442695
        %v1389 = vpow.pop %v1388
        %v1390 = vmul.f32 %v1233, 1.442695
        %v1391 = vpow.pop %v1390
        %v1392 = vmul.f32 %v1234, 1.442695
        %v1393 = vpow.pop %v1392
        %v1394 = vmul.f32 %v1235, 1.442695
        %v1395 = vpow.pop %v1394
        %v1396 = vmul.f32 %v1236, 1.442695
        %v1397 = vpow.pop %v1396
        %v1398 = vmul.f32 %v1237, 1.442695
        %v1399 = vpow.pop %v1398
        %v1400 = vmul.f32 %v1238, 1.442695
        %v1401 = vpow.pop %v1400
        %v1402 = vmul.f32 %v1239, 1.442695
        %v1403 = vpow.pop %v1402
        %v1404 = vmul.f32 %v1240, 1.442695
        %v1405 = vpow.pop %v1404
        %v1406 = vmul.f32 %v1241, 1.442695
        %v1407 = vpow.pop %v1406
        %v1408 = vmul.f32 %v1242, 1.442695
        %v1409 = vpow.pop %v1408
        %v1410 = vmul.f32 %v1243, 1.442695
        %v1411 = vpow.pop %v1410
        %v1412 = vmul.f32 %v1244, 1.442695
        %v1413 = vpow.pop %v1412
        %v1414 = vmul.f32 %v1245, 1.442695
        %v1415 = vpow.pop %v1414
        %v1416 = vmul.f32 %v1246, 1.442695
        %v1417 = vpow.pop %v1416
        %v1418 = vmul.f32 %v1247, 1.442695
        %v1419 = vpow.pop %v1418
        %v1420 = vmul.f32 %v1248, 1.442695
        %v1421 = vpow.pop %v1420
        %v1422 = vmul.f32 %v1249, 1.442695
        %v1423 = vpow.pop %v1422
        %v1424 = vmul.f32 %v1250, 1.442695
        %v1425 = vpow.pop %v1424
        %v1426 = vmul.f32 %v1251, 1.442695
        %v1427 = vpow.pop %v1426
        %v1428 = vmul.f32 %v1252, 1.442695
        %v1429 = vpow.pop %v1428
        %v1430 = vmul.f32 %v1253, 1.442695
        %v1431 = vpow.pop %v1430
        %v1432 = vmul.f32 %v1254, 1.442695
        %v1433 = vpow.pop %v1432
        %v1434 = vmul.f32 %v1255, 1.442695
        %v1435 = vpow.pop %v1434
        %v1436 = vmul.f32 %v1256, 1.442695
        %v1437 = vpow.pop %v1436
        %v1438 = vmul.f32 %v1257, 1.442695
        %v1439 = vpow.pop %v1438
        %v1440 = vmul.f32 %v1258, 1.442695
        %v1441 = vpow.pop %v1440
        %v1442 = vmul.f32 %v1259, 1.442695
        %v1443 = vpow.pop %v1442
        %v1444 = vmul.f32 %v1260, 1.442695
        %v1445 = vpow.pop %v1444
        %v1446 = vmul.f32 %v1261, 1.442695
        %v1447 = vpow.pop %v1446
        %v1448 = vmul.f32 %v1262, 1.442695
        %v1449 = vpow.pop %v1448
        %v1450 = vmul.f32 %v1263, 1.442695
        %v1451 = vpow.pop %v1450
        %v1452 = vmul.f32 %v1264, 1.442695
        %v1453 = vpow.pop %v1452
        %v1454 = vmul.f32 %v1265, 1.442695
        %v1455 = vpow.pop %v1454
        %v1456 = vmul.f32 %v1266, 1.442695
        %v1457 = vpow.pop %v1456
        %v1458 = vmul.f32 %v1267, 1.442695
        %v1459 = vpow.pop %v1458
        %v1460 = vmul.f32 %v1268, 1.442695
        %v1461 = vpow.pop %v1460
        %v1462 = vmul.f32 %v1269, 1.442695
        %v1463 = vpow.pop %v1462
        %v1464 = vmul.f32 %v1270, 1.442695
        %v1465 = vpow.pop %v1464
        %v1466 = vmul.f32 %v1271, 1.442695
        %v1467 = vpow.pop %v1466
        %v1468 = vmul.f32 %v1272, 1.442695
        %v1469 = vpow.pop %v1468
        %v1470 = vmul.f32 %v1273, 1.442695
        %v1471 = vpow.pop %v1470
        %v1472 = vmul.f32 %v1274, 1.442695
        %v1473 = vpow.pop %v1472
        %v1474 = vmul.f32 %v1275, 1.442695
        %v1475 = vpow.pop %v1474
        %v1476 = vmul.f32 %v1276, 1.442695
        %v1477 = vpow.pop %v1476
        %v1478 = vmul.f32 %v1277, 1.442695
        %v1479 = vpow.pop %v1478
        %v1480 = vmul.f32 %v1278, 1.442695
        %v1481 = vpow.pop %v1480
        %v1482 = vmul.f32 %v1279, 1.442695
        %v1483 = vpow.pop %v1482
        %v1484 = vmul.f32 %v1280, 1.442695
        %v1485 = vpow.pop %v1484
        %v1486 = vmul.f32 %v1281, 1.442695
        %v1487 = vpow.pop %v1486
        %v1488 = vmul.f32 %v1282, 1.442695
        %v1489 = vpow.pop %v1488
        %v1490 = vmul.f32 %v1283, 1.442695
        %v1491 = vpow.pop %v1490
        %v1492 = vmul.f32 %v1284, 1.442695
        %v1493 = vpow.pop %v1492
        %v1494 = vmul.f32 %v1285, 1.442695
        %v1495 = vpow.pop %v1494
        %v1496 = vmul.f32 %v1286, 1.442695
        %v1497 = vpow.pop %v1496
        %v1498 = vmul.f32 %v1287, 1.442695
        %v1499 = vpow.pop %v1498
        %v1500 = vmul.f32 %v1288, 1.442695
        %v1501 = vpow.pop %v1500
        %v1502 = vmul.f32 %v1289, 1.442695
        %v1503 = vpow.pop %v1502
        %v1504 = vmul.f32 %v1290, 1.442695
        %v1505 = vpow.pop %v1504
        %v1506 = vmul.f32 %v1291, 1.442695
        %v1507 = vpow.pop %v1506
        %v1508 = vmul.f32 %v1292, 1.442695
        %v1509 = vpow.pop %v1508
        %v1510 = vmul.f32 %v1293, 1.442695
        %v1511 = vpow.pop %v1510
        %v1512 = vmul.f32 %v1294, 1.442695
        %v1513 = vpow.pop %v1512
        %v1514 = vmul.f32 %v1295, 1.442695
        %v1515 = vpow.pop %v1514
        %v1516 = vmul.f32 %v1296, 1.442695
        %v1517 = vpow.pop %v1516
        %v1518 = vmul.f32 %v1297, 1.442695
        %v1519 = vpow.pop %v1518
        %v1520 = vmul.f32 %v1298, 1.442695
        %v1521 = vpow.pop %v1520
        %v1522 = vmul.f32 %v1299, 1.442695
        %v1523 = vpow.pop %v1522
        %v1524 = vmul.f32 %v1300, 1.442695
        %v1525 = vpow.pop %v1524
        %v1526 = vmul.f32 %v1301, 1.442695
        %v1527 = vpow.pop %v1526
        %v1528 = vmul.f32 %v1302, 1.442695
        %v1529 = vpow.pop %v1528
        %v1530 = vmul.f32 %v1303, 1.442695
        %v1531 = vpow.pop %v1530
        %v1532 = vmul.f32 %v1304, 1.442695
        %v1533 = vpow.pop %v1532
        %v1534 = vmul.f32 %v1305, 1.442695
        %v1535 = vpow.pop %v1534
        %v1536 = vmul.f32 %v1306, 1.442695
        %v1537 = vpow.pop %v1536
        %v1538 = vmul.f32 %v1307, 1.442695
        %v1539 = vpow.pop %v1538
        %v1540 = vmul.f32 %v1308, 1.442695
        %v1541 = vpow.pop %v1540
        %v1542 = vmul.f32 %v1309, 1.442695
        %v1543 = vpow.pop %v1542
        %v1544 = vmul.f32 %v1310, 1.442695
        %v1545 = vpow.pop %v1544
        %v1546 = vmul.f32 %v1311, 1.442695
        %v1547 = vpow.pop %v1546
        %v1548 = vmul.f32 %v1312, 1.442695
        %v1549 = vpow.pop %v1548
        %v1550 = vmul.f32 %v1313, 1.442695
        %v1551 = vpow.pop %v1550
        %v1552 = vmul.f32 %v1314, 1.442695
        %v1553 = vpow.pop %v1552
        %v1554 = vmul.f32 %v1315, 1.442695
        %v1555 = vpow.pop %v1554
        %v1556 = vmul.f32 %v1316, 1.442695
        %v1557 = vpow.pop %v1556
        %v1558 = vmul.f32 %v1317, 1.442695
        %v1559 = vpow.pop %v1558
        %v1560 = vmul.f32 %v1318, 1.442695
        %v1561 = vpow.pop %v1560
        %v1562 = vmul.f32 %v1319, 1.442695
        %v1563 = vpow.pop %v1562
        %v1564 = vmul.f32 %v1320, 1.442695
        %v1565 = vpow.pop %v1564
        %v1566 = vmul.f32 %v1321, 1.442695
        %v1567 = vpow.pop %v1566
        %v1568 = vmul.f32 %v1322, 1.442695
        %v1569 = vpow.pop %v1568
        %v1570 = vmul.f32 %v1323, 1.442695
        %v1571 = vpow.pop %v1570
        %v1572 = vmul.f32 %v1324, 1.442695
        %v1573 = vpow.pop %v1572
        %v1574 = vmul.f32 %v1325, 1.442695
        %v1575 = vpow.pop %v1574
        %v1576 = vmul.f32 %v1326, 1.442695
        %v1577 = vpow.pop %v1576
        %v1578 = vmul.f32 %v1327, 1.442695
        %v1579 = vpow.pop %v1578
        %v1580 = vmul.f32 %v1328, 1.442695
        %v1581 = vpow.pop %v1580
        %v1582 = vmul.f32 %v1329, 1.442695
        %v1583 = vpow.pop %v1582
        %v1584 = vmul.f32 %v1330, 1.442695
        %v1585 = vpow.pop %v1584
        %v1586 = vmul.f32 %v1331, 1.442695
        %v1587 = vpow.pop %v1586
        %v1588 = vadd.f32 %v1333, 1.0
        %v1589 = vlog2.pop %v1588
        %v1590 = vmul.f32 %v1589, 0.6931472
        %v1591 = vmul.f32 -0.5, %v1333
        %v1592 = vadd.f32 %v1591, 1.0
        %v1593 = vmul.f32 %v1592, %v1333
        %v1594 = vand.u32 2147483647, %v1333
        %vm1595 = vcmp.lt.f32.partialorder %v1594, 0.0004427343
        %v1596 = vsel %vm1595, %v1593, %v1590
        %v1597 = vadd.f32 %v1335, 1.0
        %v1598 = vlog2.pop %v1597
        %v1599 = vmul.f32 %v1598, 0.6931472
        %v1600 = vmul.f32 -0.5, %v1335
        %v1601 = vadd.f32 %v1600, 1.0
        %v1602 = vmul.f32 %v1601, %v1335
        %v1603 = vand.u32 2147483647, %v1335
        %vm1604 = vcmp.lt.f32.partialorder %v1603, 0.0004427343
        %v1605 = vsel %vm1604, %v1602, %v1599
        %v1606 = vadd.f32 %v1337, 1.0
        %v1607 = vlog2.pop %v1606
        %v1608 = vmul.f32 %v1607, 0.6931472
        %v1609 = vmul.f32 -0.5, %v1337
        %v1610 = vadd.f32 %v1609, 1.0
        %v1611 = vmul.f32 %v1610, %v1337
        %v1612 = vand.u32 2147483647, %v1337
        %vm1613 = vcmp.lt.f32.partialorder %v1612, 0.0004427343
        %v1614 = vsel %vm1613, %v1611, %v1608
        %v1615 = vadd.f32 %v1339, 1.0
        %v1616 = vlog2.pop %v1615
        %v1617 = vmul.f32 %v1616, 0.6931472
        %v1618 = vmul.f32 -0.5, %v1339
        %v1619 = vadd.f32 %v1618, 1.0
        %v1620 = vmul.f32 %v1619, %v1339
        %v1621 = vand.u32 2147483647, %v1339
        %vm1622 = vcmp.lt.f32.partialorder %v1621, 0.0004427343
        %v1623 = vsel %vm1622, %v1620, %v1617
        %v1624 = vadd.f32 %v1341, 1.0
        %v1625 = vlog2.pop %v1624
        %v1626 = vmul.f32 %v1625, 0.6931472
        %v1627 = vmul.f32 -0.5, %v1341
        %v1628 = vadd.f32 %v1627, 1.0
        %v1629 = vmul.f32 %v1628, %v1341
        %v1630 = vand.u32 2147483647, %v1341
        %vm1631 = vcmp.lt.f32.partialorder %v1630, 0.0004427343
        %v1632 = vsel %vm1631, %v1629, %v1626
        %v1633 = vadd.f32 %v1343, 1.0
        %v1634 = vlog2.pop %v1633
        %v1635 = vmul.f32 %v1634, 0.6931472
        %v1636 = vmul.f32 -0.5, %v1343
        %v1637 = vadd.f32 %v1636, 1.0
        %v1638 = vmul.f32 %v1637, %v1343
        %v1639 = vand.u32 2147483647, %v1343
        %vm1640 = vcmp.lt.f32.partialorder %v1639, 0.0004427343
        %v1641 = vsel %vm1640, %v1638, %v1635
        %v1642 = vadd.f32 %v1345, 1.0
        %v1643 = vlog2.pop %v1642
        %v1644 = vmul.f32 %v1643, 0.6931472
        %v1645 = vmul.f32 -0.5, %v1345
        %v1646 = vadd.f32 %v1645, 1.0
        %v1647 = vmul.f32 %v1646, %v1345
        %v1648 = vand.u32 2147483647, %v1345
        %vm1649 = vcmp.lt.f32.partialorder %v1648, 0.0004427343
        %v1650 = vsel %vm1649, %v1647, %v1644
        %v1651 = vadd.f32 %v1347, 1.0
        %v1652 = vlog2.pop %v1651
        %v1653 = vmul.f32 %v1652, 0.6931472
        %v1654 = vmul.f32 -0.5, %v1347
        %v1655 = vadd.f32 %v1654, 1.0
        %v1656 = vmul.f32 %v1655, %v1347
        %v1657 = vand.u32 2147483647, %v1347
        %vm1658 = vcmp.lt.f32.partialorder %v1657, 0.0004427343
        %v1659 = vsel %vm1658, %v1656, %v1653
        %v1660 = vadd.f32 %v1349, 1.0
        %v1661 = vlog2.pop %v1660
        %v1662 = vmul.f32 %v1661, 0.6931472
        %v1663 = vmul.f32 -0.5, %v1349
        %v1664 = vadd.f32 %v1663, 1.0
        %v1665 = vmul.f32 %v1664, %v1349
        %v1666 = vand.u32 2147483647, %v1349
        %vm1667 = vcmp.lt.f32.partialorder %v1666, 0.0004427343
        %v1668 = vsel %vm1667, %v1665, %v1662
        %v1669 = vadd.f32 %v1351, 1.0
        %v1670 = vlog2.pop %v1669
        %v1671 = vmul.f32 %v1670, 0.6931472
        %v1672 = vmul.f32 -0.5, %v1351
        %v1673 = vadd.f32 %v1672, 1.0
        %v1674 = vmul.f32 %v1673, %v1351
        %v1675 = vand.u32 2147483647, %v1351
        %vm1676 = vcmp.lt.f32.partialorder %v1675, 0.0004427343
        %v1677 = vsel %vm1676, %v1674, %v1671
        %v1678 = vadd.f32 %v1353, 1.0
        %v1679 = vlog2.pop %v1678
        %v1680 = vmul.f32 %v1679, 0.6931472
        %v1681 = vmul.f32 -0.5, %v1353
        %v1682 = vadd.f32 %v1681, 1.0
        %v1683 = vmul.f32 %v1682, %v1353
        %v1684 = vand.u32 2147483647, %v1353
        %vm1685 = vcmp.lt.f32.partialorder %v1684, 0.0004427343
        %v1686 = vsel %vm1685, %v1683, %v1680
        %v1687 = vadd.f32 %v1355, 1.0
        %v1688 = vlog2.pop %v1687
        %v1689 = vmul.f32 %v1688, 0.6931472
        %v1690 = vmul.f32 -0.5, %v1355
        %v1691 = vadd.f32 %v1690, 1.0
        %v1692 = vmul.f32 %v1691, %v1355
        %v1693 = vand.u32 2147483647, %v1355
        %vm1694 = vcmp.lt.f32.partialorder %v1693, 0.0004427343
        %v1695 = vsel %vm1694, %v1692, %v1689
        %v1696 = vadd.f32 %v1357, 1.0
        %v1697 = vlog2.pop %v1696
        %v1698 = vmul.f32 %v1697, 0.6931472
        %v1699 = vmul.f32 -0.5, %v1357
        %v1700 = vadd.f32 %v1699, 1.0
        %v1701 = vmul.f32 %v1700, %v1357
        %v1702 = vand.u32 2147483647, %v1357
        %vm1703 = vcmp.lt.f32.partialorder %v1702, 0.0004427343
        %v1704 = vsel %vm1703, %v1701, %v1698
        %v1705 = vadd.f32 %v1359, 1.0
        %v1706 = vlog2.pop %v1705
        %v1707 = vmul.f32 %v1706, 0.6931472
        %v1708 = vmul.f32 -0.5, %v1359
        %v1709 = vadd.f32 %v1708, 1.0
        %v1710 = vmul.f32 %v1709, %v1359
        %v1711 = vand.u32 2147483647, %v1359
        %vm1712 = vcmp.lt.f32.partialorder %v1711, 0.0004427343
        %v1713 = vsel %vm1712, %v1710, %v1707
        %v1714 = vadd.f32 %v1361, 1.0
        %v1715 = vlog2.pop %v1714
        %v1716 = vmul.f32 %v1715, 0.6931472
        %v1717 = vmul.f32 -0.5, %v1361
        %v1718 = vadd.f32 %v1717, 1.0
        %v1719 = vmul.f32 %v1718, %v1361
        %v1720 = vand.u32 2147483647, %v1361
        %vm1721 = vcmp.lt.f32.partialorder %v1720, 0.0004427343
        %v1722 = vsel %vm1721, %v1719, %v1716
        %v1723 = vadd.f32 %v1363, 1.0
        %v1724 = vlog2.pop %v1723
        %v1725 = vmul.f32 %v1724, 0.6931472
        %v1726 = vmul.f32 -0.5, %v1363
        %v1727 = vadd.f32 %v1726, 1.0
        %v1728 = vmul.f32 %v1727, %v1363
        %v1729 = vand.u32 2147483647, %v1363
        %vm1730 = vcmp.lt.f32.partialorder %v1729, 0.0004427343
        %v1731 = vsel %vm1730, %v1728, %v1725
        %v1732 = vadd.f32 %v1365, 1.0
        %v1733 = vlog2.pop %v1732
        %v1734 = vmul.f32 %v1733, 0.6931472
        %v1735 = vmul.f32 -0.5, %v1365
        %v1736 = vadd.f32 %v1735, 1.0
        %v1737 = vmul.f32 %v1736, %v1365
        %v1738 = vand.u32 2147483647, %v1365
        %vm1739 = vcmp.lt.f32.partialorder %v1738, 0.0004427343
        %v1740 = vsel %vm1739, %v1737, %v1734
        %v1741 = vadd.f32 %v1367, 1.0
        %v1742 = vlog2.pop %v1741
        %v1743 = vmul.f32 %v1742, 0.6931472
        %v1744 = vmul.f32 -0.5, %v1367
        %v1745 = vadd.f32 %v1744, 1.0
        %v1746 = vmul.f32 %v1745, %v1367
        %v1747 = vand.u32 2147483647, %v1367
        %vm1748 = vcmp.lt.f32.partialorder %v1747, 0.0004427343
        %v1749 = vsel %vm1748, %v1746, %v1743
        %v1750 = vadd.f32 %v1369, 1.0
        %v1751 = vlog2.pop %v1750
        %v1752 = vmul.f32 %v1751, 0.6931472
        %v1753 = vmul.f32 -0.5, %v1369
        %v1754 = vadd.f32 %v1753, 1.0
        %v1755 = vmul.f32 %v1754, %v1369
        %v1756 = vand.u32 2147483647, %v1369
        %vm1757 = vcmp.lt.f32.partialorder %v1756, 0.0004427343
        %v1758 = vsel %vm1757, %v1755, %v1752
        %v1759 = vadd.f32 %v1371, 1.0
        %v1760 = vlog2.pop %v1759
        %v1761 = vmul.f32 %v1760, 0.6931472
        %v1762 = vmul.f32 -0.5, %v1371
        %v1763 = vadd.f32 %v1762, 1.0
        %v1764 = vmul.f32 %v1763, %v1371
        %v1765 = vand.u32 2147483647, %v1371
        %vm1766 = vcmp.lt.f32.partialorder %v1765, 0.0004427343
        %v1767 = vsel %vm1766, %v1764, %v1761
        %v1768 = vadd.f32 %v1373, 1.0
        %v1769 = vlog2.pop %v1768
        %v1770 = vmul.f32 %v1769, 0.6931472
        %v1771 = vmul.f32 -0.5, %v1373
        %v1772 = vadd.f32 %v1771, 1.0
        %v1773 = vmul.f32 %v1772, %v1373
        %v1774 = vand.u32 2147483647, %v1373
        %vm1775 = vcmp.lt.f32.partialorder %v1774, 0.0004427343
        %v1776 = vsel %vm1775, %v1773, %v1770
        %v1777 = vadd.f32 %v1375, 1.0
        %v1778 = vlog2.pop %v1777
        %v1779 = vmul.f32 %v1778, 0.6931472
        %v1780 = vmul.f32 -0.5, %v1375
        %v1781 = vadd.f32 %v1780, 1.0
        %v1782 = vmul.f32 %v1781, %v1375
        %v1783 = vand.u32 2147483647, %v1375
        %vm1784 = vcmp.lt.f32.partialorder %v1783, 0.0004427343
        %v1785 = vsel %vm1784, %v1782, %v1779
        %v1786 = vadd.f32 %v1377, 1.0
        %v1787 = vlog2.pop %v1786
        %v1788 = vmul.f32 %v1787, 0.6931472
        %v1789 = vmul.f32 -0.5, %v1377
        %v1790 = vadd.f32 %v1789, 1.0
        %v1791 = vmul.f32 %v1790, %v1377
        %v1792 = vand.u32 2147483647, %v1377
        %vm1793 = vcmp.lt.f32.partialorder %v1792, 0.0004427343
        %v1794 = vsel %vm1793, %v1791, %v1788
        %v1795 = vadd.f32 %v1379, 1.0
        %v1796 = vlog2.pop %v1795
        %v1797 = vmul.f32 %v1796, 0.6931472
        %v1798 = vmul.f32 -0.5, %v1379
        %v1799 = vadd.f32 %v1798, 1.0
        %v1800 = vmul.f32 %v1799, %v1379
        %v1801 = vand.u32 2147483647, %v1379
        %vm1802 = vcmp.lt.f32.partialorder %v1801, 0.0004427343
        %v1803 = vsel %vm1802, %v1800, %v1797
        %v1804 = vadd.f32 %v1381, 1.0
        %v1805 = vlog2.pop %v1804
        %v1806 = vmul.f32 %v1805, 0.6931472
        %v1807 = vmul.f32 -0.5, %v1381
        %v1808 = vadd.f32 %v1807, 1.0
        %v1809 = vmul.f32 %v1808, %v1381
        %v1810 = vand.u32 2147483647, %v1381
        %vm1811 = vcmp.lt.f32.partialorder %v1810, 0.0004427343
        %v1812 = vsel %vm1811, %v1809, %v1806
        %v1813 = vadd.f32 %v1383, 1.0
        %v1814 = vlog2.pop %v1813
        %v1815 = vmul.f32 %v1814, 0.6931472
        %v1816 = vmul.f32 -0.5, %v1383
        %v1817 = vadd.f32 %v1816, 1.0
        %v1818 = vmul.f32 %v1817, %v1383
        %v1819 = vand.u32 2147483647, %v1383
        %vm1820 = vcmp.lt.f32.partialorder %v1819, 0.0004427343
        %v1821 = vsel %vm1820, %v1818, %v1815
        %v1822 = vadd.f32 %v1385, 1.0
        %v1823 = vlog2.pop %v1822
        %v1824 = vmul.f32 %v1823, 0.6931472
        %v1825 = vmul.f32 -0.5, %v1385
        %v1826 = vadd.f32 %v1825, 1.0
        %v1827 = vmul.f32 %v1826, %v1385
        %v1828 = vand.u32 2147483647, %v1385
        %vm1829 = vcmp.lt.f32.partialorder %v1828, 0.0004427343
        %v1830 = vsel %vm1829, %v1827, %v1824
        %v1831 = vadd.f32 %v1387, 1.0
        %v1832 = vlog2.pop %v1831
        %v1833 = vmul.f32 %v1832, 0.6931472
        %v1834 = vmul.f32 -0.5, %v1387
        %v1835 = vadd.f32 %v1834, 1.0
        %v1836 = vmul.f32 %v1835, %v1387
        %v1837 = vand.u32 2147483647, %v1387
        %vm1838 = vcmp.lt.f32.partialorder %v1837, 0.0004427343
        %v1839 = vsel %vm1838, %v1836, %v1833
        %v1840 = vadd.f32 %v1389, 1.0
        %v1841 = vlog2.pop %v1840
        %v1842 = vmul.f32 %v1841, 0.6931472
        %v1843 = vmul.f32 -0.5, %v1389
        %v1844 = vadd.f32 %v1843, 1.0
        %v1845 = vmul.f32 %v1844, %v1389
        %v1846 = vand.u32 2147483647, %v1389
        %vm1847 = vcmp.lt.f32.partialorder %v1846, 0.0004427343
        %v1848 = vsel %vm1847, %v1845, %v1842
        %v1849 = vadd.f32 %v1391, 1.0
        %v1850 = vlog2.pop %v1849
        %v1851 = vmul.f32 %v1850, 0.6931472
        %v1852 = vmul.f32 -0.5, %v1391
        %v1853 = vadd.f32 %v1852, 1.0
        %v1854 = vmul.f32 %v1853, %v1391
        %v1855 = vand.u32 2147483647, %v1391
        %vm1856 = vcmp.lt.f32.partialorder %v1855, 0.0004427343
        %v1857 = vsel %vm1856, %v1854, %v1851
        %v1858 = vadd.f32 %v1393, 1.0
        %v1859 = vlog2.pop %v1858
        %v1860 = vmul.f32 %v1859, 0.6931472
        %v1861 = vmul.f32 -0.5, %v1393
        %v1862 = vadd.f32 %v1861, 1.0
        %v1863 = vmul.f32 %v1862, %v1393
        %v1864 = vand.u32 2147483647, %v1393
        %vm1865 = vcmp.lt.f32.partialorder %v1864, 0.0004427343
        %v1866 = vsel %vm1865, %v1863, %v1860
        %v1867 = vadd.f32 %v1395, 1.0
        %v1868 = vlog2.pop %v1867
        %v1869 = vmul.f32 %v1868, 0.6931472
        %v1870 = vmul.f32 -0.5, %v1395
        %v1871 = vadd.f32 %v1870, 1.0
        %v1872 = vmul.f32 %v1871, %v1395
        %v1873 = vand.u32 2147483647, %v1395
        %vm1874 = vcmp.lt.f32.partialorder %v1873, 0.0004427343
        %v1875 = vsel %vm1874, %v1872, %v1869
        %v1876 = vadd.f32 %v1397, 1.0
        %v1877 = vlog2.pop %v1876
        %v1878 = vmul.f32 %v1877, 0.6931472
        %v1879 = vmul.f32 -0.5, %v1397
        %v1880 = vadd.f32 %v1879, 1.0
        %v1881 = vmul.f32 %v1880, %v1397
        %v1882 = vand.u32 2147483647, %v1397
        %vm1883 = vcmp.lt.f32.partialorder %v1882, 0.0004427343
        %v1884 = vsel %vm1883, %v1881, %v1878
        %v1885 = vadd.f32 %v1399, 1.0
        %v1886 = vlog2.pop %v1885
        %v1887 = vmul.f32 %v1886, 0.6931472
        %v1888 = vmul.f32 -0.5, %v1399
        %v1889 = vadd.f32 %v1888, 1.0
        %v1890 = vmul.f32 %v1889, %v1399
        %v1891 = vand.u32 2147483647, %v1399
        %vm1892 = vcmp.lt.f32.partialorder %v1891, 0.0004427343
        %v1893 = vsel %vm1892, %v1890, %v1887
        %v1894 = vadd.f32 %v1401, 1.0
        %v1895 = vlog2.pop %v1894
        %v1896 = vmul.f32 %v1895, 0.6931472
        %v1897 = vmul.f32 -0.5, %v1401
        %v1898 = vadd.f32 %v1897, 1.0
        %v1899 = vmul.f32 %v1898, %v1401
        %v1900 = vand.u32 2147483647, %v1401
        %vm1901 = vcmp.lt.f32.partialorder %v1900, 0.0004427343
        %v1902 = vsel %vm1901, %v1899, %v1896
        %v1903 = vadd.f32 %v1403, 1.0
        %v1904 = vlog2.pop %v1903
        %v1905 = vmul.f32 %v1904, 0.6931472
        %v1906 = vmul.f32 -0.5, %v1403
        %v1907 = vadd.f32 %v1906, 1.0
        %v1908 = vmul.f32 %v1907, %v1403
        %v1909 = vand.u32 2147483647, %v1403
        %vm1910 = vcmp.lt.f32.partialorder %v1909, 0.0004427343
        %v1911 = vsel %vm1910, %v1908, %v1905
        %v1912 = vadd.f32 %v1405, 1.0
        %v1913 = vlog2.pop %v1912
        %v1914 = vmul.f32 %v1913, 0.6931472
        %v1915 = vmul.f32 -0.5, %v1405
        %v1916 = vadd.f32 %v1915, 1.0
        %v1917 = vmul.f32 %v1916, %v1405
        %v1918 = vand.u32 2147483647, %v1405
        %vm1919 = vcmp.lt.f32.partialorder %v1918, 0.0004427343
        %v1920 = vsel %vm1919, %v1917, %v1914
        %v1921 = vadd.f32 %v1407, 1.0
        %v1922 = vlog2.pop %v1921
        %v1923 = vmul.f32 %v1922, 0.6931472
        %v1924 = vmul.f32 -0.5, %v1407
        %v1925 = vadd.f32 %v1924, 1.0
        %v1926 = vmul.f32 %v1925, %v1407
        %v1927 = vand.u32 2147483647, %v1407
        %vm1928 = vcmp.lt.f32.partialorder %v1927, 0.0004427343
        %v1929 = vsel %vm1928, %v1926, %v1923
        %v1930 = vadd.f32 %v1409, 1.0
        %v1931 = vlog2.pop %v1930
        %v1932 = vmul.f32 %v1931, 0.6931472
        %v1933 = vmul.f32 -0.5, %v1409
        %v1934 = vadd.f32 %v1933, 1.0
        %v1935 = vmul.f32 %v1934, %v1409
        %v1936 = vand.u32 2147483647, %v1409
        %vm1937 = vcmp.lt.f32.partialorder %v1936, 0.0004427343
        %v1938 = vsel %vm1937, %v1935, %v1932
        %v1939 = vadd.f32 %v1411, 1.0
        %v1940 = vlog2.pop %v1939
        %v1941 = vmul.f32 %v1940, 0.6931472
        %v1942 = vmul.f32 -0.5, %v1411
        %v1943 = vadd.f32 %v1942, 1.0
        %v1944 = vmul.f32 %v1943, %v1411
        %v1945 = vand.u32 2147483647, %v1411
        %vm1946 = vcmp.lt.f32.partialorder %v1945, 0.0004427343
        %v1947 = vsel %vm1946, %v1944, %v1941
        %v1948 = vadd.f32 %v1413, 1.0
        %v1949 = vlog2.pop %v1948
        %v1950 = vmul.f32 %v1949, 0.6931472
        %v1951 = vmul.f32 -0.5, %v1413
        %v1952 = vadd.f32 %v1951, 1.0
        %v1953 = vmul.f32 %v1952, %v1413
        %v1954 = vand.u32 2147483647, %v1413
        %vm1955 = vcmp.lt.f32.partialorder %v1954, 0.0004427343
        %v1956 = vsel %vm1955, %v1953, %v1950
        %v1957 = vadd.f32 %v1415, 1.0
        %v1958 = vlog2.pop %v1957
        %v1959 = vmul.f32 %v1958, 0.6931472
        %v1960 = vmul.f32 -0.5, %v1415
        %v1961 = vadd.f32 %v1960, 1.0
        %v1962 = vmul.f32 %v1961, %v1415
        %v1963 = vand.u32 2147483647, %v1415
        %vm1964 = vcmp.lt.f32.partialorder %v1963, 0.0004427343
        %v1965 = vsel %vm1964, %v1962, %v1959
        %v1966 = vadd.f32 %v1417, 1.0
        %v1967 = vlog2.pop %v1966
        %v1968 = vmul.f32 %v1967, 0.6931472
        %v1969 = vmul.f32 -0.5, %v1417
        %v1970 = vadd.f32 %v1969, 1.0
        %v1971 = vmul.f32 %v1970, %v1417
        %v1972 = vand.u32 2147483647, %v1417
        %vm1973 = vcmp.lt.f32.partialorder %v1972, 0.0004427343
        %v1974 = vsel %vm1973, %v1971, %v1968
        %v1975 = vadd.f32 %v1419, 1.0
        %v1976 = vlog2.pop %v1975
        %v1977 = vmul.f32 %v1976, 0.6931472
        %v1978 = vmul.f32 -0.5, %v1419
        %v1979 = vadd.f32 %v1978, 1.0
        %v1980 = vmul.f32 %v1979, %v1419
        %v1981 = vand.u32 2147483647, %v1419
        %vm1982 = vcmp.lt.f32.partialorder %v1981, 0.0004427343
        %v1983 = vsel %vm1982, %v1980, %v1977
        %v1984 = vadd.f32 %v1421, 1.0
        %v1985 = vlog2.pop %v1984
        %v1986 = vmul.f32 %v1985, 0.6931472
        %v1987 = vmul.f32 -0.5, %v1421
        %v1988 = vadd.f32 %v1987, 1.0
        %v1989 = vmul.f32 %v1988, %v1421
        %v1990 = vand.u32 2147483647, %v1421
        %vm1991 = vcmp.lt.f32.partialorder %v1990, 0.0004427343
        %v1992 = vsel %vm1991, %v1989, %v1986
        %v1993 = vadd.f32 %v1423, 1.0
        %v1994 = vlog2.pop %v1993
        %v1995 = vmul.f32 %v1994, 0.6931472
        %v1996 = vmul.f32 -0.5, %v1423
        %v1997 = vadd.f32 %v1996, 1.0
        %v1998 = vmul.f32 %v1997, %v1423
        %v1999 = vand.u32 2147483647, %v1423
        %vm2000 = vcmp.lt.f32.partialorder %v1999, 0.0004427343
        %v2001 = vsel %vm2000, %v1998, %v1995
        %v2002 = vadd.f32 %v1425, 1.0
        %v2003 = vlog2.pop %v2002
        %v2004 = vmul.f32 %v2003, 0.6931472
        %v2005 = vmul.f32 -0.5, %v1425
        %v2006 = vadd.f32 %v2005, 1.0
        %v2007 = vmul.f32 %v2006, %v1425
        %v2008 = vand.u32 2147483647, %v1425
        %vm2009 = vcmp.lt.f32.partialorder %v2008, 0.0004427343
        %v2010 = vsel %vm2009, %v2007, %v2004
        %v2011 = vadd.f32 %v1427, 1.0
        %v2012 = vlog2.pop %v2011
        %v2013 = vmul.f32 %v2012, 0.6931472
        %v2014 = vmul.f32 -0.5, %v1427
        %v2015 = vadd.f32 %v2014, 1.0
        %v2016 = vmul.f32 %v2015, %v1427
        %v2017 = vand.u32 2147483647, %v1427
        %vm2018 = vcmp.lt.f32.partialorder %v2017, 0.0004427343
        %v2019 = vsel %vm2018, %v2016, %v2013
        %v2020 = vadd.f32 %v1429, 1.0
        %v2021 = vlog2.pop %v2020
        %v2022 = vmul.f32 %v2021, 0.6931472
        %v2023 = vmul.f32 -0.5, %v1429
        %v2024 = vadd.f32 %v2023, 1.0
        %v2025 = vmul.f32 %v2024, %v1429
        %v2026 = vand.u32 2147483647, %v1429
        %vm2027 = vcmp.lt.f32.partialorder %v2026, 0.0004427343
        %v2028 = vsel %vm2027, %v2025, %v2022
        %v2029 = vadd.f32 %v1431, 1.0
        %v2030 = vlog2.pop %v2029
        %v2031 = vmul.f32 %v2030, 0.6931472
        %v2032 = vmul.f32 -0.5, %v1431
        %v2033 = vadd.f32 %v2032, 1.0
        %v2034 = vmul.f32 %v2033, %v1431
        %v2035 = vand.u32 2147483647, %v1431
        %vm2036 = vcmp.lt.f32.partialorder %v2035, 0.0004427343
        %v2037 = vsel %vm2036, %v2034, %v2031
        %v2038 = vadd.f32 %v1433, 1.0
        %v2039 = vlog2.pop %v2038
        %v2040 = vmul.f32 %v2039, 0.6931472
        %v2041 = vmul.f32 -0.5, %v1433
        %v2042 = vadd.f32 %v2041, 1.0
        %v2043 = vmul.f32 %v2042, %v1433
        %v2044 = vand.u32 2147483647, %v1433
        %vm2045 = vcmp.lt.f32.partialorder %v2044, 0.0004427343
        %v2046 = vsel %vm2045, %v2043, %v2040
        %v2047 = vadd.f32 %v1435, 1.0
        %v2048 = vlog2.pop %v2047
        %v2049 = vmul.f32 %v2048, 0.6931472
        %v2050 = vmul.f32 -0.5, %v1435
        %v2051 = vadd.f32 %v2050, 1.0
        %v2052 = vmul.f32 %v2051, %v1435
        %v2053 = vand.u32 2147483647, %v1435
        %vm2054 = vcmp.lt.f32.partialorder %v2053, 0.0004427343
        %v2055 = vsel %vm2054, %v2052, %v2049
        %v2056 = vadd.f32 %v1437, 1.0
        %v2057 = vlog2.pop %v2056
        %v2058 = vmul.f32 %v2057, 0.6931472
        %v2059 = vmul.f32 -0.5, %v1437
        %v2060 = vadd.f32 %v2059, 1.0
        %v2061 = vmul.f32 %v2060, %v1437
        %v2062 = vand.u32 2147483647, %v1437
        %vm2063 = vcmp.lt.f32.partialorder %v2062, 0.0004427343
        %v2064 = vsel %vm2063, %v2061, %v2058
        %v2065 = vadd.f32 %v1439, 1.0
        %v2066 = vlog2.pop %v2065
        %v2067 = vmul.f32 %v2066, 0.6931472
        %v2068 = vmul.f32 -0.5, %v1439
        %v2069 = vadd.f32 %v2068, 1.0
        %v2070 = vmul.f32 %v2069, %v1439
        %v2071 = vand.u32 2147483647, %v1439
        %vm2072 = vcmp.lt.f32.partialorder %v2071, 0.0004427343
        %v2073 = vsel %vm2072, %v2070, %v2067
        %v2074 = vadd.f32 %v1441, 1.0
        %v2075 = vlog2.pop %v2074
        %v2076 = vmul.f32 %v2075, 0.6931472
        %v2077 = vmul.f32 -0.5, %v1441
        %v2078 = vadd.f32 %v2077, 1.0
        %v2079 = vmul.f32 %v2078, %v1441
        %v2080 = vand.u32 2147483647, %v1441
        %vm2081 = vcmp.lt.f32.partialorder %v2080, 0.0004427343
        %v2082 = vsel %vm2081, %v2079, %v2076
        %v2083 = vadd.f32 %v1443, 1.0
        %v2084 = vlog2.pop %v2083
        %v2085 = vmul.f32 %v2084, 0.6931472
        %v2086 = vmul.f32 -0.5, %v1443
        %v2087 = vadd.f32 %v2086, 1.0
        %v2088 = vmul.f32 %v2087, %v1443
        %v2089 = vand.u32 2147483647, %v1443
        %vm2090 = vcmp.lt.f32.partialorder %v2089, 0.0004427343
        %v2091 = vsel %vm2090, %v2088, %v2085
        %v2092 = vadd.f32 %v1445, 1.0
        %v2093 = vlog2.pop %v2092
        %v2094 = vmul.f32 %v2093, 0.6931472
        %v2095 = vmul.f32 -0.5, %v1445
        %v2096 = vadd.f32 %v2095, 1.0
        %v2097 = vmul.f32 %v2096, %v1445
        %v2098 = vand.u32 2147483647, %v1445
        %vm2099 = vcmp.lt.f32.partialorder %v2098, 0.0004427343
        %v2100 = vsel %vm2099, %v2097, %v2094
        %v2101 = vadd.f32 %v1447, 1.0
        %v2102 = vlog2.pop %v2101
        %v2103 = vmul.f32 %v2102, 0.6931472
        %v2104 = vmul.f32 -0.5, %v1447
        %v2105 = vadd.f32 %v2104, 1.0
        %v2106 = vmul.f32 %v2105, %v1447
        %v2107 = vand.u32 2147483647, %v1447
        %vm2108 = vcmp.lt.f32.partialorder %v2107, 0.0004427343
        %v2109 = vsel %vm2108, %v2106, %v2103
        %v2110 = vadd.f32 %v1449, 1.0
        %v2111 = vlog2.pop %v2110
        %v2112 = vmul.f32 %v2111, 0.6931472
        %v2113 = vmul.f32 -0.5, %v1449
        %v2114 = vadd.f32 %v2113, 1.0
        %v2115 = vmul.f32 %v2114, %v1449
        %v2116 = vand.u32 2147483647, %v1449
        %vm2117 = vcmp.lt.f32.partialorder %v2116, 0.0004427343
        %v2118 = vsel %vm2117, %v2115, %v2112
        %v2119 = vadd.f32 %v1451, 1.0
        %v2120 = vlog2.pop %v2119
        %v2121 = vmul.f32 %v2120, 0.6931472
        %v2122 = vmul.f32 -0.5, %v1451
        %v2123 = vadd.f32 %v2122, 1.0
        %v2124 = vmul.f32 %v2123, %v1451
        %v2125 = vand.u32 2147483647, %v1451
        %vm2126 = vcmp.lt.f32.partialorder %v2125, 0.0004427343
        %v2127 = vsel %vm2126, %v2124, %v2121
        %v2128 = vadd.f32 %v1453, 1.0
        %v2129 = vlog2.pop %v2128
        %v2130 = vmul.f32 %v2129, 0.6931472
        %v2131 = vmul.f32 -0.5, %v1453
        %v2132 = vadd.f32 %v2131, 1.0
        %v2133 = vmul.f32 %v2132, %v1453
        %v2134 = vand.u32 2147483647, %v1453
        %vm2135 = vcmp.lt.f32.partialorder %v2134, 0.0004427343
        %v2136 = vsel %vm2135, %v2133, %v2130
        %v2137 = vadd.f32 %v1455, 1.0
        %v2138 = vlog2.pop %v2137
        %v2139 = vmul.f32 %v2138, 0.6931472
        %v2140 = vmul.f32 -0.5, %v1455
        %v2141 = vadd.f32 %v2140, 1.0
        %v2142 = vmul.f32 %v2141, %v1455
        %v2143 = vand.u32 2147483647, %v1455
        %vm2144 = vcmp.lt.f32.partialorder %v2143, 0.0004427343
        %v2145 = vsel %vm2144, %v2142, %v2139
        %v2146 = vadd.f32 %v1457, 1.0
        %v2147 = vlog2.pop %v2146
        %v2148 = vmul.f32 %v2147, 0.6931472
        %v2149 = vmul.f32 -0.5, %v1457
        %v2150 = vadd.f32 %v2149, 1.0
        %v2151 = vmul.f32 %v2150, %v1457
        %v2152 = vand.u32 2147483647, %v1457
        %vm2153 = vcmp.lt.f32.partialorder %v2152, 0.0004427343
        %v2154 = vsel %vm2153, %v2151, %v2148
        %v2155 = vadd.f32 %v1459, 1.0
        %v2156 = vlog2.pop %v2155
        %v2157 = vmul.f32 %v2156, 0.6931472
        %v2158 = vmul.f32 -0.5, %v1459
        %v2159 = vadd.f32 %v2158, 1.0
        %v2160 = vmul.f32 %v2159, %v1459
        %v2161 = vand.u32 2147483647, %v1459
        %vm2162 = vcmp.lt.f32.partialorder %v2161, 0.0004427343
        %v2163 = vsel %vm2162, %v2160, %v2157
        %v2164 = vadd.f32 %v1461, 1.0
        %v2165 = vlog2.pop %v2164
        %v2166 = vmul.f32 %v2165, 0.6931472
        %v2167 = vmul.f32 -0.5, %v1461
        %v2168 = vadd.f32 %v2167, 1.0
        %v2169 = vmul.f32 %v2168, %v1461
        %v2170 = vand.u32 2147483647, %v1461
        %vm2171 = vcmp.lt.f32.partialorder %v2170, 0.0004427343
        %v2172 = vsel %vm2171, %v2169, %v2166
        %v2173 = vadd.f32 %v1463, 1.0
        %v2174 = vlog2.pop %v2173
        %v2175 = vmul.f32 %v2174, 0.6931472
        %v2176 = vmul.f32 -0.5, %v1463
        %v2177 = vadd.f32 %v2176, 1.0
        %v2178 = vmul.f32 %v2177, %v1463
        %v2179 = vand.u32 2147483647, %v1463
        %vm2180 = vcmp.lt.f32.partialorder %v2179, 0.0004427343
        %v2181 = vsel %vm2180, %v2178, %v2175
        %v2182 = vadd.f32 %v1465, 1.0
        %v2183 = vlog2.pop %v2182
        %v2184 = vmul.f32 %v2183, 0.6931472
        %v2185 = vmul.f32 -0.5, %v1465
        %v2186 = vadd.f32 %v2185, 1.0
        %v2187 = vmul.f32 %v2186, %v1465
        %v2188 = vand.u32 2147483647, %v1465
        %vm2189 = vcmp.lt.f32.partialorder %v2188, 0.0004427343
        %v2190 = vsel %vm2189, %v2187, %v2184
        %v2191 = vadd.f32 %v1467, 1.0
        %v2192 = vlog2.pop %v2191
        %v2193 = vmul.f32 %v2192, 0.6931472
        %v2194 = vmul.f32 -0.5, %v1467
        %v2195 = vadd.f32 %v2194, 1.0
        %v2196 = vmul.f32 %v2195, %v1467
        %v2197 = vand.u32 2147483647, %v1467
        %vm2198 = vcmp.lt.f32.partialorder %v2197, 0.0004427343
        %v2199 = vsel %vm2198, %v2196, %v2193
        %v2200 = vadd.f32 %v1469, 1.0
        %v2201 = vlog2.pop %v2200
        %v2202 = vmul.f32 %v2201, 0.6931472
        %v2203 = vmul.f32 -0.5, %v1469
        %v2204 = vadd.f32 %v2203, 1.0
        %v2205 = vmul.f32 %v2204, %v1469
        %v2206 = vand.u32 2147483647, %v1469
        %vm2207 = vcmp.lt.f32.partialorder %v2206, 0.0004427343
        %v2208 = vsel %vm2207, %v2205, %v2202
        %v2209 = vadd.f32 %v1471, 1.0
        %v2210 = vlog2.pop %v2209
        %v2211 = vmul.f32 %v2210, 0.6931472
        %v2212 = vmul.f32 -0.5, %v1471
        %v2213 = vadd.f32 %v2212, 1.0
        %v2214 = vmul.f32 %v2213, %v1471
        %v2215 = vand.u32 2147483647, %v1471
        %vm2216 = vcmp.lt.f32.partialorder %v2215, 0.0004427343
        %v2217 = vsel %vm2216, %v2214, %v2211
        %v2218 = vadd.f32 %v1473, 1.0
        %v2219 = vlog2.pop %v2218
        %v2220 = vmul.f32 %v2219, 0.6931472
        %v2221 = vmul.f32 -0.5, %v1473
        %v2222 = vadd.f32 %v2221, 1.0
        %v2223 = vmul.f32 %v2222, %v1473
        %v2224 = vand.u32 2147483647, %v1473
        %vm2225 = vcmp.lt.f32.partialorder %v2224, 0.0004427343
        %v2226 = vsel %vm2225, %v2223, %v2220
        %v2227 = vadd.f32 %v1475, 1.0
        %v2228 = vlog2.pop %v2227
        %v2229 = vmul.f32 %v2228, 0.6931472
        %v2230 = vmul.f32 -0.5, %v1475
        %v2231 = vadd.f32 %v2230, 1.0
        %v2232 = vmul.f32 %v2231, %v1475
        %v2233 = vand.u32 2147483647, %v1475
        %vm2234 = vcmp.lt.f32.partialorder %v2233, 0.0004427343
        %v2235 = vsel %vm2234, %v2232, %v2229
        %v2236 = vadd.f32 %v1477, 1.0
        %v2237 = vlog2.pop %v2236
        %v2238 = vmul.f32 %v2237, 0.6931472
        %v2239 = vmul.f32 -0.5, %v1477
        %v2240 = vadd.f32 %v2239, 1.0
        %v2241 = vmul.f32 %v2240, %v1477
        %v2242 = vand.u32 2147483647, %v1477
        %vm2243 = vcmp.lt.f32.partialorder %v2242, 0.0004427343
        %v2244 = vsel %vm2243, %v2241, %v2238
        %v2245 = vadd.f32 %v1479, 1.0
        %v2246 = vlog2.pop %v2245
        %v2247 = vmul.f32 %v2246, 0.6931472
        %v2248 = vmul.f32 -0.5, %v1479
        %v2249 = vadd.f32 %v2248, 1.0
        %v2250 = vmul.f32 %v2249, %v1479
        %v2251 = vand.u32 2147483647, %v1479
        %vm2252 = vcmp.lt.f32.partialorder %v2251, 0.0004427343
        %v2253 = vsel %vm2252, %v2250, %v2247
        %v2254 = vadd.f32 %v1481, 1.0
        %v2255 = vlog2.pop %v2254
        %v2256 = vmul.f32 %v2255, 0.6931472
        %v2257 = vmul.f32 -0.5, %v1481
        %v2258 = vadd.f32 %v2257, 1.0
        %v2259 = vmul.f32 %v2258, %v1481
        %v2260 = vand.u32 2147483647, %v1481
        %vm2261 = vcmp.lt.f32.partialorder %v2260, 0.0004427343
        %v2262 = vsel %vm2261, %v2259, %v2256
        %v2263 = vadd.f32 %v1483, 1.0
        %v2264 = vlog2.pop %v2263
        %v2265 = vmul.f32 %v2264, 0.6931472
        %v2266 = vmul.f32 -0.5, %v1483
        %v2267 = vadd.f32 %v2266, 1.0
        %v2268 = vmul.f32 %v2267, %v1483
        %v2269 = vand.u32 2147483647, %v1483
        %vm2270 = vcmp.lt.f32.partialorder %v2269, 0.0004427343
        %v2271 = vsel %vm2270, %v2268, %v2265
        %v2272 = vadd.f32 %v1485, 1.0
        %v2273 = vlog2.pop %v2272
        %v2274 = vmul.f32 %v2273, 0.6931472
        %v2275 = vmul.f32 -0.5, %v1485
        %v2276 = vadd.f32 %v2275, 1.0
        %v2277 = vmul.f32 %v2276, %v1485
        %v2278 = vand.u32 2147483647, %v1485
        %vm2279 = vcmp.lt.f32.partialorder %v2278, 0.0004427343
        %v2280 = vsel %vm2279, %v2277, %v2274
        %v2281 = vadd.f32 %v1487, 1.0
        %v2282 = vlog2.pop %v2281
        %v2283 = vmul.f32 %v2282, 0.6931472
        %v2284 = vmul.f32 -0.5, %v1487
        %v2285 = vadd.f32 %v2284, 1.0
        %v2286 = vmul.f32 %v2285, %v1487
        %v2287 = vand.u32 2147483647, %v1487
        %vm2288 = vcmp.lt.f32.partialorder %v2287, 0.0004427343
        %v2289 = vsel %vm2288, %v2286, %v2283
        %v2290 = vadd.f32 %v1489, 1.0
        %v2291 = vlog2.pop %v2290
        %v2292 = vmul.f32 %v2291, 0.6931472
        %v2293 = vmul.f32 -0.5, %v1489
        %v2294 = vadd.f32 %v2293, 1.0
        %v2295 = vmul.f32 %v2294, %v1489
        %v2296 = vand.u32 2147483647, %v1489
        %vm2297 = vcmp.lt.f32.partialorder %v2296, 0.0004427343
        %v2298 = vsel %vm2297, %v2295, %v2292
        %v2299 = vadd.f32 %v1491, 1.0
        %v2300 = vlog2.pop %v2299
        %v2301 = vmul.f32 %v2300, 0.6931472
        %v2302 = vmul.f32 -0.5, %v1491
        %v2303 = vadd.f32 %v2302, 1.0
        %v2304 = vmul.f32 %v2303, %v1491
        %v2305 = vand.u32 2147483647, %v1491
        %vm2306 = vcmp.lt.f32.partialorder %v2305, 0.0004427343
        %v2307 = vsel %vm2306, %v2304, %v2301
        %v2308 = vadd.f32 %v1493, 1.0
        %v2309 = vlog2.pop %v2308
        %v2310 = vmul.f32 %v2309, 0.6931472
        %v2311 = vmul.f32 -0.5, %v1493
        %v2312 = vadd.f32 %v2311, 1.0
        %v2313 = vmul.f32 %v2312, %v1493
        %v2314 = vand.u32 2147483647, %v1493
        %vm2315 = vcmp.lt.f32.partialorder %v2314, 0.0004427343
        %v2316 = vsel %vm2315, %v2313, %v2310
        %v2317 = vadd.f32 %v1495, 1.0
        %v2318 = vlog2.pop %v2317
        %v2319 = vmul.f32 %v2318, 0.6931472
        %v2320 = vmul.f32 -0.5, %v1495
        %v2321 = vadd.f32 %v2320, 1.0
        %v2322 = vmul.f32 %v2321, %v1495
        %v2323 = vand.u32 2147483647, %v1495
        %vm2324 = vcmp.lt.f32.partialorder %v2323, 0.0004427343
        %v2325 = vsel %vm2324, %v2322, %v2319
        %v2326 = vadd.f32 %v1497, 1.0
        %v2327 = vlog2.pop %v2326
        %v2328 = vmul.f32 %v2327, 0.6931472
        %v2329 = vmul.f32 -0.5, %v1497
        %v2330 = vadd.f32 %v2329, 1.0
        %v2331 = vmul.f32 %v2330, %v1497
        %v2332 = vand.u32 2147483647, %v1497
        %vm2333 = vcmp.lt.f32.partialorder %v2332, 0.0004427343
        %v2334 = vsel %vm2333, %v2331, %v2328
        %v2335 = vadd.f32 %v1499, 1.0
        %v2336 = vlog2.pop %v2335
        %v2337 = vmul.f32 %v2336, 0.6931472
        %v2338 = vmul.f32 -0.5, %v1499
        %v2339 = vadd.f32 %v2338, 1.0
        %v2340 = vmul.f32 %v2339, %v1499
        %v2341 = vand.u32 2147483647, %v1499
        %vm2342 = vcmp.lt.f32.partialorder %v2341, 0.0004427343
        %v2343 = vsel %vm2342, %v2340, %v2337
        %v2344 = vadd.f32 %v1501, 1.0
        %v2345 = vlog2.pop %v2344
        %v2346 = vmul.f32 %v2345, 0.6931472
        %v2347 = vmul.f32 -0.5, %v1501
        %v2348 = vadd.f32 %v2347, 1.0
        %v2349 = vmul.f32 %v2348, %v1501
        %v2350 = vand.u32 2147483647, %v1501
        %vm2351 = vcmp.lt.f32.partialorder %v2350, 0.0004427343
        %v2352 = vsel %vm2351, %v2349, %v2346
        %v2353 = vadd.f32 %v1503, 1.0
        %v2354 = vlog2.pop %v2353
        %v2355 = vmul.f32 %v2354, 0.6931472
        %v2356 = vmul.f32 -0.5, %v1503
        %v2357 = vadd.f32 %v2356, 1.0
        %v2358 = vmul.f32 %v2357, %v1503
        %v2359 = vand.u32 2147483647, %v1503
        %vm2360 = vcmp.lt.f32.partialorder %v2359, 0.0004427343
        %v2361 = vsel %vm2360, %v2358, %v2355
        %v2362 = vadd.f32 %v1505, 1.0
        %v2363 = vlog2.pop %v2362
        %v2364 = vmul.f32 %v2363, 0.6931472
        %v2365 = vmul.f32 -0.5, %v1505
        %v2366 = vadd.f32 %v2365, 1.0
        %v2367 = vmul.f32 %v2366, %v1505
        %v2368 = vand.u32 2147483647, %v1505
        %vm2369 = vcmp.lt.f32.partialorder %v2368, 0.0004427343
        %v2370 = vsel %vm2369, %v2367, %v2364
        %v2371 = vadd.f32 %v1507, 1.0
        %v2372 = vlog2.pop %v2371
        %v2373 = vmul.f32 %v2372, 0.6931472
        %v2374 = vmul.f32 -0.5, %v1507
        %v2375 = vadd.f32 %v2374, 1.0
        %v2376 = vmul.f32 %v2375, %v1507
        %v2377 = vand.u32 2147483647, %v1507
        %vm2378 = vcmp.lt.f32.partialorder %v2377, 0.0004427343
        %v2379 = vsel %vm2378, %v2376, %v2373
        %v2380 = vadd.f32 %v1509, 1.0
        %v2381 = vlog2.pop %v2380
        %v2382 = vmul.f32 %v2381, 0.6931472
        %v2383 = vmul.f32 -0.5, %v1509
        %v2384 = vadd.f32 %v2383, 1.0
        %v2385 = vmul.f32 %v2384, %v1509
        %v2386 = vand.u32 2147483647, %v1509
        %vm2387 = vcmp.lt.f32.partialorder %v2386, 0.0004427343
        %v2388 = vsel %vm2387, %v2385, %v2382
        %v2389 = vadd.f32 %v1511, 1.0
        %v2390 = vlog2.pop %v2389
        %v2391 = vmul.f32 %v2390, 0.6931472
        %v2392 = vmul.f32 -0.5, %v1511
        %v2393 = vadd.f32 %v2392, 1.0
        %v2394 = vmul.f32 %v2393, %v1511
        %v2395 = vand.u32 2147483647, %v1511
        %vm2396 = vcmp.lt.f32.partialorder %v2395, 0.0004427343
        %v2397 = vsel %vm2396, %v2394, %v2391
        %v2398 = vadd.f32 %v1513, 1.0
        %v2399 = vlog2.pop %v2398
        %v2400 = vmul.f32 %v2399, 0.6931472
        %v2401 = vmul.f32 -0.5, %v1513
        %v2402 = vadd.f32 %v2401, 1.0
        %v2403 = vmul.f32 %v2402, %v1513
        %v2404 = vand.u32 2147483647, %v1513
        %vm2405 = vcmp.lt.f32.partialorder %v2404, 0.0004427343
        %v2406 = vsel %vm2405, %v2403, %v2400
        %v2407 = vadd.f32 %v1515, 1.0
        %v2408 = vlog2.pop %v2407
        %v2409 = vmul.f32 %v2408, 0.6931472
        %v2410 = vmul.f32 -0.5, %v1515
        %v2411 = vadd.f32 %v2410, 1.0
        %v2412 = vmul.f32 %v2411, %v1515
        %v2413 = vand.u32 2147483647, %v1515
        %vm2414 = vcmp.lt.f32.partialorder %v2413, 0.0004427343
        %v2415 = vsel %vm2414, %v2412, %v2409
        %v2416 = vadd.f32 %v1517, 1.0
        %v2417 = vlog2.pop %v2416
        %v2418 = vmul.f32 %v2417, 0.6931472
        %v2419 = vmul.f32 -0.5, %v1517
        %v2420 = vadd.f32 %v2419, 1.0
        %v2421 = vmul.f32 %v2420, %v1517
        %v2422 = vand.u32 2147483647, %v1517
        %vm2423 = vcmp.lt.f32.partialorder %v2422, 0.0004427343
        %v2424 = vsel %vm2423, %v2421, %v2418
        %v2425 = vadd.f32 %v1519, 1.0
        %v2426 = vlog2.pop %v2425
        %v2427 = vmul.f32 %v2426, 0.6931472
        %v2428 = vmul.f32 -0.5, %v1519
        %v2429 = vadd.f32 %v2428, 1.0
        %v2430 = vmul.f32 %v2429, %v1519
        %v2431 = vand.u32 2147483647, %v1519
        %vm2432 = vcmp.lt.f32.partialorder %v2431, 0.0004427343
        %v2433 = vsel %vm2432, %v2430, %v2427
        %v2434 = vadd.f32 %v1521, 1.0
        %v2435 = vlog2.pop %v2434
        %v2436 = vmul.f32 %v2435, 0.6931472
        %v2437 = vmul.f32 -0.5, %v1521
        %v2438 = vadd.f32 %v2437, 1.0
        %v2439 = vmul.f32 %v2438, %v1521
        %v2440 = vand.u32 2147483647, %v1521
        %vm2441 = vcmp.lt.f32.partialorder %v2440, 0.0004427343
        %v2442 = vsel %vm2441, %v2439, %v2436
        %v2443 = vadd.f32 %v1523, 1.0
        %v2444 = vlog2.pop %v2443
        %v2445 = vmul.f32 %v2444, 0.6931472
        %v2446 = vmul.f32 -0.5, %v1523
        %v2447 = vadd.f32 %v2446, 1.0
        %v2448 = vmul.f32 %v2447, %v1523
        %v2449 = vand.u32 2147483647, %v1523
        %vm2450 = vcmp.lt.f32.partialorder %v2449, 0.0004427343
        %v2451 = vsel %vm2450, %v2448, %v2445
        %v2452 = vadd.f32 %v1525, 1.0
        %v2453 = vlog2.pop %v2452
        %v2454 = vmul.f32 %v2453, 0.6931472
        %v2455 = vmul.f32 -0.5, %v1525
        %v2456 = vadd.f32 %v2455, 1.0
        %v2457 = vmul.f32 %v2456, %v1525
        %v2458 = vand.u32 2147483647, %v1525
        %vm2459 = vcmp.lt.f32.partialorder %v2458, 0.0004427343
        %v2460 = vsel %vm2459, %v2457, %v2454
        %v2461 = vadd.f32 %v1527, 1.0
        %v2462 = vlog2.pop %v2461
        %v2463 = vmul.f32 %v2462, 0.6931472
        %v2464 = vmul.f32 -0.5, %v1527
        %v2465 = vadd.f32 %v2464, 1.0
        %v2466 = vmul.f32 %v2465, %v1527
        %v2467 = vand.u32 2147483647, %v1527
        %vm2468 = vcmp.lt.f32.partialorder %v2467, 0.0004427343
        %v2469 = vsel %vm2468, %v2466, %v2463
        %v2470 = vadd.f32 %v1529, 1.0
        %v2471 = vlog2.pop %v2470
        %v2472 = vmul.f32 %v2471, 0.6931472
        %v2473 = vmul.f32 -0.5, %v1529
        %v2474 = vadd.f32 %v2473, 1.0
        %v2475 = vmul.f32 %v2474, %v1529
        %v2476 = vand.u32 2147483647, %v1529
        %vm2477 = vcmp.lt.f32.partialorder %v2476, 0.0004427343
        %v2478 = vsel %vm2477, %v2475, %v2472
        %v2479 = vadd.f32 %v1531, 1.0
        %v2480 = vlog2.pop %v2479
        %v2481 = vmul.f32 %v2480, 0.6931472
        %v2482 = vmul.f32 -0.5, %v1531
        %v2483 = vadd.f32 %v2482, 1.0
        %v2484 = vmul.f32 %v2483, %v1531
        %v2485 = vand.u32 2147483647, %v1531
        %vm2486 = vcmp.lt.f32.partialorder %v2485, 0.0004427343
        %v2487 = vsel %vm2486, %v2484, %v2481
        %v2488 = vadd.f32 %v1533, 1.0
        %v2489 = vlog2.pop %v2488
        %v2490 = vmul.f32 %v2489, 0.6931472
        %v2491 = vmul.f32 -0.5, %v1533
        %v2492 = vadd.f32 %v2491, 1.0
        %v2493 = vmul.f32 %v2492, %v1533
        %v2494 = vand.u32 2147483647, %v1533
        %vm2495 = vcmp.lt.f32.partialorder %v2494, 0.0004427343
        %v2496 = vsel %vm2495, %v2493, %v2490
        %v2497 = vadd.f32 %v1535, 1.0
        %v2498 = vlog2.pop %v2497
        %v2499 = vmul.f32 %v2498, 0.6931472
        %v2500 = vmul.f32 -0.5, %v1535
        %v2501 = vadd.f32 %v2500, 1.0
        %v2502 = vmul.f32 %v2501, %v1535
        %v2503 = vand.u32 2147483647, %v1535
        %vm2504 = vcmp.lt.f32.partialorder %v2503, 0.0004427343
        %v2505 = vsel %vm2504, %v2502, %v2499
        %v2506 = vadd.f32 %v1537, 1.0
        %v2507 = vlog2.pop %v2506
        %v2508 = vmul.f32 %v2507, 0.6931472
        %v2509 = vmul.f32 -0.5, %v1537
        %v2510 = vadd.f32 %v2509, 1.0
        %v2511 = vmul.f32 %v2510, %v1537
        %v2512 = vand.u32 2147483647, %v1537
        %vm2513 = vcmp.lt.f32.partialorder %v2512, 0.0004427343
        %v2514 = vsel %vm2513, %v2511, %v2508
        %v2515 = vadd.f32 %v1539, 1.0
        %v2516 = vlog2.pop %v2515
        %v2517 = vmul.f32 %v2516, 0.6931472
        %v2518 = vmul.f32 -0.5, %v1539
        %v2519 = vadd.f32 %v2518, 1.0
        %v2520 = vmul.f32 %v2519, %v1539
        %v2521 = vand.u32 2147483647, %v1539
        %vm2522 = vcmp.lt.f32.partialorder %v2521, 0.0004427343
        %v2523 = vsel %vm2522, %v2520, %v2517
        %v2524 = vadd.f32 %v1541, 1.0
        %v2525 = vlog2.pop %v2524
        %v2526 = vmul.f32 %v2525, 0.6931472
        %v2527 = vmul.f32 -0.5, %v1541
        %v2528 = vadd.f32 %v2527, 1.0
        %v2529 = vmul.f32 %v2528, %v1541
        %v2530 = vand.u32 2147483647, %v1541
        %vm2531 = vcmp.lt.f32.partialorder %v2530, 0.0004427343
        %v2532 = vsel %vm2531, %v2529, %v2526
        %v2533 = vadd.f32 %v1543, 1.0
        %v2534 = vlog2.pop %v2533
        %v2535 = vmul.f32 %v2534, 0.6931472
        %v2536 = vmul.f32 -0.5, %v1543
        %v2537 = vadd.f32 %v2536, 1.0
        %v2538 = vmul.f32 %v2537, %v1543
        %v2539 = vand.u32 2147483647, %v1543
        %vm2540 = vcmp.lt.f32.partialorder %v2539, 0.0004427343
        %v2541 = vsel %vm2540, %v2538, %v2535
        %v2542 = vadd.f32 %v1545, 1.0
        %v2543 = vlog2.pop %v2542
        %v2544 = vmul.f32 %v2543, 0.6931472
        %v2545 = vmul.f32 -0.5, %v1545
        %v2546 = vadd.f32 %v2545, 1.0
        %v2547 = vmul.f32 %v2546, %v1545
        %v2548 = vand.u32 2147483647, %v1545
        %vm2549 = vcmp.lt.f32.partialorder %v2548, 0.0004427343
        %v2550 = vsel %vm2549, %v2547, %v2544
        %v2551 = vadd.f32 %v1547, 1.0
        %v2552 = vlog2.pop %v2551
        %v2553 = vmul.f32 %v2552, 0.6931472
        %v2554 = vmul.f32 -0.5, %v1547
        %v2555 = vadd.f32 %v2554, 1.0
        %v2556 = vmul.f32 %v2555, %v1547
        %v2557 = vand.u32 2147483647, %v1547
        %vm2558 = vcmp.lt.f32.partialorder %v2557, 0.0004427343
        %v2559 = vsel %vm2558, %v2556, %v2553
        %v2560 = vadd.f32 %v1549, 1.0
        %v2561 = vlog2.pop %v2560
        %v2562 = vmul.f32 %v2561, 0.6931472
        %v2563 = vmul.f32 -0.5, %v1549
        %v2564 = vadd.f32 %v2563, 1.0
        %v2565 = vmul.f32 %v2564, %v1549
        %v2566 = vand.u32 2147483647, %v1549
        %vm2567 = vcmp.lt.f32.partialorder %v2566, 0.0004427343
        %v2568 = vsel %vm2567, %v2565, %v2562
        %v2569 = vadd.f32 %v1551, 1.0
        %v2570 = vlog2.pop %v2569
        %v2571 = vmul.f32 %v2570, 0.6931472
        %v2572 = vmul.f32 -0.5, %v1551
        %v2573 = vadd.f32 %v2572, 1.0
        %v2574 = vmul.f32 %v2573, %v1551
        %v2575 = vand.u32 2147483647, %v1551
        %vm2576 = vcmp.lt.f32.partialorder %v2575, 0.0004427343
        %v2577 = vsel %vm2576, %v2574, %v2571
        %v2578 = vadd.f32 %v1553, 1.0
        %v2579 = vlog2.pop %v2578
        %v2580 = vmul.f32 %v2579, 0.6931472
        %v2581 = vmul.f32 -0.5, %v1553
        %v2582 = vadd.f32 %v2581, 1.0
        %v2583 = vmul.f32 %v2582, %v1553
        %v2584 = vand.u32 2147483647, %v1553
        %vm2585 = vcmp.lt.f32.partialorder %v2584, 0.0004427343
        %v2586 = vsel %vm2585, %v2583, %v2580
        %v2587 = vadd.f32 %v1555, 1.0
        %v2588 = vlog2.pop %v2587
        %v2589 = vmul.f32 %v2588, 0.6931472
        %v2590 = vmul.f32 -0.5, %v1555
        %v2591 = vadd.f32 %v2590, 1.0
        %v2592 = vmul.f32 %v2591, %v1555
        %v2593 = vand.u32 2147483647, %v1555
        %vm2594 = vcmp.lt.f32.partialorder %v2593, 0.0004427343
        %v2595 = vsel %vm2594, %v2592, %v2589
        %v2596 = vadd.f32 %v1557, 1.0
        %v2597 = vlog2.pop %v2596
        %v2598 = vmul.f32 %v2597, 0.6931472
        %v2599 = vmul.f32 -0.5, %v1557
        %v2600 = vadd.f32 %v2599, 1.0
        %v2601 = vmul.f32 %v2600, %v1557
        %v2602 = vand.u32 2147483647, %v1557
        %vm2603 = vcmp.lt.f32.partialorder %v2602, 0.0004427343
        %v2604 = vsel %vm2603, %v2601, %v2598
        %v2605 = vadd.f32 %v1559, 1.0
        %v2606 = vlog2.pop %v2605
        %v2607 = vmul.f32 %v2606, 0.6931472
        %v2608 = vmul.f32 -0.5, %v1559
        %v2609 = vadd.f32 %v2608, 1.0
        %v2610 = vmul.f32 %v2609, %v1559
        %v2611 = vand.u32 2147483647, %v1559
        %vm2612 = vcmp.lt.f32.partialorder %v2611, 0.0004427343
        %v2613 = vsel %vm2612, %v2610, %v2607
        %v2614 = vadd.f32 %v1561, 1.0
        %v2615 = vlog2.pop %v2614
        %v2616 = vmul.f32 %v2615, 0.6931472
        %v2617 = vmul.f32 -0.5, %v1561
        %v2618 = vadd.f32 %v2617, 1.0
        %v2619 = vmul.f32 %v2618, %v1561
        %v2620 = vand.u32 2147483647, %v1561
        %vm2621 = vcmp.lt.f32.partialorder %v2620, 0.0004427343
        %v2622 = vsel %vm2621, %v2619, %v2616
        %v2623 = vadd.f32 %v1563, 1.0
        %v2624 = vlog2.pop %v2623
        %v2625 = vmul.f32 %v2624, 0.6931472
        %v2626 = vmul.f32 -0.5, %v1563
        %v2627 = vadd.f32 %v2626, 1.0
        %v2628 = vmul.f32 %v2627, %v1563
        %v2629 = vand.u32 2147483647, %v1563
        %vm2630 = vcmp.lt.f32.partialorder %v2629, 0.0004427343
        %v2631 = vsel %vm2630, %v2628, %v2625
        %v2632 = vadd.f32 %v1565, 1.0
        %v2633 = vlog2.pop %v2632
        %v2634 = vmul.f32 %v2633, 0.6931472
        %v2635 = vmul.f32 -0.5, %v1565
        %v2636 = vadd.f32 %v2635, 1.0
        %v2637 = vmul.f32 %v2636, %v1565
        %v2638 = vand.u32 2147483647, %v1565
        %vm2639 = vcmp.lt.f32.partialorder %v2638, 0.0004427343
        %v2640 = vsel %vm2639, %v2637, %v2634
        %v2641 = vadd.f32 %v1567, 1.0
        %v2642 = vlog2.pop %v2641
        %v2643 = vmul.f32 %v2642, 0.6931472
        %v2644 = vmul.f32 -0.5, %v1567
        %v2645 = vadd.f32 %v2644, 1.0
        %v2646 = vmul.f32 %v2645, %v1567
        %v2647 = vand.u32 2147483647, %v1567
        %vm2648 = vcmp.lt.f32.partialorder %v2647, 0.0004427343
        %v2649 = vsel %vm2648, %v2646, %v2643
        %v2650 = vadd.f32 %v1569, 1.0
        %v2651 = vlog2.pop %v2650
        %v2652 = vmul.f32 %v2651, 0.6931472
        %v2653 = vmul.f32 -0.5, %v1569
        %v2654 = vadd.f32 %v2653, 1.0
        %v2655 = vmul.f32 %v2654, %v1569
        %v2656 = vand.u32 2147483647, %v1569
        %vm2657 = vcmp.lt.f32.partialorder %v2656, 0.0004427343
        %v2658 = vsel %vm2657, %v2655, %v2652
        %v2659 = vadd.f32 %v1571, 1.0
        %v2660 = vlog2.pop %v2659
        %v2661 = vmul.f32 %v2660, 0.6931472
        %v2662 = vmul.f32 -0.5, %v1571
        %v2663 = vadd.f32 %v2662, 1.0
        %v2664 = vmul.f32 %v2663, %v1571
        %v2665 = vand.u32 2147483647, %v1571
        %vm2666 = vcmp.lt.f32.partialorder %v2665, 0.0004427343
        %v2667 = vsel %vm2666, %v2664, %v2661
        %v2668 = vadd.f32 %v1573, 1.0
        %v2669 = vlog2.pop %v2668
        %v2670 = vmul.f32 %v2669, 0.6931472
        %v2671 = vmul.f32 -0.5, %v1573
        %v2672 = vadd.f32 %v2671, 1.0
        %v2673 = vmul.f32 %v2672, %v1573
        %v2674 = vand.u32 2147483647, %v1573
        %vm2675 = vcmp.lt.f32.partialorder %v2674, 0.0004427343
        %v2676 = vsel %vm2675, %v2673, %v2670
        %v2677 = vadd.f32 %v1575, 1.0
        %v2678 = vlog2.pop %v2677
        %v2679 = vmul.f32 %v2678, 0.6931472
        %v2680 = vmul.f32 -0.5, %v1575
        %v2681 = vadd.f32 %v2680, 1.0
        %v2682 = vmul.f32 %v2681, %v1575
        %v2683 = vand.u32 2147483647, %v1575
        %vm2684 = vcmp.lt.f32.partialorder %v2683, 0.0004427343
        %v2685 = vsel %vm2684, %v2682, %v2679
        %v2686 = vadd.f32 %v1577, 1.0
        %v2687 = vlog2.pop %v2686
        %v2688 = vmul.f32 %v2687, 0.6931472
        %v2689 = vmul.f32 -0.5, %v1577
        %v2690 = vadd.f32 %v2689, 1.0
        %v2691 = vmul.f32 %v2690, %v1577
        %v2692 = vand.u32 2147483647, %v1577
        %vm2693 = vcmp.lt.f32.partialorder %v2692, 0.0004427343
        %v2694 = vsel %vm2693, %v2691, %v2688
        %v2695 = vadd.f32 %v1579, 1.0
        %v2696 = vlog2.pop %v2695
        %v2697 = vmul.f32 %v2696, 0.6931472
        %v2698 = vmul.f32 -0.5, %v1579
        %v2699 = vadd.f32 %v2698, 1.0
        %v2700 = vmul.f32 %v2699, %v1579
        %v2701 = vand.u32 2147483647, %v1579
        %vm2702 = vcmp.lt.f32.partialorder %v2701, 0.0004427343
        %v2703 = vsel %vm2702, %v2700, %v2697
        %v2704 = vadd.f32 %v1581, 1.0
        %v2705 = vlog2.pop %v2704
        %v2706 = vmul.f32 %v2705, 0.6931472
        %v2707 = vmul.f32 -0.5, %v1581
        %v2708 = vadd.f32 %v2707, 1.0
        %v2709 = vmul.f32 %v2708, %v1581
        %v2710 = vand.u32 2147483647, %v1581
        %vm2711 = vcmp.lt.f32.partialorder %v2710, 0.0004427343
        %v2712 = vsel %vm2711, %v2709, %v2706
        %v2713 = vadd.f32 %v1583, 1.0
        %v2714 = vlog2.pop %v2713
        %v2715 = vmul.f32 %v2714, 0.6931472
        %v2716 = vmul.f32 -0.5, %v1583
        %v2717 = vadd.f32 %v2716, 1.0
        %v2718 = vmul.f32 %v2717, %v1583
        %v2719 = vand.u32 2147483647, %v1583
        %vm2720 = vcmp.lt.f32.partialorder %v2719, 0.0004427343
        %v2721 = vsel %vm2720, %v2718, %v2715
        %v2722 = vadd.f32 %v1585, 1.0
        %v2723 = vlog2.pop %v2722
        %v2724 = vmul.f32 %v2723, 0.6931472
        %v2725 = vmul.f32 -0.5, %v1585
        %v2726 = vadd.f32 %v2725, 1.0
        %v2727 = vmul.f32 %v2726, %v1585
        %v2728 = vand.u32 2147483647, %v1585
        %vm2729 = vcmp.lt.f32.partialorder %v2728, 0.0004427343
        %v2730 = vsel %vm2729, %v2727, %v2724
        %v2731 = vadd.f32 %v1587, 1.0
        %v2732 = vlog2.pop %v2731
        %v2733 = vmul.f32 %v2732, 0.6931472
        %v2734 = vmul.f32 -0.5, %v1587
        %v2735 = vadd.f32 %v2734, 1.0
        %v2736 = vmul.f32 %v2735, %v1587
        %v2737 = vand.u32 2147483647, %v1587
        %vm2738 = vcmp.lt.f32.partialorder %v2737, 0.0004427343
        %v2739 = vsel %vm2738, %v2736, %v2733
        %v2740 = vadd.f32 %v692, %v1596
        %v2741 = vadd.f32 %v693, %v1605
        %v2742 = vadd.f32 %v694, %v1614
        %v2743 = vadd.f32 %v695, %v1623
        %v2744 = vadd.f32 %v696, %v1632
        %v2745 = vadd.f32 %v697, %v1641
        %v2746 = vadd.f32 %v698, %v1650
        %v2747 = vadd.f32 %v699, %v1659
        %v2748 = vadd.f32 %v700, %v1668
        %v2749 = vadd.f32 %v701, %v1677
        %v2750 = vadd.f32 %v702, %v1686
        %v2751 = vadd.f32 %v703, %v1695
        %v2752 = vadd.f32 %v704, %v1704
        %v2753 = vadd.f32 %v705, %v1713
        %v2754 = vadd.f32 %v706, %v1722
        %v2755 = vadd.f32 %v707, %v1731
        %v2756 = vadd.f32 %v708, %v1740
        %v2757 = vadd.f32 %v709, %v1749
        %v2758 = vadd.f32 %v710, %v1758
        %v2759 = vadd.f32 %v711, %v1767
        %v2760 = vadd.f32 %v712, %v1776
        %v2761 = vadd.f32 %v713, %v1785
        %v2762 = vadd.f32 %v714, %v1794
        %v2763 = vadd.f32 %v715, %v1803
        %v2764 = vadd.f32 %v716, %v1812
        %v2765 = vadd.f32 %v717, %v1821
        %v2766 = vadd.f32 %v718, %v1830
        %v2767 = vadd.f32 %v719, %v1839
        %v2768 = vadd.f32 %v720, %v1848
        %v2769 = vadd.f32 %v721, %v1857
        %v2770 = vadd.f32 %v722, %v1866
        %v2771 = vadd.f32 %v723, %v1875
        %v2772 = vadd.f32 %v724, %v1884
        %v2773 = vadd.f32 %v725, %v1893
        %v2774 = vadd.f32 %v726, %v1902
        %v2775 = vadd.f32 %v727, %v1911
        %v2776 = vadd.f32 %v728, %v1920
        %v2777 = vadd.f32 %v729, %v1929
        %v2778 = vadd.f32 %v730, %v1938
        %v2779 = vadd.f32 %v731, %v1947
        %v2780 = vadd.f32 %v732, %v1956
        %v2781 = vadd.f32 %v733, %v1965
        %v2782 = vadd.f32 %v734, %v1974
        %v2783 = vadd.f32 %v735, %v1983
        %v2784 = vadd.f32 %v736, %v1992
        %v2785 = vadd.f32 %v737, %v2001
        %v2786 = vadd.f32 %v738, %v2010
        %v2787 = vadd.f32 %v739, %v2019
        %v2788 = vadd.f32 %v740, %v2028
        %v2789 = vadd.f32 %v741, %v2037
        %v2790 = vadd.f32 %v742, %v2046
        %v2791 = vadd.f32 %v743, %v2055
        %v2792 = vadd.f32 %v744, %v2064
        %v2793 = vadd.f32 %v745, %v2073
        %v2794 = vadd.f32 %v746, %v2082
        %v2795 = vadd.f32 %v747, %v2091
        %v2796 = vadd.f32 %v748, %v2100
        %v2797 = vadd.f32 %v749, %v2109
        %v2798 = vadd.f32 %v750, %v2118
        %v2799 = vadd.f32 %v751, %v2127
        %v2800 = vadd.f32 %v752, %v2136
        %v2801 = vadd.f32 %v753, %v2145
        %v2802 = vadd.f32 %v754, %v2154
        %v2803 = vadd.f32 %v755, %v2163
        %v2804 = vadd.f32 %v756, %v2172
        %v2805 = vadd.f32 %v757, %v2181
        %v2806 = vadd.f32 %v758, %v2190
        %v2807 = vadd.f32 %v759, %v2199
        %v2808 = vadd.f32 %v760, %v2208
        %v2809 = vadd.f32 %v761, %v2217
        %v2810 = vadd.f32 %v762, %v2226
        %v2811 = vadd.f32 %v763, %v2235
        %v2812 = vadd.f32 %v764, %v2244
        %v2813 = vadd.f32 %v765, %v2253
        %v2814 = vadd.f32 %v766, %v2262
        %v2815 = vadd.f32 %v767, %v2271
        %v2816 = vadd.f32 %v768, %v2280
        %v2817 = vadd.f32 %v769, %v2289
        %v2818 = vadd.f32 %v770, %v2298
        %v2819 = vadd.f32 %v771, %v2307
        %v2820 = vadd.f32 %v772, %v2316
        %v2821 = vadd.f32 %v773, %v2325
        %v2822 = vadd.f32 %v774, %v2334
        %v2823 = vadd.f32 %v775, %v2343
        %v2824 = vadd.f32 %v776, %v2352
        %v2825 = vadd.f32 %v777, %v2361
        %v2826 = vadd.f32 %v778, %v2370
        %v2827 = vadd.f32 %v779, %v2379
        %v2828 = vadd.f32 %v780, %v2388
        %v2829 = vadd.f32 %v781, %v2397
        %v2830 = vadd.f32 %v782, %v2406
        %v2831 = vadd.f32 %v783, %v2415
        %v2832 = vadd.f32 %v784, %v2424
        %v2833 = vadd.f32 %v785, %v2433
        %v2834 = vadd.f32 %v786, %v2442
        %v2835 = vadd.f32 %v787, %v2451
        %v2836 = vadd.f32 %v788, %v2460
        %v2837 = vadd.f32 %v789, %v2469
        %v2838 = vadd.f32 %v790, %v2478
        %v2839 = vadd.f32 %v791, %v2487
        %v2840 = vadd.f32 %v792, %v2496
        %v2841 = vadd.f32 %v793, %v2505
        %v2842 = vadd.f32 %v794, %v2514
        %v2843 = vadd.f32 %v795, %v2523
        %v2844 = vadd.f32 %v796, %v2532
        %v2845 = vadd.f32 %v797, %v2541
        %v2846 = vadd.f32 %v798, %v2550
        %v2847 = vadd.f32 %v799, %v2559
        %v2848 = vadd.f32 %v800, %v2568
        %v2849 = vadd.f32 %v801, %v2577
        %v2850 = vadd.f32 %v802, %v2586
        %v2851 = vadd.f32 %v803, %v2595
        %v2852 = vadd.f32 %v804, %v2604
        %v2853 = vadd.f32 %v805, %v2613
        %v2854 = vadd.f32 %v806, %v2622
        %v2855 = vadd.f32 %v807, %v2631
        %v2856 = vadd.f32 %v808, %v2640
        %v2857 = vadd.f32 %v809, %v2649
        %v2858 = vadd.f32 %v810, %v2658
        %v2859 = vadd.f32 %v811, %v2667
        %v2860 = vadd.f32 %v812, %v2676
        %v2861 = vadd.f32 %v813, %v2685
        %v2862 = vadd.f32 %v814, %v2694
        %v2863 = vadd.f32 %v815, %v2703
        %v2864 = vadd.f32 %v816, %v2712
        %v2865 = vadd.f32 %v817, %v2721
        %v2866 = vadd.f32 %v818, %v2730
        %v2867 = vadd.f32 %v819, %v2739
        %v2868 = vsel %vm820, %v948, %v2740
        %v2869 = vsel %vm821, %v949, %v2741
        %v2870 = vsel %vm822, %v950, %v2742
        %v2871 = vsel %vm823, %v951, %v2743
        %v2872 = vsel %vm824, %v952, %v2744
        %v2873 = vsel %vm825, %v953, %v2745
        %v2874 = vsel %vm826, %v954, %v2746
        %v2875 = vsel %vm827, %v955, %v2747
        %v2876 = vsel %vm828, %v956, %v2748
        %v2877 = vsel %vm829, %v957, %v2749
        %v2878 = vsel %vm830, %v958, %v2750
        %v2879 = vsel %vm831, %v959, %v2751
        %v2880 = vsel %vm832, %v960, %v2752
        %v2881 = vsel %vm833, %v961, %v2753
        %v2882 = vsel %vm834, %v962, %v2754
        %v2883 = vsel %vm835, %v963, %v2755
        %v2884 = vsel %vm836, %v964, %v2756
        %v2885 = vsel %vm837, %v965, %v2757
        %v2886 = vsel %vm838, %v966, %v2758
        %v2887 = vsel %vm839, %v967, %v2759
        %v2888 = vsel %vm840, %v968, %v2760
        %v2889 = vsel %vm841, %v969, %v2761
        %v2890 = vsel %vm842, %v970, %v2762
        %v2891 = vsel %vm843, %v971, %v2763
        %v2892 = vsel %vm844, %v972, %v2764
        %v2893 = vsel %vm845, %v973, %v2765
        %v2894 = vsel %vm846, %v974, %v2766
        %v2895 = vsel %vm847, %v975, %v2767
        %v2896 = vsel %vm848, %v976, %v2768
        %v2897 = vsel %vm849, %v977, %v2769
        %v2898 = vsel %vm850, %v978, %v2770
        %v2899 = vsel %vm851, %v979, %v2771
        %v2900 = vsel %vm852, %v980, %v2772
        %v2901 = vsel %vm853, %v981, %v2773
        %v2902 = vsel %vm854, %v982, %v2774
        %v2903 = vsel %vm855, %v983, %v2775
        %v2904 = vsel %vm856, %v984, %v2776
        %v2905 = vsel %vm857, %v985, %v2777
        %v2906 = vsel %vm858, %v986, %v2778
        %v2907 = vsel %vm859, %v987, %v2779
        %v2908 = vsel %vm860, %v988, %v2780
        %v2909 = vsel %vm861, %v989, %v2781
        %v2910 = vsel %vm862, %v990, %v2782
        %v2911 = vsel %vm863, %v991, %v2783
        %v2912 = vsel %vm864, %v992, %v2784
        %v2913 = vsel %vm865, %v993, %v2785
        %v2914 = vsel %vm866, %v994, %v2786
        %v2915 = vsel %vm867, %v995, %v2787
        %v2916 = vsel %vm868, %v996, %v2788
        %v2917 = vsel %vm869, %v997, %v2789
        %v2918 = vsel %vm870, %v998, %v2790
        %v2919 = vsel %vm871, %v999, %v2791
        %v2920 = vsel %vm872, %v1000, %v2792
        %v2921 = vsel %vm873, %v1001, %v2793
        %v2922 = vsel %vm874, %v1002, %v2794
        %v2923 = vsel %vm875, %v1003, %v2795
        %v2924 = vsel %vm876, %v1004, %v2796
        %v2925 = vsel %vm877, %v1005, %v2797
        %v2926 = vsel %vm878, %v1006, %v2798
        %v2927 = vsel %vm879, %v1007, %v2799
        %v2928 = vsel %vm880, %v1008, %v2800
        %v2929 = vsel %vm881, %v1009, %v2801
        %v2930 = vsel %vm882, %v1010, %v2802
        %v2931 = vsel %vm883, %v1011, %v2803
        %v2932 = vsel %vm884, %v1012, %v2804
        %v2933 = vsel %vm885, %v1013, %v2805
        %v2934 = vsel %vm886, %v1014, %v2806
        %v2935 = vsel %vm887, %v1015, %v2807
        %v2936 = vsel %vm888, %v1016, %v2808
        %v2937 = vsel %vm889, %v1017, %v2809
        %v2938 = vsel %vm890, %v1018, %v2810
        %v2939 = vsel %vm891, %v1019, %v2811
        %v2940 = vsel %vm892, %v1020, %v2812
        %v2941 = vsel %vm893, %v1021, %v2813
        %v2942 = vsel %vm894, %v1022, %v2814
        %v2943 = vsel %vm895, %v1023, %v2815
        %v2944 = vsel %vm896, %v1024, %v2816
        %v2945 = vsel %vm897, %v1025, %v2817
        %v2946 = vsel %vm898, %v1026, %v2818
        %v2947 = vsel %vm899, %v1027, %v2819
        %v2948 = vsel %vm900, %v1028, %v2820
        %v2949 = vsel %vm901, %v1029, %v2821
        %v2950 = vsel %vm902, %v1030, %v2822
        %v2951 = vsel %vm903, %v1031, %v2823
        %v2952 = vsel %vm904, %v1032, %v2824
        %v2953 = vsel %vm905, %v1033, %v2825
        %v2954 = vsel %vm906, %v1034, %v2826
        %v2955 = vsel %vm907, %v1035, %v2827
        %v2956 = vsel %vm908, %v1036, %v2828
        %v2957 = vsel %vm909, %v1037, %v2829
        %v2958 = vsel %vm910, %v1038, %v2830
        %v2959 = vsel %vm911, %v1039, %v2831
        %v2960 = vsel %vm912, %v1040, %v2832
        %v2961 = vsel %vm913, %v1041, %v2833
        %v2962 = vsel %vm914, %v1042, %v2834
        %v2963 = vsel %vm915, %v1043, %v2835
        %v2964 = vsel %vm916, %v1044, %v2836
        %v2965 = vsel %vm917, %v1045, %v2837
        %v2966 = vsel %vm918, %v1046, %v2838
        %v2967 = vsel %vm919, %v1047, %v2839
        %v2968 = vsel %vm920, %v1048, %v2840
        %v2969 = vsel %vm921, %v1049, %v2841
        %v2970 = vsel %vm922, %v1050, %v2842
        %v2971 = vsel %vm923, %v1051, %v2843
        %v2972 = vsel %vm924, %v1052, %v2844
        %v2973 = vsel %vm925, %v1053, %v2845
        %v2974 = vsel %vm926, %v1054, %v2846
        %v2975 = vsel %vm927, %v1055, %v2847
        %v2976 = vsel %vm928, %v1056, %v2848
        %v2977 = vsel %vm929, %v1057, %v2849
        %v2978 = vsel %vm930, %v1058, %v2850
        %v2979 = vsel %vm931, %v1059, %v2851
        %v2980 = vsel %vm932, %v1060, %v2852
        %v2981 = vsel %vm933, %v1061, %v2853
        %v2982 = vsel %vm934, %v1062, %v2854
        %v2983 = vsel %vm935, %v1063, %v2855
        %v2984 = vsel %vm936, %v1064, %v2856
        %v2985 = vsel %vm937, %v1065, %v2857
        %v2986 = vsel %vm938, %v1066, %v2858
        %v2987 = vsel %vm939, %v1067, %v2859
        %v2988 = vsel %vm940, %v1068, %v2860
        %v2989 = vsel %vm941, %v1069, %v2861
        %v2990 = vsel %vm942, %v1070, %v2862
        %v2991 = vsel %vm943, %v1071, %v2863
        %v2992 = vsel %vm944, %v1072, %v2864
        %v2993 = vsel %vm945, %v1073, %v2865
        %v2994 = vsel %vm946, %v1074, %v2866
        %v2995 = vsel %vm947, %v1075, %v2867
        %v2996 = vadd.f32 %v2868, 1e-05
        %v2997 = vadd.f32 %v2869, 1e-05
        %v2998 = vadd.f32 %v2870, 1e-05
        %v2999 = vadd.f32 %v2871, 1e-05
        %v3000 = vadd.f32 %v2872, 1e-05
        %v3001 = vadd.f32 %v2873, 1e-05
        %v3002 = vadd.f32 %v2874, 1e-05
        %v3003 = vadd.f32 %v2875, 1e-05
        %v3004 = vadd.f32 %v2876, 1e-05
        %v3005 = vadd.f32 %v2877, 1e-05
        %v3006 = vadd.f32 %v2878, 1e-05
        %v3007 = vadd.f32 %v2879, 1e-05
        %v3008 = vadd.f32 %v2880, 1e-05
        %v3009 = vadd.f32 %v2881, 1e-05
        %v3010 = vadd.f32 %v2882, 1e-05
        %v3011 = vadd.f32 %v2883, 1e-05
        %v3012 = vadd.f32 %v2884, 1e-05
        %v3013 = vadd.f32 %v2885, 1e-05
        %v3014 = vadd.f32 %v2886, 1e-05
        %v3015 = vadd.f32 %v2887, 1e-05
        %v3016 = vadd.f32 %v2888, 1e-05
        %v3017 = vadd.f32 %v2889, 1e-05
        %v3018 = vadd.f32 %v2890, 1e-05
        %v3019 = vadd.f32 %v2891, 1e-05
        %v3020 = vadd.f32 %v2892, 1e-05
        %v3021 = vadd.f32 %v2893, 1e-05
        %v3022 = vadd.f32 %v2894, 1e-05
        %v3023 = vadd.f32 %v2895, 1e-05
        %v3024 = vadd.f32 %v2896, 1e-05
        %v3025 = vadd.f32 %v2897, 1e-05
        %v3026 = vadd.f32 %v2898, 1e-05
        %v3027 = vadd.f32 %v2899, 1e-05
        %v3028 = vadd.f32 %v2900, 1e-05
        %v3029 = vadd.f32 %v2901, 1e-05
        %v3030 = vadd.f32 %v2902, 1e-05
        %v3031 = vadd.f32 %v2903, 1e-05
        %v3032 = vadd.f32 %v2904, 1e-05
        %v3033 = vadd.f32 %v2905, 1e-05
        %v3034 = vadd.f32 %v2906, 1e-05
        %v3035 = vadd.f32 %v2907, 1e-05
        %v3036 = vadd.f32 %v2908, 1e-05
        %v3037 = vadd.f32 %v2909, 1e-05
        %v3038 = vadd.f32 %v2910, 1e-05
        %v3039 = vadd.f32 %v2911, 1e-05
        %v3040 = vadd.f32 %v2912, 1e-05
        %v3041 = vadd.f32 %v2913, 1e-05
        %v3042 = vadd.f32 %v2914, 1e-05
        %v3043 = vadd.f32 %v2915, 1e-05
        %v3044 = vadd.f32 %v2916, 1e-05
        %v3045 = vadd.f32 %v2917, 1e-05
        %v3046 = vadd.f32 %v2918, 1e-05
        %v3047 = vadd.f32 %v2919, 1e-05
        %v3048 = vadd.f32 %v2920, 1e-05
        %v3049 = vadd.f32 %v2921, 1e-05
        %v3050 = vadd.f32 %v2922, 1e-05
        %v3051 = vadd.f32 %v2923, 1e-05
        %v3052 = vadd.f32 %v2924, 1e-05
        %v3053 = vadd.f32 %v2925, 1e-05
        %v3054 = vadd.f32 %v2926, 1e-05
        %v3055 = vadd.f32 %v2927, 1e-05
        %v3056 = vadd.f32 %v2928, 1e-05
        %v3057 = vadd.f32 %v2929, 1e-05
        %v3058 = vadd.f32 %v2930, 1e-05
        %v3059 = vadd.f32 %v2931, 1e-05
        %v3060 = vadd.f32 %v2932, 1e-05
        %v3061 = vadd.f32 %v2933, 1e-05
        %v3062 = vadd.f32 %v2934, 1e-05
        %v3063 = vadd.f32 %v2935, 1e-05
        %v3064 = vadd.f32 %v2936, 1e-05
        %v3065 = vadd.f32 %v2937, 1e-05
        %v3066 = vadd.f32 %v2938, 1e-05
        %v3067 = vadd.f32 %v2939, 1e-05
        %v3068 = vadd.f32 %v2940, 1e-05
        %v3069 = vadd.f32 %v2941, 1e-05
        %v3070 = vadd.f32 %v2942, 1e-05
        %v3071 = vadd.f32 %v2943, 1e-05
        %v3072 = vadd.f32 %v2944, 1e-05
        %v3073 = vadd.f32 %v2945, 1e-05
        %v3074 = vadd.f32 %v2946, 1e-05
        %v3075 = vadd.f32 %v2947, 1e-05
        %v3076 = vadd.f32 %v2948, 1e-05
        %v3077 = vadd.f32 %v2949, 1e-05
        %v3078 = vadd.f32 %v2950, 1e-05
        %v3079 = vadd.f32 %v2951, 1e-05
        %v3080 = vadd.f32 %v2952, 1e-05
        %v3081 = vadd.f32 %v2953, 1e-05
        %v3082 = vadd.f32 %v2954, 1e-05
        %v3083 = vadd.f32 %v2955, 1e-05
        %v3084 = vadd.f32 %v2956, 1e-05
        %v3085 = vadd.f32 %v2957, 1e-05
        %v3086 = vadd.f32 %v2958, 1e-05
        %v3087 = vadd.f32 %v2959, 1e-05
        %v3088 = vadd.f32 %v2960, 1e-05
        %v3089 = vadd.f32 %v2961, 1e-05
        %v3090 = vadd.f32 %v2962, 1e-05
        %v3091 = vadd.f32 %v2963, 1e-05
        %v3092 = vadd.f32 %v2964, 1e-05
        %v3093 = vadd.f32 %v2965, 1e-05
        %v3094 = vadd.f32 %v2966, 1e-05
        %v3095 = vadd.f32 %v2967, 1e-05
        %v3096 = vadd.f32 %v2968, 1e-05
        %v3097 = vadd.f32 %v2969, 1e-05
        %v3098 = vadd.f32 %v2970, 1e-05
        %v3099 = vadd.f32 %v2971, 1e-05
        %v3100 = vadd.f32 %v2972, 1e-05
        %v3101 = vadd.f32 %v2973, 1e-05
        %v3102 = vadd.f32 %v2974, 1e-05
        %v3103 = vadd.f32 %v2975, 1e-05
        %v3104 = vadd.f32 %v2976, 1e-05
        %v3105 = vadd.f32 %v2977, 1e-05
        %v3106 = vadd.f32 %v2978, 1e-05
        %v3107 = vadd.f32 %v2979, 1e-05
        %v3108 = vadd.f32 %v2980, 1e-05
        %v3109 = vadd.f32 %v2981, 1e-05
        %v3110 = vadd.f32 %v2982, 1e-05
        %v3111 = vadd.f32 %v2983, 1e-05
        %v3112 = vadd.f32 %v2984, 1e-05
        %v3113 = vadd.f32 %v2985, 1e-05
        %v3114 = vadd.f32 %v2986, 1e-05
        %v3115 = vadd.f32 %v2987, 1e-05
        %v3116 = vadd.f32 %v2988, 1e-05
        %v3117 = vadd.f32 %v2989, 1e-05
        %v3118 = vadd.f32 %v2990, 1e-05
        %v3119 = vadd.f32 %v2991, 1e-05
        %v3120 = vadd.f32 %v2992, 1e-05
        %v3121 = vadd.f32 %v2993, 1e-05
        %v3122 = vadd.f32 %v2994, 1e-05
        %v3123 = vadd.f32 %v2995, 1e-05
        %v3124 = vmul.f32 %v564, %v2996
        %v3125 = vmul.f32 %v565, %v2997
        %v3126 = vmul.f32 %v566, %v2998
        %v3127 = vmul.f32 %v567, %v2999
        %v3128 = vmul.f32 %v568, %v3000
        %v3129 = vmul.f32 %v569, %v3001
        %v3130 = vmul.f32 %v570, %v3002
        %v3131 = vmul.f32 %v571, %v3003
        %v3132 = vmul.f32 %v572, %v3004
        %v3133 = vmul.f32 %v573, %v3005
        %v3134 = vmul.f32 %v574, %v3006
        %v3135 = vmul.f32 %v575, %v3007
        %v3136 = vmul.f32 %v576, %v3008
        %v3137 = vmul.f32 %v577, %v3009
        %v3138 = vmul.f32 %v578, %v3010
        %v3139 = vmul.f32 %v579, %v3011
        %v3140 = vmul.f32 %v580, %v3012
        %v3141 = vmul.f32 %v581, %v3013
        %v3142 = vmul.f32 %v582, %v3014
        %v3143 = vmul.f32 %v583, %v3015
        %v3144 = vmul.f32 %v584, %v3016
        %v3145 = vmul.f32 %v585, %v3017
        %v3146 = vmul.f32 %v586, %v3018
        %v3147 = vmul.f32 %v587, %v3019
        %v3148 = vmul.f32 %v588, %v3020
        %v3149 = vmul.f32 %v589, %v3021
        %v3150 = vmul.f32 %v590, %v3022
        %v3151 = vmul.f32 %v591, %v3023
        %v3152 = vmul.f32 %v592, %v3024
        %v3153 = vmul.f32 %v593, %v3025
        %v3154 = vmul.f32 %v594, %v3026
        %v3155 = vmul.f32 %v595, %v3027
        %v3156 = vmul.f32 %v596, %v3028
        %v3157 = vmul.f32 %v597, %v3029
        %v3158 = vmul.f32 %v598, %v3030
        %v3159 = vmul.f32 %v599, %v3031
        %v3160 = vmul.f32 %v600, %v3032
        %v3161 = vmul.f32 %v601, %v3033
        %v3162 = vmul.f32 %v602, %v3034
        %v3163 = vmul.f32 %v603, %v3035
        %v3164 = vmul.f32 %v604, %v3036
        %v3165 = vmul.f32 %v605, %v3037
        %v3166 = vmul.f32 %v606, %v3038
        %v3167 = vmul.f32 %v607, %v3039
        %v3168 = vmul.f32 %v608, %v3040
        %v3169 = vmul.f32 %v609, %v3041
        %v3170 = vmul.f32 %v610, %v3042
        %v3171 = vmul.f32 %v611, %v3043
        %v3172 = vmul.f32 %v612, %v3044
        %v3173 = vmul.f32 %v613, %v3045
        %v3174 = vmul.f32 %v614, %v3046
        %v3175 = vmul.f32 %v615, %v3047
        %v3176 = vmul.f32 %v616, %v3048
        %v3177 = vmul.f32 %v617, %v3049
        %v3178 = vmul.f32 %v618, %v3050
        %v3179 = vmul.f32 %v619, %v3051
        %v3180 = vmul.f32 %v620, %v3052
        %v3181 = vmul.f32 %v621, %v3053
        %v3182 = vmul.f32 %v622, %v3054
        %v3183 = vmul.f32 %v623, %v3055
        %v3184 = vmul.f32 %v624, %v3056
        %v3185 = vmul.f32 %v625, %v3057
        %v3186 = vmul.f32 %v626, %v3058
        %v3187 = vmul.f32 %v627, %v3059
        %v3188 = vmul.f32 %v628, %v3060
        %v3189 = vmul.f32 %v629, %v3061
        %v3190 = vmul.f32 %v630, %v3062
        %v3191 = vmul.f32 %v631, %v3063
        %v3192 = vmul.f32 %v632, %v3064
        %v3193 = vmul.f32 %v633, %v3065
        %v3194 = vmul.f32 %v634, %v3066
        %v3195 = vmul.f32 %v635, %v3067
        %v3196 = vmul.f32 %v636, %v3068
        %v3197 = vmul.f32 %v637, %v3069
        %v3198 = vmul.f32 %v638, %v3070
        %v3199 = vmul.f32 %v639, %v3071
        %v3200 = vmul.f32 %v640, %v3072
        %v3201 = vmul.f32 %v641, %v3073
        %v3202 = vmul.f32 %v642, %v3074
        %v3203 = vmul.f32 %v643, %v3075
        %v3204 = vmul.f32 %v644, %v3076
        %v3205 = vmul.f32 %v645, %v3077
        %v3206 = vmul.f32 %v646, %v3078
        %v3207 = vmul.f32 %v647, %v3079
        %v3208 = vmul.f32 %v648, %v3080
        %v3209 = vmul.f32 %v649, %v3081
        %v3210 = vmul.f32 %v650, %v3082
        %v3211 = vmul.f32 %v651, %v3083
        %v3212 = vmul.f32 %v652, %v3084
        %v3213 = vmul.f32 %v653, %v3085
        %v3214 = vmul.f32 %v654, %v3086
        %v3215 = vmul.f32 %v655, %v3087
        %v3216 = vmul.f32 %v656, %v3088
        %v3217 = vmul.f32 %v657, %v3089
        %v3218 = vmul.f32 %v658, %v3090
        %v3219 = vmul.f32 %v659, %v3091
        %v3220 = vmul.f32 %v660, %v3092
        %v3221 = vmul.f32 %v661, %v3093
        %v3222 = vmul.f32 %v662, %v3094
        %v3223 = vmul.f32 %v663, %v3095
        %v3224 = vmul.f32 %v664, %v3096
        %v3225 = vmul.f32 %v665, %v3097
        %v3226 = vmul.f32 %v666, %v3098
        %v3227 = vmul.f32 %v667, %v3099
        %v3228 = vmul.f32 %v668, %v3100
        %v3229 = vmul.f32 %v669, %v3101
        %v3230 = vmul.f32 %v670, %v3102
        %v3231 = vmul.f32 %v671, %v3103
        %v3232 = vmul.f32 %v672, %v3104
        %v3233 = vmul.f32 %v673, %v3105
        %v3234 = vmul.f32 %v674, %v3106
        %v3235 = vmul.f32 %v675, %v3107
        %v3236 = vmul.f32 %v676, %v3108
        %v3237 = vmul.f32 %v677, %v3109
        %v3238 = vmul.f32 %v678, %v3110
        %v3239 = vmul.f32 %v679, %v3111
        %v3240 = vmul.f32 %v680, %v3112
        %v3241 = vmul.f32 %v681, %v3113
        %v3242 = vmul.f32 %v682, %v3114
        %v3243 = vmul.f32 %v683, %v3115
        %v3244 = vmul.f32 %v684, %v3116
        %v3245 = vmul.f32 %v685, %v3117
        %v3246 = vmul.f32 %v686, %v3118
        %v3247 = vmul.f32 %v687, %v3119
        %v3248 = vmul.f32 %v688, %v3120
        %v3249 = vmul.f32 %v689, %v3121
        %v3250 = vmul.f32 %v690, %v3122
        %v3251 = vmul.f32 %v691, %v3123
        %v3252 = vadd.f32 %v308, %v3124
        %v3253 = vadd.f32 %v309, %v3125
        %v3254 = vadd.f32 %v310, %v3126
        %v3255 = vadd.f32 %v311, %v3127
        %v3256 = vadd.f32 %v312, %v3128
        %v3257 = vadd.f32 %v313, %v3129
        %v3258 = vadd.f32 %v314, %v3130
        %v3259 = vadd.f32 %v315, %v3131
        %v3260 = vadd.f32 %v316, %v3132
        %v3261 = vadd.f32 %v317, %v3133
        %v3262 = vadd.f32 %v318, %v3134
        %v3263 = vadd.f32 %v319, %v3135
        %v3264 = vadd.f32 %v320, %v3136
        %v3265 = vadd.f32 %v321, %v3137
        %v3266 = vadd.f32 %v322, %v3138
        %v3267 = vadd.f32 %v323, %v3139
        %v3268 = vadd.f32 %v324, %v3140
        %v3269 = vadd.f32 %v325, %v3141
        %v3270 = vadd.f32 %v326, %v3142
        %v3271 = vadd.f32 %v327, %v3143
        %v3272 = vadd.f32 %v328, %v3144
        %v3273 = vadd.f32 %v329, %v3145
        %v3274 = vadd.f32 %v330, %v3146
        %v3275 = vadd.f32 %v331, %v3147
        %v3276 = vadd.f32 %v332, %v3148
        %v3277 = vadd.f32 %v333, %v3149
        %v3278 = vadd.f32 %v334, %v3150
        %v3279 = vadd.f32 %v335, %v3151
        %v3280 = vadd.f32 %v336, %v3152
        %v3281 = vadd.f32 %v337, %v3153
        %v3282 = vadd.f32 %v338, %v3154
        %v3283 = vadd.f32 %v339, %v3155
        %v3284 = vadd.f32 %v340, %v3156
        %v3285 = vadd.f32 %v341, %v3157
        %v3286 = vadd.f32 %v342, %v3158
        %v3287 = vadd.f32 %v343, %v3159
        %v3288 = vadd.f32 %v344, %v3160
        %v3289 = vadd.f32 %v345, %v3161
        %v3290 = vadd.f32 %v346, %v3162
        %v3291 = vadd.f32 %v347, %v3163
        %v3292 = vadd.f32 %v348, %v3164
        %v3293 = vadd.f32 %v349, %v3165
        %v3294 = vadd.f32 %v350, %v3166
        %v3295 = vadd.f32 %v351, %v3167
        %v3296 = vadd.f32 %v352, %v3168
        %v3297 = vadd.f32 %v353, %v3169
        %v3298 = vadd.f32 %v354, %v3170
        %v3299 = vadd.f32 %v355, %v3171
        %v3300 = vadd.f32 %v356, %v3172
        %v3301 = vadd.f32 %v357, %v3173
        %v3302 = vadd.f32 %v358, %v3174
        %v3303 = vadd.f32 %v359, %v3175
        %v3304 = vadd.f32 %v360, %v3176
        %v3305 = vadd.f32 %v361, %v3177
        %v3306 = vadd.f32 %v362, %v3178
        %v3307 = vadd.f32 %v363, %v3179
        %v3308 = vadd.f32 %v364, %v3180
        %v3309 = vadd.f32 %v365, %v3181
        %v3310 = vadd.f32 %v366, %v3182
        %v3311 = vadd.f32 %v367, %v3183
        %v3312 = vadd.f32 %v368, %v3184
        %v3313 = vadd.f32 %v369, %v3185
        %v3314 = vadd.f32 %v370, %v3186
        %v3315 = vadd.f32 %v371, %v3187
        %v3316 = vadd.f32 %v372, %v3188
        %v3317 = vadd.f32 %v373, %v3189
        %v3318 = vadd.f32 %v374, %v3190
        %v3319 = vadd.f32 %v375, %v3191
        %v3320 = vadd.f32 %v376, %v3192
        %v3321 = vadd.f32 %v377, %v3193
        %v3322 = vadd.f32 %v378, %v3194
        %v3323 = vadd.f32 %v379, %v3195
        %v3324 = vadd.f32 %v380, %v3196
        %v3325 = vadd.f32 %v381, %v3197
        %v3326 = vadd.f32 %v382, %v3198
        %v3327 = vadd.f32 %v383, %v3199
        %v3328 = vadd.f32 %v384, %v3200
        %v3329 = vadd.f32 %v385, %v3201
        %v3330 = vadd.f32 %v386, %v3202
        %v3331 = vadd.f32 %v387, %v3203
        %v3332 = vadd.f32 %v388, %v3204
        %v3333 = vadd.f32 %v389, %v3205
        %v3334 = vadd.f32 %v390, %v3206
        %v3335 = vadd.f32 %v391, %v3207
        %v3336 = vadd.f32 %v392, %v3208
        %v3337 = vadd.f32 %v393, %v3209
        %v3338 = vadd.f32 %v394, %v3210
        %v3339 = vadd.f32 %v395, %v3211
        %v3340 = vadd.f32 %v396, %v3212
        %v3341 = vadd.f32 %v397, %v3213
        %v3342 = vadd.f32 %v398, %v3214
        %v3343 = vadd.f32 %v399, %v3215
        %v3344 = vadd.f32 %v400, %v3216
        %v3345 = vadd.f32 %v401, %v3217
        %v3346 = vadd.f32 %v402, %v3218
        %v3347 = vadd.f32 %v403, %v3219
        %v3348 = vadd.f32 %v404, %v3220
        %v3349 = vadd.f32 %v405, %v3221
        %v3350 = vadd.f32 %v406, %v3222
        %v3351 = vadd.f32 %v407, %v3223
        %v3352 = vadd.f32 %v408, %v3224
        %v3353 = vadd.f32 %v409, %v3225
        %v3354 = vadd.f32 %v410, %v3226
        %v3355 = vadd.f32 %v411, %v3227
        %v3356 = vadd.f32 %v412, %v3228
        %v3357 = vadd.f32 %v413, %v3229
        %v3358 = vadd.f32 %v414, %v3230
        %v3359 = vadd.f32 %v415, %v3231
        %v3360 = vadd.f32 %v416, %v3232
        %v3361 = vadd.f32 %v417, %v3233
        %v3362 = vadd.f32 %v418, %v3234
        %v3363 = vadd.f32 %v419, %v3235
        %v3364 = vadd.f32 %v420, %v3236
        %v3365 = vadd.f32 %v421, %v3237
        %v3366 = vadd.f32 %v422, %v3238
        %v3367 = vadd.f32 %v423, %v3239
        %v3368 = vadd.f32 %v424, %v3240
        %v3369 = vadd.f32 %v425, %v3241
        %v3370 = vadd.f32 %v426, %v3242
        %v3371 = vadd.f32 %v427, %v3243
        %v3372 = vadd.f32 %v428, %v3244
        %v3373 = vadd.f32 %v429, %v3245
        %v3374 = vadd.f32 %v430, %v3246
        %v3375 = vadd.f32 %v431, %v3247
        %v3376 = vadd.f32 %v432, %v3248
        %v3377 = vadd.f32 %v433, %v3249
        %v3378 = vadd.f32 %v434, %v3250
        %v3379 = vadd.f32 %v435, %v3251
        %3380 = vst [vmem:[%s303] sm:$0xff] %v3252
        %3381 = vst [vmem:[%s303 + $0x8] sm:$0xff] %v3253
        %3382 = vst [vmem:[%s303 + $0x10] sm:$0xff] %v3254
        %3383 = vst [vmem:[%s303 + $0x18] sm:$0xff] %v3255
        %3384 = vst [vmem:[%s303 + $0x20] sm:$0xff] %v3256
        %3385 = vst [vmem:[%s303 + $0x28] sm:$0xff] %v3257
        %3386 = vst [vmem:[%s303 + $0x30] sm:$0xff] %v3258
        %3387 = vst [vmem:[%s303 + $0x38] sm:$0xff] %v3259
        %3388 = vst [vmem:[%s303 + $0x40] sm:$0xff] %v3260
        %3389 = vst [vmem:[%s303 + $0x48] sm:$0xff] %v3261
        %3390 = vst [vmem:[%s303 + $0x50] sm:$0xff] %v3262
        %3391 = vst [vmem:[%s303 + $0x58] sm:$0xff] %v3263
        %3392 = vst [vmem:[%s303 + $0x60] sm:$0xff] %v3264
        %3393 = vst [vmem:[%s303 + $0x68] sm:$0xff] %v3265
        %3394 = vst [vmem:[%s303 + $0x70] sm:$0xff] %v3266
        %3395 = vst [vmem:[%s303 + $0x78] sm:$0xff] %v3267
        %3396 = vst [vmem:[%s303 + $0x80] sm:$0xff] %v3268
        %3397 = vst [vmem:[%s303 + $0x88] sm:$0xff] %v3269
        %3398 = vst [vmem:[%s303 + $0x90] sm:$0xff] %v3270
        %3399 = vst [vmem:[%s303 + $0x98] sm:$0xff] %v3271
        %3400 = vst [vmem:[%s303 + $0xa0] sm:$0xff] %v3272
        %3401 = vst [vmem:[%s303 + $0xa8] sm:$0xff] %v3273
        %3402 = vst [vmem:[%s303 + $0xb0] sm:$0xff] %v3274
        %3403 = vst [vmem:[%s303 + $0xb8] sm:$0xff] %v3275
        %3404 = vst [vmem:[%s303 + $0xc0] sm:$0xff] %v3276
        %3405 = vst [vmem:[%s303 + $0xc8] sm:$0xff] %v3277
        %3406 = vst [vmem:[%s303 + $0xd0] sm:$0xff] %v3278
        %3407 = vst [vmem:[%s303 + $0xd8] sm:$0xff] %v3279
        %3408 = vst [vmem:[%s303 + $0xe0] sm:$0xff] %v3280
        %3409 = vst [vmem:[%s303 + $0xe8] sm:$0xff] %v3281
        %3410 = vst [vmem:[%s303 + $0xf0] sm:$0xff] %v3282
        %3411 = vst [vmem:[%s303 + $0xf8] sm:$0xff] %v3283
        %3412 = vst [vmem:[%s303 + $0x100] sm:$0xff] %v3284
        %3413 = vst [vmem:[%s303 + $0x108] sm:$0xff] %v3285
        %3414 = vst [vmem:[%s303 + $0x110] sm:$0xff] %v3286
        %3415 = vst [vmem:[%s303 + $0x118] sm:$0xff] %v3287
        %3416 = vst [vmem:[%s303 + $0x120] sm:$0xff] %v3288
        %3417 = vst [vmem:[%s303 + $0x128] sm:$0xff] %v3289
        %3418 = vst [vmem:[%s303 + $0x130] sm:$0xff] %v3290
        %3419 = vst [vmem:[%s303 + $0x138] sm:$0xff] %v3291
        %3420 = vst [vmem:[%s303 + $0x140] sm:$0xff] %v3292
        %3421 = vst [vmem:[%s303 + $0x148] sm:$0xff] %v3293
        %3422 = vst [vmem:[%s303 + $0x150] sm:$0xff] %v3294
        %3423 = vst [vmem:[%s303 + $0x158] sm:$0xff] %v3295
        %3424 = vst [vmem:[%s303 + $0x160] sm:$0xff] %v3296
        %3425 = vst [vmem:[%s303 + $0x168] sm:$0xff] %v3297
        %3426 = vst [vmem:[%s303 + $0x170] sm:$0xff] %v3298
        %3427 = vst [vmem:[%s303 + $0x178] sm:$0xff] %v3299
        %3428 = vst [vmem:[%s303 + $0x180] sm:$0xff] %v3300
        %3429 = vst [vmem:[%s303 + $0x188] sm:$0xff] %v3301
        %3430 = vst [vmem:[%s303 + $0x190] sm:$0xff] %v3302
        %3431 = vst [vmem:[%s303 + $0x198] sm:$0xff] %v3303
        %3432 = vst [vmem:[%s303 + $0x1a0] sm:$0xff] %v3304
        %3433 = vst [vmem:[%s303 + $0x1a8] sm:$0xff] %v3305
        %3434 = vst [vmem:[%s303 + $0x1b0] sm:$0xff] %v3306
        %3435 = vst [vmem:[%s303 + $0x1b8] sm:$0xff] %v3307
        %3436 = vst [vmem:[%s303 + $0x1c0] sm:$0xff] %v3308
        %3437 = vst [vmem:[%s303 + $0x1c8] sm:$0xff] %v3309
        %3438 = vst [vmem:[%s303 + $0x1d0] sm:$0xff] %v3310
        %3439 = vst [vmem:[%s303 + $0x1d8] sm:$0xff] %v3311
        %3440 = vst [vmem:[%s303 + $0x1e0] sm:$0xff] %v3312
        %3441 = vst [vmem:[%s303 + $0x1e8] sm:$0xff] %v3313
        %3442 = vst [vmem:[%s303 + $0x1f0] sm:$0xff] %v3314
        %3443 = vst [vmem:[%s303 + $0x1f8] sm:$0xff] %v3315
        %3444 = vst [vmem:[%s303 + $0x200] sm:$0xff] %v3316
        %3445 = vst [vmem:[%s303 + $0x208] sm:$0xff] %v3317
        %3446 = vst [vmem:[%s303 + $0x210] sm:$0xff] %v3318
        %3447 = vst [vmem:[%s303 + $0x218] sm:$0xff] %v3319
        %3448 = vst [vmem:[%s303 + $0x220] sm:$0xff] %v3320
        %3449 = vst [vmem:[%s303 + $0x228] sm:$0xff] %v3321
        %3450 = vst [vmem:[%s303 + $0x230] sm:$0xff] %v3322
        %3451 = vst [vmem:[%s303 + $0x238] sm:$0xff] %v3323
        %3452 = vst [vmem:[%s303 + $0x240] sm:$0xff] %v3324
        %3453 = vst [vmem:[%s303 + $0x248] sm:$0xff] %v3325
        %3454 = vst [vmem:[%s303 + $0x250] sm:$0xff] %v3326
        %3455 = vst [vmem:[%s303 + $0x258] sm:$0xff] %v3327
        %3456 = vst [vmem:[%s303 + $0x260] sm:$0xff] %v3328
        %3457 = vst [vmem:[%s303 + $0x268] sm:$0xff] %v3329
        %3458 = vst [vmem:[%s303 + $0x270] sm:$0xff] %v3330
        %3459 = vst [vmem:[%s303 + $0x278] sm:$0xff] %v3331
        %3460 = vst [vmem:[%s303 + $0x280] sm:$0xff] %v3332
        %3461 = vst [vmem:[%s303 + $0x288] sm:$0xff] %v3333
        %3462 = vst [vmem:[%s303 + $0x290] sm:$0xff] %v3334
        %3463 = vst [vmem:[%s303 + $0x298] sm:$0xff] %v3335
        %3464 = vst [vmem:[%s303 + $0x2a0] sm:$0xff] %v3336
        %3465 = vst [vmem:[%s303 + $0x2a8] sm:$0xff] %v3337
        %3466 = vst [vmem:[%s303 + $0x2b0] sm:$0xff] %v3338
        %3467 = vst [vmem:[%s303 + $0x2b8] sm:$0xff] %v3339
        %3468 = vst [vmem:[%s303 + $0x2c0] sm:$0xff] %v3340
        %3469 = vst [vmem:[%s303 + $0x2c8] sm:$0xff] %v3341
        %3470 = vst [vmem:[%s303 + $0x2d0] sm:$0xff] %v3342
        %3471 = vst [vmem:[%s303 + $0x2d8] sm:$0xff] %v3343
        %3472 = vst [vmem:[%s303 + $0x2e0] sm:$0xff] %v3344
        %3473 = vst [vmem:[%s303 + $0x2e8] sm:$0xff] %v3345
        %3474 = vst [vmem:[%s303 + $0x2f0] sm:$0xff] %v3346
        %3475 = vst [vmem:[%s303 + $0x2f8] sm:$0xff] %v3347
        %3476 = vst [vmem:[%s303 + $0x300] sm:$0xff] %v3348
        %3477 = vst [vmem:[%s303 + $0x308] sm:$0xff] %v3349
        %3478 = vst [vmem:[%s303 + $0x310] sm:$0xff] %v3350
        %3479 = vst [vmem:[%s303 + $0x318] sm:$0xff] %v3351
        %3480 = vst [vmem:[%s303 + $0x320] sm:$0xff] %v3352
        %3481 = vst [vmem:[%s303 + $0x328] sm:$0xff] %v3353
        %3482 = vst [vmem:[%s303 + $0x330] sm:$0xff] %v3354
        %3483 = vst [vmem:[%s303 + $0x338] sm:$0xff] %v3355
        %3484 = vst [vmem:[%s303 + $0x340] sm:$0xff] %v3356
        %3485 = vst [vmem:[%s303 + $0x348] sm:$0xff] %v3357
        %3486 = vst [vmem:[%s303 + $0x350] sm:$0xff] %v3358
        %3487 = vst [vmem:[%s303 + $0x358] sm:$0xff] %v3359
        %3488 = vst [vmem:[%s303 + $0x360] sm:$0xff] %v3360
        %3489 = vst [vmem:[%s303 + $0x368] sm:$0xff] %v3361
        %3490 = vst [vmem:[%s303 + $0x370] sm:$0xff] %v3362
        %3491 = vst [vmem:[%s303 + $0x378] sm:$0xff] %v3363
        %3492 = vst [vmem:[%s303 + $0x380] sm:$0xff] %v3364
        %3493 = vst [vmem:[%s303 + $0x388] sm:$0xff] %v3365
        %3494 = vst [vmem:[%s303 + $0x390] sm:$0xff] %v3366
        %3495 = vst [vmem:[%s303 + $0x398] sm:$0xff] %v3367
        %3496 = vst [vmem:[%s303 + $0x3a0] sm:$0xff] %v3368
        %3497 = vst [vmem:[%s303 + $0x3a8] sm:$0xff] %v3369
        %3498 = vst [vmem:[%s303 + $0x3b0] sm:$0xff] %v3370
        %3499 = vst [vmem:[%s303 + $0x3b8] sm:$0xff] %v3371
        %3500 = vst [vmem:[%s303 + $0x3c0] sm:$0xff] %v3372
        %3501 = vst [vmem:[%s303 + $0x3c8] sm:$0xff] %v3373
        %3502 = vst [vmem:[%s303 + $0x3d0] sm:$0xff] %v3374
        %3503 = vst [vmem:[%s303 + $0x3d8] sm:$0xff] %v3375
        %3504 = vst [vmem:[%s303 + $0x3e0] sm:$0xff] %v3376
        %3505 = vst [vmem:[%s303 + $0x3e8] sm:$0xff] %v3377
        %3506 = vst [vmem:[%s303 + $0x3f0] sm:$0xff] %v3378
        %3507 = vst [vmem:[%s303 + $0x3f8] sm:$0xff] %v3379
        %v3508 = vlog2.pop %v2996
        %v3509 = vmul.f32 %v3508, 0.6931472
        %v3510 = vlog2.pop %v2997
        %v3511 = vmul.f32 %v3510, 0.6931472
        %v3512 = vlog2.pop %v2998
        %v3513 = vmul.f32 %v3512, 0.6931472
        %v3514 = vlog2.pop %v2999
        %v3515 = vmul.f32 %v3514, 0.6931472
        %v3516 = vlog2.pop %v3000
        %v3517 = vmul.f32 %v3516, 0.6931472
        %v3518 = vlog2.pop %v3001
        %v3519 = vmul.f32 %v3518, 0.6931472
        %v3520 = vlog2.pop %v3002
        %v3521 = vmul.f32 %v3520, 0.6931472
        %v3522 = vlog2.pop %v3003
        %v3523 = vmul.f32 %v3522, 0.6931472
        %v3524 = vlog2.pop %v3004
        %v3525 = vmul.f32 %v3524, 0.6931472
        %v3526 = vlog2.pop %v3005
        %v3527 = vmul.f32 %v3526, 0.6931472
        %v3528 = vlog2.pop %v3006
        %v3529 = vmul.f32 %v3528, 0.6931472
        %v3530 = vlog2.pop %v3007
        %v3531 = vmul.f32 %v3530, 0.6931472
        %v3532 = vlog2.pop %v3008
        %v3533 = vmul.f32 %v3532, 0.6931472
        %v3534 = vlog2.pop %v3009
        %v3535 = vmul.f32 %v3534, 0.6931472
        %v3536 = vlog2.pop %v3010
        %v3537 = vmul.f32 %v3536, 0.6931472
        %v3538 = vlog2.pop %v3011
        %v3539 = vmul.f32 %v3538, 0.6931472
        %v3540 = vlog2.pop %v3012
        %v3541 = vmul.f32 %v3540, 0.6931472
        %v3542 = vlog2.pop %v3013
        %v3543 = vmul.f32 %v3542, 0.6931472
        %v3544 = vlog2.pop %v3014
        %v3545 = vmul.f32 %v3544, 0.6931472
        %v3546 = vlog2.pop %v3015
        %v3547 = vmul.f32 %v3546, 0.6931472
        %v3548 = vlog2.pop %v3016
        %v3549 = vmul.f32 %v3548, 0.6931472
        %v3550 = vlog2.pop %v3017
        %v3551 = vmul.f32 %v3550, 0.6931472
        %v3552 = vlog2.pop %v3018
        %v3553 = vmul.f32 %v3552, 0.6931472
        %v3554 = vlog2.pop %v3019
        %v3555 = vmul.f32 %v3554, 0.6931472
        %v3556 = vlog2.pop %v3020
        %v3557 = vmul.f32 %v3556, 0.6931472
        %v3558 = vlog2.pop %v3021
        %v3559 = vmul.f32 %v3558, 0.6931472
        %v3560 = vlog2.pop %v3022
        %v3561 = vmul.f32 %v3560, 0.6931472
        %v3562 = vlog2.pop %v3023
        %v3563 = vmul.f32 %v3562, 0.6931472
        %v3564 = vlog2.pop %v3024
        %v3565 = vmul.f32 %v3564, 0.6931472
        %v3566 = vlog2.pop %v3025
        %v3567 = vmul.f32 %v3566, 0.6931472
        %v3568 = vlog2.pop %v3026
        %v3569 = vmul.f32 %v3568, 0.6931472
        %v3570 = vlog2.pop %v3027
        %v3571 = vmul.f32 %v3570, 0.6931472
        %v3572 = vlog2.pop %v3028
        %v3573 = vmul.f32 %v3572, 0.6931472
        %v3574 = vlog2.pop %v3029
        %v3575 = vmul.f32 %v3574, 0.6931472
        %v3576 = vlog2.pop %v3030
        %v3577 = vmul.f32 %v3576, 0.6931472
        %v3578 = vlog2.pop %v3031
        %v3579 = vmul.f32 %v3578, 0.6931472
        %v3580 = vlog2.pop %v3032
        %v3581 = vmul.f32 %v3580, 0.6931472
        %v3582 = vlog2.pop %v3033
        %v3583 = vmul.f32 %v3582, 0.6931472
        %v3584 = vlog2.pop %v3034
        %v3585 = vmul.f32 %v3584, 0.6931472
        %v3586 = vlog2.pop %v3035
        %v3587 = vmul.f32 %v3586, 0.6931472
        %v3588 = vlog2.pop %v3036
        %v3589 = vmul.f32 %v3588, 0.6931472
        %v3590 = vlog2.pop %v3037
        %v3591 = vmul.f32 %v3590, 0.6931472
        %v3592 = vlog2.pop %v3038
        %v3593 = vmul.f32 %v3592, 0.6931472
        %v3594 = vlog2.pop %v3039
        %v3595 = vmul.f32 %v3594, 0.6931472
        %v3596 = vlog2.pop %v3040
        %v3597 = vmul.f32 %v3596, 0.6931472
        %v3598 = vlog2.pop %v3041
        %v3599 = vmul.f32 %v3598, 0.6931472
        %v3600 = vlog2.pop %v3042
        %v3601 = vmul.f32 %v3600, 0.6931472
        %v3602 = vlog2.pop %v3043
        %v3603 = vmul.f32 %v3602, 0.6931472
        %v3604 = vlog2.pop %v3044
        %v3605 = vmul.f32 %v3604, 0.6931472
        %v3606 = vlog2.pop %v3045
        %v3607 = vmul.f32 %v3606, 0.6931472
        %v3608 = vlog2.pop %v3046
        %v3609 = vmul.f32 %v3608, 0.6931472
        %v3610 = vlog2.pop %v3047
        %v3611 = vmul.f32 %v3610, 0.6931472
        %v3612 = vlog2.pop %v3048
        %v3613 = vmul.f32 %v3612, 0.6931472
        %v3614 = vlog2.pop %v3049
        %v3615 = vmul.f32 %v3614, 0.6931472
        %v3616 = vlog2.pop %v3050
        %v3617 = vmul.f32 %v3616, 0.6931472
        %v3618 = vlog2.pop %v3051
        %v3619 = vmul.f32 %v3618, 0.6931472
        %v3620 = vlog2.pop %v3052
        %v3621 = vmul.f32 %v3620, 0.6931472
        %v3622 = vlog2.pop %v3053
        %v3623 = vmul.f32 %v3622, 0.6931472
        %v3624 = vlog2.pop %v3054
        %v3625 = vmul.f32 %v3624, 0.6931472
        %v3626 = vlog2.pop %v3055
        %v3627 = vmul.f32 %v3626, 0.6931472
        %v3628 = vlog2.pop %v3056
        %v3629 = vmul.f32 %v3628, 0.6931472
        %v3630 = vlog2.pop %v3057
        %v3631 = vmul.f32 %v3630, 0.6931472
        %v3632 = vlog2.pop %v3058
        %v3633 = vmul.f32 %v3632, 0.6931472
        %v3634 = vlog2.pop %v3059
        %v3635 = vmul.f32 %v3634, 0.6931472
        %v3636 = vlog2.pop %v3060
        %v3637 = vmul.f32 %v3636, 0.6931472
        %v3638 = vlog2.pop %v3061
        %v3639 = vmul.f32 %v3638, 0.6931472
        %v3640 = vlog2.pop %v3062
        %v3641 = vmul.f32 %v3640, 0.6931472
        %v3642 = vlog2.pop %v3063
        %v3643 = vmul.f32 %v3642, 0.6931472
        %v3644 = vlog2.pop %v3064
        %v3645 = vmul.f32 %v3644, 0.6931472
        %v3646 = vlog2.pop %v3065
        %v3647 = vmul.f32 %v3646, 0.6931472
        %v3648 = vlog2.pop %v3066
        %v3649 = vmul.f32 %v3648, 0.6931472
        %v3650 = vlog2.pop %v3067
        %v3651 = vmul.f32 %v3650, 0.6931472
        %v3652 = vlog2.pop %v3068
        %v3653 = vmul.f32 %v3652, 0.6931472
        %v3654 = vlog2.pop %v3069
        %v3655 = vmul.f32 %v3654, 0.6931472
        %v3656 = vlog2.pop %v3070
        %v3657 = vmul.f32 %v3656, 0.6931472
        %v3658 = vlog2.pop %v3071
        %v3659 = vmul.f32 %v3658, 0.6931472
        %v3660 = vlog2.pop %v3072
        %v3661 = vmul.f32 %v3660, 0.6931472
        %v3662 = vlog2.pop %v3073
        %v3663 = vmul.f32 %v3662, 0.6931472
        %v3664 = vlog2.pop %v3074
        %v3665 = vmul.f32 %v3664, 0.6931472
        %v3666 = vlog2.pop %v3075
        %v3667 = vmul.f32 %v3666, 0.6931472
        %v3668 = vlog2.pop %v3076
        %v3669 = vmul.f32 %v3668, 0.6931472
        %v3670 = vlog2.pop %v3077
        %v3671 = vmul.f32 %v3670, 0.6931472
        %v3672 = vlog2.pop %v3078
        %v3673 = vmul.f32 %v3672, 0.6931472
        %v3674 = vlog2.pop %v3079
        %v3675 = vmul.f32 %v3674, 0.6931472
        %v3676 = vlog2.pop %v3080
        %v3677 = vmul.f32 %v3676, 0.6931472
        %v3678 = vlog2.pop %v3081
        %v3679 = vmul.f32 %v3678, 0.6931472
        %v3680 = vlog2.pop %v3082
        %v3681 = vmul.f32 %v3680, 0.6931472
        %v3682 = vlog2.pop %v3083
        %v3683 = vmul.f32 %v3682, 0.6931472
        %v3684 = vlog2.pop %v3084
        %v3685 = vmul.f32 %v3684, 0.6931472
        %v3686 = vlog2.pop %v3085
        %v3687 = vmul.f32 %v3686, 0.6931472
        %v3688 = vlog2.pop %v3086
        %v3689 = vmul.f32 %v3688, 0.6931472
        %v3690 = vlog2.pop %v3087
        %v3691 = vmul.f32 %v3690, 0.6931472
        %v3692 = vlog2.pop %v3088
        %v3693 = vmul.f32 %v3692, 0.6931472
        %v3694 = vlog2.pop %v3089
        %v3695 = vmul.f32 %v3694, 0.6931472
        %v3696 = vlog2.pop %v3090
        %v3697 = vmul.f32 %v3696, 0.6931472
        %v3698 = vlog2.pop %v3091
        %v3699 = vmul.f32 %v3698, 0.6931472
        %v3700 = vlog2.pop %v3092
        %v3701 = vmul.f32 %v3700, 0.6931472
        %v3702 = vlog2.pop %v3093
        %v3703 = vmul.f32 %v3702, 0.6931472
        %v3704 = vlog2.pop %v3094
        %v3705 = vmul.f32 %v3704, 0.6931472
        %v3706 = vlog2.pop %v3095
        %v3707 = vmul.f32 %v3706, 0.6931472
        %v3708 = vlog2.pop %v3096
        %v3709 = vmul.f32 %v3708, 0.6931472
        %v3710 = vlog2.pop %v3097
        %v3711 = vmul.f32 %v3710, 0.6931472
        %v3712 = vlog2.pop %v3098
        %v3713 = vmul.f32 %v3712, 0.6931472
        %v3714 = vlog2.pop %v3099
        %v3715 = vmul.f32 %v3714, 0.6931472
        %v3716 = vlog2.pop %v3100
        %v3717 = vmul.f32 %v3716, 0.6931472
        %v3718 = vlog2.pop %v3101
        %v3719 = vmul.f32 %v3718, 0.6931472
        %v3720 = vlog2.pop %v3102
        %v3721 = vmul.f32 %v3720, 0.6931472
        %v3722 = vlog2.pop %v3103
        %v3723 = vmul.f32 %v3722, 0.6931472
        %v3724 = vlog2.pop %v3104
        %v3725 = vmul.f32 %v3724, 0.6931472
        %v3726 = vlog2.pop %v3105
        %v3727 = vmul.f32 %v3726, 0.6931472
        %v3728 = vlog2.pop %v3106
        %v3729 = vmul.f32 %v3728, 0.6931472
        %v3730 = vlog2.pop %v3107
        %v3731 = vmul.f32 %v3730, 0.6931472
        %v3732 = vlog2.pop %v3108
        %v3733 = vmul.f32 %v3732, 0.6931472
        %v3734 = vlog2.pop %v3109
        %v3735 = vmul.f32 %v3734, 0.6931472
        %v3736 = vlog2.pop %v3110
        %v3737 = vmul.f32 %v3736, 0.6931472
        %v3738 = vlog2.pop %v3111
        %v3739 = vmul.f32 %v3738, 0.6931472
        %v3740 = vlog2.pop %v3112
        %v3741 = vmul.f32 %v3740, 0.6931472
        %v3742 = vlog2.pop %v3113
        %v3743 = vmul.f32 %v3742, 0.6931472
        %v3744 = vlog2.pop %v3114
        %v3745 = vmul.f32 %v3744, 0.6931472
        %v3746 = vlog2.pop %v3115
        %v3747 = vmul.f32 %v3746, 0.6931472
        %v3748 = vlog2.pop %v3116
        %v3749 = vmul.f32 %v3748, 0.6931472
        %v3750 = vlog2.pop %v3117
        %v3751 = vmul.f32 %v3750, 0.6931472
        %v3752 = vlog2.pop %v3118
        %v3753 = vmul.f32 %v3752, 0.6931472
        %v3754 = vlog2.pop %v3119
        %v3755 = vmul.f32 %v3754, 0.6931472
        %v3756 = vlog2.pop %v3120
        %v3757 = vmul.f32 %v3756, 0.6931472
        %v3758 = vlog2.pop %v3121
        %v3759 = vmul.f32 %v3758, 0.6931472
        %v3760 = vlog2.pop %v3122
        %v3761 = vmul.f32 %v3760, 0.6931472
        %v3762 = vlog2.pop %v3123
        %v3763 = vmul.f32 %v3762, 0.6931472
        %v3764 = vsub.f32 0.0, %v3509
        %v3765 = vsub.f32 0.0, %v3511
        %v3766 = vsub.f32 0.0, %v3513
        %v3767 = vsub.f32 0.0, %v3515
        %v3768 = vsub.f32 0.0, %v3517
        %v3769 = vsub.f32 0.0, %v3519
        %v3770 = vsub.f32 0.0, %v3521
        %v3771 = vsub.f32 0.0, %v3523
        %v3772 = vsub.f32 0.0, %v3525
        %v3773 = vsub.f32 0.0, %v3527
        %v3774 = vsub.f32 0.0, %v3529
        %v3775 = vsub.f32 0.0, %v3531
        %v3776 = vsub.f32 0.0, %v3533
        %v3777 = vsub.f32 0.0, %v3535
        %v3778 = vsub.f32 0.0, %v3537
        %v3779 = vsub.f32 0.0, %v3539
        %v3780 = vsub.f32 0.0, %v3541
        %v3781 = vsub.f32 0.0, %v3543
        %v3782 = vsub.f32 0.0, %v3545
        %v3783 = vsub.f32 0.0, %v3547
        %v3784 = vsub.f32 0.0, %v3549
        %v3785 = vsub.f32 0.0, %v3551
        %v3786 = vsub.f32 0.0, %v3553
        %v3787 = vsub.f32 0.0, %v3555
        %v3788 = vsub.f32 0.0, %v3557
        %v3789 = vsub.f32 0.0, %v3559
        %v3790 = vsub.f32 0.0, %v3561
        %v3791 = vsub.f32 0.0, %v3563
        %v3792 = vsub.f32 0.0, %v3565
        %v3793 = vsub.f32 0.0, %v3567
        %v3794 = vsub.f32 0.0, %v3569
        %v3795 = vsub.f32 0.0, %v3571
        %v3796 = vsub.f32 0.0, %v3573
        %v3797 = vsub.f32 0.0, %v3575
        %v3798 = vsub.f32 0.0, %v3577
        %v3799 = vsub.f32 0.0, %v3579
        %v3800 = vsub.f32 0.0, %v3581
        %v3801 = vsub.f32 0.0, %v3583
        %v3802 = vsub.f32 0.0, %v3585
        %v3803 = vsub.f32 0.0, %v3587
        %v3804 = vsub.f32 0.0, %v3589
        %v3805 = vsub.f32 0.0, %v3591
        %v3806 = vsub.f32 0.0, %v3593
        %v3807 = vsub.f32 0.0, %v3595
        %v3808 = vsub.f32 0.0, %v3597
        %v3809 = vsub.f32 0.0, %v3599
        %v3810 = vsub.f32 0.0, %v3601
        %v3811 = vsub.f32 0.0, %v3603
        %v3812 = vsub.f32 0.0, %v3605
        %v3813 = vsub.f32 0.0, %v3607
        %v3814 = vsub.f32 0.0, %v3609
        %v3815 = vsub.f32 0.0, %v3611
        %v3816 = vsub.f32 0.0, %v3613
        %v3817 = vsub.f32 0.0, %v3615
        %v3818 = vsub.f32 0.0, %v3617
        %v3819 = vsub.f32 0.0, %v3619
        %v3820 = vsub.f32 0.0, %v3621
        %v3821 = vsub.f32 0.0, %v3623
        %v3822 = vsub.f32 0.0, %v3625
        %v3823 = vsub.f32 0.0, %v3627
        %v3824 = vsub.f32 0.0, %v3629
        %v3825 = vsub.f32 0.0, %v3631
        %v3826 = vsub.f32 0.0, %v3633
        %v3827 = vsub.f32 0.0, %v3635
        %v3828 = vsub.f32 0.0, %v3637
        %v3829 = vsub.f32 0.0, %v3639
        %v3830 = vsub.f32 0.0, %v3641
        %v3831 = vsub.f32 0.0, %v3643
        %v3832 = vsub.f32 0.0, %v3645
        %v3833 = vsub.f32 0.0, %v3647
        %v3834 = vsub.f32 0.0, %v3649
        %v3835 = vsub.f32 0.0, %v3651
        %v3836 = vsub.f32 0.0, %v3653
        %v3837 = vsub.f32 0.0, %v3655
        %v3838 = vsub.f32 0.0, %v3657
        %v3839 = vsub.f32 0.0, %v3659
        %v3840 = vsub.f32 0.0, %v3661
        %v3841 = vsub.f32 0.0, %v3663
        %v3842 = vsub.f32 0.0, %v3665
        %v3843 = vsub.f32 0.0, %v3667
        %v3844 = vsub.f32 0.0, %v3669
        %v3845 = vsub.f32 0.0, %v3671
        %v3846 = vsub.f32 0.0, %v3673
        %v3847 = vsub.f32 0.0, %v3675
        %v3848 = vsub.f32 0.0, %v3677
        %v3849 = vsub.f32 0.0, %v3679
        %v3850 = vsub.f32 0.0, %v3681
        %v3851 = vsub.f32 0.0, %v3683
        %v3852 = vsub.f32 0.0, %v3685
        %v3853 = vsub.f32 0.0, %v3687
        %v3854 = vsub.f32 0.0, %v3689
        %v3855 = vsub.f32 0.0, %v3691
        %v3856 = vsub.f32 0.0, %v3693
        %v3857 = vsub.f32 0.0, %v3695
        %v3858 = vsub.f32 0.0, %v3697
        %v3859 = vsub.f32 0.0, %v3699
        %v3860 = vsub.f32 0.0, %v3701
        %v3861 = vsub.f32 0.0, %v3703
        %v3862 = vsub.f32 0.0, %v3705
        %v3863 = vsub.f32 0.0, %v3707
        %v3864 = vsub.f32 0.0, %v3709
        %v3865 = vsub.f32 0.0, %v3711
        %v3866 = vsub.f32 0.0, %v3713
        %v3867 = vsub.f32 0.0, %v3715
        %v3868 = vsub.f32 0.0, %v3717
        %v3869 = vsub.f32 0.0, %v3719
        %v3870 = vsub.f32 0.0, %v3721
        %v3871 = vsub.f32 0.0, %v3723
        %v3872 = vsub.f32 0.0, %v3725
        %v3873 = vsub.f32 0.0, %v3727
        %v3874 = vsub.f32 0.0, %v3729
        %v3875 = vsub.f32 0.0, %v3731
        %v3876 = vsub.f32 0.0, %v3733
        %v3877 = vsub.f32 0.0, %v3735
        %v3878 = vsub.f32 0.0, %v3737
        %v3879 = vsub.f32 0.0, %v3739
        %v3880 = vsub.f32 0.0, %v3741
        %v3881 = vsub.f32 0.0, %v3743
        %v3882 = vsub.f32 0.0, %v3745
        %v3883 = vsub.f32 0.0, %v3747
        %v3884 = vsub.f32 0.0, %v3749
        %v3885 = vsub.f32 0.0, %v3751
        %v3886 = vsub.f32 0.0, %v3753
        %v3887 = vsub.f32 0.0, %v3755
        %v3888 = vsub.f32 0.0, %v3757
        %v3889 = vsub.f32 0.0, %v3759
        %v3890 = vsub.f32 0.0, %v3761
        %v3891 = vsub.f32 0.0, %v3763
        %v3892 = vmul.f32 %v564, %v564
        %v3893 = vmul.f32 %v565, %v565
        %v3894 = vmul.f32 %v566, %v566
        %v3895 = vmul.f32 %v567, %v567
        %v3896 = vmul.f32 %v568, %v568
        %v3897 = vmul.f32 %v569, %v569
        %v3898 = vmul.f32 %v570, %v570
        %v3899 = vmul.f32 %v571, %v571
        %v3900 = vmul.f32 %v572, %v572
        %v3901 = vmul.f32 %v573, %v573
        %v3902 = vmul.f32 %v574, %v574
        %v3903 = vmul.f32 %v575, %v575
        %v3904 = vmul.f32 %v576, %v576
        %v3905 = vmul.f32 %v577, %v577
        %v3906 = vmul.f32 %v578, %v578
        %v3907 = vmul.f32 %v579, %v579
        %v3908 = vmul.f32 %v580, %v580
        %v3909 = vmul.f32 %v581, %v581
        %v3910 = vmul.f32 %v582, %v582
        %v3911 = vmul.f32 %v583, %v583
        %v3912 = vmul.f32 %v584, %v584
        %v3913 = vmul.f32 %v585, %v585
        %v3914 = vmul.f32 %v586, %v586
        %v3915 = vmul.f32 %v587, %v587
        %v3916 = vmul.f32 %v588, %v588
        %v3917 = vmul.f32 %v589, %v589
        %v3918 = vmul.f32 %v590, %v590
        %v3919 = vmul.f32 %v591, %v591
        %v3920 = vmul.f32 %v592, %v592
        %v3921 = vmul.f32 %v593, %v593
        %v3922 = vmul.f32 %v594, %v594
        %v3923 = vmul.f32 %v595, %v595
        %v3924 = vmul.f32 %v596, %v596
        %v3925 = vmul.f32 %v597, %v597
        %v3926 = vmul.f32 %v598, %v598
        %v3927 = vmul.f32 %v599, %v599
        %v3928 = vmul.f32 %v600, %v600
        %v3929 = vmul.f32 %v601, %v601
        %v3930 = vmul.f32 %v602, %v602
        %v3931 = vmul.f32 %v603, %v603
        %v3932 = vmul.f32 %v604, %v604
        %v3933 = vmul.f32 %v605, %v605
        %v3934 = vmul.f32 %v606, %v606
        %v3935 = vmul.f32 %v607, %v607
        %v3936 = vmul.f32 %v608, %v608
        %v3937 = vmul.f32 %v609, %v609
        %v3938 = vmul.f32 %v610, %v610
        %v3939 = vmul.f32 %v611, %v611
        %v3940 = vmul.f32 %v612, %v612
        %v3941 = vmul.f32 %v613, %v613
        %v3942 = vmul.f32 %v614, %v614
        %v3943 = vmul.f32 %v615, %v615
        %v3944 = vmul.f32 %v616, %v616
        %v3945 = vmul.f32 %v617, %v617
        %v3946 = vmul.f32 %v618, %v618
        %v3947 = vmul.f32 %v619, %v619
        %v3948 = vmul.f32 %v620, %v620
        %v3949 = vmul.f32 %v621, %v621
        %v3950 = vmul.f32 %v622, %v622
        %v3951 = vmul.f32 %v623, %v623
        %v3952 = vmul.f32 %v624, %v624
        %v3953 = vmul.f32 %v625, %v625
        %v3954 = vmul.f32 %v626, %v626
        %v3955 = vmul.f32 %v627, %v627
        %v3956 = vmul.f32 %v628, %v628
        %v3957 = vmul.f32 %v629, %v629
        %v3958 = vmul.f32 %v630, %v630
        %v3959 = vmul.f32 %v631, %v631
        %v3960 = vmul.f32 %v632, %v632
        %v3961 = vmul.f32 %v633, %v633
        %v3962 = vmul.f32 %v634, %v634
        %v3963 = vmul.f32 %v635, %v635
        %v3964 = vmul.f32 %v636, %v636
        %v3965 = vmul.f32 %v637, %v637
        %v3966 = vmul.f32 %v638, %v638
        %v3967 = vmul.f32 %v639, %v639
        %v3968 = vmul.f32 %v640, %v640
        %v3969 = vmul.f32 %v641, %v641
        %v3970 = vmul.f32 %v642, %v642
        %v3971 = vmul.f32 %v643, %v643
        %v3972 = vmul.f32 %v644, %v644
        %v3973 = vmul.f32 %v645, %v645
        %v3974 = vmul.f32 %v646, %v646
        %v3975 = vmul.f32 %v647, %v647
        %v3976 = vmul.f32 %v648, %v648
        %v3977 = vmul.f32 %v649, %v649
        %v3978 = vmul.f32 %v650, %v650
        %v3979 = vmul.f32 %v651, %v651
        %v3980 = vmul.f32 %v652, %v652
        %v3981 = vmul.f32 %v653, %v653
        %v3982 = vmul.f32 %v654, %v654
        %v3983 = vmul.f32 %v655, %v655
        %v3984 = vmul.f32 %v656, %v656
        %v3985 = vmul.f32 %v657, %v657
        %v3986 = vmul.f32 %v658, %v658
        %v3987 = vmul.f32 %v659, %v659
        %v3988 = vmul.f32 %v660, %v660
        %v3989 = vmul.f32 %v661, %v661
        %v3990 = vmul.f32 %v662, %v662
        %v3991 = vmul.f32 %v663, %v663
        %v3992 = vmul.f32 %v664, %v664
        %v3993 = vmul.f32 %v665, %v665
        %v3994 = vmul.f32 %v666, %v666
        %v3995 = vmul.f32 %v667, %v667
        %v3996 = vmul.f32 %v668, %v668
        %v3997 = vmul.f32 %v669, %v669
        %v3998 = vmul.f32 %v670, %v670
        %v3999 = vmul.f32 %v671, %v671
        %v4000 = vmul.f32 %v672, %v672
        %v4001 = vmul.f32 %v673, %v673
        %v4002 = vmul.f32 %v674, %v674
        %v4003 = vmul.f32 %v675, %v675
        %v4004 = vmul.f32 %v676, %v676
        %v4005 = vmul.f32 %v677, %v677
        %v4006 = vmul.f32 %v678, %v678
        %v4007 = vmul.f32 %v679, %v679
        %v4008 = vmul.f32 %v680, %v680
        %v4009 = vmul.f32 %v681, %v681
        %v4010 = vmul.f32 %v682, %v682
        %v4011 = vmul.f32 %v683, %v683
        %v4012 = vmul.f32 %v684, %v684
        %v4013 = vmul.f32 %v685, %v685
        %v4014 = vmul.f32 %v686, %v686
        %v4015 = vmul.f32 %v687, %v687
        %v4016 = vmul.f32 %v688, %v688
        %v4017 = vmul.f32 %v689, %v689
        %v4018 = vmul.f32 %v690, %v690
        %v4019 = vmul.f32 %v691, %v691
        %v4020 = vmul.f32 %v3892, 0.5
        %v4021 = vmul.f32 %v3893, 0.5
        %v4022 = vmul.f32 %v3894, 0.5
        %v4023 = vmul.f32 %v3895, 0.5
        %v4024 = vmul.f32 %v3896, 0.5
        %v4025 = vmul.f32 %v3897, 0.5
        %v4026 = vmul.f32 %v3898, 0.5
        %v4027 = vmul.f32 %v3899, 0.5
        %v4028 = vmul.f32 %v3900, 0.5
        %v4029 = vmul.f32 %v3901, 0.5
        %v4030 = vmul.f32 %v3902, 0.5
        %v4031 = vmul.f32 %v3903, 0.5
        %v4032 = vmul.f32 %v3904, 0.5
        %v4033 = vmul.f32 %v3905, 0.5
        %v4034 = vmul.f32 %v3906, 0.5
        %v4035 = vmul.f32 %v3907, 0.5
        %v4036 = vmul.f32 %v3908, 0.5
        %v4037 = vmul.f32 %v3909, 0.5
        %v4038 = vmul.f32 %v3910, 0.5
        %v4039 = vmul.f32 %v3911, 0.5
        %v4040 = vmul.f32 %v3912, 0.5
        %v4041 = vmul.f32 %v3913, 0.5
        %v4042 = vmul.f32 %v3914, 0.5
        %v4043 = vmul.f32 %v3915, 0.5
        %v4044 = vmul.f32 %v3916, 0.5
        %v4045 = vmul.f32 %v3917, 0.5
        %v4046 = vmul.f32 %v3918, 0.5
        %v4047 = vmul.f32 %v3919, 0.5
        %v4048 = vmul.f32 %v3920, 0.5
        %v4049 = vmul.f32 %v3921, 0.5
        %v4050 = vmul.f32 %v3922, 0.5
        %v4051 = vmul.f32 %v3923, 0.5
        %v4052 = vmul.f32 %v3924, 0.5
        %v4053 = vmul.f32 %v3925, 0.5
        %v4054 = vmul.f32 %v3926, 0.5
        %v4055 = vmul.f32 %v3927, 0.5
        %v4056 = vmul.f32 %v3928, 0.5
        %v4057 = vmul.f32 %v3929, 0.5
        %v4058 = vmul.f32 %v3930, 0.5
        %v4059 = vmul.f32 %v3931, 0.5
        %v4060 = vmul.f32 %v3932, 0.5
        %v4061 = vmul.f32 %v3933, 0.5
        %v4062 = vmul.f32 %v3934, 0.5
        %v4063 = vmul.f32 %v3935, 0.5
        %v4064 = vmul.f32 %v3936, 0.5
        %v4065 = vmul.f32 %v3937, 0.5
        %v4066 = vmul.f32 %v3938, 0.5
        %v4067 = vmul.f32 %v3939, 0.5
        %v4068 = vmul.f32 %v3940, 0.5
        %v4069 = vmul.f32 %v3941, 0.5
        %v4070 = vmul.f32 %v3942, 0.5
        %v4071 = vmul.f32 %v3943, 0.5
        %v4072 = vmul.f32 %v3944, 0.5
        %v4073 = vmul.f32 %v3945, 0.5
        %v4074 = vmul.f32 %v3946, 0.5
        %v4075 = vmul.f32 %v3947, 0.5
        %v4076 = vmul.f32 %v3948, 0.5
        %v4077 = vmul.f32 %v3949, 0.5
        %v4078 = vmul.f32 %v3950, 0.5
        %v4079 = vmul.f32 %v3951, 0.5
        %v4080 = vmul.f32 %v3952, 0.5
        %v4081 = vmul.f32 %v3953, 0.5
        %v4082 = vmul.f32 %v3954, 0.5
        %v4083 = vmul.f32 %v3955, 0.5
        %v4084 = vmul.f32 %v3956, 0.5
        %v4085 = vmul.f32 %v3957, 0.5
        %v4086 = vmul.f32 %v3958, 0.5
        %v4087 = vmul.f32 %v3959, 0.5
        %v4088 = vmul.f32 %v3960, 0.5
        %v4089 = vmul.f32 %v3961, 0.5
        %v4090 = vmul.f32 %v3962, 0.5
        %v4091 = vmul.f32 %v3963, 0.5
        %v4092 = vmul.f32 %v3964, 0.5
        %v4093 = vmul.f32 %v3965, 0.5
        %v4094 = vmul.f32 %v3966, 0.5
        %v4095 = vmul.f32 %v3967, 0.5
        %v4096 = vmul.f32 %v3968, 0.5
        %v4097 = vmul.f32 %v3969, 0.5
        %v4098 = vmul.f32 %v3970, 0.5
        %v4099 = vmul.f32 %v3971, 0.5
        %v4100 = vmul.f32 %v3972, 0.5
        %v4101 = vmul.f32 %v3973, 0.5
        %v4102 = vmul.f32 %v3974, 0.5
        %v4103 = vmul.f32 %v3975, 0.5
        %v4104 = vmul.f32 %v3976, 0.5
        %v4105 = vmul.f32 %v3977, 0.5
        %v4106 = vmul.f32 %v3978, 0.5
        %v4107 = vmul.f32 %v3979, 0.5
        %v4108 = vmul.f32 %v3980, 0.5
        %v4109 = vmul.f32 %v3981, 0.5
        %v4110 = vmul.f32 %v3982, 0.5
        %v4111 = vmul.f32 %v3983, 0.5
        %v4112 = vmul.f32 %v3984, 0.5
        %v4113 = vmul.f32 %v3985, 0.5
        %v4114 = vmul.f32 %v3986, 0.5
        %v4115 = vmul.f32 %v3987, 0.5
        %v4116 = vmul.f32 %v3988, 0.5
        %v4117 = vmul.f32 %v3989, 0.5
        %v4118 = vmul.f32 %v3990, 0.5
        %v4119 = vmul.f32 %v3991, 0.5
        %v4120 = vmul.f32 %v3992, 0.5
        %v4121 = vmul.f32 %v3993, 0.5
        %v4122 = vmul.f32 %v3994, 0.5
        %v4123 = vmul.f32 %v3995, 0.5
        %v4124 = vmul.f32 %v3996, 0.5
        %v4125 = vmul.f32 %v3997, 0.5
        %v4126 = vmul.f32 %v3998, 0.5
        %v4127 = vmul.f32 %v3999, 0.5
        %v4128 = vmul.f32 %v4000, 0.5
        %v4129 = vmul.f32 %v4001, 0.5
        %v4130 = vmul.f32 %v4002, 0.5
        %v4131 = vmul.f32 %v4003, 0.5
        %v4132 = vmul.f32 %v4004, 0.5
        %v4133 = vmul.f32 %v4005, 0.5
        %v4134 = vmul.f32 %v4006, 0.5
        %v4135 = vmul.f32 %v4007, 0.5
        %v4136 = vmul.f32 %v4008, 0.5
        %v4137 = vmul.f32 %v4009, 0.5
        %v4138 = vmul.f32 %v4010, 0.5
        %v4139 = vmul.f32 %v4011, 0.5
        %v4140 = vmul.f32 %v4012, 0.5
        %v4141 = vmul.f32 %v4013, 0.5
        %v4142 = vmul.f32 %v4014, 0.5
        %v4143 = vmul.f32 %v4015, 0.5
        %v4144 = vmul.f32 %v4016, 0.5
        %v4145 = vmul.f32 %v4017, 0.5
        %v4146 = vmul.f32 %v4018, 0.5
        %v4147 = vmul.f32 %v4019, 0.5
        %v4148 = vsub.f32 %v3764, %v4020
        %v4149 = vsub.f32 %v3765, %v4021
        %v4150 = vsub.f32 %v3766, %v4022
        %v4151 = vsub.f32 %v3767, %v4023
        %v4152 = vsub.f32 %v3768, %v4024
        %v4153 = vsub.f32 %v3769, %v4025
        %v4154 = vsub.f32 %v3770, %v4026
        %v4155 = vsub.f32 %v3771, %v4027
        %v4156 = vsub.f32 %v3772, %v4028
        %v4157 = vsub.f32 %v3773, %v4029
        %v4158 = vsub.f32 %v3774, %v4030
        %v4159 = vsub.f32 %v3775, %v4031
        %v4160 = vsub.f32 %v3776, %v4032
        %v4161 = vsub.f32 %v3777, %v4033
        %v4162 = vsub.f32 %v3778, %v4034
        %v4163 = vsub.f32 %v3779, %v4035
        %v4164 = vsub.f32 %v3780, %v4036
        %v4165 = vsub.f32 %v3781, %v4037
        %v4166 = vsub.f32 %v3782, %v4038
        %v4167 = vsub.f32 %v3783, %v4039
        %v4168 = vsub.f32 %v3784, %v4040
        %v4169 = vsub.f32 %v3785, %v4041
        %v4170 = vsub.f32 %v3786, %v4042
        %v4171 = vsub.f32 %v3787, %v4043
        %v4172 = vsub.f32 %v3788, %v4044
        %v4173 = vsub.f32 %v3789, %v4045
        %v4174 = vsub.f32 %v3790, %v4046
        %v4175 = vsub.f32 %v3791, %v4047
        %v4176 = vsub.f32 %v3792, %v4048
        %v4177 = vsub.f32 %v3793, %v4049
        %v4178 = vsub.f32 %v3794, %v4050
        %v4179 = vsub.f32 %v3795, %v4051
        %v4180 = vsub.f32 %v3796, %v4052
        %v4181 = vsub.f32 %v3797, %v4053
        %v4182 = vsub.f32 %v3798, %v4054
        %v4183 = vsub.f32 %v3799, %v4055
        %v4184 = vsub.f32 %v3800, %v4056
        %v4185 = vsub.f32 %v3801, %v4057
        %v4186 = vsub.f32 %v3802, %v4058
        %v4187 = vsub.f32 %v3803, %v4059
        %v4188 = vsub.f32 %v3804, %v4060
        %v4189 = vsub.f32 %v3805, %v4061
        %v4190 = vsub.f32 %v3806, %v4062
        %v4191 = vsub.f32 %v3807, %v4063
        %v4192 = vsub.f32 %v3808, %v4064
        %v4193 = vsub.f32 %v3809, %v4065
        %v4194 = vsub.f32 %v3810, %v4066
        %v4195 = vsub.f32 %v3811, %v4067
        %v4196 = vsub.f32 %v3812, %v4068
        %v4197 = vsub.f32 %v3813, %v4069
        %v4198 = vsub.f32 %v3814, %v4070
        %v4199 = vsub.f32 %v3815, %v4071
        %v4200 = vsub.f32 %v3816, %v4072
        %v4201 = vsub.f32 %v3817, %v4073
        %v4202 = vsub.f32 %v3818, %v4074
        %v4203 = vsub.f32 %v3819, %v4075
        %v4204 = vsub.f32 %v3820, %v4076
        %v4205 = vsub.f32 %v3821, %v4077
        %v4206 = vsub.f32 %v3822, %v4078
        %v4207 = vsub.f32 %v3823, %v4079
        %v4208 = vsub.f32 %v3824, %v4080
        %v4209 = vsub.f32 %v3825, %v4081
        %v4210 = vsub.f32 %v3826, %v4082
        %v4211 = vsub.f32 %v3827, %v4083
        %v4212 = vsub.f32 %v3828, %v4084
        %v4213 = vsub.f32 %v3829, %v4085
        %v4214 = vsub.f32 %v3830, %v4086
        %v4215 = vsub.f32 %v3831, %v4087
        %v4216 = vsub.f32 %v3832, %v4088
        %v4217 = vsub.f32 %v3833, %v4089
        %v4218 = vsub.f32 %v3834, %v4090
        %v4219 = vsub.f32 %v3835, %v4091
        %v4220 = vsub.f32 %v3836, %v4092
        %v4221 = vsub.f32 %v3837, %v4093
        %v4222 = vsub.f32 %v3838, %v4094
        %v4223 = vsub.f32 %v3839, %v4095
        %v4224 = vsub.f32 %v3840, %v4096
        %v4225 = vsub.f32 %v3841, %v4097
        %v4226 = vsub.f32 %v3842, %v4098
        %v4227 = vsub.f32 %v3843, %v4099
        %v4228 = vsub.f32 %v3844, %v4100
        %v4229 = vsub.f32 %v3845, %v4101
        %v4230 = vsub.f32 %v3846, %v4102
        %v4231 = vsub.f32 %v3847, %v4103
        %v4232 = vsub.f32 %v3848, %v4104
        %v4233 = vsub.f32 %v3849, %v4105
        %v4234 = vsub.f32 %v3850, %v4106
        %v4235 = vsub.f32 %v3851, %v4107
        %v4236 = vsub.f32 %v3852, %v4108
        %v4237 = vsub.f32 %v3853, %v4109
        %v4238 = vsub.f32 %v3854, %v4110
        %v4239 = vsub.f32 %v3855, %v4111
        %v4240 = vsub.f32 %v3856, %v4112
        %v4241 = vsub.f32 %v3857, %v4113
        %v4242 = vsub.f32 %v3858, %v4114
        %v4243 = vsub.f32 %v3859, %v4115
        %v4244 = vsub.f32 %v3860, %v4116
        %v4245 = vsub.f32 %v3861, %v4117
        %v4246 = vsub.f32 %v3862, %v4118
        %v4247 = vsub.f32 %v3863, %v4119
        %v4248 = vsub.f32 %v3864, %v4120
        %v4249 = vsub.f32 %v3865, %v4121
        %v4250 = vsub.f32 %v3866, %v4122
        %v4251 = vsub.f32 %v3867, %v4123
        %v4252 = vsub.f32 %v3868, %v4124
        %v4253 = vsub.f32 %v3869, %v4125
        %v4254 = vsub.f32 %v3870, %v4126
        %v4255 = vsub.f32 %v3871, %v4127
        %v4256 = vsub.f32 %v3872, %v4128
        %v4257 = vsub.f32 %v3873, %v4129
        %v4258 = vsub.f32 %v3874, %v4130
        %v4259 = vsub.f32 %v3875, %v4131
        %v4260 = vsub.f32 %v3876, %v4132
        %v4261 = vsub.f32 %v3877, %v4133
        %v4262 = vsub.f32 %v3878, %v4134
        %v4263 = vsub.f32 %v3879, %v4135
        %v4264 = vsub.f32 %v3880, %v4136
        %v4265 = vsub.f32 %v3881, %v4137
        %v4266 = vsub.f32 %v3882, %v4138
        %v4267 = vsub.f32 %v3883, %v4139
        %v4268 = vsub.f32 %v3884, %v4140
        %v4269 = vsub.f32 %v3885, %v4141
        %v4270 = vsub.f32 %v3886, %v4142
        %v4271 = vsub.f32 %v3887, %v4143
        %v4272 = vsub.f32 %v3888, %v4144
        %v4273 = vsub.f32 %v3889, %v4145
        %v4274 = vsub.f32 %v3890, %v4146
        %v4275 = vsub.f32 %v3891, %v4147
        %v4276 = vmul.f32 %v3252, %v3252
        %v4277 = vmul.f32 %v3253, %v3253
        %v4278 = vmul.f32 %v3254, %v3254
        %v4279 = vmul.f32 %v3255, %v3255
        %v4280 = vmul.f32 %v3256, %v3256
        %v4281 = vmul.f32 %v3257, %v3257
        %v4282 = vmul.f32 %v3258, %v3258
        %v4283 = vmul.f32 %v3259, %v3259
        %v4284 = vmul.f32 %v3260, %v3260
        %v4285 = vmul.f32 %v3261, %v3261
        %v4286 = vmul.f32 %v3262, %v3262
        %v4287 = vmul.f32 %v3263, %v3263
        %v4288 = vmul.f32 %v3264, %v3264
        %v4289 = vmul.f32 %v3265, %v3265
        %v4290 = vmul.f32 %v3266, %v3266
        %v4291 = vmul.f32 %v3267, %v3267
        %v4292 = vmul.f32 %v3268, %v3268
        %v4293 = vmul.f32 %v3269, %v3269
        %v4294 = vmul.f32 %v3270, %v3270
        %v4295 = vmul.f32 %v3271, %v3271
        %v4296 = vmul.f32 %v3272, %v3272
        %v4297 = vmul.f32 %v3273, %v3273
        %v4298 = vmul.f32 %v3274, %v3274
        %v4299 = vmul.f32 %v3275, %v3275
        %v4300 = vmul.f32 %v3276, %v3276
        %v4301 = vmul.f32 %v3277, %v3277
        %v4302 = vmul.f32 %v3278, %v3278
        %v4303 = vmul.f32 %v3279, %v3279
        %v4304 = vmul.f32 %v3280, %v3280
        %v4305 = vmul.f32 %v3281, %v3281
        %v4306 = vmul.f32 %v3282, %v3282
        %v4307 = vmul.f32 %v3283, %v3283
        %v4308 = vmul.f32 %v3284, %v3284
        %v4309 = vmul.f32 %v3285, %v3285
        %v4310 = vmul.f32 %v3286, %v3286
        %v4311 = vmul.f32 %v3287, %v3287
        %v4312 = vmul.f32 %v3288, %v3288
        %v4313 = vmul.f32 %v3289, %v3289
        %v4314 = vmul.f32 %v3290, %v3290
        %v4315 = vmul.f32 %v3291, %v3291
        %v4316 = vmul.f32 %v3292, %v3292
        %v4317 = vmul.f32 %v3293, %v3293
        %v4318 = vmul.f32 %v3294, %v3294
        %v4319 = vmul.f32 %v3295, %v3295
        %v4320 = vmul.f32 %v3296, %v3296
        %v4321 = vmul.f32 %v3297, %v3297
        %v4322 = vmul.f32 %v3298, %v3298
        %v4323 = vmul.f32 %v3299, %v3299
        %v4324 = vmul.f32 %v3300, %v3300
        %v4325 = vmul.f32 %v3301, %v3301
        %v4326 = vmul.f32 %v3302, %v3302
        %v4327 = vmul.f32 %v3303, %v3303
        %v4328 = vmul.f32 %v3304, %v3304
        %v4329 = vmul.f32 %v3305, %v3305
        %v4330 = vmul.f32 %v3306, %v3306
        %v4331 = vmul.f32 %v3307, %v3307
        %v4332 = vmul.f32 %v3308, %v3308
        %v4333 = vmul.f32 %v3309, %v3309
        %v4334 = vmul.f32 %v3310, %v3310
        %v4335 = vmul.f32 %v3311, %v3311
        %v4336 = vmul.f32 %v3312, %v3312
        %v4337 = vmul.f32 %v3313, %v3313
        %v4338 = vmul.f32 %v3314, %v3314
        %v4339 = vmul.f32 %v3315, %v3315
        %v4340 = vmul.f32 %v3316, %v3316
        %v4341 = vmul.f32 %v3317, %v3317
        %v4342 = vmul.f32 %v3318, %v3318
        %v4343 = vmul.f32 %v3319, %v3319
        %v4344 = vmul.f32 %v3320, %v3320
        %v4345 = vmul.f32 %v3321, %v3321
        %v4346 = vmul.f32 %v3322, %v3322
        %v4347 = vmul.f32 %v3323, %v3323
        %v4348 = vmul.f32 %v3324, %v3324
        %v4349 = vmul.f32 %v3325, %v3325
        %v4350 = vmul.f32 %v3326, %v3326
        %v4351 = vmul.f32 %v3327, %v3327
        %v4352 = vmul.f32 %v3328, %v3328
        %v4353 = vmul.f32 %v3329, %v3329
        %v4354 = vmul.f32 %v3330, %v3330
        %v4355 = vmul.f32 %v3331, %v3331
        %v4356 = vmul.f32 %v3332, %v3332
        %v4357 = vmul.f32 %v3333, %v3333
        %v4358 = vmul.f32 %v3334, %v3334
        %v4359 = vmul.f32 %v3335, %v3335
        %v4360 = vmul.f32 %v3336, %v3336
        %v4361 = vmul.f32 %v3337, %v3337
        %v4362 = vmul.f32 %v3338, %v3338
        %v4363 = vmul.f32 %v3339, %v3339
        %v4364 = vmul.f32 %v3340, %v3340
        %v4365 = vmul.f32 %v3341, %v3341
        %v4366 = vmul.f32 %v3342, %v3342
        %v4367 = vmul.f32 %v3343, %v3343
        %v4368 = vmul.f32 %v3344, %v3344
        %v4369 = vmul.f32 %v3345, %v3345
        %v4370 = vmul.f32 %v3346, %v3346
        %v4371 = vmul.f32 %v3347, %v3347
        %v4372 = vmul.f32 %v3348, %v3348
        %v4373 = vmul.f32 %v3349, %v3349
        %v4374 = vmul.f32 %v3350, %v3350
        %v4375 = vmul.f32 %v3351, %v3351
        %v4376 = vmul.f32 %v3352, %v3352
        %v4377 = vmul.f32 %v3353, %v3353
        %v4378 = vmul.f32 %v3354, %v3354
        %v4379 = vmul.f32 %v3355, %v3355
        %v4380 = vmul.f32 %v3356, %v3356
        %v4381 = vmul.f32 %v3357, %v3357
        %v4382 = vmul.f32 %v3358, %v3358
        %v4383 = vmul.f32 %v3359, %v3359
        %v4384 = vmul.f32 %v3360, %v3360
        %v4385 = vmul.f32 %v3361, %v3361
        %v4386 = vmul.f32 %v3362, %v3362
        %v4387 = vmul.f32 %v3363, %v3363
        %v4388 = vmul.f32 %v3364, %v3364
        %v4389 = vmul.f32 %v3365, %v3365
        %v4390 = vmul.f32 %v3366, %v3366
        %v4391 = vmul.f32 %v3367, %v3367
        %v4392 = vmul.f32 %v3368, %v3368
        %v4393 = vmul.f32 %v3369, %v3369
        %v4394 = vmul.f32 %v3370, %v3370
        %v4395 = vmul.f32 %v3371, %v3371
        %v4396 = vmul.f32 %v3372, %v3372
        %v4397 = vmul.f32 %v3373, %v3373
        %v4398 = vmul.f32 %v3374, %v3374
        %v4399 = vmul.f32 %v3375, %v3375
        %v4400 = vmul.f32 %v3376, %v3376
        %v4401 = vmul.f32 %v3377, %v3377
        %v4402 = vmul.f32 %v3378, %v3378
        %v4403 = vmul.f32 %v3379, %v3379
        %v4404 = vmul.f32 %v4276, 2.0
        %v4405 = vmul.f32 %v4277, 2.0
        %v4406 = vmul.f32 %v4278, 2.0
        %v4407 = vmul.f32 %v4279, 2.0
        %v4408 = vmul.f32 %v4280, 2.0
        %v4409 = vmul.f32 %v4281, 2.0
        %v4410 = vmul.f32 %v4282, 2.0
        %v4411 = vmul.f32 %v4283, 2.0
        %v4412 = vmul.f32 %v4284, 2.0
        %v4413 = vmul.f32 %v4285, 2.0
        %v4414 = vmul.f32 %v4286, 2.0
        %v4415 = vmul.f32 %v4287, 2.0
        %v4416 = vmul.f32 %v4288, 2.0
        %v4417 = vmul.f32 %v4289, 2.0
        %v4418 = vmul.f32 %v4290, 2.0
        %v4419 = vmul.f32 %v4291, 2.0
        %v4420 = vmul.f32 %v4292, 2.0
        %v4421 = vmul.f32 %v4293, 2.0
        %v4422 = vmul.f32 %v4294, 2.0
        %v4423 = vmul.f32 %v4295, 2.0
        %v4424 = vmul.f32 %v4296, 2.0
        %v4425 = vmul.f32 %v4297, 2.0
        %v4426 = vmul.f32 %v4298, 2.0
        %v4427 = vmul.f32 %v4299, 2.0
        %v4428 = vmul.f32 %v4300, 2.0
        %v4429 = vmul.f32 %v4301, 2.0
        %v4430 = vmul.f32 %v4302, 2.0
        %v4431 = vmul.f32 %v4303, 2.0
        %v4432 = vmul.f32 %v4304, 2.0
        %v4433 = vmul.f32 %v4305, 2.0
        %v4434 = vmul.f32 %v4306, 2.0
        %v4435 = vmul.f32 %v4307, 2.0
        %v4436 = vmul.f32 %v4308, 2.0
        %v4437 = vmul.f32 %v4309, 2.0
        %v4438 = vmul.f32 %v4310, 2.0
        %v4439 = vmul.f32 %v4311, 2.0
        %v4440 = vmul.f32 %v4312, 2.0
        %v4441 = vmul.f32 %v4313, 2.0
        %v4442 = vmul.f32 %v4314, 2.0
        %v4443 = vmul.f32 %v4315, 2.0
        %v4444 = vmul.f32 %v4316, 2.0
        %v4445 = vmul.f32 %v4317, 2.0
        %v4446 = vmul.f32 %v4318, 2.0
        %v4447 = vmul.f32 %v4319, 2.0
        %v4448 = vmul.f32 %v4320, 2.0
        %v4449 = vmul.f32 %v4321, 2.0
        %v4450 = vmul.f32 %v4322, 2.0
        %v4451 = vmul.f32 %v4323, 2.0
        %v4452 = vmul.f32 %v4324, 2.0
        %v4453 = vmul.f32 %v4325, 2.0
        %v4454 = vmul.f32 %v4326, 2.0
        %v4455 = vmul.f32 %v4327, 2.0
        %v4456 = vmul.f32 %v4328, 2.0
        %v4457 = vmul.f32 %v4329, 2.0
        %v4458 = vmul.f32 %v4330, 2.0
        %v4459 = vmul.f32 %v4331, 2.0
        %v4460 = vmul.f32 %v4332, 2.0
        %v4461 = vmul.f32 %v4333, 2.0
        %v4462 = vmul.f32 %v4334, 2.0
        %v4463 = vmul.f32 %v4335, 2.0
        %v4464 = vmul.f32 %v4336, 2.0
        %v4465 = vmul.f32 %v4337, 2.0
        %v4466 = vmul.f32 %v4338, 2.0
        %v4467 = vmul.f32 %v4339, 2.0
        %v4468 = vmul.f32 %v4340, 2.0
        %v4469 = vmul.f32 %v4341, 2.0
        %v4470 = vmul.f32 %v4342, 2.0
        %v4471 = vmul.f32 %v4343, 2.0
        %v4472 = vmul.f32 %v4344, 2.0
        %v4473 = vmul.f32 %v4345, 2.0
        %v4474 = vmul.f32 %v4346, 2.0
        %v4475 = vmul.f32 %v4347, 2.0
        %v4476 = vmul.f32 %v4348, 2.0
        %v4477 = vmul.f32 %v4349, 2.0
        %v4478 = vmul.f32 %v4350, 2.0
        %v4479 = vmul.f32 %v4351, 2.0
        %v4480 = vmul.f32 %v4352, 2.0
        %v4481 = vmul.f32 %v4353, 2.0
        %v4482 = vmul.f32 %v4354, 2.0
        %v4483 = vmul.f32 %v4355, 2.0
        %v4484 = vmul.f32 %v4356, 2.0
        %v4485 = vmul.f32 %v4357, 2.0
        %v4486 = vmul.f32 %v4358, 2.0
        %v4487 = vmul.f32 %v4359, 2.0
        %v4488 = vmul.f32 %v4360, 2.0
        %v4489 = vmul.f32 %v4361, 2.0
        %v4490 = vmul.f32 %v4362, 2.0
        %v4491 = vmul.f32 %v4363, 2.0
        %v4492 = vmul.f32 %v4364, 2.0
        %v4493 = vmul.f32 %v4365, 2.0
        %v4494 = vmul.f32 %v4366, 2.0
        %v4495 = vmul.f32 %v4367, 2.0
        %v4496 = vmul.f32 %v4368, 2.0
        %v4497 = vmul.f32 %v4369, 2.0
        %v4498 = vmul.f32 %v4370, 2.0
        %v4499 = vmul.f32 %v4371, 2.0
        %v4500 = vmul.f32 %v4372, 2.0
        %v4501 = vmul.f32 %v4373, 2.0
        %v4502 = vmul.f32 %v4374, 2.0
        %v4503 = vmul.f32 %v4375, 2.0
        %v4504 = vmul.f32 %v4376, 2.0
        %v4505 = vmul.f32 %v4377, 2.0
        %v4506 = vmul.f32 %v4378, 2.0
        %v4507 = vmul.f32 %v4379, 2.0
        %v4508 = vmul.f32 %v4380, 2.0
        %v4509 = vmul.f32 %v4381, 2.0
        %v4510 = vmul.f32 %v4382, 2.0
        %v4511 = vmul.f32 %v4383, 2.0
        %v4512 = vmul.f32 %v4384, 2.0
        %v4513 = vmul.f32 %v4385, 2.0
        %v4514 = vmul.f32 %v4386, 2.0
        %v4515 = vmul.f32 %v4387, 2.0
        %v4516 = vmul.f32 %v4388, 2.0
        %v4517 = vmul.f32 %v4389, 2.0
        %v4518 = vmul.f32 %v4390, 2.0
        %v4519 = vmul.f32 %v4391, 2.0
        %v4520 = vmul.f32 %v4392, 2.0
        %v4521 = vmul.f32 %v4393, 2.0
        %v4522 = vmul.f32 %v4394, 2.0
        %v4523 = vmul.f32 %v4395, 2.0
        %v4524 = vmul.f32 %v4396, 2.0
        %v4525 = vmul.f32 %v4397, 2.0
        %v4526 = vmul.f32 %v4398, 2.0
        %v4527 = vmul.f32 %v4399, 2.0
        %v4528 = vmul.f32 %v4400, 2.0
        %v4529 = vmul.f32 %v4401, 2.0
        %v4530 = vmul.f32 %v4402, 2.0
        %v4531 = vmul.f32 %v4403, 2.0
        %v4532 = vsub.f32 -0.6931472, %v4404
        %v4533 = vsub.f32 -0.6931472, %v4405
        %v4534 = vsub.f32 -0.6931472, %v4406
        %v4535 = vsub.f32 -0.6931472, %v4407
        %v4536 = vsub.f32 -0.6931472, %v4408
        %v4537 = vsub.f32 -0.6931472, %v4409
        %v4538 = vsub.f32 -0.6931472, %v4410
        %v4539 = vsub.f32 -0.6931472, %v4411
        %v4540 = vsub.f32 -0.6931472, %v4412
        %v4541 = vsub.f32 -0.6931472, %v4413
        %v4542 = vsub.f32 -0.6931472, %v4414
        %v4543 = vsub.f32 -0.6931472, %v4415
        %v4544 = vsub.f32 -0.6931472, %v4416
        %v4545 = vsub.f32 -0.6931472, %v4417
        %v4546 = vsub.f32 -0.6931472, %v4418
        %v4547 = vsub.f32 -0.6931472, %v4419
        %v4548 = vsub.f32 -0.6931472, %v4420
        %v4549 = vsub.f32 -0.6931472, %v4421
        %v4550 = vsub.f32 -0.6931472, %v4422
        %v4551 = vsub.f32 -0.6931472, %v4423
        %v4552 = vsub.f32 -0.6931472, %v4424
        %v4553 = vsub.f32 -0.6931472, %v4425
        %v4554 = vsub.f32 -0.6931472, %v4426
        %v4555 = vsub.f32 -0.6931472, %v4427
        %v4556 = vsub.f32 -0.6931472, %v4428
        %v4557 = vsub.f32 -0.6931472, %v4429
        %v4558 = vsub.f32 -0.6931472, %v4430
        %v4559 = vsub.f32 -0.6931472, %v4431
        %v4560 = vsub.f32 -0.6931472, %v4432
        %v4561 = vsub.f32 -0.6931472, %v4433
        %v4562 = vsub.f32 -0.6931472, %v4434
        %v4563 = vsub.f32 -0.6931472, %v4435
        %v4564 = vsub.f32 -0.6931472, %v4436
        %v4565 = vsub.f32 -0.6931472, %v4437
        %v4566 = vsub.f32 -0.6931472, %v4438
        %v4567 = vsub.f32 -0.6931472, %v4439
        %v4568 = vsub.f32 -0.6931472, %v4440
        %v4569 = vsub.f32 -0.6931472, %v4441
        %v4570 = vsub.f32 -0.6931472, %v4442
        %v4571 = vsub.f32 -0.6931472, %v4443
        %v4572 = vsub.f32 -0.6931472, %v4444
        %v4573 = vsub.f32 -0.6931472, %v4445
        %v4574 = vsub.f32 -0.6931472, %v4446
        %v4575 = vsub.f32 -0.6931472, %v4447
        %v4576 = vsub.f32 -0.6931472, %v4448
        %v4577 = vsub.f32 -0.6931472, %v4449
        %v4578 = vsub.f32 -0.6931472, %v4450
        %v4579 = vsub.f32 -0.6931472, %v4451
        %v4580 = vsub.f32 -0.6931472, %v4452
        %v4581 = vsub.f32 -0.6931472, %v4453
        %v4582 = vsub.f32 -0.6931472, %v4454
        %v4583 = vsub.f32 -0.6931472, %v4455
        %v4584 = vsub.f32 -0.6931472, %v4456
        %v4585 = vsub.f32 -0.6931472, %v4457
        %v4586 = vsub.f32 -0.6931472, %v4458
        %v4587 = vsub.f32 -0.6931472, %v4459
        %v4588 = vsub.f32 -0.6931472, %v4460
        %v4589 = vsub.f32 -0.6931472, %v4461
        %v4590 = vsub.f32 -0.6931472, %v4462
        %v4591 = vsub.f32 -0.6931472, %v4463
        %v4592 = vsub.f32 -0.6931472, %v4464
        %v4593 = vsub.f32 -0.6931472, %v4465
        %v4594 = vsub.f32 -0.6931472, %v4466
        %v4595 = vsub.f32 -0.6931472, %v4467
        %v4596 = vsub.f32 -0.6931472, %v4468
        %v4597 = vsub.f32 -0.6931472, %v4469
        %v4598 = vsub.f32 -0.6931472, %v4470
        %v4599 = vsub.f32 -0.6931472, %v4471
        %v4600 = vsub.f32 -0.6931472, %v4472
        %v4601 = vsub.f32 -0.6931472, %v4473
        %v4602 = vsub.f32 -0.6931472, %v4474
        %v4603 = vsub.f32 -0.6931472, %v4475
        %v4604 = vsub.f32 -0.6931472, %v4476
        %v4605 = vsub.f32 -0.6931472, %v4477
        %v4606 = vsub.f32 -0.6931472, %v4478
        %v4607 = vsub.f32 -0.6931472, %v4479
        %v4608 = vsub.f32 -0.6931472, %v4480
        %v4609 = vsub.f32 -0.6931472, %v4481
        %v4610 = vsub.f32 -0.6931472, %v4482
        %v4611 = vsub.f32 -0.6931472, %v4483
        %v4612 = vsub.f32 -0.6931472, %v4484
        %v4613 = vsub.f32 -0.6931472, %v4485
        %v4614 = vsub.f32 -0.6931472, %v4486
        %v4615 = vsub.f32 -0.6931472, %v4487
        %v4616 = vsub.f32 -0.6931472, %v4488
        %v4617 = vsub.f32 -0.6931472, %v4489
        %v4618 = vsub.f32 -0.6931472, %v4490
        %v4619 = vsub.f32 -0.6931472, %v4491
        %v4620 = vsub.f32 -0.6931472, %v4492
        %v4621 = vsub.f32 -0.6931472, %v4493
        %v4622 = vsub.f32 -0.6931472, %v4494
        %v4623 = vsub.f32 -0.6931472, %v4495
        %v4624 = vsub.f32 -0.6931472, %v4496
        %v4625 = vsub.f32 -0.6931472, %v4497
        %v4626 = vsub.f32 -0.6931472, %v4498
        %v4627 = vsub.f32 -0.6931472, %v4499
        %v4628 = vsub.f32 -0.6931472, %v4500
        %v4629 = vsub.f32 -0.6931472, %v4501
        %v4630 = vsub.f32 -0.6931472, %v4502
        %v4631 = vsub.f32 -0.6931472, %v4503
        %v4632 = vsub.f32 -0.6931472, %v4504
        %v4633 = vsub.f32 -0.6931472, %v4505
        %v4634 = vsub.f32 -0.6931472, %v4506
        %v4635 = vsub.f32 -0.6931472, %v4507
        %v4636 = vsub.f32 -0.6931472, %v4508
        %v4637 = vsub.f32 -0.6931472, %v4509
        %v4638 = vsub.f32 -0.6931472, %v4510
        %v4639 = vsub.f32 -0.6931472, %v4511
        %v4640 = vsub.f32 -0.6931472, %v4512
        %v4641 = vsub.f32 -0.6931472, %v4513
        %v4642 = vsub.f32 -0.6931472, %v4514
        %v4643 = vsub.f32 -0.6931472, %v4515
        %v4644 = vsub.f32 -0.6931472, %v4516
        %v4645 = vsub.f32 -0.6931472, %v4517
        %v4646 = vsub.f32 -0.6931472, %v4518
        %v4647 = vsub.f32 -0.6931472, %v4519
        %v4648 = vsub.f32 -0.6931472, %v4520
        %v4649 = vsub.f32 -0.6931472, %v4521
        %v4650 = vsub.f32 -0.6931472, %v4522
        %v4651 = vsub.f32 -0.6931472, %v4523
        %v4652 = vsub.f32 -0.6931472, %v4524
        %v4653 = vsub.f32 -0.6931472, %v4525
        %v4654 = vsub.f32 -0.6931472, %v4526
        %v4655 = vsub.f32 -0.6931472, %v4527
        %v4656 = vsub.f32 -0.6931472, %v4528
        %v4657 = vsub.f32 -0.6931472, %v4529
        %v4658 = vsub.f32 -0.6931472, %v4530
        %v4659 = vsub.f32 -0.6931472, %v4531
        %v4660 = vmul.f32 %v4276, 200.0
        %v4661 = vmul.f32 %v4277, 200.0
        %v4662 = vmul.f32 %v4278, 200.0
        %v4663 = vmul.f32 %v4279, 200.0
        %v4664 = vmul.f32 %v4280, 200.0
        %v4665 = vmul.f32 %v4281, 200.0
        %v4666 = vmul.f32 %v4282, 200.0
        %v4667 = vmul.f32 %v4283, 200.0
        %v4668 = vmul.f32 %v4284, 200.0
        %v4669 = vmul.f32 %v4285, 200.0
        %v4670 = vmul.f32 %v4286, 200.0
        %v4671 = vmul.f32 %v4287, 200.0
        %v4672 = vmul.f32 %v4288, 200.0
        %v4673 = vmul.f32 %v4289, 200.0
        %v4674 = vmul.f32 %v4290, 200.0
        %v4675 = vmul.f32 %v4291, 200.0
        %v4676 = vmul.f32 %v4292, 200.0
        %v4677 = vmul.f32 %v4293, 200.0
        %v4678 = vmul.f32 %v4294, 200.0
        %v4679 = vmul.f32 %v4295, 200.0
        %v4680 = vmul.f32 %v4296, 200.0
        %v4681 = vmul.f32 %v4297, 200.0
        %v4682 = vmul.f32 %v4298, 200.0
        %v4683 = vmul.f32 %v4299, 200.0
        %v4684 = vmul.f32 %v4300, 200.0
        %v4685 = vmul.f32 %v4301, 200.0
        %v4686 = vmul.f32 %v4302, 200.0
        %v4687 = vmul.f32 %v4303, 200.0
        %v4688 = vmul.f32 %v4304, 200.0
        %v4689 = vmul.f32 %v4305, 200.0
        %v4690 = vmul.f32 %v4306, 200.0
        %v4691 = vmul.f32 %v4307, 200.0
        %v4692 = vmul.f32 %v4308, 200.0
        %v4693 = vmul.f32 %v4309, 200.0
        %v4694 = vmul.f32 %v4310, 200.0
        %v4695 = vmul.f32 %v4311, 200.0
        %v4696 = vmul.f32 %v4312, 200.0
        %v4697 = vmul.f32 %v4313, 200.0
        %v4698 = vmul.f32 %v4314, 200.0
        %v4699 = vmul.f32 %v4315, 200.0
        %v4700 = vmul.f32 %v4316, 200.0
        %v4701 = vmul.f32 %v4317, 200.0
        %v4702 = vmul.f32 %v4318, 200.0
        %v4703 = vmul.f32 %v4319, 200.0
        %v4704 = vmul.f32 %v4320, 200.0
        %v4705 = vmul.f32 %v4321, 200.0
        %v4706 = vmul.f32 %v4322, 200.0
        %v4707 = vmul.f32 %v4323, 200.0
        %v4708 = vmul.f32 %v4324, 200.0
        %v4709 = vmul.f32 %v4325, 200.0
        %v4710 = vmul.f32 %v4326, 200.0
        %v4711 = vmul.f32 %v4327, 200.0
        %v4712 = vmul.f32 %v4328, 200.0
        %v4713 = vmul.f32 %v4329, 200.0
        %v4714 = vmul.f32 %v4330, 200.0
        %v4715 = vmul.f32 %v4331, 200.0
        %v4716 = vmul.f32 %v4332, 200.0
        %v4717 = vmul.f32 %v4333, 200.0
        %v4718 = vmul.f32 %v4334, 200.0
        %v4719 = vmul.f32 %v4335, 200.0
        %v4720 = vmul.f32 %v4336, 200.0
        %v4721 = vmul.f32 %v4337, 200.0
        %v4722 = vmul.f32 %v4338, 200.0
        %v4723 = vmul.f32 %v4339, 200.0
        %v4724 = vmul.f32 %v4340, 200.0
        %v4725 = vmul.f32 %v4341, 200.0
        %v4726 = vmul.f32 %v4342, 200.0
        %v4727 = vmul.f32 %v4343, 200.0
        %v4728 = vmul.f32 %v4344, 200.0
        %v4729 = vmul.f32 %v4345, 200.0
        %v4730 = vmul.f32 %v4346, 200.0
        %v4731 = vmul.f32 %v4347, 200.0
        %v4732 = vmul.f32 %v4348, 200.0
        %v4733 = vmul.f32 %v4349, 200.0
        %v4734 = vmul.f32 %v4350, 200.0
        %v4735 = vmul.f32 %v4351, 200.0
        %v4736 = vmul.f32 %v4352, 200.0
        %v4737 = vmul.f32 %v4353, 200.0
        %v4738 = vmul.f32 %v4354, 200.0
        %v4739 = vmul.f32 %v4355, 200.0
        %v4740 = vmul.f32 %v4356, 200.0
        %v4741 = vmul.f32 %v4357, 200.0
        %v4742 = vmul.f32 %v4358, 200.0
        %v4743 = vmul.f32 %v4359, 200.0
        %v4744 = vmul.f32 %v4360, 200.0
        %v4745 = vmul.f32 %v4361, 200.0
        %v4746 = vmul.f32 %v4362, 200.0
        %v4747 = vmul.f32 %v4363, 200.0
        %v4748 = vmul.f32 %v4364, 200.0
        %v4749 = vmul.f32 %v4365, 200.0
        %v4750 = vmul.f32 %v4366, 200.0
        %v4751 = vmul.f32 %v4367, 200.0
        %v4752 = vmul.f32 %v4368, 200.0
        %v4753 = vmul.f32 %v4369, 200.0
        %v4754 = vmul.f32 %v4370, 200.0
        %v4755 = vmul.f32 %v4371, 200.0
        %v4756 = vmul.f32 %v4372, 200.0
        %v4757 = vmul.f32 %v4373, 200.0
        %v4758 = vmul.f32 %v4374, 200.0
        %v4759 = vmul.f32 %v4375, 200.0
        %v4760 = vmul.f32 %v4376, 200.0
        %v4761 = vmul.f32 %v4377, 200.0
        %v4762 = vmul.f32 %v4378, 200.0
        %v4763 = vmul.f32 %v4379, 200.0
        %v4764 = vmul.f32 %v4380, 200.0
        %v4765 = vmul.f32 %v4381, 200.0
        %v4766 = vmul.f32 %v4382, 200.0
        %v4767 = vmul.f32 %v4383, 200.0
        %v4768 = vmul.f32 %v4384, 200.0
        %v4769 = vmul.f32 %v4385, 200.0
        %v4770 = vmul.f32 %v4386, 200.0
        %v4771 = vmul.f32 %v4387, 200.0
        %v4772 = vmul.f32 %v4388, 200.0
        %v4773 = vmul.f32 %v4389, 200.0
        %v4774 = vmul.f32 %v4390, 200.0
        %v4775 = vmul.f32 %v4391, 200.0
        %v4776 = vmul.f32 %v4392, 200.0
        %v4777 = vmul.f32 %v4393, 200.0
        %v4778 = vmul.f32 %v4394, 200.0
        %v4779 = vmul.f32 %v4395, 200.0
        %v4780 = vmul.f32 %v4396, 200.0
        %v4781 = vmul.f32 %v4397, 200.0
        %v4782 = vmul.f32 %v4398, 200.0
        %v4783 = vmul.f32 %v4399, 200.0
        %v4784 = vmul.f32 %v4400, 200.0
        %v4785 = vmul.f32 %v4401, 200.0
        %v4786 = vmul.f32 %v4402, 200.0
        %v4787 = vmul.f32 %v4403, 200.0
        %v4788 = vsub.f32 2.7080503, %v4660
        %v4789 = vsub.f32 2.7080503, %v4661
        %v4790 = vsub.f32 2.7080503, %v4662
        %v4791 = vsub.f32 2.7080503, %v4663
        %v4792 = vsub.f32 2.7080503, %v4664
        %v4793 = vsub.f32 2.7080503, %v4665
        %v4794 = vsub.f32 2.7080503, %v4666
        %v4795 = vsub.f32 2.7080503, %v4667
        %v4796 = vsub.f32 2.7080503, %v4668
        %v4797 = vsub.f32 2.7080503, %v4669
        %v4798 = vsub.f32 2.7080503, %v4670
        %v4799 = vsub.f32 2.7080503, %v4671
        %v4800 = vsub.f32 2.7080503, %v4672
        %v4801 = vsub.f32 2.7080503, %v4673
        %v4802 = vsub.f32 2.7080503, %v4674
        %v4803 = vsub.f32 2.7080503, %v4675
        %v4804 = vsub.f32 2.7080503, %v4676
        %v4805 = vsub.f32 2.7080503, %v4677
        %v4806 = vsub.f32 2.7080503, %v4678
        %v4807 = vsub.f32 2.7080503, %v4679
        %v4808 = vsub.f32 2.7080503, %v4680
        %v4809 = vsub.f32 2.7080503, %v4681
        %v4810 = vsub.f32 2.7080503, %v4682
        %v4811 = vsub.f32 2.7080503, %v4683
        %v4812 = vsub.f32 2.7080503, %v4684
        %v4813 = vsub.f32 2.7080503, %v4685
        %v4814 = vsub.f32 2.7080503, %v4686
        %v4815 = vsub.f32 2.7080503, %v4687
        %v4816 = vsub.f32 2.7080503, %v4688
        %v4817 = vsub.f32 2.7080503, %v4689
        %v4818 = vsub.f32 2.7080503, %v4690
        %v4819 = vsub.f32 2.7080503, %v4691
        %v4820 = vsub.f32 2.7080503, %v4692
        %v4821 = vsub.f32 2.7080503, %v4693
        %v4822 = vsub.f32 2.7080503, %v4694
        %v4823 = vsub.f32 2.7080503, %v4695
        %v4824 = vsub.f32 2.7080503, %v4696
        %v4825 = vsub.f32 2.7080503, %v4697
        %v4826 = vsub.f32 2.7080503, %v4698
        %v4827 = vsub.f32 2.7080503, %v4699
        %v4828 = vsub.f32 2.7080503, %v4700
        %v4829 = vsub.f32 2.7080503, %v4701
        %v4830 = vsub.f32 2.7080503, %v4702
        %v4831 = vsub.f32 2.7080503, %v4703
        %v4832 = vsub.f32 2.7080503, %v4704
        %v4833 = vsub.f32 2.7080503, %v4705
        %v4834 = vsub.f32 2.7080503, %v4706
        %v4835 = vsub.f32 2.7080503, %v4707
        %v4836 = vsub.f32 2.7080503, %v4708
        %v4837 = vsub.f32 2.7080503, %v4709
        %v4838 = vsub.f32 2.7080503, %v4710
        %v4839 = vsub.f32 2.7080503, %v4711
        %v4840 = vsub.f32 2.7080503, %v4712
        %v4841 = vsub.f32 2.7080503, %v4713
        %v4842 = vsub.f32 2.7080503, %v4714
        %v4843 = vsub.f32 2.7080503, %v4715
        %v4844 = vsub.f32 2.7080503, %v4716
        %v4845 = vsub.f32 2.7080503, %v4717
        %v4846 = vsub.f32 2.7080503, %v4718
        %v4847 = vsub.f32 2.7080503, %v4719
        %v4848 = vsub.f32 2.7080503, %v4720
        %v4849 = vsub.f32 2.7080503, %v4721
        %v4850 = vsub.f32 2.7080503, %v4722
        %v4851 = vsub.f32 2.7080503, %v4723
        %v4852 = vsub.f32 2.7080503, %v4724
        %v4853 = vsub.f32 2.7080503, %v4725
        %v4854 = vsub.f32 2.7080503, %v4726
        %v4855 = vsub.f32 2.7080503, %v4727
        %v4856 = vsub.f32 2.7080503, %v4728
        %v4857 = vsub.f32 2.7080503, %v4729
        %v4858 = vsub.f32 2.7080503, %v4730
        %v4859 = vsub.f32 2.7080503, %v4731
        %v4860 = vsub.f32 2.7080503, %v4732
        %v4861 = vsub.f32 2.7080503, %v4733
        %v4862 = vsub.f32 2.7080503, %v4734
        %v4863 = vsub.f32 2.7080503, %v4735
        %v4864 = vsub.f32 2.7080503, %v4736
        %v4865 = vsub.f32 2.7080503, %v4737
        %v4866 = vsub.f32 2.7080503, %v4738
        %v4867 = vsub.f32 2.7080503, %v4739
        %v4868 = vsub.f32 2.7080503, %v4740
        %v4869 = vsub.f32 2.7080503, %v4741
        %v4870 = vsub.f32 2.7080503, %v4742
        %v4871 = vsub.f32 2.7080503, %v4743
        %v4872 = vsub.f32 2.7080503, %v4744
        %v4873 = vsub.f32 2.7080503, %v4745
        %v4874 = vsub.f32 2.7080503, %v4746
        %v4875 = vsub.f32 2.7080503, %v4747
        %v4876 = vsub.f32 2.7080503, %v4748
        %v4877 = vsub.f32 2.7080503, %v4749
        %v4878 = vsub.f32 2.7080503, %v4750
        %v4879 = vsub.f32 2.7080503, %v4751
        %v4880 = vsub.f32 2.7080503, %v4752
        %v4881 = vsub.f32 2.7080503, %v4753
        %v4882 = vsub.f32 2.7080503, %v4754
        %v4883 = vsub.f32 2.7080503, %v4755
        %v4884 = vsub.f32 2.7080503, %v4756
        %v4885 = vsub.f32 2.7080503, %v4757
        %v4886 = vsub.f32 2.7080503, %v4758
        %v4887 = vsub.f32 2.7080503, %v4759
        %v4888 = vsub.f32 2.7080503, %v4760
        %v4889 = vsub.f32 2.7080503, %v4761
        %v4890 = vsub.f32 2.7080503, %v4762
        %v4891 = vsub.f32 2.7080503, %v4763
        %v4892 = vsub.f32 2.7080503, %v4764
        %v4893 = vsub.f32 2.7080503, %v4765
        %v4894 = vsub.f32 2.7080503, %v4766
        %v4895 = vsub.f32 2.7080503, %v4767
        %v4896 = vsub.f32 2.7080503, %v4768
        %v4897 = vsub.f32 2.7080503, %v4769
        %v4898 = vsub.f32 2.7080503, %v4770
        %v4899 = vsub.f32 2.7080503, %v4771
        %v4900 = vsub.f32 2.7080503, %v4772
        %v4901 = vsub.f32 2.7080503, %v4773
        %v4902 = vsub.f32 2.7080503, %v4774
        %v4903 = vsub.f32 2.7080503, %v4775
        %v4904 = vsub.f32 2.7080503, %v4776
        %v4905 = vsub.f32 2.7080503, %v4777
        %v4906 = vsub.f32 2.7080503, %v4778
        %v4907 = vsub.f32 2.7080503, %v4779
        %v4908 = vsub.f32 2.7080503, %v4780
        %v4909 = vsub.f32 2.7080503, %v4781
        %v4910 = vsub.f32 2.7080503, %v4782
        %v4911 = vsub.f32 2.7080503, %v4783
        %v4912 = vsub.f32 2.7080503, %v4784
        %v4913 = vsub.f32 2.7080503, %v4785
        %v4914 = vsub.f32 2.7080503, %v4786
        %v4915 = vsub.f32 2.7080503, %v4787
        %v4916 = vmax.f32 %v4532, %v4788
        %v4917 = vmax.f32 %v4533, %v4789
        %v4918 = vmax.f32 %v4534, %v4790
        %v4919 = vmax.f32 %v4535, %v4791
        %v4920 = vmax.f32 %v4536, %v4792
        %v4921 = vmax.f32 %v4537, %v4793
        %v4922 = vmax.f32 %v4538, %v4794
        %v4923 = vmax.f32 %v4539, %v4795
        %v4924 = vmax.f32 %v4540, %v4796
        %v4925 = vmax.f32 %v4541, %v4797
        %v4926 = vmax.f32 %v4542, %v4798
        %v4927 = vmax.f32 %v4543, %v4799
        %v4928 = vmax.f32 %v4544, %v4800
        %v4929 = vmax.f32 %v4545, %v4801
        %v4930 = vmax.f32 %v4546, %v4802
        %v4931 = vmax.f32 %v4547, %v4803
        %v4932 = vmax.f32 %v4548, %v4804
        %v4933 = vmax.f32 %v4549, %v4805
        %v4934 = vmax.f32 %v4550, %v4806
        %v4935 = vmax.f32 %v4551, %v4807
        %v4936 = vmax.f32 %v4552, %v4808
        %v4937 = vmax.f32 %v4553, %v4809
        %v4938 = vmax.f32 %v4554, %v4810
        %v4939 = vmax.f32 %v4555, %v4811
        %v4940 = vmax.f32 %v4556, %v4812
        %v4941 = vmax.f32 %v4557, %v4813
        %v4942 = vmax.f32 %v4558, %v4814
        %v4943 = vmax.f32 %v4559, %v4815
        %v4944 = vmax.f32 %v4560, %v4816
        %v4945 = vmax.f32 %v4561, %v4817
        %v4946 = vmax.f32 %v4562, %v4818
        %v4947 = vmax.f32 %v4563, %v4819
        %v4948 = vmax.f32 %v4564, %v4820
        %v4949 = vmax.f32 %v4565, %v4821
        %v4950 = vmax.f32 %v4566, %v4822
        %v4951 = vmax.f32 %v4567, %v4823
        %v4952 = vmax.f32 %v4568, %v4824
        %v4953 = vmax.f32 %v4569, %v4825
        %v4954 = vmax.f32 %v4570, %v4826
        %v4955 = vmax.f32 %v4571, %v4827
        %v4956 = vmax.f32 %v4572, %v4828
        %v4957 = vmax.f32 %v4573, %v4829
        %v4958 = vmax.f32 %v4574, %v4830
        %v4959 = vmax.f32 %v4575, %v4831
        %v4960 = vmax.f32 %v4576, %v4832
        %v4961 = vmax.f32 %v4577, %v4833
        %v4962 = vmax.f32 %v4578, %v4834
        %v4963 = vmax.f32 %v4579, %v4835
        %v4964 = vmax.f32 %v4580, %v4836
        %v4965 = vmax.f32 %v4581, %v4837
        %v4966 = vmax.f32 %v4582, %v4838
        %v4967 = vmax.f32 %v4583, %v4839
        %v4968 = vmax.f32 %v4584, %v4840
        %v4969 = vmax.f32 %v4585, %v4841
        %v4970 = vmax.f32 %v4586, %v4842
        %v4971 = vmax.f32 %v4587, %v4843
        %v4972 = vmax.f32 %v4588, %v4844
        %v4973 = vmax.f32 %v4589, %v4845
        %v4974 = vmax.f32 %v4590, %v4846
        %v4975 = vmax.f32 %v4591, %v4847
        %v4976 = vmax.f32 %v4592, %v4848
        %v4977 = vmax.f32 %v4593, %v4849
        %v4978 = vmax.f32 %v4594, %v4850
        %v4979 = vmax.f32 %v4595, %v4851
        %v4980 = vmax.f32 %v4596, %v4852
        %v4981 = vmax.f32 %v4597, %v4853
        %v4982 = vmax.f32 %v4598, %v4854
        %v4983 = vmax.f32 %v4599, %v4855
        %v4984 = vmax.f32 %v4600, %v4856
        %v4985 = vmax.f32 %v4601, %v4857
        %v4986 = vmax.f32 %v4602, %v4858
        %v4987 = vmax.f32 %v4603, %v4859
        %v4988 = vmax.f32 %v4604, %v4860
        %v4989 = vmax.f32 %v4605, %v4861
        %v4990 = vmax.f32 %v4606, %v4862
        %v4991 = vmax.f32 %v4607, %v4863
        %v4992 = vmax.f32 %v4608, %v4864
        %v4993 = vmax.f32 %v4609, %v4865
        %v4994 = vmax.f32 %v4610, %v4866
        %v4995 = vmax.f32 %v4611, %v4867
        %v4996 = vmax.f32 %v4612, %v4868
        %v4997 = vmax.f32 %v4613, %v4869
        %v4998 = vmax.f32 %v4614, %v4870
        %v4999 = vmax.f32 %v4615, %v4871
        %v5000 = vmax.f32 %v4616, %v4872
        %v5001 = vmax.f32 %v4617, %v4873
        %v5002 = vmax.f32 %v4618, %v4874
        %v5003 = vmax.f32 %v4619, %v4875
        %v5004 = vmax.f32 %v4620, %v4876
        %v5005 = vmax.f32 %v4621, %v4877
        %v5006 = vmax.f32 %v4622, %v4878
        %v5007 = vmax.f32 %v4623, %v4879
        %v5008 = vmax.f32 %v4624, %v4880
        %v5009 = vmax.f32 %v4625, %v4881
        %v5010 = vmax.f32 %v4626, %v4882
        %v5011 = vmax.f32 %v4627, %v4883
        %v5012 = vmax.f32 %v4628, %v4884
        %v5013 = vmax.f32 %v4629, %v4885
        %v5014 = vmax.f32 %v4630, %v4886
        %v5015 = vmax.f32 %v4631, %v4887
        %v5016 = vmax.f32 %v4632, %v4888
        %v5017 = vmax.f32 %v4633, %v4889
        %v5018 = vmax.f32 %v4634, %v4890
        %v5019 = vmax.f32 %v4635, %v4891
        %v5020 = vmax.f32 %v4636, %v4892
        %v5021 = vmax.f32 %v4637, %v4893
        %v5022 = vmax.f32 %v4638, %v4894
        %v5023 = vmax.f32 %v4639, %v4895
        %v5024 = vmax.f32 %v4640, %v4896
        %v5025 = vmax.f32 %v4641, %v4897
        %v5026 = vmax.f32 %v4642, %v4898
        %v5027 = vmax.f32 %v4643, %v4899
        %v5028 = vmax.f32 %v4644, %v4900
        %v5029 = vmax.f32 %v4645, %v4901
        %v5030 = vmax.f32 %v4646, %v4902
        %v5031 = vmax.f32 %v4647, %v4903
        %v5032 = vmax.f32 %v4648, %v4904
        %v5033 = vmax.f32 %v4649, %v4905
        %v5034 = vmax.f32 %v4650, %v4906
        %v5035 = vmax.f32 %v4651, %v4907
        %v5036 = vmax.f32 %v4652, %v4908
        %v5037 = vmax.f32 %v4653, %v4909
        %v5038 = vmax.f32 %v4654, %v4910
        %v5039 = vmax.f32 %v4655, %v4911
        %v5040 = vmax.f32 %v4656, %v4912
        %v5041 = vmax.f32 %v4657, %v4913
        %v5042 = vmax.f32 %v4658, %v4914
        %v5043 = vmax.f32 %v4659, %v4915
        %v5044 = vmin.f32 %v4532, %v4788
        %v5045 = vmin.f32 %v4533, %v4789
        %v5046 = vmin.f32 %v4534, %v4790
        %v5047 = vmin.f32 %v4535, %v4791
        %v5048 = vmin.f32 %v4536, %v4792
        %v5049 = vmin.f32 %v4537, %v4793
        %v5050 = vmin.f32 %v4538, %v4794
        %v5051 = vmin.f32 %v4539, %v4795
        %v5052 = vmin.f32 %v4540, %v4796
        %v5053 = vmin.f32 %v4541, %v4797
        %v5054 = vmin.f32 %v4542, %v4798
        %v5055 = vmin.f32 %v4543, %v4799
        %v5056 = vmin.f32 %v4544, %v4800
        %v5057 = vmin.f32 %v4545, %v4801
        %v5058 = vmin.f32 %v4546, %v4802
        %v5059 = vmin.f32 %v4547, %v4803
        %v5060 = vmin.f32 %v4548, %v4804
        %v5061 = vmin.f32 %v4549, %v4805
        %v5062 = vmin.f32 %v4550, %v4806
        %v5063 = vmin.f32 %v4551, %v4807
        %v5064 = vmin.f32 %v4552, %v4808
        %v5065 = vmin.f32 %v4553, %v4809
        %v5066 = vmin.f32 %v4554, %v4810
        %v5067 = vmin.f32 %v4555, %v4811
        %v5068 = vmin.f32 %v4556, %v4812
        %v5069 = vmin.f32 %v4557, %v4813
        %v5070 = vmin.f32 %v4558, %v4814
        %v5071 = vmin.f32 %v4559, %v4815
        %v5072 = vmin.f32 %v4560, %v4816
        %v5073 = vmin.f32 %v4561, %v4817
        %v5074 = vmin.f32 %v4562, %v4818
        %v5075 = vmin.f32 %v4563, %v4819
        %v5076 = vmin.f32 %v4564, %v4820
        %v5077 = vmin.f32 %v4565, %v4821
        %v5078 = vmin.f32 %v4566, %v4822
        %v5079 = vmin.f32 %v4567, %v4823
        %v5080 = vmin.f32 %v4568, %v4824
        %v5081 = vmin.f32 %v4569, %v4825
        %v5082 = vmin.f32 %v4570, %v4826
        %v5083 = vmin.f32 %v4571, %v4827
        %v5084 = vmin.f32 %v4572, %v4828
        %v5085 = vmin.f32 %v4573, %v4829
        %v5086 = vmin.f32 %v4574, %v4830
        %v5087 = vmin.f32 %v4575, %v4831
        %v5088 = vmin.f32 %v4576, %v4832
        %v5089 = vmin.f32 %v4577, %v4833
        %v5090 = vmin.f32 %v4578, %v4834
        %v5091 = vmin.f32 %v4579, %v4835
        %v5092 = vmin.f32 %v4580, %v4836
        %v5093 = vmin.f32 %v4581, %v4837
        %v5094 = vmin.f32 %v4582, %v4838
        %v5095 = vmin.f32 %v4583, %v4839
        %v5096 = vmin.f32 %v4584, %v4840
        %v5097 = vmin.f32 %v4585, %v4841
        %v5098 = vmin.f32 %v4586, %v4842
        %v5099 = vmin.f32 %v4587, %v4843
        %v5100 = vmin.f32 %v4588, %v4844
        %v5101 = vmin.f32 %v4589, %v4845
        %v5102 = vmin.f32 %v4590, %v4846
        %v5103 = vmin.f32 %v4591, %v4847
        %v5104 = vmin.f32 %v4592, %v4848
        %v5105 = vmin.f32 %v4593, %v4849
        %v5106 = vmin.f32 %v4594, %v4850
        %v5107 = vmin.f32 %v4595, %v4851
        %v5108 = vmin.f32 %v4596, %v4852
        %v5109 = vmin.f32 %v4597, %v4853
        %v5110 = vmin.f32 %v4598, %v4854
        %v5111 = vmin.f32 %v4599, %v4855
        %v5112 = vmin.f32 %v4600, %v4856
        %v5113 = vmin.f32 %v4601, %v4857
        %v5114 = vmin.f32 %v4602, %v4858
        %v5115 = vmin.f32 %v4603, %v4859
        %v5116 = vmin.f32 %v4604, %v4860
        %v5117 = vmin.f32 %v4605, %v4861
        %v5118 = vmin.f32 %v4606, %v4862
        %v5119 = vmin.f32 %v4607, %v4863
        %v5120 = vmin.f32 %v4608, %v4864
        %v5121 = vmin.f32 %v4609, %v4865
        %v5122 = vmin.f32 %v4610, %v4866
        %v5123 = vmin.f32 %v4611, %v4867
        %v5124 = vmin.f32 %v4612, %v4868
        %v5125 = vmin.f32 %v4613, %v4869
        %v5126 = vmin.f32 %v4614, %v4870
        %v5127 = vmin.f32 %v4615, %v4871
        %v5128 = vmin.f32 %v4616, %v4872
        %v5129 = vmin.f32 %v4617, %v4873
        %v5130 = vmin.f32 %v4618, %v4874
        %v5131 = vmin.f32 %v4619, %v4875
        %v5132 = vmin.f32 %v4620, %v4876
        %v5133 = vmin.f32 %v4621, %v4877
        %v5134 = vmin.f32 %v4622, %v4878
        %v5135 = vmin.f32 %v4623, %v4879
        %v5136 = vmin.f32 %v4624, %v4880
        %v5137 = vmin.f32 %v4625, %v4881
        %v5138 = vmin.f32 %v4626, %v4882
        %v5139 = vmin.f32 %v4627, %v4883
        %v5140 = vmin.f32 %v4628, %v4884
        %v5141 = vmin.f32 %v4629, %v4885
        %v5142 = vmin.f32 %v4630, %v4886
        %v5143 = vmin.f32 %v4631, %v4887
        %v5144 = vmin.f32 %v4632, %v4888
        %v5145 = vmin.f32 %v4633, %v4889
        %v5146 = vmin.f32 %v4634, %v4890
        %v5147 = vmin.f32 %v4635, %v4891
        %v5148 = vmin.f32 %v4636, %v4892
        %v5149 = vmin.f32 %v4637, %v4893
        %v5150 = vmin.f32 %v4638, %v4894
        %v5151 = vmin.f32 %v4639, %v4895
        %v5152 = vmin.f32 %v4640, %v4896
        %v5153 = vmin.f32 %v4641, %v4897
        %v5154 = vmin.f32 %v4642, %v4898
        %v5155 = vmin.f32 %v4643, %v4899
        %v5156 = vmin.f32 %v4644, %v4900
        %v5157 = vmin.f32 %v4645, %v4901
        %v5158 = vmin.f32 %v4646, %v4902
        %v5159 = vmin.f32 %v4647, %v4903
        %v5160 = vmin.f32 %v4648, %v4904
        %v5161 = vmin.f32 %v4649, %v4905
        %v5162 = vmin.f32 %v4650, %v4906
        %v5163 = vmin.f32 %v4651, %v4907
        %v5164 = vmin.f32 %v4652, %v4908
        %v5165 = vmin.f32 %v4653, %v4909
        %v5166 = vmin.f32 %v4654, %v4910
        %v5167 = vmin.f32 %v4655, %v4911
        %v5168 = vmin.f32 %v4656, %v4912
        %v5169 = vmin.f32 %v4657, %v4913
        %v5170 = vmin.f32 %v4658, %v4914
        %v5171 = vmin.f32 %v4659, %v4915
        %v5172 = vsub.f32 %v5044, %v4916
        %v5173 = vsub.f32 %v5045, %v4917
        %v5174 = vsub.f32 %v5046, %v4918
        %v5175 = vsub.f32 %v5047, %v4919
        %v5176 = vsub.f32 %v5048, %v4920
        %v5177 = vsub.f32 %v5049, %v4921
        %v5178 = vsub.f32 %v5050, %v4922
        %v5179 = vsub.f32 %v5051, %v4923
        %v5180 = vsub.f32 %v5052, %v4924
        %v5181 = vsub.f32 %v5053, %v4925
        %v5182 = vsub.f32 %v5054, %v4926
        %v5183 = vsub.f32 %v5055, %v4927
        %v5184 = vsub.f32 %v5056, %v4928
        %v5185 = vsub.f32 %v5057, %v4929
        %v5186 = vsub.f32 %v5058, %v4930
        %v5187 = vsub.f32 %v5059, %v4931
        %v5188 = vsub.f32 %v5060, %v4932
        %v5189 = vsub.f32 %v5061, %v4933
        %v5190 = vsub.f32 %v5062, %v4934
        %v5191 = vsub.f32 %v5063, %v4935
        %v5192 = vsub.f32 %v5064, %v4936
        %v5193 = vsub.f32 %v5065, %v4937
        %v5194 = vsub.f32 %v5066, %v4938
        %v5195 = vsub.f32 %v5067, %v4939
        %v5196 = vsub.f32 %v5068, %v4940
        %v5197 = vsub.f32 %v5069, %v4941
        %v5198 = vsub.f32 %v5070, %v4942
        %v5199 = vsub.f32 %v5071, %v4943
        %v5200 = vsub.f32 %v5072, %v4944
        %v5201 = vsub.f32 %v5073, %v4945
        %v5202 = vsub.f32 %v5074, %v4946
        %v5203 = vsub.f32 %v5075, %v4947
        %v5204 = vsub.f32 %v5076, %v4948
        %v5205 = vsub.f32 %v5077, %v4949
        %v5206 = vsub.f32 %v5078, %v4950
        %v5207 = vsub.f32 %v5079, %v4951
        %v5208 = vsub.f32 %v5080, %v4952
        %v5209 = vsub.f32 %v5081, %v4953
        %v5210 = vsub.f32 %v5082, %v4954
        %v5211 = vsub.f32 %v5083, %v4955
        %v5212 = vsub.f32 %v5084, %v4956
        %v5213 = vsub.f32 %v5085, %v4957
        %v5214 = vsub.f32 %v5086, %v4958
        %v5215 = vsub.f32 %v5087, %v4959
        %v5216 = vsub.f32 %v5088, %v4960
        %v5217 = vsub.f32 %v5089, %v4961
        %v5218 = vsub.f32 %v5090, %v4962
        %v5219 = vsub.f32 %v5091, %v4963
        %v5220 = vsub.f32 %v5092, %v4964
        %v5221 = vsub.f32 %v5093, %v4965
        %v5222 = vsub.f32 %v5094, %v4966
        %v5223 = vsub.f32 %v5095, %v4967
        %v5224 = vsub.f32 %v5096, %v4968
        %v5225 = vsub.f32 %v5097, %v4969
        %v5226 = vsub.f32 %v5098, %v4970
        %v5227 = vsub.f32 %v5099, %v4971
        %v5228 = vsub.f32 %v5100, %v4972
        %v5229 = vsub.f32 %v5101, %v4973
        %v5230 = vsub.f32 %v5102, %v4974
        %v5231 = vsub.f32 %v5103, %v4975
        %v5232 = vsub.f32 %v5104, %v4976
        %v5233 = vsub.f32 %v5105, %v4977
        %v5234 = vsub.f32 %v5106, %v4978
        %v5235 = vsub.f32 %v5107, %v4979
        %v5236 = vsub.f32 %v5108, %v4980
        %v5237 = vsub.f32 %v5109, %v4981
        %v5238 = vsub.f32 %v5110, %v4982
        %v5239 = vsub.f32 %v5111, %v4983
        %v5240 = vsub.f32 %v5112, %v4984
        %v5241 = vsub.f32 %v5113, %v4985
        %v5242 = vsub.f32 %v5114, %v4986
        %v5243 = vsub.f32 %v5115, %v4987
        %v5244 = vsub.f32 %v5116, %v4988
        %v5245 = vsub.f32 %v5117, %v4989
        %v5246 = vsub.f32 %v5118, %v4990
        %v5247 = vsub.f32 %v5119, %v4991
        %v5248 = vsub.f32 %v5120, %v4992
        %v5249 = vsub.f32 %v5121, %v4993
        %v5250 = vsub.f32 %v5122, %v4994
        %v5251 = vsub.f32 %v5123, %v4995
        %v5252 = vsub.f32 %v5124, %v4996
        %v5253 = vsub.f32 %v5125, %v4997
        %v5254 = vsub.f32 %v5126, %v4998
        %v5255 = vsub.f32 %v5127, %v4999
        %v5256 = vsub.f32 %v5128, %v5000
        %v5257 = vsub.f32 %v5129, %v5001
        %v5258 = vsub.f32 %v5130, %v5002
        %v5259 = vsub.f32 %v5131, %v5003
        %v5260 = vsub.f32 %v5132, %v5004
        %v5261 = vsub.f32 %v5133, %v5005
        %v5262 = vsub.f32 %v5134, %v5006
        %v5263 = vsub.f32 %v5135, %v5007
        %v5264 = vsub.f32 %v5136, %v5008
        %v5265 = vsub.f32 %v5137, %v5009
        %v5266 = vsub.f32 %v5138, %v5010
        %v5267 = vsub.f32 %v5139, %v5011
        %v5268 = vsub.f32 %v5140, %v5012
        %v5269 = vsub.f32 %v5141, %v5013
        %v5270 = vsub.f32 %v5142, %v5014
        %v5271 = vsub.f32 %v5143, %v5015
        %v5272 = vsub.f32 %v5144, %v5016
        %v5273 = vsub.f32 %v5145, %v5017
        %v5274 = vsub.f32 %v5146, %v5018
        %v5275 = vsub.f32 %v5147, %v5019
        %v5276 = vsub.f32 %v5148, %v5020
        %v5277 = vsub.f32 %v5149, %v5021
        %v5278 = vsub.f32 %v5150, %v5022
        %v5279 = vsub.f32 %v5151, %v5023
        %v5280 = vsub.f32 %v5152, %v5024
        %v5281 = vsub.f32 %v5153, %v5025
        %v5282 = vsub.f32 %v5154, %v5026
        %v5283 = vsub.f32 %v5155, %v5027
        %v5284 = vsub.f32 %v5156, %v5028
        %v5285 = vsub.f32 %v5157, %v5029
        %v5286 = vsub.f32 %v5158, %v5030
        %v5287 = vsub.f32 %v5159, %v5031
        %v5288 = vsub.f32 %v5160, %v5032
        %v5289 = vsub.f32 %v5161, %v5033
        %v5290 = vsub.f32 %v5162, %v5034
        %v5291 = vsub.f32 %v5163, %v5035
        %v5292 = vsub.f32 %v5164, %v5036
        %v5293 = vsub.f32 %v5165, %v5037
        %v5294 = vsub.f32 %v5166, %v5038
        %v5295 = vsub.f32 %v5167, %v5039
        %v5296 = vsub.f32 %v5168, %v5040
        %v5297 = vsub.f32 %v5169, %v5041
        %v5298 = vsub.f32 %v5170, %v5042
        %v5299 = vsub.f32 %v5171, %v5043
        %v5300 = vmul.f32 %v5172, 1.442695
        %v5301 = vpow.pop %v5300
        %v5302 = vmul.f32 %v5173, 1.442695
        %v5303 = vpow.pop %v5302
        %v5304 = vmul.f32 %v5174, 1.442695
        %v5305 = vpow.pop %v5304
        %v5306 = vmul.f32 %v5175, 1.442695
        %v5307 = vpow.pop %v5306
        %v5308 = vmul.f32 %v5176, 1.442695
        %v5309 = vpow.pop %v5308
        %v5310 = vmul.f32 %v5177, 1.442695
        %v5311 = vpow.pop %v5310
        %v5312 = vmul.f32 %v5178, 1.442695
        %v5313 = vpow.pop %v5312
        %v5314 = vmul.f32 %v5179, 1.442695
        %v5315 = vpow.pop %v5314
        %v5316 = vmul.f32 %v5180, 1.442695
        %v5317 = vpow.pop %v5316
        %v5318 = vmul.f32 %v5181, 1.442695
        %v5319 = vpow.pop %v5318
        %v5320 = vmul.f32 %v5182, 1.442695
        %v5321 = vpow.pop %v5320
        %v5322 = vmul.f32 %v5183, 1.442695
        %v5323 = vpow.pop %v5322
        %v5324 = vmul.f32 %v5184, 1.442695
        %v5325 = vpow.pop %v5324
        %v5326 = vmul.f32 %v5185, 1.442695
        %v5327 = vpow.pop %v5326
        %v5328 = vmul.f32 %v5186, 1.442695
        %v5329 = vpow.pop %v5328
        %v5330 = vmul.f32 %v5187, 1.442695
        %v5331 = vpow.pop %v5330
        %v5332 = vmul.f32 %v5188, 1.442695
        %v5333 = vpow.pop %v5332
        %v5334 = vmul.f32 %v5189, 1.442695
        %v5335 = vpow.pop %v5334
        %v5336 = vmul.f32 %v5190, 1.442695
        %v5337 = vpow.pop %v5336
        %v5338 = vmul.f32 %v5191, 1.442695
        %v5339 = vpow.pop %v5338
        %v5340 = vmul.f32 %v5192, 1.442695
        %v5341 = vpow.pop %v5340
        %v5342 = vmul.f32 %v5193, 1.442695
        %v5343 = vpow.pop %v5342
        %v5344 = vmul.f32 %v5194, 1.442695
        %v5345 = vpow.pop %v5344
        %v5346 = vmul.f32 %v5195, 1.442695
        %v5347 = vpow.pop %v5346
        %v5348 = vmul.f32 %v5196, 1.442695
        %v5349 = vpow.pop %v5348
        %v5350 = vmul.f32 %v5197, 1.442695
        %v5351 = vpow.pop %v5350
        %v5352 = vmul.f32 %v5198, 1.442695
        %v5353 = vpow.pop %v5352
        %v5354 = vmul.f32 %v5199, 1.442695
        %v5355 = vpow.pop %v5354
        %v5356 = vmul.f32 %v5200, 1.442695
        %v5357 = vpow.pop %v5356
        %v5358 = vmul.f32 %v5201, 1.442695
        %v5359 = vpow.pop %v5358
        %v5360 = vmul.f32 %v5202, 1.442695
        %v5361 = vpow.pop %v5360
        %v5362 = vmul.f32 %v5203, 1.442695
        %v5363 = vpow.pop %v5362
        %v5364 = vmul.f32 %v5204, 1.442695
        %v5365 = vpow.pop %v5364
        %v5366 = vmul.f32 %v5205, 1.442695
        %v5367 = vpow.pop %v5366
        %v5368 = vmul.f32 %v5206, 1.442695
        %v5369 = vpow.pop %v5368
        %v5370 = vmul.f32 %v5207, 1.442695
        %v5371 = vpow.pop %v5370
        %v5372 = vmul.f32 %v5208, 1.442695
        %v5373 = vpow.pop %v5372
        %v5374 = vmul.f32 %v5209, 1.442695
        %v5375 = vpow.pop %v5374
        %v5376 = vmul.f32 %v5210, 1.442695
        %v5377 = vpow.pop %v5376
        %v5378 = vmul.f32 %v5211, 1.442695
        %v5379 = vpow.pop %v5378
        %v5380 = vmul.f32 %v5212, 1.442695
        %v5381 = vpow.pop %v5380
        %v5382 = vmul.f32 %v5213, 1.442695
        %v5383 = vpow.pop %v5382
        %v5384 = vmul.f32 %v5214, 1.442695
        %v5385 = vpow.pop %v5384
        %v5386 = vmul.f32 %v5215, 1.442695
        %v5387 = vpow.pop %v5386
        %v5388 = vmul.f32 %v5216, 1.442695
        %v5389 = vpow.pop %v5388
        %v5390 = vmul.f32 %v5217, 1.442695
        %v5391 = vpow.pop %v5390
        %v5392 = vmul.f32 %v5218, 1.442695
        %v5393 = vpow.pop %v5392
        %v5394 = vmul.f32 %v5219, 1.442695
        %v5395 = vpow.pop %v5394
        %v5396 = vmul.f32 %v5220, 1.442695
        %v5397 = vpow.pop %v5396
        %v5398 = vmul.f32 %v5221, 1.442695
        %v5399 = vpow.pop %v5398
        %v5400 = vmul.f32 %v5222, 1.442695
        %v5401 = vpow.pop %v5400
        %v5402 = vmul.f32 %v5223, 1.442695
        %v5403 = vpow.pop %v5402
        %v5404 = vmul.f32 %v5224, 1.442695
        %v5405 = vpow.pop %v5404
        %v5406 = vmul.f32 %v5225, 1.442695
        %v5407 = vpow.pop %v5406
        %v5408 = vmul.f32 %v5226, 1.442695
        %v5409 = vpow.pop %v5408
        %v5410 = vmul.f32 %v5227, 1.442695
        %v5411 = vpow.pop %v5410
        %v5412 = vmul.f32 %v5228, 1.442695
        %v5413 = vpow.pop %v5412
        %v5414 = vmul.f32 %v5229, 1.442695
        %v5415 = vpow.pop %v5414
        %v5416 = vmul.f32 %v5230, 1.442695
        %v5417 = vpow.pop %v5416
        %v5418 = vmul.f32 %v5231, 1.442695
        %v5419 = vpow.pop %v5418
        %v5420 = vmul.f32 %v5232, 1.442695
        %v5421 = vpow.pop %v5420
        %v5422 = vmul.f32 %v5233, 1.442695
        %v5423 = vpow.pop %v5422
        %v5424 = vmul.f32 %v5234, 1.442695
        %v5425 = vpow.pop %v5424
        %v5426 = vmul.f32 %v5235, 1.442695
        %v5427 = vpow.pop %v5426
        %v5428 = vmul.f32 %v5236, 1.442695
        %v5429 = vpow.pop %v5428
        %v5430 = vmul.f32 %v5237, 1.442695
        %v5431 = vpow.pop %v5430
        %v5432 = vmul.f32 %v5238, 1.442695
        %v5433 = vpow.pop %v5432
        %v5434 = vmul.f32 %v5239, 1.442695
        %v5435 = vpow.pop %v5434
        %v5436 = vmul.f32 %v5240, 1.442695
        %v5437 = vpow.pop %v5436
        %v5438 = vmul.f32 %v5241, 1.442695
        %v5439 = vpow.pop %v5438
        %v5440 = vmul.f32 %v5242, 1.442695
        %v5441 = vpow.pop %v5440
        %v5442 = vmul.f32 %v5243, 1.442695
        %v5443 = vpow.pop %v5442
        %v5444 = vmul.f32 %v5244, 1.442695
        %v5445 = vpow.pop %v5444
        %v5446 = vmul.f32 %v5245, 1.442695
        %v5447 = vpow.pop %v5446
        %v5448 = vmul.f32 %v5246, 1.442695
        %v5449 = vpow.pop %v5448
        %v5450 = vmul.f32 %v5247, 1.442695
        %v5451 = vpow.pop %v5450
        %v5452 = vmul.f32 %v5248, 1.442695
        %v5453 = vpow.pop %v5452
        %v5454 = vmul.f32 %v5249, 1.442695
        %v5455 = vpow.pop %v5454
        %v5456 = vmul.f32 %v5250, 1.442695
        %v5457 = vpow.pop %v5456
        %v5458 = vmul.f32 %v5251, 1.442695
        %v5459 = vpow.pop %v5458
        %v5460 = vmul.f32 %v5252, 1.442695
        %v5461 = vpow.pop %v5460
        %v5462 = vmul.f32 %v5253, 1.442695
        %v5463 = vpow.pop %v5462
        %v5464 = vmul.f32 %v5254, 1.442695
        %v5465 = vpow.pop %v5464
        %v5466 = vmul.f32 %v5255, 1.442695
        %v5467 = vpow.pop %v5466
        %v5468 = vmul.f32 %v5256, 1.442695
        %v5469 = vpow.pop %v5468
        %v5470 = vmul.f32 %v5257, 1.442695
        %v5471 = vpow.pop %v5470
        %v5472 = vmul.f32 %v5258, 1.442695
        %v5473 = vpow.pop %v5472
        %v5474 = vmul.f32 %v5259, 1.442695
        %v5475 = vpow.pop %v5474
        %v5476 = vmul.f32 %v5260, 1.442695
        %v5477 = vpow.pop %v5476
        %v5478 = vmul.f32 %v5261, 1.442695
        %v5479 = vpow.pop %v5478
        %v5480 = vmul.f32 %v5262, 1.442695
        %v5481 = vpow.pop %v5480
        %v5482 = vmul.f32 %v5263, 1.442695
        %v5483 = vpow.pop %v5482
        %v5484 = vmul.f32 %v5264, 1.442695
        %v5485 = vpow.pop %v5484
        %v5486 = vmul.f32 %v5265, 1.442695
        %v5487 = vpow.pop %v5486
        %v5488 = vmul.f32 %v5266, 1.442695
        %v5489 = vpow.pop %v5488
        %v5490 = vmul.f32 %v5267, 1.442695
        %v5491 = vpow.pop %v5490
        %v5492 = vmul.f32 %v5268, 1.442695
        %v5493 = vpow.pop %v5492
        %v5494 = vmul.f32 %v5269, 1.442695
        %v5495 = vpow.pop %v5494
        %v5496 = vmul.f32 %v5270, 1.442695
        %v5497 = vpow.pop %v5496
        %v5498 = vmul.f32 %v5271, 1.442695
        %v5499 = vpow.pop %v5498
        %v5500 = vmul.f32 %v5272, 1.442695
        %v5501 = vpow.pop %v5500
        %v5502 = vmul.f32 %v5273, 1.442695
        %v5503 = vpow.pop %v5502
        %v5504 = vmul.f32 %v5274, 1.442695
        %v5505 = vpow.pop %v5504
        %v5506 = vmul.f32 %v5275, 1.442695
        %v5507 = vpow.pop %v5506
        %v5508 = vmul.f32 %v5276, 1.442695
        %v5509 = vpow.pop %v5508
        %v5510 = vmul.f32 %v5277, 1.442695
        %v5511 = vpow.pop %v5510
        %v5512 = vmul.f32 %v5278, 1.442695
        %v5513 = vpow.pop %v5512
        %v5514 = vmul.f32 %v5279, 1.442695
        %v5515 = vpow.pop %v5514
        %v5516 = vmul.f32 %v5280, 1.442695
        %v5517 = vpow.pop %v5516
        %v5518 = vmul.f32 %v5281, 1.442695
        %v5519 = vpow.pop %v5518
        %v5520 = vmul.f32 %v5282, 1.442695
        %v5521 = vpow.pop %v5520
        %v5522 = vmul.f32 %v5283, 1.442695
        %v5523 = vpow.pop %v5522
        %v5524 = vmul.f32 %v5284, 1.442695
        %v5525 = vpow.pop %v5524
        %v5526 = vmul.f32 %v5285, 1.442695
        %v5527 = vpow.pop %v5526
        %v5528 = vmul.f32 %v5286, 1.442695
        %v5529 = vpow.pop %v5528
        %v5530 = vmul.f32 %v5287, 1.442695
        %v5531 = vpow.pop %v5530
        %v5532 = vmul.f32 %v5288, 1.442695
        %v5533 = vpow.pop %v5532
        %v5534 = vmul.f32 %v5289, 1.442695
        %v5535 = vpow.pop %v5534
        %v5536 = vmul.f32 %v5290, 1.442695
        %v5537 = vpow.pop %v5536
        %v5538 = vmul.f32 %v5291, 1.442695
        %v5539 = vpow.pop %v5538
        %v5540 = vmul.f32 %v5292, 1.442695
        %v5541 = vpow.pop %v5540
        %v5542 = vmul.f32 %v5293, 1.442695
        %v5543 = vpow.pop %v5542
        %v5544 = vmul.f32 %v5294, 1.442695
        %v5545 = vpow.pop %v5544
        %v5546 = vmul.f32 %v5295, 1.442695
        %v5547 = vpow.pop %v5546
        %v5548 = vmul.f32 %v5296, 1.442695
        %v5549 = vpow.pop %v5548
        %v5550 = vmul.f32 %v5297, 1.442695
        %v5551 = vpow.pop %v5550
        %v5552 = vmul.f32 %v5298, 1.442695
        %v5553 = vpow.pop %v5552
        %v5554 = vmul.f32 %v5299, 1.442695
        %v5555 = vpow.pop %v5554
        %v5556 = vadd.f32 %v5301, 1.0
        %v5557 = vlog2.pop %v5556
        %v5558 = vmul.f32 %v5557, 0.6931472
        %v5559 = vmul.f32 -0.5, %v5301
        %v5560 = vadd.f32 %v5559, 1.0
        %v5561 = vmul.f32 %v5560, %v5301
        %v5562 = vand.u32 2147483647, %v5301
        %vm5563 = vcmp.lt.f32.partialorder %v5562, 0.0004427343
        %v5564 = vsel %vm5563, %v5561, %v5558
        %v5565 = vadd.f32 %v5303, 1.0
        %v5566 = vlog2.pop %v5565
        %v5567 = vmul.f32 %v5566, 0.6931472
        %v5568 = vmul.f32 -0.5, %v5303
        %v5569 = vadd.f32 %v5568, 1.0
        %v5570 = vmul.f32 %v5569, %v5303
        %v5571 = vand.u32 2147483647, %v5303
        %vm5572 = vcmp.lt.f32.partialorder %v5571, 0.0004427343
        %v5573 = vsel %vm5572, %v5570, %v5567
        %v5574 = vadd.f32 %v5305, 1.0
        %v5575 = vlog2.pop %v5574
        %v5576 = vmul.f32 %v5575, 0.6931472
        %v5577 = vmul.f32 -0.5, %v5305
        %v5578 = vadd.f32 %v5577, 1.0
        %v5579 = vmul.f32 %v5578, %v5305
        %v5580 = vand.u32 2147483647, %v5305
        %vm5581 = vcmp.lt.f32.partialorder %v5580, 0.0004427343
        %v5582 = vsel %vm5581, %v5579, %v5576
        %v5583 = vadd.f32 %v5307, 1.0
        %v5584 = vlog2.pop %v5583
        %v5585 = vmul.f32 %v5584, 0.6931472
        %v5586 = vmul.f32 -0.5, %v5307
        %v5587 = vadd.f32 %v5586, 1.0
        %v5588 = vmul.f32 %v5587, %v5307
        %v5589 = vand.u32 2147483647, %v5307
        %vm5590 = vcmp.lt.f32.partialorder %v5589, 0.0004427343
        %v5591 = vsel %vm5590, %v5588, %v5585
        %v5592 = vadd.f32 %v5309, 1.0
        %v5593 = vlog2.pop %v5592
        %v5594 = vmul.f32 %v5593, 0.6931472
        %v5595 = vmul.f32 -0.5, %v5309
        %v5596 = vadd.f32 %v5595, 1.0
        %v5597 = vmul.f32 %v5596, %v5309
        %v5598 = vand.u32 2147483647, %v5309
        %vm5599 = vcmp.lt.f32.partialorder %v5598, 0.0004427343
        %v5600 = vsel %vm5599, %v5597, %v5594
        %v5601 = vadd.f32 %v5311, 1.0
        %v5602 = vlog2.pop %v5601
        %v5603 = vmul.f32 %v5602, 0.6931472
        %v5604 = vmul.f32 -0.5, %v5311
        %v5605 = vadd.f32 %v5604, 1.0
        %v5606 = vmul.f32 %v5605, %v5311
        %v5607 = vand.u32 2147483647, %v5311
        %vm5608 = vcmp.lt.f32.partialorder %v5607, 0.0004427343
        %v5609 = vsel %vm5608, %v5606, %v5603
        %v5610 = vadd.f32 %v5313, 1.0
        %v5611 = vlog2.pop %v5610
        %v5612 = vmul.f32 %v5611, 0.6931472
        %v5613 = vmul.f32 -0.5, %v5313
        %v5614 = vadd.f32 %v5613, 1.0
        %v5615 = vmul.f32 %v5614, %v5313
        %v5616 = vand.u32 2147483647, %v5313
        %vm5617 = vcmp.lt.f32.partialorder %v5616, 0.0004427343
        %v5618 = vsel %vm5617, %v5615, %v5612
        %v5619 = vadd.f32 %v5315, 1.0
        %v5620 = vlog2.pop %v5619
        %v5621 = vmul.f32 %v5620, 0.6931472
        %v5622 = vmul.f32 -0.5, %v5315
        %v5623 = vadd.f32 %v5622, 1.0
        %v5624 = vmul.f32 %v5623, %v5315
        %v5625 = vand.u32 2147483647, %v5315
        %vm5626 = vcmp.lt.f32.partialorder %v5625, 0.0004427343
        %v5627 = vsel %vm5626, %v5624, %v5621
        %v5628 = vadd.f32 %v5317, 1.0
        %v5629 = vlog2.pop %v5628
        %v5630 = vmul.f32 %v5629, 0.6931472
        %v5631 = vmul.f32 -0.5, %v5317
        %v5632 = vadd.f32 %v5631, 1.0
        %v5633 = vmul.f32 %v5632, %v5317
        %v5634 = vand.u32 2147483647, %v5317
        %vm5635 = vcmp.lt.f32.partialorder %v5634, 0.0004427343
        %v5636 = vsel %vm5635, %v5633, %v5630
        %v5637 = vadd.f32 %v5319, 1.0
        %v5638 = vlog2.pop %v5637
        %v5639 = vmul.f32 %v5638, 0.6931472
        %v5640 = vmul.f32 -0.5, %v5319
        %v5641 = vadd.f32 %v5640, 1.0
        %v5642 = vmul.f32 %v5641, %v5319
        %v5643 = vand.u32 2147483647, %v5319
        %vm5644 = vcmp.lt.f32.partialorder %v5643, 0.0004427343
        %v5645 = vsel %vm5644, %v5642, %v5639
        %v5646 = vadd.f32 %v5321, 1.0
        %v5647 = vlog2.pop %v5646
        %v5648 = vmul.f32 %v5647, 0.6931472
        %v5649 = vmul.f32 -0.5, %v5321
        %v5650 = vadd.f32 %v5649, 1.0
        %v5651 = vmul.f32 %v5650, %v5321
        %v5652 = vand.u32 2147483647, %v5321
        %vm5653 = vcmp.lt.f32.partialorder %v5652, 0.0004427343
        %v5654 = vsel %vm5653, %v5651, %v5648
        %v5655 = vadd.f32 %v5323, 1.0
        %v5656 = vlog2.pop %v5655
        %v5657 = vmul.f32 %v5656, 0.6931472
        %v5658 = vmul.f32 -0.5, %v5323
        %v5659 = vadd.f32 %v5658, 1.0
        %v5660 = vmul.f32 %v5659, %v5323
        %v5661 = vand.u32 2147483647, %v5323
        %vm5662 = vcmp.lt.f32.partialorder %v5661, 0.0004427343
        %v5663 = vsel %vm5662, %v5660, %v5657
        %v5664 = vadd.f32 %v5325, 1.0
        %v5665 = vlog2.pop %v5664
        %v5666 = vmul.f32 %v5665, 0.6931472
        %v5667 = vmul.f32 -0.5, %v5325
        %v5668 = vadd.f32 %v5667, 1.0
        %v5669 = vmul.f32 %v5668, %v5325
        %v5670 = vand.u32 2147483647, %v5325
        %vm5671 = vcmp.lt.f32.partialorder %v5670, 0.0004427343
        %v5672 = vsel %vm5671, %v5669, %v5666
        %v5673 = vadd.f32 %v5327, 1.0
        %v5674 = vlog2.pop %v5673
        %v5675 = vmul.f32 %v5674, 0.6931472
        %v5676 = vmul.f32 -0.5, %v5327
        %v5677 = vadd.f32 %v5676, 1.0
        %v5678 = vmul.f32 %v5677, %v5327
        %v5679 = vand.u32 2147483647, %v5327
        %vm5680 = vcmp.lt.f32.partialorder %v5679, 0.0004427343
        %v5681 = vsel %vm5680, %v5678, %v5675
        %v5682 = vadd.f32 %v5329, 1.0
        %v5683 = vlog2.pop %v5682
        %v5684 = vmul.f32 %v5683, 0.6931472
        %v5685 = vmul.f32 -0.5, %v5329
        %v5686 = vadd.f32 %v5685, 1.0
        %v5687 = vmul.f32 %v5686, %v5329
        %v5688 = vand.u32 2147483647, %v5329
        %vm5689 = vcmp.lt.f32.partialorder %v5688, 0.0004427343
        %v5690 = vsel %vm5689, %v5687, %v5684
        %v5691 = vadd.f32 %v5331, 1.0
        %v5692 = vlog2.pop %v5691
        %v5693 = vmul.f32 %v5692, 0.6931472
        %v5694 = vmul.f32 -0.5, %v5331
        %v5695 = vadd.f32 %v5694, 1.0
        %v5696 = vmul.f32 %v5695, %v5331
        %v5697 = vand.u32 2147483647, %v5331
        %vm5698 = vcmp.lt.f32.partialorder %v5697, 0.0004427343
        %v5699 = vsel %vm5698, %v5696, %v5693
        %v5700 = vadd.f32 %v5333, 1.0
        %v5701 = vlog2.pop %v5700
        %v5702 = vmul.f32 %v5701, 0.6931472
        %v5703 = vmul.f32 -0.5, %v5333
        %v5704 = vadd.f32 %v5703, 1.0
        %v5705 = vmul.f32 %v5704, %v5333
        %v5706 = vand.u32 2147483647, %v5333
        %vm5707 = vcmp.lt.f32.partialorder %v5706, 0.0004427343
        %v5708 = vsel %vm5707, %v5705, %v5702
        %v5709 = vadd.f32 %v5335, 1.0
        %v5710 = vlog2.pop %v5709
        %v5711 = vmul.f32 %v5710, 0.6931472
        %v5712 = vmul.f32 -0.5, %v5335
        %v5713 = vadd.f32 %v5712, 1.0
        %v5714 = vmul.f32 %v5713, %v5335
        %v5715 = vand.u32 2147483647, %v5335
        %vm5716 = vcmp.lt.f32.partialorder %v5715, 0.0004427343
        %v5717 = vsel %vm5716, %v5714, %v5711
        %v5718 = vadd.f32 %v5337, 1.0
        %v5719 = vlog2.pop %v5718
        %v5720 = vmul.f32 %v5719, 0.6931472
        %v5721 = vmul.f32 -0.5, %v5337
        %v5722 = vadd.f32 %v5721, 1.0
        %v5723 = vmul.f32 %v5722, %v5337
        %v5724 = vand.u32 2147483647, %v5337
        %vm5725 = vcmp.lt.f32.partialorder %v5724, 0.0004427343
        %v5726 = vsel %vm5725, %v5723, %v5720
        %v5727 = vadd.f32 %v5339, 1.0
        %v5728 = vlog2.pop %v5727
        %v5729 = vmul.f32 %v5728, 0.6931472
        %v5730 = vmul.f32 -0.5, %v5339
        %v5731 = vadd.f32 %v5730, 1.0
        %v5732 = vmul.f32 %v5731, %v5339
        %v5733 = vand.u32 2147483647, %v5339
        %vm5734 = vcmp.lt.f32.partialorder %v5733, 0.0004427343
        %v5735 = vsel %vm5734, %v5732, %v5729
        %v5736 = vadd.f32 %v5341, 1.0
        %v5737 = vlog2.pop %v5736
        %v5738 = vmul.f32 %v5737, 0.6931472
        %v5739 = vmul.f32 -0.5, %v5341
        %v5740 = vadd.f32 %v5739, 1.0
        %v5741 = vmul.f32 %v5740, %v5341
        %v5742 = vand.u32 2147483647, %v5341
        %vm5743 = vcmp.lt.f32.partialorder %v5742, 0.0004427343
        %v5744 = vsel %vm5743, %v5741, %v5738
        %v5745 = vadd.f32 %v5343, 1.0
        %v5746 = vlog2.pop %v5745
        %v5747 = vmul.f32 %v5746, 0.6931472
        %v5748 = vmul.f32 -0.5, %v5343
        %v5749 = vadd.f32 %v5748, 1.0
        %v5750 = vmul.f32 %v5749, %v5343
        %v5751 = vand.u32 2147483647, %v5343
        %vm5752 = vcmp.lt.f32.partialorder %v5751, 0.0004427343
        %v5753 = vsel %vm5752, %v5750, %v5747
        %v5754 = vadd.f32 %v5345, 1.0
        %v5755 = vlog2.pop %v5754
        %v5756 = vmul.f32 %v5755, 0.6931472
        %v5757 = vmul.f32 -0.5, %v5345
        %v5758 = vadd.f32 %v5757, 1.0
        %v5759 = vmul.f32 %v5758, %v5345
        %v5760 = vand.u32 2147483647, %v5345
        %vm5761 = vcmp.lt.f32.partialorder %v5760, 0.0004427343
        %v5762 = vsel %vm5761, %v5759, %v5756
        %v5763 = vadd.f32 %v5347, 1.0
        %v5764 = vlog2.pop %v5763
        %v5765 = vmul.f32 %v5764, 0.6931472
        %v5766 = vmul.f32 -0.5, %v5347
        %v5767 = vadd.f32 %v5766, 1.0
        %v5768 = vmul.f32 %v5767, %v5347
        %v5769 = vand.u32 2147483647, %v5347
        %vm5770 = vcmp.lt.f32.partialorder %v5769, 0.0004427343
        %v5771 = vsel %vm5770, %v5768, %v5765
        %v5772 = vadd.f32 %v5349, 1.0
        %v5773 = vlog2.pop %v5772
        %v5774 = vmul.f32 %v5773, 0.6931472
        %v5775 = vmul.f32 -0.5, %v5349
        %v5776 = vadd.f32 %v5775, 1.0
        %v5777 = vmul.f32 %v5776, %v5349
        %v5778 = vand.u32 2147483647, %v5349
        %vm5779 = vcmp.lt.f32.partialorder %v5778, 0.0004427343
        %v5780 = vsel %vm5779, %v5777, %v5774
        %v5781 = vadd.f32 %v5351, 1.0
        %v5782 = vlog2.pop %v5781
        %v5783 = vmul.f32 %v5782, 0.6931472
        %v5784 = vmul.f32 -0.5, %v5351
        %v5785 = vadd.f32 %v5784, 1.0
        %v5786 = vmul.f32 %v5785, %v5351
        %v5787 = vand.u32 2147483647, %v5351
        %vm5788 = vcmp.lt.f32.partialorder %v5787, 0.0004427343
        %v5789 = vsel %vm5788, %v5786, %v5783
        %v5790 = vadd.f32 %v5353, 1.0
        %v5791 = vlog2.pop %v5790
        %v5792 = vmul.f32 %v5791, 0.6931472
        %v5793 = vmul.f32 -0.5, %v5353
        %v5794 = vadd.f32 %v5793, 1.0
        %v5795 = vmul.f32 %v5794, %v5353
        %v5796 = vand.u32 2147483647, %v5353
        %vm5797 = vcmp.lt.f32.partialorder %v5796, 0.0004427343
        %v5798 = vsel %vm5797, %v5795, %v5792
        %v5799 = vadd.f32 %v5355, 1.0
        %v5800 = vlog2.pop %v5799
        %v5801 = vmul.f32 %v5800, 0.6931472
        %v5802 = vmul.f32 -0.5, %v5355
        %v5803 = vadd.f32 %v5802, 1.0
        %v5804 = vmul.f32 %v5803, %v5355
        %v5805 = vand.u32 2147483647, %v5355
        %vm5806 = vcmp.lt.f32.partialorder %v5805, 0.0004427343
        %v5807 = vsel %vm5806, %v5804, %v5801
        %v5808 = vadd.f32 %v5357, 1.0
        %v5809 = vlog2.pop %v5808
        %v5810 = vmul.f32 %v5809, 0.6931472
        %v5811 = vmul.f32 -0.5, %v5357
        %v5812 = vadd.f32 %v5811, 1.0
        %v5813 = vmul.f32 %v5812, %v5357
        %v5814 = vand.u32 2147483647, %v5357
        %vm5815 = vcmp.lt.f32.partialorder %v5814, 0.0004427343
        %v5816 = vsel %vm5815, %v5813, %v5810
        %v5817 = vadd.f32 %v5359, 1.0
        %v5818 = vlog2.pop %v5817
        %v5819 = vmul.f32 %v5818, 0.6931472
        %v5820 = vmul.f32 -0.5, %v5359
        %v5821 = vadd.f32 %v5820, 1.0
        %v5822 = vmul.f32 %v5821, %v5359
        %v5823 = vand.u32 2147483647, %v5359
        %vm5824 = vcmp.lt.f32.partialorder %v5823, 0.0004427343
        %v5825 = vsel %vm5824, %v5822, %v5819
        %v5826 = vadd.f32 %v5361, 1.0
        %v5827 = vlog2.pop %v5826
        %v5828 = vmul.f32 %v5827, 0.6931472
        %v5829 = vmul.f32 -0.5, %v5361
        %v5830 = vadd.f32 %v5829, 1.0
        %v5831 = vmul.f32 %v5830, %v5361
        %v5832 = vand.u32 2147483647, %v5361
        %vm5833 = vcmp.lt.f32.partialorder %v5832, 0.0004427343
        %v5834 = vsel %vm5833, %v5831, %v5828
        %v5835 = vadd.f32 %v5363, 1.0
        %v5836 = vlog2.pop %v5835
        %v5837 = vmul.f32 %v5836, 0.6931472
        %v5838 = vmul.f32 -0.5, %v5363
        %v5839 = vadd.f32 %v5838, 1.0
        %v5840 = vmul.f32 %v5839, %v5363
        %v5841 = vand.u32 2147483647, %v5363
        %vm5842 = vcmp.lt.f32.partialorder %v5841, 0.0004427343
        %v5843 = vsel %vm5842, %v5840, %v5837
        %v5844 = vadd.f32 %v5365, 1.0
        %v5845 = vlog2.pop %v5844
        %v5846 = vmul.f32 %v5845, 0.6931472
        %v5847 = vmul.f32 -0.5, %v5365
        %v5848 = vadd.f32 %v5847, 1.0
        %v5849 = vmul.f32 %v5848, %v5365
        %v5850 = vand.u32 2147483647, %v5365
        %vm5851 = vcmp.lt.f32.partialorder %v5850, 0.0004427343
        %v5852 = vsel %vm5851, %v5849, %v5846
        %v5853 = vadd.f32 %v5367, 1.0
        %v5854 = vlog2.pop %v5853
        %v5855 = vmul.f32 %v5854, 0.6931472
        %v5856 = vmul.f32 -0.5, %v5367
        %v5857 = vadd.f32 %v5856, 1.0
        %v5858 = vmul.f32 %v5857, %v5367
        %v5859 = vand.u32 2147483647, %v5367
        %vm5860 = vcmp.lt.f32.partialorder %v5859, 0.0004427343
        %v5861 = vsel %vm5860, %v5858, %v5855
        %v5862 = vadd.f32 %v5369, 1.0
        %v5863 = vlog2.pop %v5862
        %v5864 = vmul.f32 %v5863, 0.6931472
        %v5865 = vmul.f32 -0.5, %v5369
        %v5866 = vadd.f32 %v5865, 1.0
        %v5867 = vmul.f32 %v5866, %v5369
        %v5868 = vand.u32 2147483647, %v5369
        %vm5869 = vcmp.lt.f32.partialorder %v5868, 0.0004427343
        %v5870 = vsel %vm5869, %v5867, %v5864
        %v5871 = vadd.f32 %v5371, 1.0
        %v5872 = vlog2.pop %v5871
        %v5873 = vmul.f32 %v5872, 0.6931472
        %v5874 = vmul.f32 -0.5, %v5371
        %v5875 = vadd.f32 %v5874, 1.0
        %v5876 = vmul.f32 %v5875, %v5371
        %v5877 = vand.u32 2147483647, %v5371
        %vm5878 = vcmp.lt.f32.partialorder %v5877, 0.0004427343
        %v5879 = vsel %vm5878, %v5876, %v5873
        %v5880 = vadd.f32 %v5373, 1.0
        %v5881 = vlog2.pop %v5880
        %v5882 = vmul.f32 %v5881, 0.6931472
        %v5883 = vmul.f32 -0.5, %v5373
        %v5884 = vadd.f32 %v5883, 1.0
        %v5885 = vmul.f32 %v5884, %v5373
        %v5886 = vand.u32 2147483647, %v5373
        %vm5887 = vcmp.lt.f32.partialorder %v5886, 0.0004427343
        %v5888 = vsel %vm5887, %v5885, %v5882
        %v5889 = vadd.f32 %v5375, 1.0
        %v5890 = vlog2.pop %v5889
        %v5891 = vmul.f32 %v5890, 0.6931472
        %v5892 = vmul.f32 -0.5, %v5375
        %v5893 = vadd.f32 %v5892, 1.0
        %v5894 = vmul.f32 %v5893, %v5375
        %v5895 = vand.u32 2147483647, %v5375
        %vm5896 = vcmp.lt.f32.partialorder %v5895, 0.0004427343
        %v5897 = vsel %vm5896, %v5894, %v5891
        %v5898 = vadd.f32 %v5377, 1.0
        %v5899 = vlog2.pop %v5898
        %v5900 = vmul.f32 %v5899, 0.6931472
        %v5901 = vmul.f32 -0.5, %v5377
        %v5902 = vadd.f32 %v5901, 1.0
        %v5903 = vmul.f32 %v5902, %v5377
        %v5904 = vand.u32 2147483647, %v5377
        %vm5905 = vcmp.lt.f32.partialorder %v5904, 0.0004427343
        %v5906 = vsel %vm5905, %v5903, %v5900
        %v5907 = vadd.f32 %v5379, 1.0
        %v5908 = vlog2.pop %v5907
        %v5909 = vmul.f32 %v5908, 0.6931472
        %v5910 = vmul.f32 -0.5, %v5379
        %v5911 = vadd.f32 %v5910, 1.0
        %v5912 = vmul.f32 %v5911, %v5379
        %v5913 = vand.u32 2147483647, %v5379
        %vm5914 = vcmp.lt.f32.partialorder %v5913, 0.0004427343
        %v5915 = vsel %vm5914, %v5912, %v5909
        %v5916 = vadd.f32 %v5381, 1.0
        %v5917 = vlog2.pop %v5916
        %v5918 = vmul.f32 %v5917, 0.6931472
        %v5919 = vmul.f32 -0.5, %v5381
        %v5920 = vadd.f32 %v5919, 1.0
        %v5921 = vmul.f32 %v5920, %v5381
        %v5922 = vand.u32 2147483647, %v5381
        %vm5923 = vcmp.lt.f32.partialorder %v5922, 0.0004427343
        %v5924 = vsel %vm5923, %v5921, %v5918
        %v5925 = vadd.f32 %v5383, 1.0
        %v5926 = vlog2.pop %v5925
        %v5927 = vmul.f32 %v5926, 0.6931472
        %v5928 = vmul.f32 -0.5, %v5383
        %v5929 = vadd.f32 %v5928, 1.0
        %v5930 = vmul.f32 %v5929, %v5383
        %v5931 = vand.u32 2147483647, %v5383
        %vm5932 = vcmp.lt.f32.partialorder %v5931, 0.0004427343
        %v5933 = vsel %vm5932, %v5930, %v5927
        %v5934 = vadd.f32 %v5385, 1.0
        %v5935 = vlog2.pop %v5934
        %v5936 = vmul.f32 %v5935, 0.6931472
        %v5937 = vmul.f32 -0.5, %v5385
        %v5938 = vadd.f32 %v5937, 1.0
        %v5939 = vmul.f32 %v5938, %v5385
        %v5940 = vand.u32 2147483647, %v5385
        %vm5941 = vcmp.lt.f32.partialorder %v5940, 0.0004427343
        %v5942 = vsel %vm5941, %v5939, %v5936
        %v5943 = vadd.f32 %v5387, 1.0
        %v5944 = vlog2.pop %v5943
        %v5945 = vmul.f32 %v5944, 0.6931472
        %v5946 = vmul.f32 -0.5, %v5387
        %v5947 = vadd.f32 %v5946, 1.0
        %v5948 = vmul.f32 %v5947, %v5387
        %v5949 = vand.u32 2147483647, %v5387
        %vm5950 = vcmp.lt.f32.partialorder %v5949, 0.0004427343
        %v5951 = vsel %vm5950, %v5948, %v5945
        %v5952 = vadd.f32 %v5389, 1.0
        %v5953 = vlog2.pop %v5952
        %v5954 = vmul.f32 %v5953, 0.6931472
        %v5955 = vmul.f32 -0.5, %v5389
        %v5956 = vadd.f32 %v5955, 1.0
        %v5957 = vmul.f32 %v5956, %v5389
        %v5958 = vand.u32 2147483647, %v5389
        %vm5959 = vcmp.lt.f32.partialorder %v5958, 0.0004427343
        %v5960 = vsel %vm5959, %v5957, %v5954
        %v5961 = vadd.f32 %v5391, 1.0
        %v5962 = vlog2.pop %v5961
        %v5963 = vmul.f32 %v5962, 0.6931472
        %v5964 = vmul.f32 -0.5, %v5391
        %v5965 = vadd.f32 %v5964, 1.0
        %v5966 = vmul.f32 %v5965, %v5391
        %v5967 = vand.u32 2147483647, %v5391
        %vm5968 = vcmp.lt.f32.partialorder %v5967, 0.0004427343
        %v5969 = vsel %vm5968, %v5966, %v5963
        %v5970 = vadd.f32 %v5393, 1.0
        %v5971 = vlog2.pop %v5970
        %v5972 = vmul.f32 %v5971, 0.6931472
        %v5973 = vmul.f32 -0.5, %v5393
        %v5974 = vadd.f32 %v5973, 1.0
        %v5975 = vmul.f32 %v5974, %v5393
        %v5976 = vand.u32 2147483647, %v5393
        %vm5977 = vcmp.lt.f32.partialorder %v5976, 0.0004427343
        %v5978 = vsel %vm5977, %v5975, %v5972
        %v5979 = vadd.f32 %v5395, 1.0
        %v5980 = vlog2.pop %v5979
        %v5981 = vmul.f32 %v5980, 0.6931472
        %v5982 = vmul.f32 -0.5, %v5395
        %v5983 = vadd.f32 %v5982, 1.0
        %v5984 = vmul.f32 %v5983, %v5395
        %v5985 = vand.u32 2147483647, %v5395
        %vm5986 = vcmp.lt.f32.partialorder %v5985, 0.0004427343
        %v5987 = vsel %vm5986, %v5984, %v5981
        %v5988 = vadd.f32 %v5397, 1.0
        %v5989 = vlog2.pop %v5988
        %v5990 = vmul.f32 %v5989, 0.6931472
        %v5991 = vmul.f32 -0.5, %v5397
        %v5992 = vadd.f32 %v5991, 1.0
        %v5993 = vmul.f32 %v5992, %v5397
        %v5994 = vand.u32 2147483647, %v5397
        %vm5995 = vcmp.lt.f32.partialorder %v5994, 0.0004427343
        %v5996 = vsel %vm5995, %v5993, %v5990
        %v5997 = vadd.f32 %v5399, 1.0
        %v5998 = vlog2.pop %v5997
        %v5999 = vmul.f32 %v5998, 0.6931472
        %v6000 = vmul.f32 -0.5, %v5399
        %v6001 = vadd.f32 %v6000, 1.0
        %v6002 = vmul.f32 %v6001, %v5399
        %v6003 = vand.u32 2147483647, %v5399
        %vm6004 = vcmp.lt.f32.partialorder %v6003, 0.0004427343
        %v6005 = vsel %vm6004, %v6002, %v5999
        %v6006 = vadd.f32 %v5401, 1.0
        %v6007 = vlog2.pop %v6006
        %v6008 = vmul.f32 %v6007, 0.6931472
        %v6009 = vmul.f32 -0.5, %v5401
        %v6010 = vadd.f32 %v6009, 1.0
        %v6011 = vmul.f32 %v6010, %v5401
        %v6012 = vand.u32 2147483647, %v5401
        %vm6013 = vcmp.lt.f32.partialorder %v6012, 0.0004427343
        %v6014 = vsel %vm6013, %v6011, %v6008
        %v6015 = vadd.f32 %v5403, 1.0
        %v6016 = vlog2.pop %v6015
        %v6017 = vmul.f32 %v6016, 0.6931472
        %v6018 = vmul.f32 -0.5, %v5403
        %v6019 = vadd.f32 %v6018, 1.0
        %v6020 = vmul.f32 %v6019, %v5403
        %v6021 = vand.u32 2147483647, %v5403
        %vm6022 = vcmp.lt.f32.partialorder %v6021, 0.0004427343
        %v6023 = vsel %vm6022, %v6020, %v6017
        %v6024 = vadd.f32 %v5405, 1.0
        %v6025 = vlog2.pop %v6024
        %v6026 = vmul.f32 %v6025, 0.6931472
        %v6027 = vmul.f32 -0.5, %v5405
        %v6028 = vadd.f32 %v6027, 1.0
        %v6029 = vmul.f32 %v6028, %v5405
        %v6030 = vand.u32 2147483647, %v5405
        %vm6031 = vcmp.lt.f32.partialorder %v6030, 0.0004427343
        %v6032 = vsel %vm6031, %v6029, %v6026
        %v6033 = vadd.f32 %v5407, 1.0
        %v6034 = vlog2.pop %v6033
        %v6035 = vmul.f32 %v6034, 0.6931472
        %v6036 = vmul.f32 -0.5, %v5407
        %v6037 = vadd.f32 %v6036, 1.0
        %v6038 = vmul.f32 %v6037, %v5407
        %v6039 = vand.u32 2147483647, %v5407
        %vm6040 = vcmp.lt.f32.partialorder %v6039, 0.0004427343
        %v6041 = vsel %vm6040, %v6038, %v6035
        %v6042 = vadd.f32 %v5409, 1.0
        %v6043 = vlog2.pop %v6042
        %v6044 = vmul.f32 %v6043, 0.6931472
        %v6045 = vmul.f32 -0.5, %v5409
        %v6046 = vadd.f32 %v6045, 1.0
        %v6047 = vmul.f32 %v6046, %v5409
        %v6048 = vand.u32 2147483647, %v5409
        %vm6049 = vcmp.lt.f32.partialorder %v6048, 0.0004427343
        %v6050 = vsel %vm6049, %v6047, %v6044
        %v6051 = vadd.f32 %v5411, 1.0
        %v6052 = vlog2.pop %v6051
        %v6053 = vmul.f32 %v6052, 0.6931472
        %v6054 = vmul.f32 -0.5, %v5411
        %v6055 = vadd.f32 %v6054, 1.0
        %v6056 = vmul.f32 %v6055, %v5411
        %v6057 = vand.u32 2147483647, %v5411
        %vm6058 = vcmp.lt.f32.partialorder %v6057, 0.0004427343
        %v6059 = vsel %vm6058, %v6056, %v6053
        %v6060 = vadd.f32 %v5413, 1.0
        %v6061 = vlog2.pop %v6060
        %v6062 = vmul.f32 %v6061, 0.6931472
        %v6063 = vmul.f32 -0.5, %v5413
        %v6064 = vadd.f32 %v6063, 1.0
        %v6065 = vmul.f32 %v6064, %v5413
        %v6066 = vand.u32 2147483647, %v5413
        %vm6067 = vcmp.lt.f32.partialorder %v6066, 0.0004427343
        %v6068 = vsel %vm6067, %v6065, %v6062
        %v6069 = vadd.f32 %v5415, 1.0
        %v6070 = vlog2.pop %v6069
        %v6071 = vmul.f32 %v6070, 0.6931472
        %v6072 = vmul.f32 -0.5, %v5415
        %v6073 = vadd.f32 %v6072, 1.0
        %v6074 = vmul.f32 %v6073, %v5415
        %v6075 = vand.u32 2147483647, %v5415
        %vm6076 = vcmp.lt.f32.partialorder %v6075, 0.0004427343
        %v6077 = vsel %vm6076, %v6074, %v6071
        %v6078 = vadd.f32 %v5417, 1.0
        %v6079 = vlog2.pop %v6078
        %v6080 = vmul.f32 %v6079, 0.6931472
        %v6081 = vmul.f32 -0.5, %v5417
        %v6082 = vadd.f32 %v6081, 1.0
        %v6083 = vmul.f32 %v6082, %v5417
        %v6084 = vand.u32 2147483647, %v5417
        %vm6085 = vcmp.lt.f32.partialorder %v6084, 0.0004427343
        %v6086 = vsel %vm6085, %v6083, %v6080
        %v6087 = vadd.f32 %v5419, 1.0
        %v6088 = vlog2.pop %v6087
        %v6089 = vmul.f32 %v6088, 0.6931472
        %v6090 = vmul.f32 -0.5, %v5419
        %v6091 = vadd.f32 %v6090, 1.0
        %v6092 = vmul.f32 %v6091, %v5419
        %v6093 = vand.u32 2147483647, %v5419
        %vm6094 = vcmp.lt.f32.partialorder %v6093, 0.0004427343
        %v6095 = vsel %vm6094, %v6092, %v6089
        %v6096 = vadd.f32 %v5421, 1.0
        %v6097 = vlog2.pop %v6096
        %v6098 = vmul.f32 %v6097, 0.6931472
        %v6099 = vmul.f32 -0.5, %v5421
        %v6100 = vadd.f32 %v6099, 1.0
        %v6101 = vmul.f32 %v6100, %v5421
        %v6102 = vand.u32 2147483647, %v5421
        %vm6103 = vcmp.lt.f32.partialorder %v6102, 0.0004427343
        %v6104 = vsel %vm6103, %v6101, %v6098
        %v6105 = vadd.f32 %v5423, 1.0
        %v6106 = vlog2.pop %v6105
        %v6107 = vmul.f32 %v6106, 0.6931472
        %v6108 = vmul.f32 -0.5, %v5423
        %v6109 = vadd.f32 %v6108, 1.0
        %v6110 = vmul.f32 %v6109, %v5423
        %v6111 = vand.u32 2147483647, %v5423
        %vm6112 = vcmp.lt.f32.partialorder %v6111, 0.0004427343
        %v6113 = vsel %vm6112, %v6110, %v6107
        %v6114 = vadd.f32 %v5425, 1.0
        %v6115 = vlog2.pop %v6114
        %v6116 = vmul.f32 %v6115, 0.6931472
        %v6117 = vmul.f32 -0.5, %v5425
        %v6118 = vadd.f32 %v6117, 1.0
        %v6119 = vmul.f32 %v6118, %v5425
        %v6120 = vand.u32 2147483647, %v5425
        %vm6121 = vcmp.lt.f32.partialorder %v6120, 0.0004427343
        %v6122 = vsel %vm6121, %v6119, %v6116
        %v6123 = vadd.f32 %v5427, 1.0
        %v6124 = vlog2.pop %v6123
        %v6125 = vmul.f32 %v6124, 0.6931472
        %v6126 = vmul.f32 -0.5, %v5427
        %v6127 = vadd.f32 %v6126, 1.0
        %v6128 = vmul.f32 %v6127, %v5427
        %v6129 = vand.u32 2147483647, %v5427
        %vm6130 = vcmp.lt.f32.partialorder %v6129, 0.0004427343
        %v6131 = vsel %vm6130, %v6128, %v6125
        %v6132 = vadd.f32 %v5429, 1.0
        %v6133 = vlog2.pop %v6132
        %v6134 = vmul.f32 %v6133, 0.6931472
        %v6135 = vmul.f32 -0.5, %v5429
        %v6136 = vadd.f32 %v6135, 1.0
        %v6137 = vmul.f32 %v6136, %v5429
        %v6138 = vand.u32 2147483647, %v5429
        %vm6139 = vcmp.lt.f32.partialorder %v6138, 0.0004427343
        %v6140 = vsel %vm6139, %v6137, %v6134
        %v6141 = vadd.f32 %v5431, 1.0
        %v6142 = vlog2.pop %v6141
        %v6143 = vmul.f32 %v6142, 0.6931472
        %v6144 = vmul.f32 -0.5, %v5431
        %v6145 = vadd.f32 %v6144, 1.0
        %v6146 = vmul.f32 %v6145, %v5431
        %v6147 = vand.u32 2147483647, %v5431
        %vm6148 = vcmp.lt.f32.partialorder %v6147, 0.0004427343
        %v6149 = vsel %vm6148, %v6146, %v6143
        %v6150 = vadd.f32 %v5433, 1.0
        %v6151 = vlog2.pop %v6150
        %v6152 = vmul.f32 %v6151, 0.6931472
        %v6153 = vmul.f32 -0.5, %v5433
        %v6154 = vadd.f32 %v6153, 1.0
        %v6155 = vmul.f32 %v6154, %v5433
        %v6156 = vand.u32 2147483647, %v5433
        %vm6157 = vcmp.lt.f32.partialorder %v6156, 0.0004427343
        %v6158 = vsel %vm6157, %v6155, %v6152
        %v6159 = vadd.f32 %v5435, 1.0
        %v6160 = vlog2.pop %v6159
        %v6161 = vmul.f32 %v6160, 0.6931472
        %v6162 = vmul.f32 -0.5, %v5435
        %v6163 = vadd.f32 %v6162, 1.0
        %v6164 = vmul.f32 %v6163, %v5435
        %v6165 = vand.u32 2147483647, %v5435
        %vm6166 = vcmp.lt.f32.partialorder %v6165, 0.0004427343
        %v6167 = vsel %vm6166, %v6164, %v6161
        %v6168 = vadd.f32 %v5437, 1.0
        %v6169 = vlog2.pop %v6168
        %v6170 = vmul.f32 %v6169, 0.6931472
        %v6171 = vmul.f32 -0.5, %v5437
        %v6172 = vadd.f32 %v6171, 1.0
        %v6173 = vmul.f32 %v6172, %v5437
        %v6174 = vand.u32 2147483647, %v5437
        %vm6175 = vcmp.lt.f32.partialorder %v6174, 0.0004427343
        %v6176 = vsel %vm6175, %v6173, %v6170
        %v6177 = vadd.f32 %v5439, 1.0
        %v6178 = vlog2.pop %v6177
        %v6179 = vmul.f32 %v6178, 0.6931472
        %v6180 = vmul.f32 -0.5, %v5439
        %v6181 = vadd.f32 %v6180, 1.0
        %v6182 = vmul.f32 %v6181, %v5439
        %v6183 = vand.u32 2147483647, %v5439
        %vm6184 = vcmp.lt.f32.partialorder %v6183, 0.0004427343
        %v6185 = vsel %vm6184, %v6182, %v6179
        %v6186 = vadd.f32 %v5441, 1.0
        %v6187 = vlog2.pop %v6186
        %v6188 = vmul.f32 %v6187, 0.6931472
        %v6189 = vmul.f32 -0.5, %v5441
        %v6190 = vadd.f32 %v6189, 1.0
        %v6191 = vmul.f32 %v6190, %v5441
        %v6192 = vand.u32 2147483647, %v5441
        %vm6193 = vcmp.lt.f32.partialorder %v6192, 0.0004427343
        %v6194 = vsel %vm6193, %v6191, %v6188
        %v6195 = vadd.f32 %v5443, 1.0
        %v6196 = vlog2.pop %v6195
        %v6197 = vmul.f32 %v6196, 0.6931472
        %v6198 = vmul.f32 -0.5, %v5443
        %v6199 = vadd.f32 %v6198, 1.0
        %v6200 = vmul.f32 %v6199, %v5443
        %v6201 = vand.u32 2147483647, %v5443
        %vm6202 = vcmp.lt.f32.partialorder %v6201, 0.0004427343
        %v6203 = vsel %vm6202, %v6200, %v6197
        %v6204 = vadd.f32 %v5445, 1.0
        %v6205 = vlog2.pop %v6204
        %v6206 = vmul.f32 %v6205, 0.6931472
        %v6207 = vmul.f32 -0.5, %v5445
        %v6208 = vadd.f32 %v6207, 1.0
        %v6209 = vmul.f32 %v6208, %v5445
        %v6210 = vand.u32 2147483647, %v5445
        %vm6211 = vcmp.lt.f32.partialorder %v6210, 0.0004427343
        %v6212 = vsel %vm6211, %v6209, %v6206
        %v6213 = vadd.f32 %v5447, 1.0
        %v6214 = vlog2.pop %v6213
        %v6215 = vmul.f32 %v6214, 0.6931472
        %v6216 = vmul.f32 -0.5, %v5447
        %v6217 = vadd.f32 %v6216, 1.0
        %v6218 = vmul.f32 %v6217, %v5447
        %v6219 = vand.u32 2147483647, %v5447
        %vm6220 = vcmp.lt.f32.partialorder %v6219, 0.0004427343
        %v6221 = vsel %vm6220, %v6218, %v6215
        %v6222 = vadd.f32 %v5449, 1.0
        %v6223 = vlog2.pop %v6222
        %v6224 = vmul.f32 %v6223, 0.6931472
        %v6225 = vmul.f32 -0.5, %v5449
        %v6226 = vadd.f32 %v6225, 1.0
        %v6227 = vmul.f32 %v6226, %v5449
        %v6228 = vand.u32 2147483647, %v5449
        %vm6229 = vcmp.lt.f32.partialorder %v6228, 0.0004427343
        %v6230 = vsel %vm6229, %v6227, %v6224
        %v6231 = vadd.f32 %v5451, 1.0
        %v6232 = vlog2.pop %v6231
        %v6233 = vmul.f32 %v6232, 0.6931472
        %v6234 = vmul.f32 -0.5, %v5451
        %v6235 = vadd.f32 %v6234, 1.0
        %v6236 = vmul.f32 %v6235, %v5451
        %v6237 = vand.u32 2147483647, %v5451
        %vm6238 = vcmp.lt.f32.partialorder %v6237, 0.0004427343
        %v6239 = vsel %vm6238, %v6236, %v6233
        %v6240 = vadd.f32 %v5453, 1.0
        %v6241 = vlog2.pop %v6240
        %v6242 = vmul.f32 %v6241, 0.6931472
        %v6243 = vmul.f32 -0.5, %v5453
        %v6244 = vadd.f32 %v6243, 1.0
        %v6245 = vmul.f32 %v6244, %v5453
        %v6246 = vand.u32 2147483647, %v5453
        %vm6247 = vcmp.lt.f32.partialorder %v6246, 0.0004427343
        %v6248 = vsel %vm6247, %v6245, %v6242
        %v6249 = vadd.f32 %v5455, 1.0
        %v6250 = vlog2.pop %v6249
        %v6251 = vmul.f32 %v6250, 0.6931472
        %v6252 = vmul.f32 -0.5, %v5455
        %v6253 = vadd.f32 %v6252, 1.0
        %v6254 = vmul.f32 %v6253, %v5455
        %v6255 = vand.u32 2147483647, %v5455
        %vm6256 = vcmp.lt.f32.partialorder %v6255, 0.0004427343
        %v6257 = vsel %vm6256, %v6254, %v6251
        %v6258 = vadd.f32 %v5457, 1.0
        %v6259 = vlog2.pop %v6258
        %v6260 = vmul.f32 %v6259, 0.6931472
        %v6261 = vmul.f32 -0.5, %v5457
        %v6262 = vadd.f32 %v6261, 1.0
        %v6263 = vmul.f32 %v6262, %v5457
        %v6264 = vand.u32 2147483647, %v5457
        %vm6265 = vcmp.lt.f32.partialorder %v6264, 0.0004427343
        %v6266 = vsel %vm6265, %v6263, %v6260
        %v6267 = vadd.f32 %v5459, 1.0
        %v6268 = vlog2.pop %v6267
        %v6269 = vmul.f32 %v6268, 0.6931472
        %v6270 = vmul.f32 -0.5, %v5459
        %v6271 = vadd.f32 %v6270, 1.0
        %v6272 = vmul.f32 %v6271, %v5459
        %v6273 = vand.u32 2147483647, %v5459
        %vm6274 = vcmp.lt.f32.partialorder %v6273, 0.0004427343
        %v6275 = vsel %vm6274, %v6272, %v6269
        %v6276 = vadd.f32 %v5461, 1.0
        %v6277 = vlog2.pop %v6276
        %v6278 = vmul.f32 %v6277, 0.6931472
        %v6279 = vmul.f32 -0.5, %v5461
        %v6280 = vadd.f32 %v6279, 1.0
        %v6281 = vmul.f32 %v6280, %v5461
        %v6282 = vand.u32 2147483647, %v5461
        %vm6283 = vcmp.lt.f32.partialorder %v6282, 0.0004427343
        %v6284 = vsel %vm6283, %v6281, %v6278
        %v6285 = vadd.f32 %v5463, 1.0
        %v6286 = vlog2.pop %v6285
        %v6287 = vmul.f32 %v6286, 0.6931472
        %v6288 = vmul.f32 -0.5, %v5463
        %v6289 = vadd.f32 %v6288, 1.0
        %v6290 = vmul.f32 %v6289, %v5463
        %v6291 = vand.u32 2147483647, %v5463
        %vm6292 = vcmp.lt.f32.partialorder %v6291, 0.0004427343
        %v6293 = vsel %vm6292, %v6290, %v6287
        %v6294 = vadd.f32 %v5465, 1.0
        %v6295 = vlog2.pop %v6294
        %v6296 = vmul.f32 %v6295, 0.6931472
        %v6297 = vmul.f32 -0.5, %v5465
        %v6298 = vadd.f32 %v6297, 1.0
        %v6299 = vmul.f32 %v6298, %v5465
        %v6300 = vand.u32 2147483647, %v5465
        %vm6301 = vcmp.lt.f32.partialorder %v6300, 0.0004427343
        %v6302 = vsel %vm6301, %v6299, %v6296
        %v6303 = vadd.f32 %v5467, 1.0
        %v6304 = vlog2.pop %v6303
        %v6305 = vmul.f32 %v6304, 0.6931472
        %v6306 = vmul.f32 -0.5, %v5467
        %v6307 = vadd.f32 %v6306, 1.0
        %v6308 = vmul.f32 %v6307, %v5467
        %v6309 = vand.u32 2147483647, %v5467
        %vm6310 = vcmp.lt.f32.partialorder %v6309, 0.0004427343
        %v6311 = vsel %vm6310, %v6308, %v6305
        %v6312 = vadd.f32 %v5469, 1.0
        %v6313 = vlog2.pop %v6312
        %v6314 = vmul.f32 %v6313, 0.6931472
        %v6315 = vmul.f32 -0.5, %v5469
        %v6316 = vadd.f32 %v6315, 1.0
        %v6317 = vmul.f32 %v6316, %v5469
        %v6318 = vand.u32 2147483647, %v5469
        %vm6319 = vcmp.lt.f32.partialorder %v6318, 0.0004427343
        %v6320 = vsel %vm6319, %v6317, %v6314
        %v6321 = vadd.f32 %v5471, 1.0
        %v6322 = vlog2.pop %v6321
        %v6323 = vmul.f32 %v6322, 0.6931472
        %v6324 = vmul.f32 -0.5, %v5471
        %v6325 = vadd.f32 %v6324, 1.0
        %v6326 = vmul.f32 %v6325, %v5471
        %v6327 = vand.u32 2147483647, %v5471
        %vm6328 = vcmp.lt.f32.partialorder %v6327, 0.0004427343
        %v6329 = vsel %vm6328, %v6326, %v6323
        %v6330 = vadd.f32 %v5473, 1.0
        %v6331 = vlog2.pop %v6330
        %v6332 = vmul.f32 %v6331, 0.6931472
        %v6333 = vmul.f32 -0.5, %v5473
        %v6334 = vadd.f32 %v6333, 1.0
        %v6335 = vmul.f32 %v6334, %v5473
        %v6336 = vand.u32 2147483647, %v5473
        %vm6337 = vcmp.lt.f32.partialorder %v6336, 0.0004427343
        %v6338 = vsel %vm6337, %v6335, %v6332
        %v6339 = vadd.f32 %v5475, 1.0
        %v6340 = vlog2.pop %v6339
        %v6341 = vmul.f32 %v6340, 0.6931472
        %v6342 = vmul.f32 -0.5, %v5475
        %v6343 = vadd.f32 %v6342, 1.0
        %v6344 = vmul.f32 %v6343, %v5475
        %v6345 = vand.u32 2147483647, %v5475
        %vm6346 = vcmp.lt.f32.partialorder %v6345, 0.0004427343
        %v6347 = vsel %vm6346, %v6344, %v6341
        %v6348 = vadd.f32 %v5477, 1.0
        %v6349 = vlog2.pop %v6348
        %v6350 = vmul.f32 %v6349, 0.6931472
        %v6351 = vmul.f32 -0.5, %v5477
        %v6352 = vadd.f32 %v6351, 1.0
        %v6353 = vmul.f32 %v6352, %v5477
        %v6354 = vand.u32 2147483647, %v5477
        %vm6355 = vcmp.lt.f32.partialorder %v6354, 0.0004427343
        %v6356 = vsel %vm6355, %v6353, %v6350
        %v6357 = vadd.f32 %v5479, 1.0
        %v6358 = vlog2.pop %v6357
        %v6359 = vmul.f32 %v6358, 0.6931472
        %v6360 = vmul.f32 -0.5, %v5479
        %v6361 = vadd.f32 %v6360, 1.0
        %v6362 = vmul.f32 %v6361, %v5479
        %v6363 = vand.u32 2147483647, %v5479
        %vm6364 = vcmp.lt.f32.partialorder %v6363, 0.0004427343
        %v6365 = vsel %vm6364, %v6362, %v6359
        %v6366 = vadd.f32 %v5481, 1.0
        %v6367 = vlog2.pop %v6366
        %v6368 = vmul.f32 %v6367, 0.6931472
        %v6369 = vmul.f32 -0.5, %v5481
        %v6370 = vadd.f32 %v6369, 1.0
        %v6371 = vmul.f32 %v6370, %v5481
        %v6372 = vand.u32 2147483647, %v5481
        %vm6373 = vcmp.lt.f32.partialorder %v6372, 0.0004427343
        %v6374 = vsel %vm6373, %v6371, %v6368
        %v6375 = vadd.f32 %v5483, 1.0
        %v6376 = vlog2.pop %v6375
        %v6377 = vmul.f32 %v6376, 0.6931472
        %v6378 = vmul.f32 -0.5, %v5483
        %v6379 = vadd.f32 %v6378, 1.0
        %v6380 = vmul.f32 %v6379, %v5483
        %v6381 = vand.u32 2147483647, %v5483
        %vm6382 = vcmp.lt.f32.partialorder %v6381, 0.0004427343
        %v6383 = vsel %vm6382, %v6380, %v6377
        %v6384 = vadd.f32 %v5485, 1.0
        %v6385 = vlog2.pop %v6384
        %v6386 = vmul.f32 %v6385, 0.6931472
        %v6387 = vmul.f32 -0.5, %v5485
        %v6388 = vadd.f32 %v6387, 1.0
        %v6389 = vmul.f32 %v6388, %v5485
        %v6390 = vand.u32 2147483647, %v5485
        %vm6391 = vcmp.lt.f32.partialorder %v6390, 0.0004427343
        %v6392 = vsel %vm6391, %v6389, %v6386
        %v6393 = vadd.f32 %v5487, 1.0
        %v6394 = vlog2.pop %v6393
        %v6395 = vmul.f32 %v6394, 0.6931472
        %v6396 = vmul.f32 -0.5, %v5487
        %v6397 = vadd.f32 %v6396, 1.0
        %v6398 = vmul.f32 %v6397, %v5487
        %v6399 = vand.u32 2147483647, %v5487
        %vm6400 = vcmp.lt.f32.partialorder %v6399, 0.0004427343
        %v6401 = vsel %vm6400, %v6398, %v6395
        %v6402 = vadd.f32 %v5489, 1.0
        %v6403 = vlog2.pop %v6402
        %v6404 = vmul.f32 %v6403, 0.6931472
        %v6405 = vmul.f32 -0.5, %v5489
        %v6406 = vadd.f32 %v6405, 1.0
        %v6407 = vmul.f32 %v6406, %v5489
        %v6408 = vand.u32 2147483647, %v5489
        %vm6409 = vcmp.lt.f32.partialorder %v6408, 0.0004427343
        %v6410 = vsel %vm6409, %v6407, %v6404
        %v6411 = vadd.f32 %v5491, 1.0
        %v6412 = vlog2.pop %v6411
        %v6413 = vmul.f32 %v6412, 0.6931472
        %v6414 = vmul.f32 -0.5, %v5491
        %v6415 = vadd.f32 %v6414, 1.0
        %v6416 = vmul.f32 %v6415, %v5491
        %v6417 = vand.u32 2147483647, %v5491
        %vm6418 = vcmp.lt.f32.partialorder %v6417, 0.0004427343
        %v6419 = vsel %vm6418, %v6416, %v6413
        %v6420 = vadd.f32 %v5493, 1.0
        %v6421 = vlog2.pop %v6420
        %v6422 = vmul.f32 %v6421, 0.6931472
        %v6423 = vmul.f32 -0.5, %v5493
        %v6424 = vadd.f32 %v6423, 1.0
        %v6425 = vmul.f32 %v6424, %v5493
        %v6426 = vand.u32 2147483647, %v5493
        %vm6427 = vcmp.lt.f32.partialorder %v6426, 0.0004427343
        %v6428 = vsel %vm6427, %v6425, %v6422
        %v6429 = vadd.f32 %v5495, 1.0
        %v6430 = vlog2.pop %v6429
        %v6431 = vmul.f32 %v6430, 0.6931472
        %v6432 = vmul.f32 -0.5, %v5495
        %v6433 = vadd.f32 %v6432, 1.0
        %v6434 = vmul.f32 %v6433, %v5495
        %v6435 = vand.u32 2147483647, %v5495
        %vm6436 = vcmp.lt.f32.partialorder %v6435, 0.0004427343
        %v6437 = vsel %vm6436, %v6434, %v6431
        %v6438 = vadd.f32 %v5497, 1.0
        %v6439 = vlog2.pop %v6438
        %v6440 = vmul.f32 %v6439, 0.6931472
        %v6441 = vmul.f32 -0.5, %v5497
        %v6442 = vadd.f32 %v6441, 1.0
        %v6443 = vmul.f32 %v6442, %v5497
        %v6444 = vand.u32 2147483647, %v5497
        %vm6445 = vcmp.lt.f32.partialorder %v6444, 0.0004427343
        %v6446 = vsel %vm6445, %v6443, %v6440
        %v6447 = vadd.f32 %v5499, 1.0
        %v6448 = vlog2.pop %v6447
        %v6449 = vmul.f32 %v6448, 0.6931472
        %v6450 = vmul.f32 -0.5, %v5499
        %v6451 = vadd.f32 %v6450, 1.0
        %v6452 = vmul.f32 %v6451, %v5499
        %v6453 = vand.u32 2147483647, %v5499
        %vm6454 = vcmp.lt.f32.partialorder %v6453, 0.0004427343
        %v6455 = vsel %vm6454, %v6452, %v6449
        %v6456 = vadd.f32 %v5501, 1.0
        %v6457 = vlog2.pop %v6456
        %v6458 = vmul.f32 %v6457, 0.6931472
        %v6459 = vmul.f32 -0.5, %v5501
        %v6460 = vadd.f32 %v6459, 1.0
        %v6461 = vmul.f32 %v6460, %v5501
        %v6462 = vand.u32 2147483647, %v5501
        %vm6463 = vcmp.lt.f32.partialorder %v6462, 0.0004427343
        %v6464 = vsel %vm6463, %v6461, %v6458
        %v6465 = vadd.f32 %v5503, 1.0
        %v6466 = vlog2.pop %v6465
        %v6467 = vmul.f32 %v6466, 0.6931472
        %v6468 = vmul.f32 -0.5, %v5503
        %v6469 = vadd.f32 %v6468, 1.0
        %v6470 = vmul.f32 %v6469, %v5503
        %v6471 = vand.u32 2147483647, %v5503
        %vm6472 = vcmp.lt.f32.partialorder %v6471, 0.0004427343
        %v6473 = vsel %vm6472, %v6470, %v6467
        %v6474 = vadd.f32 %v5505, 1.0
        %v6475 = vlog2.pop %v6474
        %v6476 = vmul.f32 %v6475, 0.6931472
        %v6477 = vmul.f32 -0.5, %v5505
        %v6478 = vadd.f32 %v6477, 1.0
        %v6479 = vmul.f32 %v6478, %v5505
        %v6480 = vand.u32 2147483647, %v5505
        %vm6481 = vcmp.lt.f32.partialorder %v6480, 0.0004427343
        %v6482 = vsel %vm6481, %v6479, %v6476
        %v6483 = vadd.f32 %v5507, 1.0
        %v6484 = vlog2.pop %v6483
        %v6485 = vmul.f32 %v6484, 0.6931472
        %v6486 = vmul.f32 -0.5, %v5507
        %v6487 = vadd.f32 %v6486, 1.0
        %v6488 = vmul.f32 %v6487, %v5507
        %v6489 = vand.u32 2147483647, %v5507
        %vm6490 = vcmp.lt.f32.partialorder %v6489, 0.0004427343
        %v6491 = vsel %vm6490, %v6488, %v6485
        %v6492 = vadd.f32 %v5509, 1.0
        %v6493 = vlog2.pop %v6492
        %v6494 = vmul.f32 %v6493, 0.6931472
        %v6495 = vmul.f32 -0.5, %v5509
        %v6496 = vadd.f32 %v6495, 1.0
        %v6497 = vmul.f32 %v6496, %v5509
        %v6498 = vand.u32 2147483647, %v5509
        %vm6499 = vcmp.lt.f32.partialorder %v6498, 0.0004427343
        %v6500 = vsel %vm6499, %v6497, %v6494
        %v6501 = vadd.f32 %v5511, 1.0
        %v6502 = vlog2.pop %v6501
        %v6503 = vmul.f32 %v6502, 0.6931472
        %v6504 = vmul.f32 -0.5, %v5511
        %v6505 = vadd.f32 %v6504, 1.0
        %v6506 = vmul.f32 %v6505, %v5511
        %v6507 = vand.u32 2147483647, %v5511
        %vm6508 = vcmp.lt.f32.partialorder %v6507, 0.0004427343
        %v6509 = vsel %vm6508, %v6506, %v6503
        %v6510 = vadd.f32 %v5513, 1.0
        %v6511 = vlog2.pop %v6510
        %v6512 = vmul.f32 %v6511, 0.6931472
        %v6513 = vmul.f32 -0.5, %v5513
        %v6514 = vadd.f32 %v6513, 1.0
        %v6515 = vmul.f32 %v6514, %v5513
        %v6516 = vand.u32 2147483647, %v5513
        %vm6517 = vcmp.lt.f32.partialorder %v6516, 0.0004427343
        %v6518 = vsel %vm6517, %v6515, %v6512
        %v6519 = vadd.f32 %v5515, 1.0
        %v6520 = vlog2.pop %v6519
        %v6521 = vmul.f32 %v6520, 0.6931472
        %v6522 = vmul.f32 -0.5, %v5515
        %v6523 = vadd.f32 %v6522, 1.0
        %v6524 = vmul.f32 %v6523, %v5515
        %v6525 = vand.u32 2147483647, %v5515
        %vm6526 = vcmp.lt.f32.partialorder %v6525, 0.0004427343
        %v6527 = vsel %vm6526, %v6524, %v6521
        %v6528 = vadd.f32 %v5517, 1.0
        %v6529 = vlog2.pop %v6528
        %v6530 = vmul.f32 %v6529, 0.6931472
        %v6531 = vmul.f32 -0.5, %v5517
        %v6532 = vadd.f32 %v6531, 1.0
        %v6533 = vmul.f32 %v6532, %v5517
        %v6534 = vand.u32 2147483647, %v5517
        %vm6535 = vcmp.lt.f32.partialorder %v6534, 0.0004427343
        %v6536 = vsel %vm6535, %v6533, %v6530
        %v6537 = vadd.f32 %v5519, 1.0
        %v6538 = vlog2.pop %v6537
        %v6539 = vmul.f32 %v6538, 0.6931472
        %v6540 = vmul.f32 -0.5, %v5519
        %v6541 = vadd.f32 %v6540, 1.0
        %v6542 = vmul.f32 %v6541, %v5519
        %v6543 = vand.u32 2147483647, %v5519
        %vm6544 = vcmp.lt.f32.partialorder %v6543, 0.0004427343
        %v6545 = vsel %vm6544, %v6542, %v6539
        %v6546 = vadd.f32 %v5521, 1.0
        %v6547 = vlog2.pop %v6546
        %v6548 = vmul.f32 %v6547, 0.6931472
        %v6549 = vmul.f32 -0.5, %v5521
        %v6550 = vadd.f32 %v6549, 1.0
        %v6551 = vmul.f32 %v6550, %v5521
        %v6552 = vand.u32 2147483647, %v5521
        %vm6553 = vcmp.lt.f32.partialorder %v6552, 0.0004427343
        %v6554 = vsel %vm6553, %v6551, %v6548
        %v6555 = vadd.f32 %v5523, 1.0
        %v6556 = vlog2.pop %v6555
        %v6557 = vmul.f32 %v6556, 0.6931472
        %v6558 = vmul.f32 -0.5, %v5523
        %v6559 = vadd.f32 %v6558, 1.0
        %v6560 = vmul.f32 %v6559, %v5523
        %v6561 = vand.u32 2147483647, %v5523
        %vm6562 = vcmp.lt.f32.partialorder %v6561, 0.0004427343
        %v6563 = vsel %vm6562, %v6560, %v6557
        %v6564 = vadd.f32 %v5525, 1.0
        %v6565 = vlog2.pop %v6564
        %v6566 = vmul.f32 %v6565, 0.6931472
        %v6567 = vmul.f32 -0.5, %v5525
        %v6568 = vadd.f32 %v6567, 1.0
        %v6569 = vmul.f32 %v6568, %v5525
        %v6570 = vand.u32 2147483647, %v5525
        %vm6571 = vcmp.lt.f32.partialorder %v6570, 0.0004427343
        %v6572 = vsel %vm6571, %v6569, %v6566
        %v6573 = vadd.f32 %v5527, 1.0
        %v6574 = vlog2.pop %v6573
        %v6575 = vmul.f32 %v6574, 0.6931472
        %v6576 = vmul.f32 -0.5, %v5527
        %v6577 = vadd.f32 %v6576, 1.0
        %v6578 = vmul.f32 %v6577, %v5527
        %v6579 = vand.u32 2147483647, %v5527
        %vm6580 = vcmp.lt.f32.partialorder %v6579, 0.0004427343
        %v6581 = vsel %vm6580, %v6578, %v6575
        %v6582 = vadd.f32 %v5529, 1.0
        %v6583 = vlog2.pop %v6582
        %v6584 = vmul.f32 %v6583, 0.6931472
        %v6585 = vmul.f32 -0.5, %v5529
        %v6586 = vadd.f32 %v6585, 1.0
        %v6587 = vmul.f32 %v6586, %v5529
        %v6588 = vand.u32 2147483647, %v5529
        %vm6589 = vcmp.lt.f32.partialorder %v6588, 0.0004427343
        %v6590 = vsel %vm6589, %v6587, %v6584
        %v6591 = vadd.f32 %v5531, 1.0
        %v6592 = vlog2.pop %v6591
        %v6593 = vmul.f32 %v6592, 0.6931472
        %v6594 = vmul.f32 -0.5, %v5531
        %v6595 = vadd.f32 %v6594, 1.0
        %v6596 = vmul.f32 %v6595, %v5531
        %v6597 = vand.u32 2147483647, %v5531
        %vm6598 = vcmp.lt.f32.partialorder %v6597, 0.0004427343
        %v6599 = vsel %vm6598, %v6596, %v6593
        %v6600 = vadd.f32 %v5533, 1.0
        %v6601 = vlog2.pop %v6600
        %v6602 = vmul.f32 %v6601, 0.6931472
        %v6603 = vmul.f32 -0.5, %v5533
        %v6604 = vadd.f32 %v6603, 1.0
        %v6605 = vmul.f32 %v6604, %v5533
        %v6606 = vand.u32 2147483647, %v5533
        %vm6607 = vcmp.lt.f32.partialorder %v6606, 0.0004427343
        %v6608 = vsel %vm6607, %v6605, %v6602
        %v6609 = vadd.f32 %v5535, 1.0
        %v6610 = vlog2.pop %v6609
        %v6611 = vmul.f32 %v6610, 0.6931472
        %v6612 = vmul.f32 -0.5, %v5535
        %v6613 = vadd.f32 %v6612, 1.0
        %v6614 = vmul.f32 %v6613, %v5535
        %v6615 = vand.u32 2147483647, %v5535
        %vm6616 = vcmp.lt.f32.partialorder %v6615, 0.0004427343
        %v6617 = vsel %vm6616, %v6614, %v6611
        %v6618 = vadd.f32 %v5537, 1.0
        %v6619 = vlog2.pop %v6618
        %v6620 = vmul.f32 %v6619, 0.6931472
        %v6621 = vmul.f32 -0.5, %v5537
        %v6622 = vadd.f32 %v6621, 1.0
        %v6623 = vmul.f32 %v6622, %v5537
        %v6624 = vand.u32 2147483647, %v5537
        %vm6625 = vcmp.lt.f32.partialorder %v6624, 0.0004427343
        %v6626 = vsel %vm6625, %v6623, %v6620
        %v6627 = vadd.f32 %v5539, 1.0
        %v6628 = vlog2.pop %v6627
        %v6629 = vmul.f32 %v6628, 0.6931472
        %v6630 = vmul.f32 -0.5, %v5539
        %v6631 = vadd.f32 %v6630, 1.0
        %v6632 = vmul.f32 %v6631, %v5539
        %v6633 = vand.u32 2147483647, %v5539
        %vm6634 = vcmp.lt.f32.partialorder %v6633, 0.0004427343
        %v6635 = vsel %vm6634, %v6632, %v6629
        %v6636 = vadd.f32 %v5541, 1.0
        %v6637 = vlog2.pop %v6636
        %v6638 = vmul.f32 %v6637, 0.6931472
        %v6639 = vmul.f32 -0.5, %v5541
        %v6640 = vadd.f32 %v6639, 1.0
        %v6641 = vmul.f32 %v6640, %v5541
        %v6642 = vand.u32 2147483647, %v5541
        %vm6643 = vcmp.lt.f32.partialorder %v6642, 0.0004427343
        %v6644 = vsel %vm6643, %v6641, %v6638
        %v6645 = vadd.f32 %v5543, 1.0
        %v6646 = vlog2.pop %v6645
        %v6647 = vmul.f32 %v6646, 0.6931472
        %v6648 = vmul.f32 -0.5, %v5543
        %v6649 = vadd.f32 %v6648, 1.0
        %v6650 = vmul.f32 %v6649, %v5543
        %v6651 = vand.u32 2147483647, %v5543
        %vm6652 = vcmp.lt.f32.partialorder %v6651, 0.0004427343
        %v6653 = vsel %vm6652, %v6650, %v6647
        %v6654 = vadd.f32 %v5545, 1.0
        %v6655 = vlog2.pop %v6654
        %v6656 = vmul.f32 %v6655, 0.6931472
        %v6657 = vmul.f32 -0.5, %v5545
        %v6658 = vadd.f32 %v6657, 1.0
        %v6659 = vmul.f32 %v6658, %v5545
        %v6660 = vand.u32 2147483647, %v5545
        %vm6661 = vcmp.lt.f32.partialorder %v6660, 0.0004427343
        %v6662 = vsel %vm6661, %v6659, %v6656
        %v6663 = vadd.f32 %v5547, 1.0
        %v6664 = vlog2.pop %v6663
        %v6665 = vmul.f32 %v6664, 0.6931472
        %v6666 = vmul.f32 -0.5, %v5547
        %v6667 = vadd.f32 %v6666, 1.0
        %v6668 = vmul.f32 %v6667, %v5547
        %v6669 = vand.u32 2147483647, %v5547
        %vm6670 = vcmp.lt.f32.partialorder %v6669, 0.0004427343
        %v6671 = vsel %vm6670, %v6668, %v6665
        %v6672 = vadd.f32 %v5549, 1.0
        %v6673 = vlog2.pop %v6672
        %v6674 = vmul.f32 %v6673, 0.6931472
        %v6675 = vmul.f32 -0.5, %v5549
        %v6676 = vadd.f32 %v6675, 1.0
        %v6677 = vmul.f32 %v6676, %v5549
        %v6678 = vand.u32 2147483647, %v5549
        %vm6679 = vcmp.lt.f32.partialorder %v6678, 0.0004427343
        %v6680 = vsel %vm6679, %v6677, %v6674
        %v6681 = vadd.f32 %v5551, 1.0
        %v6682 = vlog2.pop %v6681
        %v6683 = vmul.f32 %v6682, 0.6931472
        %v6684 = vmul.f32 -0.5, %v5551
        %v6685 = vadd.f32 %v6684, 1.0
        %v6686 = vmul.f32 %v6685, %v5551
        %v6687 = vand.u32 2147483647, %v5551
        %vm6688 = vcmp.lt.f32.partialorder %v6687, 0.0004427343
        %v6689 = vsel %vm6688, %v6686, %v6683
        %v6690 = vadd.f32 %v5553, 1.0
        %v6691 = vlog2.pop %v6690
        %v6692 = vmul.f32 %v6691, 0.6931472
        %v6693 = vmul.f32 -0.5, %v5553
        %v6694 = vadd.f32 %v6693, 1.0
        %v6695 = vmul.f32 %v6694, %v5553
        %v6696 = vand.u32 2147483647, %v5553
        %vm6697 = vcmp.lt.f32.partialorder %v6696, 0.0004427343
        %v6698 = vsel %vm6697, %v6695, %v6692
        %v6699 = vadd.f32 %v5555, 1.0
        %v6700 = vlog2.pop %v6699
        %v6701 = vmul.f32 %v6700, 0.6931472
        %v6702 = vmul.f32 -0.5, %v5555
        %v6703 = vadd.f32 %v6702, 1.0
        %v6704 = vmul.f32 %v6703, %v5555
        %v6705 = vand.u32 2147483647, %v5555
        %vm6706 = vcmp.lt.f32.partialorder %v6705, 0.0004427343
        %v6707 = vsel %vm6706, %v6704, %v6701
        %v6708 = vadd.f32 %v4916, %v5564
        %v6709 = vadd.f32 %v4917, %v5573
        %v6710 = vadd.f32 %v4918, %v5582
        %v6711 = vadd.f32 %v4919, %v5591
        %v6712 = vadd.f32 %v4920, %v5600
        %v6713 = vadd.f32 %v4921, %v5609
        %v6714 = vadd.f32 %v4922, %v5618
        %v6715 = vadd.f32 %v4923, %v5627
        %v6716 = vadd.f32 %v4924, %v5636
        %v6717 = vadd.f32 %v4925, %v5645
        %v6718 = vadd.f32 %v4926, %v5654
        %v6719 = vadd.f32 %v4927, %v5663
        %v6720 = vadd.f32 %v4928, %v5672
        %v6721 = vadd.f32 %v4929, %v5681
        %v6722 = vadd.f32 %v4930, %v5690
        %v6723 = vadd.f32 %v4931, %v5699
        %v6724 = vadd.f32 %v4932, %v5708
        %v6725 = vadd.f32 %v4933, %v5717
        %v6726 = vadd.f32 %v4934, %v5726
        %v6727 = vadd.f32 %v4935, %v5735
        %v6728 = vadd.f32 %v4936, %v5744
        %v6729 = vadd.f32 %v4937, %v5753
        %v6730 = vadd.f32 %v4938, %v5762
        %v6731 = vadd.f32 %v4939, %v5771
        %v6732 = vadd.f32 %v4940, %v5780
        %v6733 = vadd.f32 %v4941, %v5789
        %v6734 = vadd.f32 %v4942, %v5798
        %v6735 = vadd.f32 %v4943, %v5807
        %v6736 = vadd.f32 %v4944, %v5816
        %v6737 = vadd.f32 %v4945, %v5825
        %v6738 = vadd.f32 %v4946, %v5834
        %v6739 = vadd.f32 %v4947, %v5843
        %v6740 = vadd.f32 %v4948, %v5852
        %v6741 = vadd.f32 %v4949, %v5861
        %v6742 = vadd.f32 %v4950, %v5870
        %v6743 = vadd.f32 %v4951, %v5879
        %v6744 = vadd.f32 %v4952, %v5888
        %v6745 = vadd.f32 %v4953, %v5897
        %v6746 = vadd.f32 %v4954, %v5906
        %v6747 = vadd.f32 %v4955, %v5915
        %v6748 = vadd.f32 %v4956, %v5924
        %v6749 = vadd.f32 %v4957, %v5933
        %v6750 = vadd.f32 %v4958, %v5942
        %v6751 = vadd.f32 %v4959, %v5951
        %v6752 = vadd.f32 %v4960, %v5960
        %v6753 = vadd.f32 %v4961, %v5969
        %v6754 = vadd.f32 %v4962, %v5978
        %v6755 = vadd.f32 %v4963, %v5987
        %v6756 = vadd.f32 %v4964, %v5996
        %v6757 = vadd.f32 %v4965, %v6005
        %v6758 = vadd.f32 %v4966, %v6014
        %v6759 = vadd.f32 %v4967, %v6023
        %v6760 = vadd.f32 %v4968, %v6032
        %v6761 = vadd.f32 %v4969, %v6041
        %v6762 = vadd.f32 %v4970, %v6050
        %v6763 = vadd.f32 %v4971, %v6059
        %v6764 = vadd.f32 %v4972, %v6068
        %v6765 = vadd.f32 %v4973, %v6077
        %v6766 = vadd.f32 %v4974, %v6086
        %v6767 = vadd.f32 %v4975, %v6095
        %v6768 = vadd.f32 %v4976, %v6104
        %v6769 = vadd.f32 %v4977, %v6113
        %v6770 = vadd.f32 %v4978, %v6122
        %v6771 = vadd.f32 %v4979, %v6131
        %v6772 = vadd.f32 %v4980, %v6140
        %v6773 = vadd.f32 %v4981, %v6149
        %v6774 = vadd.f32 %v4982, %v6158
        %v6775 = vadd.f32 %v4983, %v6167
        %v6776 = vadd.f32 %v4984, %v6176
        %v6777 = vadd.f32 %v4985, %v6185
        %v6778 = vadd.f32 %v4986, %v6194
        %v6779 = vadd.f32 %v4987, %v6203
        %v6780 = vadd.f32 %v4988, %v6212
        %v6781 = vadd.f32 %v4989, %v6221
        %v6782 = vadd.f32 %v4990, %v6230
        %v6783 = vadd.f32 %v4991, %v6239
        %v6784 = vadd.f32 %v4992, %v6248
        %v6785 = vadd.f32 %v4993, %v6257
        %v6786 = vadd.f32 %v4994, %v6266
        %v6787 = vadd.f32 %v4995, %v6275
        %v6788 = vadd.f32 %v4996, %v6284
        %v6789 = vadd.f32 %v4997, %v6293
        %v6790 = vadd.f32 %v4998, %v6302
        %v6791 = vadd.f32 %v4999, %v6311
        %v6792 = vadd.f32 %v5000, %v6320
        %v6793 = vadd.f32 %v5001, %v6329
        %v6794 = vadd.f32 %v5002, %v6338
        %v6795 = vadd.f32 %v5003, %v6347
        %v6796 = vadd.f32 %v5004, %v6356
        %v6797 = vadd.f32 %v5005, %v6365
        %v6798 = vadd.f32 %v5006, %v6374
        %v6799 = vadd.f32 %v5007, %v6383
        %v6800 = vadd.f32 %v5008, %v6392
        %v6801 = vadd.f32 %v5009, %v6401
        %v6802 = vadd.f32 %v5010, %v6410
        %v6803 = vadd.f32 %v5011, %v6419
        %v6804 = vadd.f32 %v5012, %v6428
        %v6805 = vadd.f32 %v5013, %v6437
        %v6806 = vadd.f32 %v5014, %v6446
        %v6807 = vadd.f32 %v5015, %v6455
        %v6808 = vadd.f32 %v5016, %v6464
        %v6809 = vadd.f32 %v5017, %v6473
        %v6810 = vadd.f32 %v5018, %v6482
        %v6811 = vadd.f32 %v5019, %v6491
        %v6812 = vadd.f32 %v5020, %v6500
        %v6813 = vadd.f32 %v5021, %v6509
        %v6814 = vadd.f32 %v5022, %v6518
        %v6815 = vadd.f32 %v5023, %v6527
        %v6816 = vadd.f32 %v5024, %v6536
        %v6817 = vadd.f32 %v5025, %v6545
        %v6818 = vadd.f32 %v5026, %v6554
        %v6819 = vadd.f32 %v5027, %v6563
        %v6820 = vadd.f32 %v5028, %v6572
        %v6821 = vadd.f32 %v5029, %v6581
        %v6822 = vadd.f32 %v5030, %v6590
        %v6823 = vadd.f32 %v5031, %v6599
        %v6824 = vadd.f32 %v5032, %v6608
        %v6825 = vadd.f32 %v5033, %v6617
        %v6826 = vadd.f32 %v5034, %v6626
        %v6827 = vadd.f32 %v5035, %v6635
        %v6828 = vadd.f32 %v5036, %v6644
        %v6829 = vadd.f32 %v5037, %v6653
        %v6830 = vadd.f32 %v5038, %v6662
        %v6831 = vadd.f32 %v5039, %v6671
        %v6832 = vadd.f32 %v5040, %v6680
        %v6833 = vadd.f32 %v5041, %v6689
        %v6834 = vadd.f32 %v5042, %v6698
        %v6835 = vadd.f32 %v5043, %v6707
        %v6836 = vsub.f32 %v4148, %v6708
        %v6837 = vsub.f32 %v4149, %v6709
        %v6838 = vsub.f32 %v4150, %v6710
        %v6839 = vsub.f32 %v4151, %v6711
        %v6840 = vsub.f32 %v4152, %v6712
        %v6841 = vsub.f32 %v4153, %v6713
        %v6842 = vsub.f32 %v4154, %v6714
        %v6843 = vsub.f32 %v4155, %v6715
        %v6844 = vsub.f32 %v4156, %v6716
        %v6845 = vsub.f32 %v4157, %v6717
        %v6846 = vsub.f32 %v4158, %v6718
        %v6847 = vsub.f32 %v4159, %v6719
        %v6848 = vsub.f32 %v4160, %v6720
        %v6849 = vsub.f32 %v4161, %v6721
        %v6850 = vsub.f32 %v4162, %v6722
        %v6851 = vsub.f32 %v4163, %v6723
        %v6852 = vsub.f32 %v4164, %v6724
        %v6853 = vsub.f32 %v4165, %v6725
        %v6854 = vsub.f32 %v4166, %v6726
        %v6855 = vsub.f32 %v4167, %v6727
        %v6856 = vsub.f32 %v4168, %v6728
        %v6857 = vsub.f32 %v4169, %v6729
        %v6858 = vsub.f32 %v4170, %v6730
        %v6859 = vsub.f32 %v4171, %v6731
        %v6860 = vsub.f32 %v4172, %v6732
        %v6861 = vsub.f32 %v4173, %v6733
        %v6862 = vsub.f32 %v4174, %v6734
        %v6863 = vsub.f32 %v4175, %v6735
        %v6864 = vsub.f32 %v4176, %v6736
        %v6865 = vsub.f32 %v4177, %v6737
        %v6866 = vsub.f32 %v4178, %v6738
        %v6867 = vsub.f32 %v4179, %v6739
        %v6868 = vsub.f32 %v4180, %v6740
        %v6869 = vsub.f32 %v4181, %v6741
        %v6870 = vsub.f32 %v4182, %v6742
        %v6871 = vsub.f32 %v4183, %v6743
        %v6872 = vsub.f32 %v4184, %v6744
        %v6873 = vsub.f32 %v4185, %v6745
        %v6874 = vsub.f32 %v4186, %v6746
        %v6875 = vsub.f32 %v4187, %v6747
        %v6876 = vsub.f32 %v4188, %v6748
        %v6877 = vsub.f32 %v4189, %v6749
        %v6878 = vsub.f32 %v4190, %v6750
        %v6879 = vsub.f32 %v4191, %v6751
        %v6880 = vsub.f32 %v4192, %v6752
        %v6881 = vsub.f32 %v4193, %v6753
        %v6882 = vsub.f32 %v4194, %v6754
        %v6883 = vsub.f32 %v4195, %v6755
        %v6884 = vsub.f32 %v4196, %v6756
        %v6885 = vsub.f32 %v4197, %v6757
        %v6886 = vsub.f32 %v4198, %v6758
        %v6887 = vsub.f32 %v4199, %v6759
        %v6888 = vsub.f32 %v4200, %v6760
        %v6889 = vsub.f32 %v4201, %v6761
        %v6890 = vsub.f32 %v4202, %v6762
        %v6891 = vsub.f32 %v4203, %v6763
        %v6892 = vsub.f32 %v4204, %v6764
        %v6893 = vsub.f32 %v4205, %v6765
        %v6894 = vsub.f32 %v4206, %v6766
        %v6895 = vsub.f32 %v4207, %v6767
        %v6896 = vsub.f32 %v4208, %v6768
        %v6897 = vsub.f32 %v4209, %v6769
        %v6898 = vsub.f32 %v4210, %v6770
        %v6899 = vsub.f32 %v4211, %v6771
        %v6900 = vsub.f32 %v4212, %v6772
        %v6901 = vsub.f32 %v4213, %v6773
        %v6902 = vsub.f32 %v4214, %v6774
        %v6903 = vsub.f32 %v4215, %v6775
        %v6904 = vsub.f32 %v4216, %v6776
        %v6905 = vsub.f32 %v4217, %v6777
        %v6906 = vsub.f32 %v4218, %v6778
        %v6907 = vsub.f32 %v4219, %v6779
        %v6908 = vsub.f32 %v4220, %v6780
        %v6909 = vsub.f32 %v4221, %v6781
        %v6910 = vsub.f32 %v4222, %v6782
        %v6911 = vsub.f32 %v4223, %v6783
        %v6912 = vsub.f32 %v4224, %v6784
        %v6913 = vsub.f32 %v4225, %v6785
        %v6914 = vsub.f32 %v4226, %v6786
        %v6915 = vsub.f32 %v4227, %v6787
        %v6916 = vsub.f32 %v4228, %v6788
        %v6917 = vsub.f32 %v4229, %v6789
        %v6918 = vsub.f32 %v4230, %v6790
        %v6919 = vsub.f32 %v4231, %v6791
        %v6920 = vsub.f32 %v4232, %v6792
        %v6921 = vsub.f32 %v4233, %v6793
        %v6922 = vsub.f32 %v4234, %v6794
        %v6923 = vsub.f32 %v4235, %v6795
        %v6924 = vsub.f32 %v4236, %v6796
        %v6925 = vsub.f32 %v4237, %v6797
        %v6926 = vsub.f32 %v4238, %v6798
        %v6927 = vsub.f32 %v4239, %v6799
        %v6928 = vsub.f32 %v4240, %v6800
        %v6929 = vsub.f32 %v4241, %v6801
        %v6930 = vsub.f32 %v4242, %v6802
        %v6931 = vsub.f32 %v4243, %v6803
        %v6932 = vsub.f32 %v4244, %v6804
        %v6933 = vsub.f32 %v4245, %v6805
        %v6934 = vsub.f32 %v4246, %v6806
        %v6935 = vsub.f32 %v4247, %v6807
        %v6936 = vsub.f32 %v4248, %v6808
        %v6937 = vsub.f32 %v4249, %v6809
        %v6938 = vsub.f32 %v4250, %v6810
        %v6939 = vsub.f32 %v4251, %v6811
        %v6940 = vsub.f32 %v4252, %v6812
        %v6941 = vsub.f32 %v4253, %v6813
        %v6942 = vsub.f32 %v4254, %v6814
        %v6943 = vsub.f32 %v4255, %v6815
        %v6944 = vsub.f32 %v4256, %v6816
        %v6945 = vsub.f32 %v4257, %v6817
        %v6946 = vsub.f32 %v4258, %v6818
        %v6947 = vsub.f32 %v4259, %v6819
        %v6948 = vsub.f32 %v4260, %v6820
        %v6949 = vsub.f32 %v4261, %v6821
        %v6950 = vsub.f32 %v4262, %v6822
        %v6951 = vsub.f32 %v4263, %v6823
        %v6952 = vsub.f32 %v4264, %v6824
        %v6953 = vsub.f32 %v4265, %v6825
        %v6954 = vsub.f32 %v4266, %v6826
        %v6955 = vsub.f32 %v4267, %v6827
        %v6956 = vsub.f32 %v4268, %v6828
        %v6957 = vsub.f32 %v4269, %v6829
        %v6958 = vsub.f32 %v4270, %v6830
        %v6959 = vsub.f32 %v4271, %v6831
        %v6960 = vsub.f32 %v4272, %v6832
        %v6961 = vsub.f32 %v4273, %v6833
        %v6962 = vsub.f32 %v4274, %v6834
        %v6963 = vsub.f32 %v4275, %v6835
        %v6964 = vadd.f32 %v6836, %v6837
        %v6965 = vadd.f32 %v6964, %v6838
        %v6966 = vadd.f32 %v6965, %v6839
        %v6967 = vadd.f32 %v6966, %v6840
        %v6968 = vadd.f32 %v6967, %v6841
        %v6969 = vadd.f32 %v6968, %v6842
        %v6970 = vadd.f32 %v6969, %v6843
        %v6971 = vadd.f32 %v6970, %v6844
        %v6972 = vadd.f32 %v6971, %v6845
        %v6973 = vadd.f32 %v6972, %v6846
        %v6974 = vadd.f32 %v6973, %v6847
        %v6975 = vadd.f32 %v6974, %v6848
        %v6976 = vadd.f32 %v6975, %v6849
        %v6977 = vadd.f32 %v6976, %v6850
        %v6978 = vadd.f32 %v6977, %v6851
        %v6979 = vadd.f32 %v6978, %v6852
        %v6980 = vadd.f32 %v6979, %v6853
        %v6981 = vadd.f32 %v6980, %v6854
        %v6982 = vadd.f32 %v6981, %v6855
        %v6983 = vadd.f32 %v6982, %v6856
        %v6984 = vadd.f32 %v6983, %v6857
        %v6985 = vadd.f32 %v6984, %v6858
        %v6986 = vadd.f32 %v6985, %v6859
        %v6987 = vadd.f32 %v6986, %v6860
        %v6988 = vadd.f32 %v6987, %v6861
        %v6989 = vadd.f32 %v6988, %v6862
        %v6990 = vadd.f32 %v6989, %v6863
        %v6991 = vadd.f32 %v6990, %v6864
        %v6992 = vadd.f32 %v6991, %v6865
        %v6993 = vadd.f32 %v6992, %v6866
        %v6994 = vadd.f32 %v6993, %v6867
        %v6995 = vadd.f32 %v6994, %v6868
        %v6996 = vadd.f32 %v6995, %v6869
        %v6997 = vadd.f32 %v6996, %v6870
        %v6998 = vadd.f32 %v6997, %v6871
        %v6999 = vadd.f32 %v6998, %v6872
        %v7000 = vadd.f32 %v6999, %v6873
        %v7001 = vadd.f32 %v7000, %v6874
        %v7002 = vadd.f32 %v7001, %v6875
        %v7003 = vadd.f32 %v7002, %v6876
        %v7004 = vadd.f32 %v7003, %v6877
        %v7005 = vadd.f32 %v7004, %v6878
        %v7006 = vadd.f32 %v7005, %v6879
        %v7007 = vadd.f32 %v7006, %v6880
        %v7008 = vadd.f32 %v7007, %v6881
        %v7009 = vadd.f32 %v7008, %v6882
        %v7010 = vadd.f32 %v7009, %v6883
        %v7011 = vadd.f32 %v7010, %v6884
        %v7012 = vadd.f32 %v7011, %v6885
        %v7013 = vadd.f32 %v7012, %v6886
        %v7014 = vadd.f32 %v7013, %v6887
        %v7015 = vadd.f32 %v7014, %v6888
        %v7016 = vadd.f32 %v7015, %v6889
        %v7017 = vadd.f32 %v7016, %v6890
        %v7018 = vadd.f32 %v7017, %v6891
        %v7019 = vadd.f32 %v7018, %v6892
        %v7020 = vadd.f32 %v7019, %v6893
        %v7021 = vadd.f32 %v7020, %v6894
        %v7022 = vadd.f32 %v7021, %v6895
        %v7023 = vadd.f32 %v7022, %v6896
        %v7024 = vadd.f32 %v7023, %v6897
        %v7025 = vadd.f32 %v7024, %v6898
        %v7026 = vadd.f32 %v7025, %v6899
        %v7027 = vadd.f32 %v7026, %v6900
        %v7028 = vadd.f32 %v7027, %v6901
        %v7029 = vadd.f32 %v7028, %v6902
        %v7030 = vadd.f32 %v7029, %v6903
        %v7031 = vadd.f32 %v7030, %v6904
        %v7032 = vadd.f32 %v7031, %v6905
        %v7033 = vadd.f32 %v7032, %v6906
        %v7034 = vadd.f32 %v7033, %v6907
        %v7035 = vadd.f32 %v7034, %v6908
        %v7036 = vadd.f32 %v7035, %v6909
        %v7037 = vadd.f32 %v7036, %v6910
        %v7038 = vadd.f32 %v7037, %v6911
        %v7039 = vadd.f32 %v7038, %v6912
        %v7040 = vadd.f32 %v7039, %v6913
        %v7041 = vadd.f32 %v7040, %v6914
        %v7042 = vadd.f32 %v7041, %v6915
        %v7043 = vadd.f32 %v7042, %v6916
        %v7044 = vadd.f32 %v7043, %v6917
        %v7045 = vadd.f32 %v7044, %v6918
        %v7046 = vadd.f32 %v7045, %v6919
        %v7047 = vadd.f32 %v7046, %v6920
        %v7048 = vadd.f32 %v7047, %v6921
        %v7049 = vadd.f32 %v7048, %v6922
        %v7050 = vadd.f32 %v7049, %v6923
        %v7051 = vadd.f32 %v7050, %v6924
        %v7052 = vadd.f32 %v7051, %v6925
        %v7053 = vadd.f32 %v7052, %v6926
        %v7054 = vadd.f32 %v7053, %v6927
        %v7055 = vadd.f32 %v7054, %v6928
        %v7056 = vadd.f32 %v7055, %v6929
        %v7057 = vadd.f32 %v7056, %v6930
        %v7058 = vadd.f32 %v7057, %v6931
        %v7059 = vadd.f32 %v7058, %v6932
        %v7060 = vadd.f32 %v7059, %v6933
        %v7061 = vadd.f32 %v7060, %v6934
        %v7062 = vadd.f32 %v7061, %v6935
        %v7063 = vadd.f32 %v7062, %v6936
        %v7064 = vadd.f32 %v7063, %v6937
        %v7065 = vadd.f32 %v7064, %v6938
        %v7066 = vadd.f32 %v7065, %v6939
        %v7067 = vadd.f32 %v7066, %v6940
        %v7068 = vadd.f32 %v7067, %v6941
        %v7069 = vadd.f32 %v7068, %v6942
        %v7070 = vadd.f32 %v7069, %v6943
        %v7071 = vadd.f32 %v7070, %v6944
        %v7072 = vadd.f32 %v7071, %v6945
        %v7073 = vadd.f32 %v7072, %v6946
        %v7074 = vadd.f32 %v7073, %v6947
        %v7075 = vadd.f32 %v7074, %v6948
        %v7076 = vadd.f32 %v7075, %v6949
        %v7077 = vadd.f32 %v7076, %v6950
        %v7078 = vadd.f32 %v7077, %v6951
        %v7079 = vadd.f32 %v7078, %v6952
        %v7080 = vadd.f32 %v7079, %v6953
        %v7081 = vadd.f32 %v7080, %v6954
        %v7082 = vadd.f32 %v7081, %v6955
        %v7083 = vadd.f32 %v7082, %v6956
        %v7084 = vadd.f32 %v7083, %v6957
        %v7085 = vadd.f32 %v7084, %v6958
        %v7086 = vadd.f32 %v7085, %v6959
        %v7087 = vadd.f32 %v7086, %v6960
        %v7088 = vadd.f32 %v7087, %v6961
        %v7089 = vadd.f32 %v7088, %v6962
        %v7090 = vadd.f32 %v7089, %v6963
        %7091 = vst [vmem:[%s296] sm:$0xff] %v7090
        %s7092 = sand.u32 %s114, 1
        %s7093 = scalar_lea.sflag [#allocation4], %s7092
        %s7094 = sand.u32 %s114, 1
        %s7095 = smul.addr %s7094, 8
        %s7096 = scalar_lea.vmem [#allocation8], %s7095
        %s7097 = sand.u32 %s140, 1
        %s7098 = scalar_lea.sflag [#allocation10], %s7097
        %s7099 = sand.u32 %s140, 1
        %s7100 = smul.addr %s7099, 1024
        %s7101 = scalar_lea.vmem [#allocation9], %s7100
        // Predicated region
        $region45: #{tpu_custom_call.1} parent=31 // pred_check
          %p7102 = pneg %p124
        $region46: #{tpu_custom_call.1} parent=31 // pred_check_branch
          %7104 = sbr.rel (%p7102) target = $region48
        $region47: #{tpu_custom_call.1} parent=31 // pred_region
          %s7106 = ssub.s32 128, 128
          %7107 = vsyncadd %s7093, %s7106
          %s7108 = smul.addr %s28, 128
          %s7109 = scalar_lea.hbm %s3, %s7108
          %s7111 = sshll.u32 %s7096, 4
          %s7112 = int_to_ptr.vmem [resolvable:$true] %s7111
          %7114 = dma.vmem_to_hbm [thread:$0]  %s7112, 128, %s7109, %s7093
        $region48: #{tpu_custom_call.1} parent=31 // pred_fallthru
          _
        // Predicated region
        $region49: #{tpu_custom_call.1} parent=31 // pred_check
          %p7115 = pneg %p150
        $region50: #{tpu_custom_call.1} parent=31 // pred_check_branch
          %7117 = sbr.rel (%p7115) target = $region52
        $region51: #{tpu_custom_call.1} parent=31 // pred_region
          %s7118 = smul.u32 128, %s28
          %s7120 = ssub.s32 16384, 16384
          %7121 = vsyncadd %s7098, %s7120
          %s7122 = smul.addr %s7118, 128
          %s7123 = scalar_lea.hbm %s4, %s7122
          %s7124 = sshll.u32 %s7101, 4
          %s7125 = int_to_ptr.vmem [resolvable:$true] %s7124
          %7130 = dma.vmem_to_hbm [thread:$0]  %s7125, 16384, %s7123, %s7098, 128, 128, 8
        $region52: #{tpu_custom_call.1} parent=31 // pred_fallthru
          _
      $region32: #{tpu_custom_call.1} parent=5 // pred_fallthru
        _
      %p7131 = scmp.le.s32.totalorder 2, %s23
      // Predicated region
      $region53: #{tpu_custom_call.1} parent=5 // pred_check
        %p7132 = pneg %p7131
      $region54: #{tpu_custom_call.1} parent=5 // pred_check_branch
        %7134 = sbr.rel (%p7132) target = $region56
      $region55: #{tpu_custom_call.1} parent=5 // pred_region
        %s7135 = ssub.s32 %s23, 2
        // Predicated region
        $region57: #{tpu_custom_call.1} parent=55 // pred_check
          %p7136 = pneg %p130
        $region58: #{tpu_custom_call.1} parent=55 // pred_check_branch
          %7138 = sbr.rel (%p7136) target = $region60
        $region59: #{tpu_custom_call.1} parent=55 // pred_region
          %s7139 = sand.u32 %s115, 1
          %s7140 = scalar_lea.sflag [#allocation4], %s7139
          %s7141 = sand.u32 %s115, 1
          %s7142 = smul.addr %s7141, 8
          %s7143 = scalar_lea.vmem [#allocation8], %s7142
          %7144 = dma.done %s7140, 128
        $region60: #{tpu_custom_call.1} parent=55 // pred_fallthru
          _
        // Predicated region
        $region61: #{tpu_custom_call.1} parent=55 // pred_check
          %p7145 = pneg %p156
        $region62: #{tpu_custom_call.1} parent=55 // pred_check_branch
          %7147 = sbr.rel (%p7145) target = $region64
        $region63: #{tpu_custom_call.1} parent=55 // pred_region
          %s7148 = sand.u32 %s141, 1
          %s7149 = scalar_lea.sflag [#allocation10], %s7148
          %s7150 = sand.u32 %s141, 1
          %s7151 = smul.addr %s7150, 1024
          %s7152 = scalar_lea.vmem [#allocation9], %s7151
          %7153 = dma.done %s7149, 16384
        $region64: #{tpu_custom_call.1} parent=55 // pred_fallthru
          _
      $region56: #{tpu_custom_call.1} parent=5 // pred_fallthru
        _
    $region6: #{tpu_custom_call.1} parent=1 // loop_footer
      %s27 = sadd.s32 1, %s23
    $region7: #{tpu_custom_call.1} parent=1 // loop_footer_branch
      %22 = sbr.rel target = $region3
    $region8: #{tpu_custom_call.1} parent=1 // loop_exit
      _
    %7154 = vsyncpa [#allocation3], 1
    %s7155 = scalar_lea.sflag [#allocation3], 1
    %7156 = vsyncpa %s7155, 1
    %7157 = vsyncpa [#allocation6], 1
    %s7158 = scalar_lea.sflag [#allocation6], 1
    %7159 = vsyncpa %s7158, 1
    %7160 = vsyncpa [#allocation4], 1
    %s7161 = scalar_lea.sflag [#allocation4], 1
    %7162 = vsyncpa %s7161, 1
    %7163 = vsyncpa [#allocation10], 1
    %s7164 = scalar_lea.sflag [#allocation10], 1
    %7165 = vsyncpa %s7164, 1

</llo_original>
